<compile_context>
chip_gen: v7x
topology: tpu7x:2x2x1
jax: 0.10.0
libtpu: 0.0.40
codegen_flags: <defaults>
</compile_context>

<pallas_src>
import jax
import jax.numpy as jnp
import numpy as np
from jax.experimental import pallas as pl
from jax.experimental.pallas import tpu as pltpu


def make_cube_pad_kernel(p, H, W):
    Hp, Wp = H + 2 * p, W + 2 * p
    TOP, BOT = slice(0, p), slice(H - p, H)
    LEF, RIG = slice(0, p), slice(W - p, W)
    ALL = slice(None)

    # ---- helpers: act only on the two *untiled* leading axes ---------------
    def _rev(a, axis):
        """Reverse a small untiled axis via static slices + concat."""
        n = a.shape[axis]
        if n == 1:
            return a
        parts = []
        for i in range(n - 1, -1, -1):
            sl = [slice(None)] * a.ndim
            sl[axis] = slice(i, i + 1)
            parts.append(a[tuple(sl)])
        return jnp.concatenate(parts, axis=axis)

    def _rev01(a):
        return _rev(_rev(a, 0), 1)

    def _tr01(a):
        """Swap the two leading untiled axes: (R, C, TS, L) -> (C, R, TS, L)."""
        r, c = a.shape[0], a.shape[1]
        rows = []
        for j in range(c):
            if r == 1:
                rows.append(a[0:1, j:j + 1])
            else:
                rows.append(jnp.concatenate(
                    [a[i:i + 1, j:j + 1] for i in range(r)], axis=1))
        return rows[0] if c == 1 else jnp.concatenate(rows, axis=0)

    def _cat_w(parts):
        return jnp.concatenate(parts, axis=1)

    def kernel(in_ref, out_ref):
        # in_ref:  (6, H,  W,  TS, L)      out_ref: (6, Hp, Wp, TS, L)
        ts, lane = in_ref.shape[3], in_ref.shape[4]
        zc = jnp.zeros((p, p, ts, lane), out_ref.dtype)

        def rd(f, rs=ALL, cs=ALL):
            return in_ref[f, rs, cs, :, :]

        def emit(f, top_band, left, right, bot_band):
            # 5 disjoint dense slab stores cover the whole padded face once.
            out_ref[f, 0:p, :, :, :] = top_band
            out_ref[f, p:Hp - p, 0:p, :, :] = left
            out_ref[f, p:Hp - p, p:Wp - p, :, :] = rd(f)
            out_ref[f, p:Hp - p, Wp - p:Wp, :, :] = right
            out_ref[f, Hp - p:Hp, :, :, :] = bot_band

        # ---- equatorial faces: corners stay zero (matches in-place torch) --
        emit(0,
             _cat_w([zc, rd(4, BOT), zc]),
             rd(3, cs=RIG), rd(1, cs=LEF),
             _cat_w([zc, rd(5, TOP), zc]))
        emit(1,
             _cat_w([zc, _rev(_tr01(rd(4, cs=RIG)), 1), zc]),
             rd(0, cs=RIG), rd(2, cs=LEF),
             _cat_w([zc, _rev(_tr01(rd(5, cs=RIG)), 0), zc]))
        emit(2,
             _cat_w([zc, _rev01(rd(4, TOP)), zc]),
             rd(1, cs=RIG), rd(3, cs=LEF),
             _cat_w([zc, _rev01(rd(5, BOT)), zc]))
        emit(3,
             _cat_w([zc, _rev(_tr01(rd(4, cs=LEF)), 0), zc]),
             rd(2, cs=RIG), rd(0, cs=LEF),
             _cat_w([zc, _rev(_tr01(rd(5, cs=LEF)), 1), zc]))

        # ---- polar faces: corners are NON-zero — they reproduce the values
        # the in-place torch code reads from already-written halos of faces
        # 0-3 (halo-of-halo).
        emit(4,
             _cat_w([_rev01(rd(3, TOP, LEF)), _rev01(rd(2, TOP)),
                     _rev01(rd(1, TOP, RIG))]),
             _rev(_tr01(rd(3, TOP)), 1), _rev(_tr01(rd(1, TOP)), 0),
             _cat_w([rd(3, TOP, RIG), rd(0, TOP), rd(1, TOP, LEF)]))
        emit(5,
             _cat_w([rd(3, BOT, RIG), rd(0, BOT), rd(1, BOT, LEF)]),
             _rev(_tr01(rd(3, BOT)), 0), _rev(_tr01(rd(1, BOT)), 1),
             _cat_w([_rev01(rd(3, BOT, LEF)), _rev01(rd(2, BOT)),
                     _rev01(rd(1, BOT, RIG))]))

    return kernel


def cube_sphere_padding_2d(x, pad):
    """x: (B, C, 6, H, W) -> (B, C, 6, H+2*pad, W+2*pad)."""
    B, C, F, H, W = x.shape
    assert F == 6 and H == W, "cube-sphere: 6 square faces required"
    p = int(pad)
    Hp, Wp = H + 2 * p, W + 2 * p
    N = B * C
    itemsize = jnp.dtype(x.dtype).itemsize

    # ---- lane-dense re-layout: N goes onto (sublane-chunk, lane) axes ------
    lane = 128 if N >= 128 else N          # dense 128 lanes when possible
    s_total = pl.cdiv(N, lane)
    ts = min(s_total, 8)                   # 8 sublanes -> full (8,128) tiles;
    #  2*(in+out) block bytes ~28.5 MiB for H=16 f32 -> fits under the raised
    #  scoped-VMEM limit on v5e/v6e/v7x.
    s_total_p = pl.cdiv(s_total, ts) * ts
    n2 = s_total_p * lane

    xt = jnp.transpose(x.reshape(N, 6, H, W), (1, 2, 3, 0))      # (6,H,W,N)
    if n2 != N:
        xt = jnp.pad(xt, ((0, 0), (0, 0), (0, 0), (0, n2 - N)))
    xt = xt.reshape(6, H, W, s_total_p, lane)

    grid = (s_total_p // ts,)
    bytes_accessed = 6 * (H * W + Hp * Wp) * n2 * itemsize

    out = pl.pallas_call(
        make_cube_pad_kernel(p, H, W),
        out_shape=jax.ShapeDtypeStruct((6, Hp, Wp, s_total_p, lane), x.dtype),
        grid=grid,
        in_specs=[pl.BlockSpec((6, H, W, ts, lane),
                               lambda s: (0, 0, 0, s, 0))],
        out_specs=pl.BlockSpec((6, Hp, Wp, ts, lane),
                               lambda s: (0, 0, 0, s, 0)),
        compiler_params=pltpu.CompilerParams(
            dimension_semantics=("parallel",),
            vmem_limit_bytes=48 * 1024 * 1024),
        cost_estimate=pl.CostEstimate(flops=0, transcendentals=0,
                                      bytes_accessed=int(bytes_accessed)),
    )(xt)

    out = out.reshape(6, Hp, Wp, n2)[..., :N]
    out = jnp.transpose(out, (3, 0, 1, 2)).reshape(B, C, 6, Hp, Wp)
    return out


def cube_sphere_padding_2d_ref(x, p):
    """NumPy reference mirroring the PyTorch in-place semantics exactly."""
    x = np.asarray(x)
    B, C, F, H, W = x.shape
    t = np.zeros((B, C, F, H + 2 * p, W + 2 * p), dtype=x.dtype)
    t[:, :, :, p:-p, p:-p] = x
    tr = lambda a: np.swapaxes(a, -1, -2)
    t[:, :, 0, :, -p:] = t[:, :, 1, :, p:2 * p]
    t[:, :, 0, :, :p] = t[:, :, 3, :, -2 * p:-p]
    t[:, :, 0, :p, :] = t[:, :, 4, -2 * p:-p, :]
    t[:, :, 0, -p:, :] = t[:, :, 5, p:2 * p, :]
    t[:, :, 1, :, -p:] = t[:, :, 2, :, p:2 * p]
    t[:, :, 1, :, :p] = t[:, :, 0, :, -2 * p:-p]
    t[:, :, 1, :p, :] = np.flip(tr(t[:, :, 4, :, -2 * p:-p]), -1)
    t[:, :, 1, -p:, :] = np.flip(tr(t[:, :, 5, :, -2 * p:-p]), -2)
    t[:, :, 2, :, -p:] = t[:, :, 3, :, p:2 * p]
    t[:, :, 2, :, :p] = t[:, :, 1, :, -2 * p:-p]
    t[:, :, 2, :p, :] = np.flip(t[:, :, 4, p:2 * p, :], (-1, -2))
    t[:, :, 2, -p:, :] = np.flip(t[:, :, 5, -2 * p:-p, :], (-1, -2))
    t[:, :, 3, :, -p:] = t[:, :, 0, :, p:2 * p]
    t[:, :, 3, :, :p] = t[:, :, 2, :, -2 * p:-p]
    t[:, :, 3, :p, :] = np.flip(tr(t[:, :, 4, :, p:2 * p]), -2)
    t[:, :, 3, -p:, :] = np.flip(tr(t[:, :, 5, :, p:2 * p]), -1)
    t[:, :, 4, :, -p:] = np.flip(tr(t[:, :, 1, p:2 * p, :]), -2)
    t[:, :, 4, :, :p] = np.flip(tr(t[:, :, 3, p:2 * p, :]), -1)
    t[:, :, 4, :p, :] = np.flip(t[:, :, 2, p:2 * p, :], (-1, -2))
    t[:, :, 4, -p:, :] = t[:, :, 0, p:2 * p, :]
    t[:, :, 5, :, -p:] = np.flip(tr(t[:, :, 1, -2 * p:-p, :]), -1)
    t[:, :, 5, :, :p] = np.flip(tr(t[:, :, 3, -2 * p:-p, :]), -2)
    t[:, :, 5, :p, :] = t[:, :, 0, -2 * p:-p, :]
    t[:, :, 5, -p:, :] = np.flip(t[:, :, 2, -2 * p:-p, :], (-1, -2))
    return t


if __name__ == "__main__":
    # CubeSpherePadding2D has no trainable parameters; only `padding` config.
    B, C, F, H, W = 2, 4, 6, 16, 16
    pad = 1
    key = jax.random.PRNGKey(0)
    x = jax.random.normal(key, (B, C, F, H, W), dtype=jnp.float32)

    fn = jax.jit(cube_sphere_padding_2d, static_argnums=1)
    out = jax.block_until_ready(fn(x, pad))

    ref = cube_sphere_padding_2d_ref(np.asarray(x), pad)
    assert out.shape == (B, C, F, H + 2 * pad, W + 2 * pad), out.shape
    np.testing.assert_allclose(np.asarray(out), ref, rtol=0, atol=0)
    print("KERNEL_OK")
</pallas_src>

<mosaic_0001>
module attributes {stable_mosaic.version = 11 : i64} {
  func.func @kernel(%arg0: i32, %arg1: memref<6x16x16x1x8xf32, #tpu.memory_space<vmem>>, %arg2: memref<6x18x18x1x8xf32, #tpu.memory_space<vmem>>) attributes {dimension_semantics = [#tpu.dimension_semantics<parallel>], iteration_bounds = array<i64: 1>, scalar_prefetch = 0 : i64, scratch_operands = 0 : i64, tpu.core_type = #tpu.core_type<tc>, window_params = [{transform_indices = @transform_0, window_bounds = array<i64: 6, 16, 16, 1, 8>}, {transform_indices = @transform_1, window_bounds = array<i64: 6, 18, 18, 1, 8>}]} {
    %cst = arith.constant 0.000000e+00 : f32
    %0 = vector.broadcast %cst : f32 to vector<1x1x1x8xf32>
    %c4 = arith.constant 4 : index
    %c15 = arith.constant 15 : index
    %c0 = arith.constant 0 : index
    %c0_0 = arith.constant 0 : index
    %c0_1 = arith.constant 0 : index
    %1 = vector.load %arg1[%c4, %c15, %c0, %c0_0, %c0_1] : memref<6x16x16x1x8xf32, #tpu.memory_space<vmem>>, vector<1x1x16x1x8xf32>
    %2 = vector.shape_cast %1 : vector<1x1x16x1x8xf32> to vector<1x16x1x8xf32>
    %3 = tpu.concatenate %0, %2, %0 in 1 : vector<1x1x1x8xf32>, vector<1x16x1x8xf32>, vector<1x1x1x8xf32> -> vector<1x18x1x8xf32>
    %c3 = arith.constant 3 : index
    %c0_2 = arith.constant 0 : index
    %c15_3 = arith.constant 15 : index
    %c0_4 = arith.constant 0 : index
    %c0_5 = arith.constant 0 : index
    %4 = vector.load %arg1[%c3, %c0_2, %c15_3, %c0_4, %c0_5] : memref<6x16x16x1x8xf32, #tpu.memory_space<vmem>>, vector<1x16x1x1x8xf32>
    %5 = vector.shape_cast %4 : vector<1x16x1x1x8xf32> to vector<16x1x1x8xf32>
    %c1 = arith.constant 1 : index
    %c0_6 = arith.constant 0 : index
    %c0_7 = arith.constant 0 : index
    %c0_8 = arith.constant 0 : index
    %c0_9 = arith.constant 0 : index
    %6 = vector.load %arg1[%c1, %c0_6, %c0_7, %c0_8, %c0_9] : memref<6x16x16x1x8xf32, #tpu.memory_space<vmem>>, vector<1x16x1x1x8xf32>
    %7 = vector.shape_cast %6 : vector<1x16x1x1x8xf32> to vector<16x1x1x8xf32>
    %c5 = arith.constant 5 : index
    %c0_10 = arith.constant 0 : index
    %c0_11 = arith.constant 0 : index
    %c0_12 = arith.constant 0 : index
    %c0_13 = arith.constant 0 : index
    %8 = vector.load %arg1[%c5, %c0_10, %c0_11, %c0_12, %c0_13] : memref<6x16x16x1x8xf32, #tpu.memory_space<vmem>>, vector<1x1x16x1x8xf32>
    %9 = vector.shape_cast %8 : vector<1x1x16x1x8xf32> to vector<1x16x1x8xf32>
    %10 = tpu.concatenate %0, %9, %0 in 1 : vector<1x1x1x8xf32>, vector<1x16x1x8xf32>, vector<1x1x1x8xf32> -> vector<1x18x1x8xf32>
    %c0_14 = arith.constant 0 : index
    %c0_15 = arith.constant 0 : index
    %c0_16 = arith.constant 0 : index
    %c0_17 = arith.constant 0 : index
    %c0_18 = arith.constant 0 : index
    %11 = vector.load %arg2[%c0_14, %c0_15, %c0_16, %c0_17, %c0_18] : memref<6x18x18x1x8xf32, #tpu.memory_space<vmem>>, vector<1x1x18x1x8xf32>
    %12 = vector.shape_cast %11 : vector<1x1x18x1x8xf32> to vector<1x18x1x8xf32>
    %13 = vector.shape_cast %3 : vector<1x18x1x8xf32> to vector<1x1x18x1x8xf32>
    tpu.vector_store %arg2[%c0_14, %c0_15, %c0_16, %c0_17, %c0_18], %13 {strides = array<i32>} : memref<6x18x18x1x8xf32, #tpu.memory_space<vmem>>, vector<1x1x18x1x8xf32>,
    %c0_19 = arith.constant 0 : index
    %c1_20 = arith.constant 1 : index
    %c0_21 = arith.constant 0 : index
    %c0_22 = arith.constant 0 : index
    %c0_23 = arith.constant 0 : index
    %14 = vector.load %arg2[%c0_19, %c1_20, %c0_21, %c0_22, %c0_23] : memref<6x18x18x1x8xf32, #tpu.memory_space<vmem>>, vector<1x16x1x1x8xf32>
    %15 = vector.shape_cast %14 : vector<1x16x1x1x8xf32> to vector<16x1x1x8xf32>
    %16 = vector.shape_cast %5 : vector<16x1x1x8xf32> to vector<1x16x1x1x8xf32>
    tpu.vector_store %arg2[%c0_19, %c1_20, %c0_21, %c0_22, %c0_23], %16 {strides = array<i32>} : memref<6x18x18x1x8xf32, #tpu.memory_space<vmem>>, vector<1x16x1x1x8xf32>,
    %c0_24 = arith.constant 0 : index
    %c0_25 = arith.constant 0 : index
    %c0_26 = arith.constant 0 : index
    %c0_27 = arith.constant 0 : index
    %c0_28 = arith.constant 0 : index
    %17 = vector.load %arg1[%c0_24, %c0_25, %c0_26, %c0_27, %c0_28] : memref<6x16x16x1x8xf32, #tpu.memory_space<vmem>>, vector<1x16x16x1x8xf32>
    %18 = vector.shape_cast %17 : vector<1x16x16x1x8xf32> to vector<16x16x1x8xf32>
    %c0_29 = arith.constant 0 : index
    %c1_30 = arith.constant 1 : index
    %c1_31 = arith.constant 1 : index
    %c0_32 = arith.constant 0 : index
    %c0_33 = arith.constant 0 : index
    %19 = vector.load %arg2[%c0_29, %c1_30, %c1_31, %c0_32, %c0_33] : memref<6x18x18x1x8xf32, #tpu.memory_space<vmem>>, vector<1x16x16x1x8xf32>
    %20 = vector.shape_cast %19 : vector<1x16x16x1x8xf32> to vector<16x16x1x8xf32>
    %21 = vector.shape_cast %18 : vector<16x16x1x8xf32> to vector<1x16x16x1x8xf32>
    tpu.vector_store %arg2[%c0_29, %c1_30, %c1_31, %c0_32, %c0_33], %21 {strides = array<i32>} : memref<6x18x18x1x8xf32, #tpu.memory_space<vmem>>, vector<1x16x16x1x8xf32>,
    %c0_34 = arith.constant 0 : index
    %c1_35 = arith.constant 1 : index
    %c17 = arith.constant 17 : index
    %c0_36 = arith.constant 0 : index
    %c0_37 = arith.constant 0 : index
    %22 = vector.load %arg2[%c0_34, %c1_35, %c17, %c0_36, %c0_37] : memref<6x18x18x1x8xf32, #tpu.memory_space<vmem>>, vector<1x16x1x1x8xf32>
    %23 = vector.shape_cast %22 : vector<1x16x1x1x8xf32> to vector<16x1x1x8xf32>
    %24 = vector.shape_cast %7 : vector<16x1x1x8xf32> to vector<1x16x1x1x8xf32>
    tpu.vector_store %arg2[%c0_34, %c1_35, %c17, %c0_36, %c0_37], %24 {strides = array<i32>} : memref<6x18x18x1x8xf32, #tpu.memory_space<vmem>>, vector<1x16x1x1x8xf32>,
    %c0_38 = arith.constant 0 : index
    %c17_39 = arith.constant 17 : index
    %c0_40 = arith.constant 0 : index
    %c0_41 = arith.constant 0 : index
    %c0_42 = arith.constant 0 : index
    %25 = vector.load %arg2[%c0_38, %c17_39, %c0_40, %c0_41, %c0_42] : memref<6x18x18x1x8xf32, #tpu.memory_space<vmem>>, vector<1x1x18x1x8xf32>
    %26 = vector.shape_cast %25 : vector<1x1x18x1x8xf32> to vector<1x18x1x8xf32>
    %27 = vector.shape_cast %10 : vector<1x18x1x8xf32> to vector<1x1x18x1x8xf32>
    tpu.vector_store %arg2[%c0_38, %c17_39, %c0_40, %c0_41, %c0_42], %27 {strides = array<i32>} : memref<6x18x18x1x8xf32, #tpu.memory_space<vmem>>, vector<1x1x18x1x8xf32>,
    %c4_43 = arith.constant 4 : index
    %c0_44 = arith.constant 0 : index
    %c15_45 = arith.constant 15 : index
    %c0_46 = arith.constant 0 : index
    %c0_47 = arith.constant 0 : index
    %28 = vector.load %arg1[%c4_43, %c0_44, %c15_45, %c0_46, %c0_47] : memref<6x16x16x1x8xf32, #tpu.memory_space<vmem>>, vector<1x16x1x1x8xf32>
    %29 = vector.shape_cast %28 : vector<1x16x1x1x8xf32> to vector<16x1x1x8xf32>
    %30 = vector.extract_strided_slice %29 {offsets = [0, 0, 0, 0], sizes = [1, 1, 1, 8], strides = [1, 1, 1, 1]} : vector<16x1x1x8xf32> to vector<1x1x1x8xf32>
    %31 = vector.extract_strided_slice %29 {offsets = [1, 0, 0, 0], sizes = [1, 1, 1, 8], strides = [1, 1, 1, 1]} : vector<16x1x1x8xf32> to vector<1x1x1x8xf32>
    %32 = vector.extract_strided_slice %29 {offsets = [2, 0, 0, 0], sizes = [1, 1, 1, 8], strides = [1, 1, 1, 1]} : vector<16x1x1x8xf32> to vector<1x1x1x8xf32>
    %33 = vector.extract_strided_slice %29 {offsets = [3, 0, 0, 0], sizes = [1, 1, 1, 8], strides = [1, 1, 1, 1]} : vector<16x1x1x8xf32> to vector<1x1x1x8xf32>
    %34 = vector.extract_strided_slice %29 {offsets = [4, 0, 0, 0], sizes = [1, 1, 1, 8], strides = [1, 1, 1, 1]} : vector<16x1x1x8xf32> to vector<1x1x1x8xf32>
    %35 = vector.extract_strided_slice %29 {offsets = [5, 0, 0, 0], sizes = [1, 1, 1, 8], strides = [1, 1, 1, 1]} : vector<16x1x1x8xf32> to vector<1x1x1x8xf32>
    %36 = vector.extract_strided_slice %29 {offsets = [6, 0, 0, 0], sizes = [1, 1, 1, 8], strides = [1, 1, 1, 1]} : vector<16x1x1x8xf32> to vector<1x1x1x8xf32>
    %37 = vector.extract_strided_slice %29 {offsets = [7, 0, 0, 0], sizes = [1, 1, 1, 8], strides = [1, 1, 1, 1]} : vector<16x1x1x8xf32> to vector<1x1x1x8xf32>
    %38 = vector.extract_strided_slice %29 {offsets = [8, 0, 0, 0], sizes = [1, 1, 1, 8], strides = [1, 1, 1, 1]} : vector<16x1x1x8xf32> to vector<1x1x1x8xf32>
    %39 = vector.extract_strided_slice %29 {offsets = [9, 0, 0, 0], sizes = [1, 1, 1, 8], strides = [1, 1, 1, 1]} : vector<16x1x1x8xf32> to vector<1x1x1x8xf32>
    %40 = vector.extract_strided_slice %29 {offsets = [10, 0, 0, 0], sizes = [1, 1, 1, 8], strides = [1, 1, 1, 1]} : vector<16x1x1x8xf32> to vector<1x1x1x8xf32>
    %41 = vector.extract_strided_slice %29 {offsets = [11, 0, 0, 0], sizes = [1, 1, 1, 8], strides = [1, 1, 1, 1]} : vector<16x1x1x8xf32> to vector<1x1x1x8xf32>
    %42 = vector.extract_strided_slice %29 {offsets = [12, 0, 0, 0], sizes = [1, 1, 1, 8], strides = [1, 1, 1, 1]} : vector<16x1x1x8xf32> to vector<1x1x1x8xf32>
    %43 = vector.extract_strided_slice %29 {offsets = [13, 0, 0, 0], sizes = [1, 1, 1, 8], strides = [1, 1, 1, 1]} : vector<16x1x1x8xf32> to vector<1x1x1x8xf32>
    %44 = vector.extract_strided_slice %29 {offsets = [14, 0, 0, 0], sizes = [1, 1, 1, 8], strides = [1, 1, 1, 1]} : vector<16x1x1x8xf32> to vector<1x1x1x8xf32>
    %45 = vector.extract_strided_slice %29 {offsets = [15, 0, 0, 0], sizes = [1, 1, 1, 8], strides = [1, 1, 1, 1]} : vector<16x1x1x8xf32> to vector<1x1x1x8xf32>
    %46 = tpu.concatenate %30, %31, %32, %33, %34, %35, %36, %37, %38, %39, %40, %41, %42, %43, %44, %45 in 1 : vector<1x1x1x8xf32>, vector<1x1x1x8xf32>, vector<1x1x1x8xf32>, vector<1x1x1x8xf32>, vector<1x1x1x8xf32>, vector<1x1x1x8xf32>, vector<1x1x1x8xf32>, vector<1x1x1x8xf32>, vector<1x1x1x8xf32>, vector<1x1x1x8xf32>, vector<1x1x1x8xf32>, vector<1x1x1x8xf32>, vector<1x1x1x8xf32>, vector<1x1x1x8xf32>, vector<1x1x1x8xf32>, vector<1x1x1x8xf32> -> vector<1x16x1x8xf32>
    %47 = vector.extract_strided_slice %46 {offsets = [0, 15, 0, 0], sizes = [1, 1, 1, 8], strides = [1, 1, 1, 1]} : vector<1x16x1x8xf32> to vector<1x1x1x8xf32>
    %48 = vector.extract_strided_slice %46 {offsets = [0, 14, 0, 0], sizes = [1, 1, 1, 8], strides = [1, 1, 1, 1]} : vector<1x16x1x8xf32> to vector<1x1x1x8xf32>
    %49 = vector.extract_strided_slice %46 {offsets = [0, 13, 0, 0], sizes = [1, 1, 1, 8], strides = [1, 1, 1, 1]} : vector<1x16x1x8xf32> to vector<1x1x1x8xf32>
    %50 = vector.extract_strided_slice %46 {offsets = [0, 12, 0, 0], sizes = [1, 1, 1, 8], strides = [1, 1, 1, 1]} : vector<1x16x1x8xf32> to vector<1x1x1x8xf32>
    %51 = vector.extract_strided_slice %46 {offsets = [0, 11, 0, 0], sizes = [1, 1, 1, 8], strides = [1, 1, 1, 1]} : vector<1x16x1x8xf32> to vector<1x1x1x8xf32>
    %52 = vector.extract_strided_slice %46 {offsets = [0, 10, 0, 0], sizes = [1, 1, 1, 8], strides = [1, 1, 1, 1]} : vector<1x16x1x8xf32> to vector<1x1x1x8xf32>
    %53 = vector.extract_strided_slice %46 {offsets = [0, 9, 0, 0], sizes = [1, 1, 1, 8], strides = [1, 1, 1, 1]} : vector<1x16x1x8xf32> to vector<1x1x1x8xf32>
    %54 = vector.extract_strided_slice %46 {offsets = [0, 8, 0, 0], sizes = [1, 1, 1, 8], strides = [1, 1, 1, 1]} : vector<1x16x1x8xf32> to vector<1x1x1x8xf32>
    %55 = vector.extract_strided_slice %46 {offsets = [0, 7, 0, 0], sizes = [1, 1, 1, 8], strides = [1, 1, 1, 1]} : vector<1x16x1x8xf32> to vector<1x1x1x8xf32>
    %56 = vector.extract_strided_slice %46 {offsets = [0, 6, 0, 0], sizes = [1, 1, 1, 8], strides = [1, 1, 1, 1]} : vector<1x16x1x8xf32> to vector<1x1x1x8xf32>
    %57 = vector.extract_strided_slice %46 {offsets = [0, 5, 0, 0], sizes = [1, 1, 1, 8], strides = [1, 1, 1, 1]} : vector<1x16x1x8xf32> to vector<1x1x1x8xf32>
    %58 = vector.extract_strided_slice %46 {offsets = [0, 4, 0, 0], sizes = [1, 1, 1, 8], strides = [1, 1, 1, 1]} : vector<1x16x1x8xf32> to vector<1x1x1x8xf32>
    %59 = vector.extract_strided_slice %46 {offsets = [0, 3, 0, 0], sizes = [1, 1, 1, 8], strides = [1, 1, 1, 1]} : vector<1x16x1x8xf32> to vector<1x1x1x8xf32>
    %60 = vector.extract_strided_slice %46 {offsets = [0, 2, 0, 0], sizes = [1, 1, 1, 8], strides = [1, 1, 1, 1]} : vector<1x16x1x8xf32> to vector<1x1x1x8xf32>
    %61 = vector.extract_strided_slice %46 {offsets = [0, 1, 0, 0], sizes = [1, 1, 1, 8], strides = [1, 1, 1, 1]} : vector<1x16x1x8xf32> to vector<1x1x1x8xf32>
    %62 = vector.extract_strided_slice %46 {offsets = [0, 0, 0, 0], sizes = [1, 1, 1, 8], strides = [1, 1, 1, 1]} : vector<1x16x1x8xf32> to vector<1x1x1x8xf32>
    %63 = tpu.concatenate %47, %48, %49, %50, %51, %52, %53, %54, %55, %56, %57, %58, %59, %60, %61, %62 in 1 : vector<1x1x1x8xf32>, vector<1x1x1x8xf32>, vector<1x1x1x8xf32>, vector<1x1x1x8xf32>, vector<1x1x1x8xf32>, vector<1x1x1x8xf32>, vector<1x1x1x8xf32>, vector<1x1x1x8xf32>, vector<1x1x1x8xf32>, vector<1x1x1x8xf32>, vector<1x1x1x8xf32>, vector<1x1x1x8xf32>, vector<1x1x1x8xf32>, vector<1x1x1x8xf32>, vector<1x1x1x8xf32>, vector<1x1x1x8xf32> -> vector<1x16x1x8xf32>
    %64 = tpu.concatenate %0, %63, %0 in 1 : vector<1x1x1x8xf32>, vector<1x16x1x8xf32>, vector<1x1x1x8xf32> -> vector<1x18x1x8xf32>
    %c0_48 = arith.constant 0 : index
    %c0_49 = arith.constant 0 : index
    %c15_50 = arith.constant 15 : index
    %c0_51 = arith.constant 0 : index
    %c0_52 = arith.constant 0 : index
    %65 = vector.load %arg1[%c0_48, %c0_49, %c15_50, %c0_51, %c0_52] : memref<6x16x16x1x8xf32, #tpu.memory_space<vmem>>, vector<1x16x1x1x8xf32>
    %66 = vector.shape_cast %65 : vector<1x16x1x1x8xf32> to vector<16x1x1x8xf32>
    %c2 = arith.constant 2 : index
    %c0_53 = arith.constant 0 : index
    %c0_54 = arith.constant 0 : index
    %c0_55 = arith.constant 0 : index
    %c0_56 = arith.constant 0 : index
    %67 = vector.load %arg1[%c2, %c0_53, %c0_54, %c0_55, %c0_56] : memref<6x16x16x1x8xf32, #tpu.memory_space<vmem>>, vector<1x16x1x1x8xf32>
    %68 = vector.shape_cast %67 : vector<1x16x1x1x8xf32> to vector<16x1x1x8xf32>
    %c5_57 = arith.constant 5 : index
    %c0_58 = arith.constant 0 : index
    %c15_59 = arith.constant 15 : index
    %c0_60 = arith.constant 0 : index
    %c0_61 = arith.constant 0 : index
    %69 = vector.load %arg1[%c5_57, %c0_58, %c15_59, %c0_60, %c0_61] : memref<6x16x16x1x8xf32, #tpu.memory_space<vmem>>, vector<1x16x1x1x8xf32>
    %70 = vector.shape_cast %69 : vector<1x16x1x1x8xf32> to vector<16x1x1x8xf32>
    %71 = vector.extract_strided_slice %70 {offsets = [0, 0, 0, 0], sizes = [1, 1, 1, 8], strides = [1, 1, 1, 1]} : vector<16x1x1x8xf32> to vector<1x1x1x8xf32>
    %72 = vector.extract_strided_slice %70 {offsets = [1, 0, 0, 0], sizes = [1, 1, 1, 8], strides = [1, 1, 1, 1]} : vector<16x1x1x8xf32> to vector<1x1x1x8xf32>
    %73 = vector.extract_strided_slice %70 {offsets = [2, 0, 0, 0], sizes = [1, 1, 1, 8], strides = [1, 1, 1, 1]} : vector<16x1x1x8xf32> to vector<1x1x1x8xf32>
    %74 = vector.extract_strided_slice %70 {offsets = [3, 0, 0, 0], sizes = [1, 1, 1, 8], strides = [1, 1, 1, 1]} : vector<16x1x1x8xf32> to vector<1x1x1x8xf32>
    %75 = vector.extract_strided_slice %70 {offsets = [4, 0, 0, 0], sizes = [1, 1, 1, 8], strides = [1, 1, 1, 1]} : vector<16x1x1x8xf32> to vector<1x1x1x8xf32>
    %76 = vector.extract_strided_slice %70 {offsets = [5, 0, 0, 0], sizes = [1, 1, 1, 8], strides = [1, 1, 1, 1]} : vector<16x1x1x8xf32> to vector<1x1x1x8xf32>
    %77 = vector.extract_strided_slice %70 {offsets = [6, 0, 0, 0], sizes = [1, 1, 1, 8], strides = [1, 1, 1, 1]} : vector<16x1x1x8xf32> to vector<1x1x1x8xf32>
    %78 = vector.extract_strided_slice %70 {offsets = [7, 0, 0, 0], sizes = [1, 1, 1, 8], strides = [1, 1, 1, 1]} : vector<16x1x1x8xf32> to vector<1x1x1x8xf32>
    %79 = vector.extract_strided_slice %70 {offsets = [8, 0, 0, 0], sizes = [1, 1, 1, 8], strides = [1, 1, 1, 1]} : vector<16x1x1x8xf32> to vector<1x1x1x8xf32>
    %80 = vector.extract_strided_slice %70 {offsets = [9, 0, 0, 0], sizes = [1, 1, 1, 8], strides = [1, 1, 1, 1]} : vector<16x1x1x8xf32> to vector<1x1x1x8xf32>
    %81 = vector.extract_strided_slice %70 {offsets = [10, 0, 0, 0], sizes = [1, 1, 1, 8], strides = [1, 1, 1, 1]} : vector<16x1x1x8xf32> to vector<1x1x1x8xf32>
    %82 = vector.extract_strided_slice %70 {offsets = [11, 0, 0, 0], sizes = [1, 1, 1, 8], strides = [1, 1, 1, 1]} : vector<16x1x1x8xf32> to vector<1x1x1x8xf32>
    %83 = vector.extract_strided_slice %70 {offsets = [12, 0, 0, 0], sizes = [1, 1, 1, 8], strides = [1, 1, 1, 1]} : vector<16x1x1x8xf32> to vector<1x1x1x8xf32>
    %84 = vector.extract_strided_slice %70 {offsets = [13, 0, 0, 0], sizes = [1, 1, 1, 8], strides = [1, 1, 1, 1]} : vector<16x1x1x8xf32> to vector<1x1x1x8xf32>
    %85 = vector.extract_strided_slice %70 {offsets = [14, 0, 0, 0], sizes = [1, 1, 1, 8], strides = [1, 1, 1, 1]} : vector<16x1x1x8xf32> to vector<1x1x1x8xf32>
    %86 = vector.extract_strided_slice %70 {offsets = [15, 0, 0, 0], sizes = [1, 1, 1, 8], strides = [1, 1, 1, 1]} : vector<16x1x1x8xf32> to vector<1x1x1x8xf32>
    %87 = tpu.concatenate %71, %72, %73, %74, %75, %76, %77, %78, %79, %80, %81, %82, %83, %84, %85, %86 in 1 : vector<1x1x1x8xf32>, vector<1x1x1x8xf32>, vector<1x1x1x8xf32>, vector<1x1x1x8xf32>, vector<1x1x1x8xf32>, vector<1x1x1x8xf32>, vector<1x1x1x8xf32>, vector<1x1x1x8xf32>, vector<1x1x1x8xf32>, vector<1x1x1x8xf32>, vector<1x1x1x8xf32>, vector<1x1x1x8xf32>, vector<1x1x1x8xf32>, vector<1x1x1x8xf32>, vector<1x1x1x8xf32>, vector<1x1x1x8xf32> -> vector<1x16x1x8xf32>
    %88 = tpu.concatenate %0, %87, %0 in 1 : vector<1x1x1x8xf32>, vector<1x16x1x8xf32>, vector<1x1x1x8xf32> -> vector<1x18x1x8xf32>
    %c1_62 = arith.constant 1 : index
    %c0_63 = arith.constant 0 : index
    %c0_64 = arith.constant 0 : index
    %c0_65 = arith.constant 0 : index
    %c0_66 = arith.constant 0 : index
    %89 = vector.load %arg2[%c1_62, %c0_63, %c0_64, %c0_65, %c0_66] : memref<6x18x18x1x8xf32, #tpu.memory_space<vmem>>, vector<1x1x18x1x8xf32>
    %90 = vector.shape_cast %89 : vector<1x1x18x1x8xf32> to vector<1x18x1x8xf32>
    %91 = vector.shape_cast %64 : vector<1x18x1x8xf32> to vector<1x1x18x1x8xf32>
    tpu.vector_store %arg2[%c1_62, %c0_63, %c0_64, %c0_65, %c0_66], %91 {strides = array<i32>} : memref<6x18x18x1x8xf32, #tpu.memory_space<vmem>>, vector<1x1x18x1x8xf32>,
    %c1_67 = arith.constant 1 : index
    %c1_68 = arith.constant 1 : index
    %c0_69 = arith.constant 0 : index
    %c0_70 = arith.constant 0 : index
    %c0_71 = arith.constant 0 : index
    %92 = vector.load %arg2[%c1_67, %c1_68, %c0_69, %c0_70, %c0_71] : memref<6x18x18x1x8xf32, #tpu.memory_space<vmem>>, vector<1x16x1x1x8xf32>
    %93 = vector.shape_cast %92 : vector<1x16x1x1x8xf32> to vector<16x1x1x8xf32>
    %94 = vector.shape_cast %66 : vector<16x1x1x8xf32> to vector<1x16x1x1x8xf32>
    tpu.vector_store %arg2[%c1_67, %c1_68, %c0_69, %c0_70, %c0_71], %94 {strides = array<i32>} : memref<6x18x18x1x8xf32, #tpu.memory_space<vmem>>, vector<1x16x1x1x8xf32>,
    %c1_72 = arith.constant 1 : index
    %c0_73 = arith.constant 0 : index
    %c0_74 = arith.constant 0 : index
    %c0_75 = arith.constant 0 : index
    %c0_76 = arith.constant 0 : index
    %95 = vector.load %arg1[%c1_72, %c0_73, %c0_74, %c0_75, %c0_76] : memref<6x16x16x1x8xf32, #tpu.memory_space<vmem>>, vector<1x16x16x1x8xf32>
    %96 = vector.shape_cast %95 : vector<1x16x16x1x8xf32> to vector<16x16x1x8xf32>
    %c1_77 = arith.constant 1 : index
    %c1_78 = arith.constant 1 : index
    %c1_79 = arith.constant 1 : index
    %c0_80 = arith.constant 0 : index
    %c0_81 = arith.constant 0 : index
    %97 = vector.load %arg2[%c1_77, %c1_78, %c1_79, %c0_80, %c0_81] : memref<6x18x18x1x8xf32, #tpu.memory_space<vmem>>, vector<1x16x16x1x8xf32>
    %98 = vector.shape_cast %97 : vector<1x16x16x1x8xf32> to vector<16x16x1x8xf32>
    %99 = vector.shape_cast %96 : vector<16x16x1x8xf32> to vector<1x16x16x1x8xf32>
    tpu.vector_store %arg2[%c1_77, %c1_78, %c1_79, %c0_80, %c0_81], %99 {strides = array<i32>} : memref<6x18x18x1x8xf32, #tpu.memory_space<vmem>>, vector<1x16x16x1x8xf32>,
    %c1_82 = arith.constant 1 : index
    %c1_83 = arith.constant 1 : index
    %c17_84 = arith.constant 17 : index
    %c0_85 = arith.constant 0 : index
    %c0_86 = arith.constant 0 : index
    %100 = vector.load %arg2[%c1_82, %c1_83, %c17_84, %c0_85, %c0_86] : memref<6x18x18x1x8xf32, #tpu.memory_space<vmem>>, vector<1x16x1x1x8xf32>
    %101 = vector.shape_cast %100 : vector<1x16x1x1x8xf32> to vector<16x1x1x8xf32>
    %102 = vector.shape_cast %68 : vector<16x1x1x8xf32> to vector<1x16x1x1x8xf32>
    tpu.vector_store %arg2[%c1_82, %c1_83, %c17_84, %c0_85, %c0_86], %102 {strides = array<i32>} : memref<6x18x18x1x8xf32, #tpu.memory_space<vmem>>, vector<1x16x1x1x8xf32>,
    %c1_87 = arith.constant 1 : index
    %c17_88 = arith.constant 17 : index
    %c0_89 = arith.constant 0 : index
    %c0_90 = arith.constant 0 : index
    %c0_91 = arith.constant 0 : index
    %103 = vector.load %arg2[%c1_87, %c17_88, %c0_89, %c0_90, %c0_91] : memref<6x18x18x1x8xf32, #tpu.memory_space<vmem>>, vector<1x1x18x1x8xf32>
    %104 = vector.shape_cast %103 : vector<1x1x18x1x8xf32> to vector<1x18x1x8xf32>
    %105 = vector.shape_cast %88 : vector<1x18x1x8xf32> to vector<1x1x18x1x8xf32>
    tpu.vector_store %arg2[%c1_87, %c17_88, %c0_89, %c0_90, %c0_91], %105 {strides = array<i32>} : memref<6x18x18x1x8xf32, #tpu.memory_space<vmem>>, vector<1x1x18x1x8xf32>,
    %c4_92 = arith.constant 4 : index
    %c0_93 = arith.constant 0 : index
    %c0_94 = arith.constant 0 : index
    %c0_95 = arith.constant 0 : index
    %c0_96 = arith.constant 0 : index
    %106 = vector.load %arg1[%c4_92, %c0_93, %c0_94, %c0_95, %c0_96] : memref<6x16x16x1x8xf32, #tpu.memory_space<vmem>>, vector<1x1x16x1x8xf32>
    %107 = vector.shape_cast %106 : vector<1x1x16x1x8xf32> to vector<1x16x1x8xf32>
    %108 = vector.extract_strided_slice %107 {offsets = [0, 15, 0, 0], sizes = [1, 1, 1, 8], strides = [1, 1, 1, 1]} : vector<1x16x1x8xf32> to vector<1x1x1x8xf32>
    %109 = vector.extract_strided_slice %107 {offsets = [0, 14, 0, 0], sizes = [1, 1, 1, 8], strides = [1, 1, 1, 1]} : vector<1x16x1x8xf32> to vector<1x1x1x8xf32>
    %110 = vector.extract_strided_slice %107 {offsets = [0, 13, 0, 0], sizes = [1, 1, 1, 8], strides = [1, 1, 1, 1]} : vector<1x16x1x8xf32> to vector<1x1x1x8xf32>
    %111 = vector.extract_strided_slice %107 {offsets = [0, 12, 0, 0], sizes = [1, 1, 1, 8], strides = [1, 1, 1, 1]} : vector<1x16x1x8xf32> to vector<1x1x1x8xf32>
    %112 = vector.extract_strided_slice %107 {offsets = [0, 11, 0, 0], sizes = [1, 1, 1, 8], strides = [1, 1, 1, 1]} : vector<1x16x1x8xf32> to vector<1x1x1x8xf32>
    %113 = vector.extract_strided_slice %107 {offsets = [0, 10, 0, 0], sizes = [1, 1, 1, 8], strides = [1, 1, 1, 1]} : vector<1x16x1x8xf32> to vector<1x1x1x8xf32>
    %114 = vector.extract_strided_slice %107 {offsets = [0, 9, 0, 0], sizes = [1, 1, 1, 8], strides = [1, 1, 1, 1]} : vector<1x16x1x8xf32> to vector<1x1x1x8xf32>
    %115 = vector.extract_strided_slice %107 {offsets = [0, 8, 0, 0], sizes = [1, 1, 1, 8], strides = [1, 1, 1, 1]} : vector<1x16x1x8xf32> to vector<1x1x1x8xf32>
    %116 = vector.extract_strided_slice %107 {offsets = [0, 7, 0, 0], sizes = [1, 1, 1, 8], strides = [1, 1, 1, 1]} : vector<1x16x1x8xf32> to vector<1x1x1x8xf32>
    %117 = vector.extract_strided_slice %107 {offsets = [0, 6, 0, 0], sizes = [1, 1, 1, 8], strides = [1, 1, 1, 1]} : vector<1x16x1x8xf32> to vector<1x1x1x8xf32>
    %118 = vector.extract_strided_slice %107 {offsets = [0, 5, 0, 0], sizes = [1, 1, 1, 8], strides = [1, 1, 1, 1]} : vector<1x16x1x8xf32> to vector<1x1x1x8xf32>
    %119 = vector.extract_strided_slice %107 {offsets = [0, 4, 0, 0], sizes = [1, 1, 1, 8], strides = [1, 1, 1, 1]} : vector<1x16x1x8xf32> to vector<1x1x1x8xf32>
    %120 = vector.extract_strided_slice %107 {offsets = [0, 3, 0, 0], sizes = [1, 1, 1, 8], strides = [1, 1, 1, 1]} : vector<1x16x1x8xf32> to vector<1x1x1x8xf32>
    %121 = vector.extract_strided_slice %107 {offsets = [0, 2, 0, 0], sizes = [1, 1, 1, 8], strides = [1, 1, 1, 1]} : vector<1x16x1x8xf32> to vector<1x1x1x8xf32>
    %122 = vector.extract_strided_slice %107 {offsets = [0, 1, 0, 0], sizes = [1, 1, 1, 8], strides = [1, 1, 1, 1]} : vector<1x16x1x8xf32> to vector<1x1x1x8xf32>
    %123 = vector.extract_strided_slice %107 {offsets = [0, 0, 0, 0], sizes = [1, 1, 1, 8], strides = [1, 1, 1, 1]} : vector<1x16x1x8xf32> to vector<1x1x1x8xf32>
    %124 = tpu.concatenate %108, %109, %110, %111, %112, %113, %114, %115, %116, %117, %118, %119, %120, %121, %122, %123 in 1 : vector<1x1x1x8xf32>, vector<1x1x1x8xf32>, vector<1x1x1x8xf32>, vector<1x1x1x8xf32>, vector<1x1x1x8xf32>, vector<1x1x1x8xf32>, vector<1x1x1x8xf32>, vector<1x1x1x8xf32>, vector<1x1x1x8xf32>, vector<1x1x1x8xf32>, vector<1x1x1x8xf32>, vector<1x1x1x8xf32>, vector<1x1x1x8xf32>, vector<1x1x1x8xf32>, vector<1x1x1x8xf32>, vector<1x1x1x8xf32> -> vector<1x16x1x8xf32>
    %125 = tpu.concatenate %0, %124, %0 in 1 : vector<1x1x1x8xf32>, vector<1x16x1x8xf32>, vector<1x1x1x8xf32> -> vector<1x18x1x8xf32>
    %c1_97 = arith.constant 1 : index
    %c0_98 = arith.constant 0 : index
    %c15_99 = arith.constant 15 : index
    %c0_100 = arith.constant 0 : index
    %c0_101 = arith.constant 0 : index
    %126 = vector.load %arg1[%c1_97, %c0_98, %c15_99, %c0_100, %c0_101] : memref<6x16x16x1x8xf32, #tpu.memory_space<vmem>>, vector<1x16x1x1x8xf32>
    %127 = vector.shape_cast %126 : vector<1x16x1x1x8xf32> to vector<16x1x1x8xf32>
    %c3_102 = arith.constant 3 : index
    %c0_103 = arith.constant 0 : index
    %c0_104 = arith.constant 0 : index
    %c0_105 = arith.constant 0 : index
    %c0_106 = arith.constant 0 : index
    %128 = vector.load %arg1[%c3_102, %c0_103, %c0_104, %c0_105, %c0_106] : memref<6x16x16x1x8xf32, #tpu.memory_space<vmem>>, vector<1x16x1x1x8xf32>
    %129 = vector.shape_cast %128 : vector<1x16x1x1x8xf32> to vector<16x1x1x8xf32>
    %c5_107 = arith.constant 5 : index
    %c15_108 = arith.constant 15 : index
    %c0_109 = arith.constant 0 : index
    %c0_110 = arith.constant 0 : index
    %c0_111 = arith.constant 0 : index
    %130 = vector.load %arg1[%c5_107, %c15_108, %c0_109, %c0_110, %c0_111] : memref<6x16x16x1x8xf32, #tpu.memory_space<vmem>>, vector<1x1x16x1x8xf32>
    %131 = vector.shape_cast %130 : vector<1x1x16x1x8xf32> to vector<1x16x1x8xf32>
    %132 = vector.extract_strided_slice %131 {offsets = [0, 15, 0, 0], sizes = [1, 1, 1, 8], strides = [1, 1, 1, 1]} : vector<1x16x1x8xf32> to vector<1x1x1x8xf32>
    %133 = vector.extract_strided_slice %131 {offsets = [0, 14, 0, 0], sizes = [1, 1, 1, 8], strides = [1, 1, 1, 1]} : vector<1x16x1x8xf32> to vector<1x1x1x8xf32>
    %134 = vector.extract_strided_slice %131 {offsets = [0, 13, 0, 0], sizes = [1, 1, 1, 8], strides = [1, 1, 1, 1]} : vector<1x16x1x8xf32> to vector<1x1x1x8xf32>
    %135 = vector.extract_strided_slice %131 {offsets = [0, 12, 0, 0], sizes = [1, 1, 1, 8], strides = [1, 1, 1, 1]} : vector<1x16x1x8xf32> to vector<1x1x1x8xf32>
    %136 = vector.extract_strided_slice %131 {offsets = [0, 11, 0, 0], sizes = [1, 1, 1, 8], strides = [1, 1, 1, 1]} : vector<1x16x1x8xf32> to vector<1x1x1x8xf32>
    %137 = vector.extract_strided_slice %131 {offsets = [0, 10, 0, 0], sizes = [1, 1, 1, 8], strides = [1, 1, 1, 1]} : vector<1x16x1x8xf32> to vector<1x1x1x8xf32>
    %138 = vector.extract_strided_slice %131 {offsets = [0, 9, 0, 0], sizes = [1, 1, 1, 8], strides = [1, 1, 1, 1]} : vector<1x16x1x8xf32> to vector<1x1x1x8xf32>
    %139 = vector.extract_strided_slice %131 {offsets = [0, 8, 0, 0], sizes = [1, 1, 1, 8], strides = [1, 1, 1, 1]} : vector<1x16x1x8xf32> to vector<1x1x1x8xf32>
    %140 = vector.extract_strided_slice %131 {offsets = [0, 7, 0, 0], sizes = [1, 1, 1, 8], strides = [1, 1, 1, 1]} : vector<1x16x1x8xf32> to vector<1x1x1x8xf32>
    %141 = vector.extract_strided_slice %131 {offsets = [0, 6, 0, 0], sizes = [1, 1, 1, 8], strides = [1, 1, 1, 1]} : vector<1x16x1x8xf32> to vector<1x1x1x8xf32>
    %142 = vector.extract_strided_slice %131 {offsets = [0, 5, 0, 0], sizes = [1, 1, 1, 8], strides = [1, 1, 1, 1]} : vector<1x16x1x8xf32> to vector<1x1x1x8xf32>
    %143 = vector.extract_strided_slice %131 {offsets = [0, 4, 0, 0], sizes = [1, 1, 1, 8], strides = [1, 1, 1, 1]} : vector<1x16x1x8xf32> to vector<1x1x1x8xf32>
    %144 = vector.extract_strided_slice %131 {offsets = [0, 3, 0, 0], sizes = [1, 1, 1, 8], strides = [1, 1, 1, 1]} : vector<1x16x1x8xf32> to vector<1x1x1x8xf32>
    %145 = vector.extract_strided_slice %131 {offsets = [0, 2, 0, 0], sizes = [1, 1, 1, 8], strides = [1, 1, 1, 1]} : vector<1x16x1x8xf32> to vector<1x1x1x8xf32>
    %146 = vector.extract_strided_slice %131 {offsets = [0, 1, 0, 0], sizes = [1, 1, 1, 8], strides = [1, 1, 1, 1]} : vector<1x16x1x8xf32> to vector<1x1x1x8xf32>
    %147 = vector.extract_strided_slice %131 {offsets = [0, 0, 0, 0], sizes = [1, 1, 1, 8], strides = [1, 1, 1, 1]} : vector<1x16x1x8xf32> to vector<1x1x1x8xf32>
    %148 = tpu.concatenate %132, %133, %134, %135, %136, %137, %138, %139, %140, %141, %142, %143, %144, %145, %146, %147 in 1 : vector<1x1x1x8xf32>, vector<1x1x1x8xf32>, vector<1x1x1x8xf32>, vector<1x1x1x8xf32>, vector<1x1x1x8xf32>, vector<1x1x1x8xf32>, vector<1x1x1x8xf32>, vector<1x1x1x8xf32>, vector<1x1x1x8xf32>, vector<1x1x1x8xf32>, vector<1x1x1x8xf32>, vector<1x1x1x8xf32>, vector<1x1x1x8xf32>, vector<1x1x1x8xf32>, vector<1x1x1x8xf32>, vector<1x1x1x8xf32> -> vector<1x16x1x8xf32>
    %149 = tpu.concatenate %0, %148, %0 in 1 : vector<1x1x1x8xf32>, vector<1x16x1x8xf32>, vector<1x1x1x8xf32> -> vector<1x18x1x8xf32>
    %c2_112 = arith.constant 2 : index
    %c0_113 = arith.constant 0 : index
    %c0_114 = arith.constant 0 : index
    %c0_115 = arith.constant 0 : index
    %c0_116 = arith.constant 0 : index
    %150 = vector.load %arg2[%c2_112, %c0_113, %c0_114, %c0_115, %c0_116] : memref<6x18x18x1x8xf32, #tpu.memory_space<vmem>>, vector<1x1x18x1x8xf32>
    %151 = vector.shape_cast %150 : vector<1x1x18x1x8xf32> to vector<1x18x1x8xf32>
    %152 = vector.shape_cast %125 : vector<1x18x1x8xf32> to vector<1x1x18x1x8xf32>
    tpu.vector_store %arg2[%c2_112, %c0_113, %c0_114, %c0_115, %c0_116], %152 {strides = array<i32>} : memref<6x18x18x1x8xf32, #tpu.memory_space<vmem>>, vector<1x1x18x1x8xf32>,
    %c2_117 = arith.constant 2 : index
    %c1_118 = arith.constant 1 : index
    %c0_119 = arith.constant 0 : index
    %c0_120 = arith.constant 0 : index
    %c0_121 = arith.constant 0 : index
    %153 = vector.load %arg2[%c2_117, %c1_118, %c0_119, %c0_120, %c0_121] : memref<6x18x18x1x8xf32, #tpu.memory_space<vmem>>, vector<1x16x1x1x8xf32>
    %154 = vector.shape_cast %153 : vector<1x16x1x1x8xf32> to vector<16x1x1x8xf32>
    %155 = vector.shape_cast %127 : vector<16x1x1x8xf32> to vector<1x16x1x1x8xf32>
    tpu.vector_store %arg2[%c2_117, %c1_118, %c0_119, %c0_120, %c0_121], %155 {strides = array<i32>} : memref<6x18x18x1x8xf32, #tpu.memory_space<vmem>>, vector<1x16x1x1x8xf32>,
    %c2_122 = arith.constant 2 : index
    %c0_123 = arith.constant 0 : index
    %c0_124 = arith.constant 0 : index
    %c0_125 = arith.constant 0 : index
    %c0_126 = arith.constant 0 : index
    %156 = vector.load %arg1[%c2_122, %c0_123, %c0_124, %c0_125, %c0_126] : memref<6x16x16x1x8xf32, #tpu.memory_space<vmem>>, vector<1x16x16x1x8xf32>
    %157 = vector.shape_cast %156 : vector<1x16x16x1x8xf32> to vector<16x16x1x8xf32>
    %c2_127 = arith.constant 2 : index
    %c1_128 = arith.constant 1 : index
    %c1_129 = arith.constant 1 : index
    %c0_130 = arith.constant 0 : index
    %c0_131 = arith.constant 0 : index
    %158 = vector.load %arg2[%c2_127, %c1_128, %c1_129, %c0_130, %c0_131] : memref<6x18x18x1x8xf32, #tpu.memory_space<vmem>>, vector<1x16x16x1x8xf32>
    %159 = vector.shape_cast %158 : vector<1x16x16x1x8xf32> to vector<16x16x1x8xf32>
    %160 = vector.shape_cast %157 : vector<16x16x1x8xf32> to vector<1x16x16x1x8xf32>
    tpu.vector_store %arg2[%c2_127, %c1_128, %c1_129, %c0_130, %c0_131], %160 {strides = array<i32>} : memref<6x18x18x1x8xf32, #tpu.memory_space<vmem>>, vector<1x16x16x1x8xf32>,
    %c2_132 = arith.constant 2 : index
    %c1_133 = arith.constant 1 : index
    %c17_134 = arith.constant 17 : index
    %c0_135 = arith.constant 0 : index
    %c0_136 = arith.constant 0 : index
    %161 = vector.load %arg2[%c2_132, %c1_133, %c17_134, %c0_135, %c0_136] : memref<6x18x18x1x8xf32, #tpu.memory_space<vmem>>, vector<1x16x1x1x8xf32>
    %162 = vector.shape_cast %161 : vector<1x16x1x1x8xf32> to vector<16x1x1x8xf32>
    %163 = vector.shape_cast %129 : vector<16x1x1x8xf32> to vector<1x16x1x1x8xf32>
    tpu.vector_store %arg2[%c2_132, %c1_133, %c17_134, %c0_135, %c0_136], %163 {strides = array<i32>} : memref<6x18x18x1x8xf32, #tpu.memory_space<vmem>>, vector<1x16x1x1x8xf32>,
    %c2_137 = arith.constant 2 : index
    %c17_138 = arith.constant 17 : index
    %c0_139 = arith.constant 0 : index
    %c0_140 = arith.constant 0 : index
    %c0_141 = arith.constant 0 : index
    %164 = vector.load %arg2[%c2_137, %c17_138, %c0_139, %c0_140, %c0_141] : memref<6x18x18x1x8xf32, #tpu.memory_space<vmem>>, vector<1x1x18x1x8xf32>
    %165 = vector.shape_cast %164 : vector<1x1x18x1x8xf32> to vector<1x18x1x8xf32>
    %166 = vector.shape_cast %149 : vector<1x18x1x8xf32> to vector<1x1x18x1x8xf32>
    tpu.vector_store %arg2[%c2_137, %c17_138, %c0_139, %c0_140, %c0_141], %166 {strides = array<i32>} : memref<6x18x18x1x8xf32, #tpu.memory_space<vmem>>, vector<1x1x18x1x8xf32>,
    %c4_142 = arith.constant 4 : index
    %c0_143 = arith.constant 0 : index
    %c0_144 = arith.constant 0 : index
    %c0_145 = arith.constant 0 : index
    %c0_146 = arith.constant 0 : index
    %167 = vector.load %arg1[%c4_142, %c0_143, %c0_144, %c0_145, %c0_146] : memref<6x16x16x1x8xf32, #tpu.memory_space<vmem>>, vector<1x16x1x1x8xf32>
    %168 = vector.shape_cast %167 : vector<1x16x1x1x8xf32> to vector<16x1x1x8xf32>
    %169 = vector.extract_strided_slice %168 {offsets = [0, 0, 0, 0], sizes = [1, 1, 1, 8], strides = [1, 1, 1, 1]} : vector<16x1x1x8xf32> to vector<1x1x1x8xf32>
    %170 = vector.extract_strided_slice %168 {offsets = [1, 0, 0, 0], sizes = [1, 1, 1, 8], strides = [1, 1, 1, 1]} : vector<16x1x1x8xf32> to vector<1x1x1x8xf32>
    %171 = vector.extract_strided_slice %168 {offsets = [2, 0, 0, 0], sizes = [1, 1, 1, 8], strides = [1, 1, 1, 1]} : vector<16x1x1x8xf32> to vector<1x1x1x8xf32>
    %172 = vector.extract_strided_slice %168 {offsets = [3, 0, 0, 0], sizes = [1, 1, 1, 8], strides = [1, 1, 1, 1]} : vector<16x1x1x8xf32> to vector<1x1x1x8xf32>
    %173 = vector.extract_strided_slice %168 {offsets = [4, 0, 0, 0], sizes = [1, 1, 1, 8], strides = [1, 1, 1, 1]} : vector<16x1x1x8xf32> to vector<1x1x1x8xf32>
    %174 = vector.extract_strided_slice %168 {offsets = [5, 0, 0, 0], sizes = [1, 1, 1, 8], strides = [1, 1, 1, 1]} : vector<16x1x1x8xf32> to vector<1x1x1x8xf32>
    %175 = vector.extract_strided_slice %168 {offsets = [6, 0, 0, 0], sizes = [1, 1, 1, 8], strides = [1, 1, 1, 1]} : vector<16x1x1x8xf32> to vector<1x1x1x8xf32>
    %176 = vector.extract_strided_slice %168 {offsets = [7, 0, 0, 0], sizes = [1, 1, 1, 8], strides = [1, 1, 1, 1]} : vector<16x1x1x8xf32> to vector<1x1x1x8xf32>
    %177 = vector.extract_strided_slice %168 {offsets = [8, 0, 0, 0], sizes = [1, 1, 1, 8], strides = [1, 1, 1, 1]} : vector<16x1x1x8xf32> to vector<1x1x1x8xf32>
    %178 = vector.extract_strided_slice %168 {offsets = [9, 0, 0, 0], sizes = [1, 1, 1, 8], strides = [1, 1, 1, 1]} : vector<16x1x1x8xf32> to vector<1x1x1x8xf32>
    %179 = vector.extract_strided_slice %168 {offsets = [10, 0, 0, 0], sizes = [1, 1, 1, 8], strides = [1, 1, 1, 1]} : vector<16x1x1x8xf32> to vector<1x1x1x8xf32>
    %180 = vector.extract_strided_slice %168 {offsets = [11, 0, 0, 0], sizes = [1, 1, 1, 8], strides = [1, 1, 1, 1]} : vector<16x1x1x8xf32> to vector<1x1x1x8xf32>
    %181 = vector.extract_strided_slice %168 {offsets = [12, 0, 0, 0], sizes = [1, 1, 1, 8], strides = [1, 1, 1, 1]} : vector<16x1x1x8xf32> to vector<1x1x1x8xf32>
    %182 = vector.extract_strided_slice %168 {offsets = [13, 0, 0, 0], sizes = [1, 1, 1, 8], strides = [1, 1, 1, 1]} : vector<16x1x1x8xf32> to vector<1x1x1x8xf32>
    %183 = vector.extract_strided_slice %168 {offsets = [14, 0, 0, 0], sizes = [1, 1, 1, 8], strides = [1, 1, 1, 1]} : vector<16x1x1x8xf32> to vector<1x1x1x8xf32>
    %184 = vector.extract_strided_slice %168 {offsets = [15, 0, 0, 0], sizes = [1, 1, 1, 8], strides = [1, 1, 1, 1]} : vector<16x1x1x8xf32> to vector<1x1x1x8xf32>
    %185 = tpu.concatenate %169, %170, %171, %172, %173, %174, %175, %176, %177, %178, %179, %180, %181, %182, %183, %184 in 1 : vector<1x1x1x8xf32>, vector<1x1x1x8xf32>, vector<1x1x1x8xf32>, vector<1x1x1x8xf32>, vector<1x1x1x8xf32>, vector<1x1x1x8xf32>, vector<1x1x1x8xf32>, vector<1x1x1x8xf32>, vector<1x1x1x8xf32>, vector<1x1x1x8xf32>, vector<1x1x1x8xf32>, vector<1x1x1x8xf32>, vector<1x1x1x8xf32>, vector<1x1x1x8xf32>, vector<1x1x1x8xf32>, vector<1x1x1x8xf32> -> vector<1x16x1x8xf32>
    %186 = tpu.concatenate %0, %185, %0 in 1 : vector<1x1x1x8xf32>, vector<1x16x1x8xf32>, vector<1x1x1x8xf32> -> vector<1x18x1x8xf32>
    %c2_147 = arith.constant 2 : index
    %c0_148 = arith.constant 0 : index
    %c15_149 = arith.constant 15 : index
    %c0_150 = arith.constant 0 : index
    %c0_151 = arith.constant 0 : index
    %187 = vector.load %arg1[%c2_147, %c0_148, %c15_149, %c0_150, %c0_151] : memref<6x16x16x1x8xf32, #tpu.memory_space<vmem>>, vector<1x16x1x1x8xf32>
    %188 = vector.shape_cast %187 : vector<1x16x1x1x8xf32> to vector<16x1x1x8xf32>
    %c0_152 = arith.constant 0 : index
    %c0_153 = arith.constant 0 : index
    %c0_154 = arith.constant 0 : index
    %c0_155 = arith.constant 0 : index
    %c0_156 = arith.constant 0 : index
    %189 = vector.load %arg1[%c0_152, %c0_153, %c0_154, %c0_155, %c0_156] : memref<6x16x16x1x8xf32, #tpu.memory_space<vmem>>, vector<1x16x1x1x8xf32>
    %190 = vector.shape_cast %189 : vector<1x16x1x1x8xf32> to vector<16x1x1x8xf32>
    %c5_157 = arith.constant 5 : index
    %c0_158 = arith.constant 0 : index
    %c0_159 = arith.constant 0 : index
    %c0_160 = arith.constant 0 : index
    %c0_161 = arith.constant 0 : index
    %191 = vector.load %arg1[%c5_157, %c0_158, %c0_159, %c0_160, %c0_161] : memref<6x16x16x1x8xf32, #tpu.memory_space<vmem>>, vector<1x16x1x1x8xf32>
    %192 = vector.shape_cast %191 : vector<1x16x1x1x8xf32> to vector<16x1x1x8xf32>
    %193 = vector.extract_strided_slice %192 {offsets = [0, 0, 0, 0], sizes = [1, 1, 1, 8], strides = [1, 1, 1, 1]} : vector<16x1x1x8xf32> to vector<1x1x1x8xf32>
    %194 = vector.extract_strided_slice %192 {offsets = [1, 0, 0, 0], sizes = [1, 1, 1, 8], strides = [1, 1, 1, 1]} : vector<16x1x1x8xf32> to vector<1x1x1x8xf32>
    %195 = vector.extract_strided_slice %192 {offsets = [2, 0, 0, 0], sizes = [1, 1, 1, 8], strides = [1, 1, 1, 1]} : vector<16x1x1x8xf32> to vector<1x1x1x8xf32>
    %196 = vector.extract_strided_slice %192 {offsets = [3, 0, 0, 0], sizes = [1, 1, 1, 8], strides = [1, 1, 1, 1]} : vector<16x1x1x8xf32> to vector<1x1x1x8xf32>
    %197 = vector.extract_strided_slice %192 {offsets = [4, 0, 0, 0], sizes = [1, 1, 1, 8], strides = [1, 1, 1, 1]} : vector<16x1x1x8xf32> to vector<1x1x1x8xf32>
    %198 = vector.extract_strided_slice %192 {offsets = [5, 0, 0, 0], sizes = [1, 1, 1, 8], strides = [1, 1, 1, 1]} : vector<16x1x1x8xf32> to vector<1x1x1x8xf32>
    %199 = vector.extract_strided_slice %192 {offsets = [6, 0, 0, 0], sizes = [1, 1, 1, 8], strides = [1, 1, 1, 1]} : vector<16x1x1x8xf32> to vector<1x1x1x8xf32>
    %200 = vector.extract_strided_slice %192 {offsets = [7, 0, 0, 0], sizes = [1, 1, 1, 8], strides = [1, 1, 1, 1]} : vector<16x1x1x8xf32> to vector<1x1x1x8xf32>
    %201 = vector.extract_strided_slice %192 {offsets = [8, 0, 0, 0], sizes = [1, 1, 1, 8], strides = [1, 1, 1, 1]} : vector<16x1x1x8xf32> to vector<1x1x1x8xf32>
    %202 = vector.extract_strided_slice %192 {offsets = [9, 0, 0, 0], sizes = [1, 1, 1, 8], strides = [1, 1, 1, 1]} : vector<16x1x1x8xf32> to vector<1x1x1x8xf32>
    %203 = vector.extract_strided_slice %192 {offsets = [10, 0, 0, 0], sizes = [1, 1, 1, 8], strides = [1, 1, 1, 1]} : vector<16x1x1x8xf32> to vector<1x1x1x8xf32>
    %204 = vector.extract_strided_slice %192 {offsets = [11, 0, 0, 0], sizes = [1, 1, 1, 8], strides = [1, 1, 1, 1]} : vector<16x1x1x8xf32> to vector<1x1x1x8xf32>
    %205 = vector.extract_strided_slice %192 {offsets = [12, 0, 0, 0], sizes = [1, 1, 1, 8], strides = [1, 1, 1, 1]} : vector<16x1x1x8xf32> to vector<1x1x1x8xf32>
    %206 = vector.extract_strided_slice %192 {offsets = [13, 0, 0, 0], sizes = [1, 1, 1, 8], strides = [1, 1, 1, 1]} : vector<16x1x1x8xf32> to vector<1x1x1x8xf32>
    %207 = vector.extract_strided_slice %192 {offsets = [14, 0, 0, 0], sizes = [1, 1, 1, 8], strides = [1, 1, 1, 1]} : vector<16x1x1x8xf32> to vector<1x1x1x8xf32>
    %208 = vector.extract_strided_slice %192 {offsets = [15, 0, 0, 0], sizes = [1, 1, 1, 8], strides = [1, 1, 1, 1]} : vector<16x1x1x8xf32> to vector<1x1x1x8xf32>
    %209 = tpu.concatenate %193, %194, %195, %196, %197, %198, %199, %200, %201, %202, %203, %204, %205, %206, %207, %208 in 1 : vector<1x1x1x8xf32>, vector<1x1x1x8xf32>, vector<1x1x1x8xf32>, vector<1x1x1x8xf32>, vector<1x1x1x8xf32>, vector<1x1x1x8xf32>, vector<1x1x1x8xf32>, vector<1x1x1x8xf32>, vector<1x1x1x8xf32>, vector<1x1x1x8xf32>, vector<1x1x1x8xf32>, vector<1x1x1x8xf32>, vector<1x1x1x8xf32>, vector<1x1x1x8xf32>, vector<1x1x1x8xf32>, vector<1x1x1x8xf32> -> vector<1x16x1x8xf32>
    %210 = vector.extract_strided_slice %209 {offsets = [0, 15, 0, 0], sizes = [1, 1, 1, 8], strides = [1, 1, 1, 1]} : vector<1x16x1x8xf32> to vector<1x1x1x8xf32>
    %211 = vector.extract_strided_slice %209 {offsets = [0, 14, 0, 0], sizes = [1, 1, 1, 8], strides = [1, 1, 1, 1]} : vector<1x16x1x8xf32> to vector<1x1x1x8xf32>
    %212 = vector.extract_strided_slice %209 {offsets = [0, 13, 0, 0], sizes = [1, 1, 1, 8], strides = [1, 1, 1, 1]} : vector<1x16x1x8xf32> to vector<1x1x1x8xf32>
    %213 = vector.extract_strided_slice %209 {offsets = [0, 12, 0, 0], sizes = [1, 1, 1, 8], strides = [1, 1, 1, 1]} : vector<1x16x1x8xf32> to vector<1x1x1x8xf32>
    %214 = vector.extract_strided_slice %209 {offsets = [0, 11, 0, 0], sizes = [1, 1, 1, 8], strides = [1, 1, 1, 1]} : vector<1x16x1x8xf32> to vector<1x1x1x8xf32>
    %215 = vector.extract_strided_slice %209 {offsets = [0, 10, 0, 0], sizes = [1, 1, 1, 8], strides = [1, 1, 1, 1]} : vector<1x16x1x8xf32> to vector<1x1x1x8xf32>
    %216 = vector.extract_strided_slice %209 {offsets = [0, 9, 0, 0], sizes = [1, 1, 1, 8], strides = [1, 1, 1, 1]} : vector<1x16x1x8xf32> to vector<1x1x1x8xf32>
    %217 = vector.extract_strided_slice %209 {offsets = [0, 8, 0, 0], sizes = [1, 1, 1, 8], strides = [1, 1, 1, 1]} : vector<1x16x1x8xf32> to vector<1x1x1x8xf32>
    %218 = vector.extract_strided_slice %209 {offsets = [0, 7, 0, 0], sizes = [1, 1, 1, 8], strides = [1, 1, 1, 1]} : vector<1x16x1x8xf32> to vector<1x1x1x8xf32>
    %219 = vector.extract_strided_slice %209 {offsets = [0, 6, 0, 0], sizes = [1, 1, 1, 8], strides = [1, 1, 1, 1]} : vector<1x16x1x8xf32> to vector<1x1x1x8xf32>
    %220 = vector.extract_strided_slice %209 {offsets = [0, 5, 0, 0], sizes = [1, 1, 1, 8], strides = [1, 1, 1, 1]} : vector<1x16x1x8xf32> to vector<1x1x1x8xf32>
    %221 = vector.extract_strided_slice %209 {offsets = [0, 4, 0, 0], sizes = [1, 1, 1, 8], strides = [1, 1, 1, 1]} : vector<1x16x1x8xf32> to vector<1x1x1x8xf32>
    %222 = vector.extract_strided_slice %209 {offsets = [0, 3, 0, 0], sizes = [1, 1, 1, 8], strides = [1, 1, 1, 1]} : vector<1x16x1x8xf32> to vector<1x1x1x8xf32>
    %223 = vector.extract_strided_slice %209 {offsets = [0, 2, 0, 0], sizes = [1, 1, 1, 8], strides = [1, 1, 1, 1]} : vector<1x16x1x8xf32> to vector<1x1x1x8xf32>
    %224 = vector.extract_strided_slice %209 {offsets = [0, 1, 0, 0], sizes = [1, 1, 1, 8], strides = [1, 1, 1, 1]} : vector<1x16x1x8xf32> to vector<1x1x1x8xf32>
    %225 = vector.extract_strided_slice %209 {offsets = [0, 0, 0, 0], sizes = [1, 1, 1, 8], strides = [1, 1, 1, 1]} : vector<1x16x1x8xf32> to vector<1x1x1x8xf32>
    %226 = tpu.concatenate %210, %211, %212, %213, %214, %215, %216, %217, %218, %219, %220, %221, %222, %223, %224, %225 in 1 : vector<1x1x1x8xf32>, vector<1x1x1x8xf32>, vector<1x1x1x8xf32>, vector<1x1x1x8xf32>, vector<1x1x1x8xf32>, vector<1x1x1x8xf32>, vector<1x1x1x8xf32>, vector<1x1x1x8xf32>, vector<1x1x1x8xf32>, vector<1x1x1x8xf32>, vector<1x1x1x8xf32>, vector<1x1x1x8xf32>, vector<1x1x1x8xf32>, vector<1x1x1x8xf32>, vector<1x1x1x8xf32>, vector<1x1x1x8xf32> -> vector<1x16x1x8xf32>
    %227 = tpu.concatenate %0, %226, %0 in 1 : vector<1x1x1x8xf32>, vector<1x16x1x8xf32>, vector<1x1x1x8xf32> -> vector<1x18x1x8xf32>
    %c3_162 = arith.constant 3 : index
    %c0_163 = arith.constant 0 : index
    %c0_164 = arith.constant 0 : index
    %c0_165 = arith.constant 0 : index
    %c0_166 = arith.constant 0 : index
    %228 = vector.load %arg2[%c3_162, %c0_163, %c0_164, %c0_165, %c0_166] : memref<6x18x18x1x8xf32, #tpu.memory_space<vmem>>, vector<1x1x18x1x8xf32>
    %229 = vector.shape_cast %228 : vector<1x1x18x1x8xf32> to vector<1x18x1x8xf32>
    %230 = vector.shape_cast %186 : vector<1x18x1x8xf32> to vector<1x1x18x1x8xf32>
    tpu.vector_store %arg2[%c3_162, %c0_163, %c0_164, %c0_165, %c0_166], %230 {strides = array<i32>} : memref<6x18x18x1x8xf32, #tpu.memory_space<vmem>>, vector<1x1x18x1x8xf32>,
    %c3_167 = arith.constant 3 : index
    %c1_168 = arith.constant 1 : index
    %c0_169 = arith.constant 0 : index
    %c0_170 = arith.constant 0 : index
    %c0_171 = arith.constant 0 : index
    %231 = vector.load %arg2[%c3_167, %c1_168, %c0_169, %c0_170, %c0_171] : memref<6x18x18x1x8xf32, #tpu.memory_space<vmem>>, vector<1x16x1x1x8xf32>
    %232 = vector.shape_cast %231 : vector<1x16x1x1x8xf32> to vector<16x1x1x8xf32>
    %233 = vector.shape_cast %188 : vector<16x1x1x8xf32> to vector<1x16x1x1x8xf32>
    tpu.vector_store %arg2[%c3_167, %c1_168, %c0_169, %c0_170, %c0_171], %233 {strides = array<i32>} : memref<6x18x18x1x8xf32, #tpu.memory_space<vmem>>, vector<1x16x1x1x8xf32>,
    %c3_172 = arith.constant 3 : index
    %c0_173 = arith.constant 0 : index
    %c0_174 = arith.constant 0 : index
    %c0_175 = arith.constant 0 : index
    %c0_176 = arith.constant 0 : index
    %234 = vector.load %arg1[%c3_172, %c0_173, %c0_174, %c0_175, %c0_176] : memref<6x16x16x1x8xf32, #tpu.memory_space<vmem>>, vector<1x16x16x1x8xf32>
    %235 = vector.shape_cast %234 : vector<1x16x16x1x8xf32> to vector<16x16x1x8xf32>
    %c3_177 = arith.constant 3 : index
    %c1_178 = arith.constant 1 : index
    %c1_179 = arith.constant 1 : index
    %c0_180 = arith.constant 0 : index
    %c0_181 = arith.constant 0 : index
    %236 = vector.load %arg2[%c3_177, %c1_178, %c1_179, %c0_180, %c0_181] : memref<6x18x18x1x8xf32, #tpu.memory_space<vmem>>, vector<1x16x16x1x8xf32>
    %237 = vector.shape_cast %236 : vector<1x16x16x1x8xf32> to vector<16x16x1x8xf32>
    %238 = vector.shape_cast %235 : vector<16x16x1x8xf32> to vector<1x16x16x1x8xf32>
    tpu.vector_store %arg2[%c3_177, %c1_178, %c1_179, %c0_180, %c0_181], %238 {strides = array<i32>} : memref<6x18x18x1x8xf32, #tpu.memory_space<vmem>>, vector<1x16x16x1x8xf32>,
    %c3_182 = arith.constant 3 : index
    %c1_183 = arith.constant 1 : index
    %c17_184 = arith.constant 17 : index
    %c0_185 = arith.constant 0 : index
    %c0_186 = arith.constant 0 : index
    %239 = vector.load %arg2[%c3_182, %c1_183, %c17_184, %c0_185, %c0_186] : memref<6x18x18x1x8xf32, #tpu.memory_space<vmem>>, vector<1x16x1x1x8xf32>
    %240 = vector.shape_cast %239 : vector<1x16x1x1x8xf32> to vector<16x1x1x8xf32>
    %241 = vector.shape_cast %190 : vector<16x1x1x8xf32> to vector<1x16x1x1x8xf32>
    tpu.vector_store %arg2[%c3_182, %c1_183, %c17_184, %c0_185, %c0_186], %241 {strides = array<i32>} : memref<6x18x18x1x8xf32, #tpu.memory_space<vmem>>, vector<1x16x1x1x8xf32>,
    %c3_187 = arith.constant 3 : index
    %c17_188 = arith.constant 17 : index
    %c0_189 = arith.constant 0 : index
    %c0_190 = arith.constant 0 : index
    %c0_191 = arith.constant 0 : index
    %242 = vector.load %arg2[%c3_187, %c17_188, %c0_189, %c0_190, %c0_191] : memref<6x18x18x1x8xf32, #tpu.memory_space<vmem>>, vector<1x1x18x1x8xf32>
    %243 = vector.shape_cast %242 : vector<1x1x18x1x8xf32> to vector<1x18x1x8xf32>
    %244 = vector.shape_cast %227 : vector<1x18x1x8xf32> to vector<1x1x18x1x8xf32>
    tpu.vector_store %arg2[%c3_187, %c17_188, %c0_189, %c0_190, %c0_191], %244 {strides = array<i32>} : memref<6x18x18x1x8xf32, #tpu.memory_space<vmem>>, vector<1x1x18x1x8xf32>,
    %c3_192 = arith.constant 3 : index
    %c0_193 = arith.constant 0 : index
    %c0_194 = arith.constant 0 : index
    %c0_195 = arith.constant 0 : index
    %c0_196 = arith.constant 0 : index
    %245 = vector.load %arg1[%c3_192, %c0_193, %c0_194, %c0_195, %c0_196] : memref<6x16x16x1x8xf32, #tpu.memory_space<vmem>>, vector<1x1x1x1x8xf32>
    %246 = vector.shape_cast %245 : vector<1x1x1x1x8xf32> to vector<1x1x1x8xf32>
    %c2_197 = arith.constant 2 : index
    %c0_198 = arith.constant 0 : index
    %c0_199 = arith.constant 0 : index
    %c0_200 = arith.constant 0 : index
    %c0_201 = arith.constant 0 : index
    %247 = vector.load %arg1[%c2_197, %c0_198, %c0_199, %c0_200, %c0_201] : memref<6x16x16x1x8xf32, #tpu.memory_space<vmem>>, vector<1x1x16x1x8xf32>
    %248 = vector.shape_cast %247 : vector<1x1x16x1x8xf32> to vector<1x16x1x8xf32>
    %249 = vector.extract_strided_slice %248 {offsets = [0, 15, 0, 0], sizes = [1, 1, 1, 8], strides = [1, 1, 1, 1]} : vector<1x16x1x8xf32> to vector<1x1x1x8xf32>
    %250 = vector.extract_strided_slice %248 {offsets = [0, 14, 0, 0], sizes = [1, 1, 1, 8], strides = [1, 1, 1, 1]} : vector<1x16x1x8xf32> to vector<1x1x1x8xf32>
    %251 = vector.extract_strided_slice %248 {offsets = [0, 13, 0, 0], sizes = [1, 1, 1, 8], strides = [1, 1, 1, 1]} : vector<1x16x1x8xf32> to vector<1x1x1x8xf32>
    %252 = vector.extract_strided_slice %248 {offsets = [0, 12, 0, 0], sizes = [1, 1, 1, 8], strides = [1, 1, 1, 1]} : vector<1x16x1x8xf32> to vector<1x1x1x8xf32>
    %253 = vector.extract_strided_slice %248 {offsets = [0, 11, 0, 0], sizes = [1, 1, 1, 8], strides = [1, 1, 1, 1]} : vector<1x16x1x8xf32> to vector<1x1x1x8xf32>
    %254 = vector.extract_strided_slice %248 {offsets = [0, 10, 0, 0], sizes = [1, 1, 1, 8], strides = [1, 1, 1, 1]} : vector<1x16x1x8xf32> to vector<1x1x1x8xf32>
    %255 = vector.extract_strided_slice %248 {offsets = [0, 9, 0, 0], sizes = [1, 1, 1, 8], strides = [1, 1, 1, 1]} : vector<1x16x1x8xf32> to vector<1x1x1x8xf32>
    %256 = vector.extract_strided_slice %248 {offsets = [0, 8, 0, 0], sizes = [1, 1, 1, 8], strides = [1, 1, 1, 1]} : vector<1x16x1x8xf32> to vector<1x1x1x8xf32>
    %257 = vector.extract_strided_slice %248 {offsets = [0, 7, 0, 0], sizes = [1, 1, 1, 8], strides = [1, 1, 1, 1]} : vector<1x16x1x8xf32> to vector<1x1x1x8xf32>
    %258 = vector.extract_strided_slice %248 {offsets = [0, 6, 0, 0], sizes = [1, 1, 1, 8], strides = [1, 1, 1, 1]} : vector<1x16x1x8xf32> to vector<1x1x1x8xf32>
    %259 = vector.extract_strided_slice %248 {offsets = [0, 5, 0, 0], sizes = [1, 1, 1, 8], strides = [1, 1, 1, 1]} : vector<1x16x1x8xf32> to vector<1x1x1x8xf32>
    %260 = vector.extract_strided_slice %248 {offsets = [0, 4, 0, 0], sizes = [1, 1, 1, 8], strides = [1, 1, 1, 1]} : vector<1x16x1x8xf32> to vector<1x1x1x8xf32>
    %261 = vector.extract_strided_slice %248 {offsets = [0, 3, 0, 0], sizes = [1, 1, 1, 8], strides = [1, 1, 1, 1]} : vector<1x16x1x8xf32> to vector<1x1x1x8xf32>
    %262 = vector.extract_strided_slice %248 {offsets = [0, 2, 0, 0], sizes = [1, 1, 1, 8], strides = [1, 1, 1, 1]} : vector<1x16x1x8xf32> to vector<1x1x1x8xf32>
    %263 = vector.extract_strided_slice %248 {offsets = [0, 1, 0, 0], sizes = [1, 1, 1, 8], strides = [1, 1, 1, 1]} : vector<1x16x1x8xf32> to vector<1x1x1x8xf32>
    %264 = vector.extract_strided_slice %248 {offsets = [0, 0, 0, 0], sizes = [1, 1, 1, 8], strides = [1, 1, 1, 1]} : vector<1x16x1x8xf32> to vector<1x1x1x8xf32>
    %265 = tpu.concatenate %249, %250, %251, %252, %253, %254, %255, %256, %257, %258, %259, %260, %261, %262, %263, %264 in 1 : vector<1x1x1x8xf32>, vector<1x1x1x8xf32>, vector<1x1x1x8xf32>, vector<1x1x1x8xf32>, vector<1x1x1x8xf32>, vector<1x1x1x8xf32>, vector<1x1x1x8xf32>, vector<1x1x1x8xf32>, vector<1x1x1x8xf32>, vector<1x1x1x8xf32>, vector<1x1x1x8xf32>, vector<1x1x1x8xf32>, vector<1x1x1x8xf32>, vector<1x1x1x8xf32>, vector<1x1x1x8xf32>, vector<1x1x1x8xf32> -> vector<1x16x1x8xf32>
    %c1_202 = arith.constant 1 : index
    %c0_203 = arith.constant 0 : index
    %c15_204 = arith.constant 15 : index
    %c0_205 = arith.constant 0 : index
    %c0_206 = arith.constant 0 : index
    %266 = vector.load %arg1[%c1_202, %c0_203, %c15_204, %c0_205, %c0_206] : memref<6x16x16x1x8xf32, #tpu.memory_space<vmem>>, vector<1x1x1x1x8xf32>
    %267 = vector.shape_cast %266 : vector<1x1x1x1x8xf32> to vector<1x1x1x8xf32>
    %268 = tpu.concatenate %246, %265, %267 in 1 : vector<1x1x1x8xf32>, vector<1x16x1x8xf32>, vector<1x1x1x8xf32> -> vector<1x18x1x8xf32>
    %c3_207 = arith.constant 3 : index
    %c0_208 = arith.constant 0 : index
    %c0_209 = arith.constant 0 : index
    %c0_210 = arith.constant 0 : index
    %c0_211 = arith.constant 0 : index
    %269 = vector.load %arg1[%c3_207, %c0_208, %c0_209, %c0_210, %c0_211] : memref<6x16x16x1x8xf32, #tpu.memory_space<vmem>>, vector<1x1x16x1x8xf32>
    %270 = vector.shape_cast %269 : vector<1x1x16x1x8xf32> to vector<1x16x1x8xf32>
    %271 = vector.extract_strided_slice %270 {offsets = [0, 0, 0, 0], sizes = [1, 1, 1, 8], strides = [1, 1, 1, 1]} : vector<1x16x1x8xf32> to vector<1x1x1x8xf32>
    %272 = vector.extract_strided_slice %270 {offsets = [0, 1, 0, 0], sizes = [1, 1, 1, 8], strides = [1, 1, 1, 1]} : vector<1x16x1x8xf32> to vector<1x1x1x8xf32>
    %273 = vector.extract_strided_slice %270 {offsets = [0, 2, 0, 0], sizes = [1, 1, 1, 8], strides = [1, 1, 1, 1]} : vector<1x16x1x8xf32> to vector<1x1x1x8xf32>
    %274 = vector.extract_strided_slice %270 {offsets = [0, 3, 0, 0], sizes = [1, 1, 1, 8], strides = [1, 1, 1, 1]} : vector<1x16x1x8xf32> to vector<1x1x1x8xf32>
    %275 = vector.extract_strided_slice %270 {offsets = [0, 4, 0, 0], sizes = [1, 1, 1, 8], strides = [1, 1, 1, 1]} : vector<1x16x1x8xf32> to vector<1x1x1x8xf32>
    %276 = vector.extract_strided_slice %270 {offsets = [0, 5, 0, 0], sizes = [1, 1, 1, 8], strides = [1, 1, 1, 1]} : vector<1x16x1x8xf32> to vector<1x1x1x8xf32>
    %277 = vector.extract_strided_slice %270 {offsets = [0, 6, 0, 0], sizes = [1, 1, 1, 8], strides = [1, 1, 1, 1]} : vector<1x16x1x8xf32> to vector<1x1x1x8xf32>
    %278 = vector.extract_strided_slice %270 {offsets = [0, 7, 0, 0], sizes = [1, 1, 1, 8], strides = [1, 1, 1, 1]} : vector<1x16x1x8xf32> to vector<1x1x1x8xf32>
    %279 = vector.extract_strided_slice %270 {offsets = [0, 8, 0, 0], sizes = [1, 1, 1, 8], strides = [1, 1, 1, 1]} : vector<1x16x1x8xf32> to vector<1x1x1x8xf32>
    %280 = vector.extract_strided_slice %270 {offsets = [0, 9, 0, 0], sizes = [1, 1, 1, 8], strides = [1, 1, 1, 1]} : vector<1x16x1x8xf32> to vector<1x1x1x8xf32>
    %281 = vector.extract_strided_slice %270 {offsets = [0, 10, 0, 0], sizes = [1, 1, 1, 8], strides = [1, 1, 1, 1]} : vector<1x16x1x8xf32> to vector<1x1x1x8xf32>
    %282 = vector.extract_strided_slice %270 {offsets = [0, 11, 0, 0], sizes = [1, 1, 1, 8], strides = [1, 1, 1, 1]} : vector<1x16x1x8xf32> to vector<1x1x1x8xf32>
    %283 = vector.extract_strided_slice %270 {offsets = [0, 12, 0, 0], sizes = [1, 1, 1, 8], strides = [1, 1, 1, 1]} : vector<1x16x1x8xf32> to vector<1x1x1x8xf32>
    %284 = vector.extract_strided_slice %270 {offsets = [0, 13, 0, 0], sizes = [1, 1, 1, 8], strides = [1, 1, 1, 1]} : vector<1x16x1x8xf32> to vector<1x1x1x8xf32>
    %285 = vector.extract_strided_slice %270 {offsets = [0, 14, 0, 0], sizes = [1, 1, 1, 8], strides = [1, 1, 1, 1]} : vector<1x16x1x8xf32> to vector<1x1x1x8xf32>
    %286 = vector.extract_strided_slice %270 {offsets = [0, 15, 0, 0], sizes = [1, 1, 1, 8], strides = [1, 1, 1, 1]} : vector<1x16x1x8xf32> to vector<1x1x1x8xf32>
    %287 = tpu.concatenate %271, %272, %273, %274, %275, %276, %277, %278, %279, %280, %281, %282, %283, %284, %285, %286 in 0 : vector<1x1x1x8xf32>, vector<1x1x1x8xf32>, vector<1x1x1x8xf32>, vector<1x1x1x8xf32>, vector<1x1x1x8xf32>, vector<1x1x1x8xf32>, vector<1x1x1x8xf32>, vector<1x1x1x8xf32>, vector<1x1x1x8xf32>, vector<1x1x1x8xf32>, vector<1x1x1x8xf32>, vector<1x1x1x8xf32>, vector<1x1x1x8xf32>, vector<1x1x1x8xf32>, vector<1x1x1x8xf32>, vector<1x1x1x8xf32> -> vector<16x1x1x8xf32>
    %c1_212 = arith.constant 1 : index
    %c0_213 = arith.constant 0 : index
    %c0_214 = arith.constant 0 : index
    %c0_215 = arith.constant 0 : index
    %c0_216 = arith.constant 0 : index
    %288 = vector.load %arg1[%c1_212, %c0_213, %c0_214, %c0_215, %c0_216] : memref<6x16x16x1x8xf32, #tpu.memory_space<vmem>>, vector<1x1x16x1x8xf32>
    %289 = vector.shape_cast %288 : vector<1x1x16x1x8xf32> to vector<1x16x1x8xf32>
    %290 = vector.extract_strided_slice %289 {offsets = [0, 0, 0, 0], sizes = [1, 1, 1, 8], strides = [1, 1, 1, 1]} : vector<1x16x1x8xf32> to vector<1x1x1x8xf32>
    %291 = vector.extract_strided_slice %289 {offsets = [0, 1, 0, 0], sizes = [1, 1, 1, 8], strides = [1, 1, 1, 1]} : vector<1x16x1x8xf32> to vector<1x1x1x8xf32>
    %292 = vector.extract_strided_slice %289 {offsets = [0, 2, 0, 0], sizes = [1, 1, 1, 8], strides = [1, 1, 1, 1]} : vector<1x16x1x8xf32> to vector<1x1x1x8xf32>
    %293 = vector.extract_strided_slice %289 {offsets = [0, 3, 0, 0], sizes = [1, 1, 1, 8], strides = [1, 1, 1, 1]} : vector<1x16x1x8xf32> to vector<1x1x1x8xf32>
    %294 = vector.extract_strided_slice %289 {offsets = [0, 4, 0, 0], sizes = [1, 1, 1, 8], strides = [1, 1, 1, 1]} : vector<1x16x1x8xf32> to vector<1x1x1x8xf32>
    %295 = vector.extract_strided_slice %289 {offsets = [0, 5, 0, 0], sizes = [1, 1, 1, 8], strides = [1, 1, 1, 1]} : vector<1x16x1x8xf32> to vector<1x1x1x8xf32>
    %296 = vector.extract_strided_slice %289 {offsets = [0, 6, 0, 0], sizes = [1, 1, 1, 8], strides = [1, 1, 1, 1]} : vector<1x16x1x8xf32> to vector<1x1x1x8xf32>
    %297 = vector.extract_strided_slice %289 {offsets = [0, 7, 0, 0], sizes = [1, 1, 1, 8], strides = [1, 1, 1, 1]} : vector<1x16x1x8xf32> to vector<1x1x1x8xf32>
    %298 = vector.extract_strided_slice %289 {offsets = [0, 8, 0, 0], sizes = [1, 1, 1, 8], strides = [1, 1, 1, 1]} : vector<1x16x1x8xf32> to vector<1x1x1x8xf32>
    %299 = vector.extract_strided_slice %289 {offsets = [0, 9, 0, 0], sizes = [1, 1, 1, 8], strides = [1, 1, 1, 1]} : vector<1x16x1x8xf32> to vector<1x1x1x8xf32>
    %300 = vector.extract_strided_slice %289 {offsets = [0, 10, 0, 0], sizes = [1, 1, 1, 8], strides = [1, 1, 1, 1]} : vector<1x16x1x8xf32> to vector<1x1x1x8xf32>
    %301 = vector.extract_strided_slice %289 {offsets = [0, 11, 0, 0], sizes = [1, 1, 1, 8], strides = [1, 1, 1, 1]} : vector<1x16x1x8xf32> to vector<1x1x1x8xf32>
    %302 = vector.extract_strided_slice %289 {offsets = [0, 12, 0, 0], sizes = [1, 1, 1, 8], strides = [1, 1, 1, 1]} : vector<1x16x1x8xf32> to vector<1x1x1x8xf32>
    %303 = vector.extract_strided_slice %289 {offsets = [0, 13, 0, 0], sizes = [1, 1, 1, 8], strides = [1, 1, 1, 1]} : vector<1x16x1x8xf32> to vector<1x1x1x8xf32>
    %304 = vector.extract_strided_slice %289 {offsets = [0, 14, 0, 0], sizes = [1, 1, 1, 8], strides = [1, 1, 1, 1]} : vector<1x16x1x8xf32> to vector<1x1x1x8xf32>
    %305 = vector.extract_strided_slice %289 {offsets = [0, 15, 0, 0], sizes = [1, 1, 1, 8], strides = [1, 1, 1, 1]} : vector<1x16x1x8xf32> to vector<1x1x1x8xf32>
    %306 = tpu.concatenate %290, %291, %292, %293, %294, %295, %296, %297, %298, %299, %300, %301, %302, %303, %304, %305 in 0 : vector<1x1x1x8xf32>, vector<1x1x1x8xf32>, vector<1x1x1x8xf32>, vector<1x1x1x8xf32>, vector<1x1x1x8xf32>, vector<1x1x1x8xf32>, vector<1x1x1x8xf32>, vector<1x1x1x8xf32>, vector<1x1x1x8xf32>, vector<1x1x1x8xf32>, vector<1x1x1x8xf32>, vector<1x1x1x8xf32>, vector<1x1x1x8xf32>, vector<1x1x1x8xf32>, vector<1x1x1x8xf32>, vector<1x1x1x8xf32> -> vector<16x1x1x8xf32>
    %307 = vector.extract_strided_slice %306 {offsets = [15, 0, 0, 0], sizes = [1, 1, 1, 8], strides = [1, 1, 1, 1]} : vector<16x1x1x8xf32> to vector<1x1x1x8xf32>
    %308 = vector.extract_strided_slice %306 {offsets = [14, 0, 0, 0], sizes = [1, 1, 1, 8], strides = [1, 1, 1, 1]} : vector<16x1x1x8xf32> to vector<1x1x1x8xf32>
    %309 = vector.extract_strided_slice %306 {offsets = [13, 0, 0, 0], sizes = [1, 1, 1, 8], strides = [1, 1, 1, 1]} : vector<16x1x1x8xf32> to vector<1x1x1x8xf32>
    %310 = vector.extract_strided_slice %306 {offsets = [12, 0, 0, 0], sizes = [1, 1, 1, 8], strides = [1, 1, 1, 1]} : vector<16x1x1x8xf32> to vector<1x1x1x8xf32>
    %311 = vector.extract_strided_slice %306 {offsets = [11, 0, 0, 0], sizes = [1, 1, 1, 8], strides = [1, 1, 1, 1]} : vector<16x1x1x8xf32> to vector<1x1x1x8xf32>
    %312 = vector.extract_strided_slice %306 {offsets = [10, 0, 0, 0], sizes = [1, 1, 1, 8], strides = [1, 1, 1, 1]} : vector<16x1x1x8xf32> to vector<1x1x1x8xf32>
    %313 = vector.extract_strided_slice %306 {offsets = [9, 0, 0, 0], sizes = [1, 1, 1, 8], strides = [1, 1, 1, 1]} : vector<16x1x1x8xf32> to vector<1x1x1x8xf32>
    %314 = vector.extract_strided_slice %306 {offsets = [8, 0, 0, 0], sizes = [1, 1, 1, 8], strides = [1, 1, 1, 1]} : vector<16x1x1x8xf32> to vector<1x1x1x8xf32>
    %315 = vector.extract_strided_slice %306 {offsets = [7, 0, 0, 0], sizes = [1, 1, 1, 8], strides = [1, 1, 1, 1]} : vector<16x1x1x8xf32> to vector<1x1x1x8xf32>
    %316 = vector.extract_strided_slice %306 {offsets = [6, 0, 0, 0], sizes = [1, 1, 1, 8], strides = [1, 1, 1, 1]} : vector<16x1x1x8xf32> to vector<1x1x1x8xf32>
    %317 = vector.extract_strided_slice %306 {offsets = [5, 0, 0, 0], sizes = [1, 1, 1, 8], strides = [1, 1, 1, 1]} : vector<16x1x1x8xf32> to vector<1x1x1x8xf32>
    %318 = vector.extract_strided_slice %306 {offsets = [4, 0, 0, 0], sizes = [1, 1, 1, 8], strides = [1, 1, 1, 1]} : vector<16x1x1x8xf32> to vector<1x1x1x8xf32>
    %319 = vector.extract_strided_slice %306 {offsets = [3, 0, 0, 0], sizes = [1, 1, 1, 8], strides = [1, 1, 1, 1]} : vector<16x1x1x8xf32> to vector<1x1x1x8xf32>
    %320 = vector.extract_strided_slice %306 {offsets = [2, 0, 0, 0], sizes = [1, 1, 1, 8], strides = [1, 1, 1, 1]} : vector<16x1x1x8xf32> to vector<1x1x1x8xf32>
    %321 = vector.extract_strided_slice %306 {offsets = [1, 0, 0, 0], sizes = [1, 1, 1, 8], strides = [1, 1, 1, 1]} : vector<16x1x1x8xf32> to vector<1x1x1x8xf32>
    %322 = vector.extract_strided_slice %306 {offsets = [0, 0, 0, 0], sizes = [1, 1, 1, 8], strides = [1, 1, 1, 1]} : vector<16x1x1x8xf32> to vector<1x1x1x8xf32>
    %323 = tpu.concatenate %307, %308, %309, %310, %311, %312, %313, %314, %315, %316, %317, %318, %319, %320, %321, %322 in 0 : vector<1x1x1x8xf32>, vector<1x1x1x8xf32>, vector<1x1x1x8xf32>, vector<1x1x1x8xf32>, vector<1x1x1x8xf32>, vector<1x1x1x8xf32>, vector<1x1x1x8xf32>, vector<1x1x1x8xf32>, vector<1x1x1x8xf32>, vector<1x1x1x8xf32>, vector<1x1x1x8xf32>, vector<1x1x1x8xf32>, vector<1x1x1x8xf32>, vector<1x1x1x8xf32>, vector<1x1x1x8xf32>, vector<1x1x1x8xf32> -> vector<16x1x1x8xf32>
    %c3_217 = arith.constant 3 : index
    %c0_218 = arith.constant 0 : index
    %c15_219 = arith.constant 15 : index
    %c0_220 = arith.constant 0 : index
    %c0_221 = arith.constant 0 : index
    %324 = vector.load %arg1[%c3_217, %c0_218, %c15_219, %c0_220, %c0_221] : memref<6x16x16x1x8xf32, #tpu.memory_space<vmem>>, vector<1x1x1x1x8xf32>
    %325 = vector.shape_cast %324 : vector<1x1x1x1x8xf32> to vector<1x1x1x8xf32>
    %c0_222 = arith.constant 0 : index
    %c0_223 = arith.constant 0 : index
    %c0_224 = arith.constant 0 : index
    %c0_225 = arith.constant 0 : index
    %c0_226 = arith.constant 0 : index
    %326 = vector.load %arg1[%c0_222, %c0_223, %c0_224, %c0_225, %c0_226] : memref<6x16x16x1x8xf32, #tpu.memory_space<vmem>>, vector<1x1x16x1x8xf32>
    %327 = vector.shape_cast %326 : vector<1x1x16x1x8xf32> to vector<1x16x1x8xf32>
    %c1_227 = arith.constant 1 : index
    %c0_228 = arith.constant 0 : index
    %c0_229 = arith.constant 0 : index
    %c0_230 = arith.constant 0 : index
    %c0_231 = arith.constant 0 : index
    %328 = vector.load %arg1[%c1_227, %c0_228, %c0_229, %c0_230, %c0_231] : memref<6x16x16x1x8xf32, #tpu.memory_space<vmem>>, vector<1x1x1x1x8xf32>
    %329 = vector.shape_cast %328 : vector<1x1x1x1x8xf32> to vector<1x1x1x8xf32>
    %330 = tpu.concatenate %325, %327, %329 in 1 : vector<1x1x1x8xf32>, vector<1x16x1x8xf32>, vector<1x1x1x8xf32> -> vector<1x18x1x8xf32>
    %c4_232 = arith.constant 4 : index
    %c0_233 = arith.constant 0 : index
    %c0_234 = arith.constant 0 : index
    %c0_235 = arith.constant 0 : index
    %c0_236 = arith.constant 0 : index
    %331 = vector.load %arg2[%c4_232, %c0_233, %c0_234, %c0_235, %c0_236] : memref<6x18x18x1x8xf32, #tpu.memory_space<vmem>>, vector<1x1x18x1x8xf32>
    %332 = vector.shape_cast %331 : vector<1x1x18x1x8xf32> to vector<1x18x1x8xf32>
    %333 = vector.shape_cast %268 : vector<1x18x1x8xf32> to vector<1x1x18x1x8xf32>
    tpu.vector_store %arg2[%c4_232, %c0_233, %c0_234, %c0_235, %c0_236], %333 {strides = array<i32>} : memref<6x18x18x1x8xf32, #tpu.memory_space<vmem>>, vector<1x1x18x1x8xf32>,
    %c4_237 = arith.constant 4 : index
    %c1_238 = arith.constant 1 : index
    %c0_239 = arith.constant 0 : index
    %c0_240 = arith.constant 0 : index
    %c0_241 = arith.constant 0 : index
    %334 = vector.load %arg2[%c4_237, %c1_238, %c0_239, %c0_240, %c0_241] : memref<6x18x18x1x8xf32, #tpu.memory_space<vmem>>, vector<1x16x1x1x8xf32>
    %335 = vector.shape_cast %334 : vector<1x16x1x1x8xf32> to vector<16x1x1x8xf32>
    %336 = vector.shape_cast %287 : vector<16x1x1x8xf32> to vector<1x16x1x1x8xf32>
    tpu.vector_store %arg2[%c4_237, %c1_238, %c0_239, %c0_240, %c0_241], %336 {strides = array<i32>} : memref<6x18x18x1x8xf32, #tpu.memory_space<vmem>>, vector<1x16x1x1x8xf32>,
    %c4_242 = arith.constant 4 : index
    %c0_243 = arith.constant 0 : index
    %c0_244 = arith.constant 0 : index
    %c0_245 = arith.constant 0 : index
    %c0_246 = arith.constant 0 : index
    %337 = vector.load %arg1[%c4_242, %c0_243, %c0_244, %c0_245, %c0_246] : memref<6x16x16x1x8xf32, #tpu.memory_space<vmem>>, vector<1x16x16x1x8xf32>
    %338 = vector.shape_cast %337 : vector<1x16x16x1x8xf32> to vector<16x16x1x8xf32>
    %c4_247 = arith.constant 4 : index
    %c1_248 = arith.constant 1 : index
    %c1_249 = arith.constant 1 : index
    %c0_250 = arith.constant 0 : index
    %c0_251 = arith.constant 0 : index
    %339 = vector.load %arg2[%c4_247, %c1_248, %c1_249, %c0_250, %c0_251] : memref<6x18x18x1x8xf32, #tpu.memory_space<vmem>>, vector<1x16x16x1x8xf32>
    %340 = vector.shape_cast %339 : vector<1x16x16x1x8xf32> to vector<16x16x1x8xf32>
    %341 = vector.shape_cast %338 : vector<16x16x1x8xf32> to vector<1x16x16x1x8xf32>
    tpu.vector_store %arg2[%c4_247, %c1_248, %c1_249, %c0_250, %c0_251], %341 {strides = array<i32>} : memref<6x18x18x1x8xf32, #tpu.memory_space<vmem>>, vector<1x16x16x1x8xf32>,
    %c4_252 = arith.constant 4 : index
    %c1_253 = arith.constant 1 : index
    %c17_254 = arith.constant 17 : index
    %c0_255 = arith.constant 0 : index
    %c0_256 = arith.constant 0 : index
    %342 = vector.load %arg2[%c4_252, %c1_253, %c17_254, %c0_255, %c0_256] : memref<6x18x18x1x8xf32, #tpu.memory_space<vmem>>, vector<1x16x1x1x8xf32>
    %343 = vector.shape_cast %342 : vector<1x16x1x1x8xf32> to vector<16x1x1x8xf32>
    %344 = vector.shape_cast %323 : vector<16x1x1x8xf32> to vector<1x16x1x1x8xf32>
    tpu.vector_store %arg2[%c4_252, %c1_253, %c17_254, %c0_255, %c0_256], %344 {strides = array<i32>} : memref<6x18x18x1x8xf32, #tpu.memory_space<vmem>>, vector<1x16x1x1x8xf32>,
    %c4_257 = arith.constant 4 : index
    %c17_258 = arith.constant 17 : index
    %c0_259 = arith.constant 0 : index
    %c0_260 = arith.constant 0 : index
    %c0_261 = arith.constant 0 : index
    %345 = vector.load %arg2[%c4_257, %c17_258, %c0_259, %c0_260, %c0_261] : memref<6x18x18x1x8xf32, #tpu.memory_space<vmem>>, vector<1x1x18x1x8xf32>
    %346 = vector.shape_cast %345 : vector<1x1x18x1x8xf32> to vector<1x18x1x8xf32>
    %347 = vector.shape_cast %330 : vector<1x18x1x8xf32> to vector<1x1x18x1x8xf32>
    tpu.vector_store %arg2[%c4_257, %c17_258, %c0_259, %c0_260, %c0_261], %347 {strides = array<i32>} : memref<6x18x18x1x8xf32, #tpu.memory_space<vmem>>, vector<1x1x18x1x8xf32>,
    %c3_262 = arith.constant 3 : index
    %c15_263 = arith.constant 15 : index
    %c15_264 = arith.constant 15 : index
    %c0_265 = arith.constant 0 : index
    %c0_266 = arith.constant 0 : index
    %348 = vector.load %arg1[%c3_262, %c15_263, %c15_264, %c0_265, %c0_266] : memref<6x16x16x1x8xf32, #tpu.memory_space<vmem>>, vector<1x1x1x1x8xf32>
    %349 = vector.shape_cast %348 : vector<1x1x1x1x8xf32> to vector<1x1x1x8xf32>
    %c0_267 = arith.constant 0 : index
    %c15_268 = arith.constant 15 : index
    %c0_269 = arith.constant 0 : index
    %c0_270 = arith.constant 0 : index
    %c0_271 = arith.constant 0 : index
    %350 = vector.load %arg1[%c0_267, %c15_268, %c0_269, %c0_270, %c0_271] : memref<6x16x16x1x8xf32, #tpu.memory_space<vmem>>, vector<1x1x16x1x8xf32>
    %351 = vector.shape_cast %350 : vector<1x1x16x1x8xf32> to vector<1x16x1x8xf32>
    %c1_272 = arith.constant 1 : index
    %c15_273 = arith.constant 15 : index
    %c0_274 = arith.constant 0 : index
    %c0_275 = arith.constant 0 : index
    %c0_276 = arith.constant 0 : index
    %352 = vector.load %arg1[%c1_272, %c15_273, %c0_274, %c0_275, %c0_276] : memref<6x16x16x1x8xf32, #tpu.memory_space<vmem>>, vector<1x1x1x1x8xf32>
    %353 = vector.shape_cast %352 : vector<1x1x1x1x8xf32> to vector<1x1x1x8xf32>
    %354 = tpu.concatenate %349, %351, %353 in 1 : vector<1x1x1x8xf32>, vector<1x16x1x8xf32>, vector<1x1x1x8xf32> -> vector<1x18x1x8xf32>
    %c3_277 = arith.constant 3 : index
    %c15_278 = arith.constant 15 : index
    %c0_279 = arith.constant 0 : index
    %c0_280 = arith.constant 0 : index
    %c0_281 = arith.constant 0 : index
    %355 = vector.load %arg1[%c3_277, %c15_278, %c0_279, %c0_280, %c0_281] : memref<6x16x16x1x8xf32, #tpu.memory_space<vmem>>, vector<1x1x16x1x8xf32>
    %356 = vector.shape_cast %355 : vector<1x1x16x1x8xf32> to vector<1x16x1x8xf32>
    %357 = vector.extract_strided_slice %356 {offsets = [0, 0, 0, 0], sizes = [1, 1, 1, 8], strides = [1, 1, 1, 1]} : vector<1x16x1x8xf32> to vector<1x1x1x8xf32>
    %358 = vector.extract_strided_slice %356 {offsets = [0, 1, 0, 0], sizes = [1, 1, 1, 8], strides = [1, 1, 1, 1]} : vector<1x16x1x8xf32> to vector<1x1x1x8xf32>
    %359 = vector.extract_strided_slice %356 {offsets = [0, 2, 0, 0], sizes = [1, 1, 1, 8], strides = [1, 1, 1, 1]} : vector<1x16x1x8xf32> to vector<1x1x1x8xf32>
    %360 = vector.extract_strided_slice %356 {offsets = [0, 3, 0, 0], sizes = [1, 1, 1, 8], strides = [1, 1, 1, 1]} : vector<1x16x1x8xf32> to vector<1x1x1x8xf32>
    %361 = vector.extract_strided_slice %356 {offsets = [0, 4, 0, 0], sizes = [1, 1, 1, 8], strides = [1, 1, 1, 1]} : vector<1x16x1x8xf32> to vector<1x1x1x8xf32>
    %362 = vector.extract_strided_slice %356 {offsets = [0, 5, 0, 0], sizes = [1, 1, 1, 8], strides = [1, 1, 1, 1]} : vector<1x16x1x8xf32> to vector<1x1x1x8xf32>
    %363 = vector.extract_strided_slice %356 {offsets = [0, 6, 0, 0], sizes = [1, 1, 1, 8], strides = [1, 1, 1, 1]} : vector<1x16x1x8xf32> to vector<1x1x1x8xf32>
    %364 = vector.extract_strided_slice %356 {offsets = [0, 7, 0, 0], sizes = [1, 1, 1, 8], strides = [1, 1, 1, 1]} : vector<1x16x1x8xf32> to vector<1x1x1x8xf32>
    %365 = vector.extract_strided_slice %356 {offsets = [0, 8, 0, 0], sizes = [1, 1, 1, 8], strides = [1, 1, 1, 1]} : vector<1x16x1x8xf32> to vector<1x1x1x8xf32>
    %366 = vector.extract_strided_slice %356 {offsets = [0, 9, 0, 0], sizes = [1, 1, 1, 8], strides = [1, 1, 1, 1]} : vector<1x16x1x8xf32> to vector<1x1x1x8xf32>
    %367 = vector.extract_strided_slice %356 {offsets = [0, 10, 0, 0], sizes = [1, 1, 1, 8], strides = [1, 1, 1, 1]} : vector<1x16x1x8xf32> to vector<1x1x1x8xf32>
    %368 = vector.extract_strided_slice %356 {offsets = [0, 11, 0, 0], sizes = [1, 1, 1, 8], strides = [1, 1, 1, 1]} : vector<1x16x1x8xf32> to vector<1x1x1x8xf32>
    %369 = vector.extract_strided_slice %356 {offsets = [0, 12, 0, 0], sizes = [1, 1, 1, 8], strides = [1, 1, 1, 1]} : vector<1x16x1x8xf32> to vector<1x1x1x8xf32>
    %370 = vector.extract_strided_slice %356 {offsets = [0, 13, 0, 0], sizes = [1, 1, 1, 8], strides = [1, 1, 1, 1]} : vector<1x16x1x8xf32> to vector<1x1x1x8xf32>
    %371 = vector.extract_strided_slice %356 {offsets = [0, 14, 0, 0], sizes = [1, 1, 1, 8], strides = [1, 1, 1, 1]} : vector<1x16x1x8xf32> to vector<1x1x1x8xf32>
    %372 = vector.extract_strided_slice %356 {offsets = [0, 15, 0, 0], sizes = [1, 1, 1, 8], strides = [1, 1, 1, 1]} : vector<1x16x1x8xf32> to vector<1x1x1x8xf32>
    %373 = tpu.concatenate %357, %358, %359, %360, %361, %362, %363, %364, %365, %366, %367, %368, %369, %370, %371, %372 in 0 : vector<1x1x1x8xf32>, vector<1x1x1x8xf32>, vector<1x1x1x8xf32>, vector<1x1x1x8xf32>, vector<1x1x1x8xf32>, vector<1x1x1x8xf32>, vector<1x1x1x8xf32>, vector<1x1x1x8xf32>, vector<1x1x1x8xf32>, vector<1x1x1x8xf32>, vector<1x1x1x8xf32>, vector<1x1x1x8xf32>, vector<1x1x1x8xf32>, vector<1x1x1x8xf32>, vector<1x1x1x8xf32>, vector<1x1x1x8xf32> -> vector<16x1x1x8xf32>
    %374 = vector.extract_strided_slice %373 {offsets = [15, 0, 0, 0], sizes = [1, 1, 1, 8], strides = [1, 1, 1, 1]} : vector<16x1x1x8xf32> to vector<1x1x1x8xf32>
    %375 = vector.extract_strided_slice %373 {offsets = [14, 0, 0, 0], sizes = [1, 1, 1, 8], strides = [1, 1, 1, 1]} : vector<16x1x1x8xf32> to vector<1x1x1x8xf32>
    %376 = vector.extract_strided_slice %373 {offsets = [13, 0, 0, 0], sizes = [1, 1, 1, 8], strides = [1, 1, 1, 1]} : vector<16x1x1x8xf32> to vector<1x1x1x8xf32>
    %377 = vector.extract_strided_slice %373 {offsets = [12, 0, 0, 0], sizes = [1, 1, 1, 8], strides = [1, 1, 1, 1]} : vector<16x1x1x8xf32> to vector<1x1x1x8xf32>
    %378 = vector.extract_strided_slice %373 {offsets = [11, 0, 0, 0], sizes = [1, 1, 1, 8], strides = [1, 1, 1, 1]} : vector<16x1x1x8xf32> to vector<1x1x1x8xf32>
    %379 = vector.extract_strided_slice %373 {offsets = [10, 0, 0, 0], sizes = [1, 1, 1, 8], strides = [1, 1, 1, 1]} : vector<16x1x1x8xf32> to vector<1x1x1x8xf32>
    %380 = vector.extract_strided_slice %373 {offsets = [9, 0, 0, 0], sizes = [1, 1, 1, 8], strides = [1, 1, 1, 1]} : vector<16x1x1x8xf32> to vector<1x1x1x8xf32>
    %381 = vector.extract_strided_slice %373 {offsets = [8, 0, 0, 0], sizes = [1, 1, 1, 8], strides = [1, 1, 1, 1]} : vector<16x1x1x8xf32> to vector<1x1x1x8xf32>
    %382 = vector.extract_strided_slice %373 {offsets = [7, 0, 0, 0], sizes = [1, 1, 1, 8], strides = [1, 1, 1, 1]} : vector<16x1x1x8xf32> to vector<1x1x1x8xf32>
    %383 = vector.extract_strided_slice %373 {offsets = [6, 0, 0, 0], sizes = [1, 1, 1, 8], strides = [1, 1, 1, 1]} : vector<16x1x1x8xf32> to vector<1x1x1x8xf32>
    %384 = vector.extract_strided_slice %373 {offsets = [5, 0, 0, 0], sizes = [1, 1, 1, 8], strides = [1, 1, 1, 1]} : vector<16x1x1x8xf32> to vector<1x1x1x8xf32>
    %385 = vector.extract_strided_slice %373 {offsets = [4, 0, 0, 0], sizes = [1, 1, 1, 8], strides = [1, 1, 1, 1]} : vector<16x1x1x8xf32> to vector<1x1x1x8xf32>
    %386 = vector.extract_strided_slice %373 {offsets = [3, 0, 0, 0], sizes = [1, 1, 1, 8], strides = [1, 1, 1, 1]} : vector<16x1x1x8xf32> to vector<1x1x1x8xf32>
    %387 = vector.extract_strided_slice %373 {offsets = [2, 0, 0, 0], sizes = [1, 1, 1, 8], strides = [1, 1, 1, 1]} : vector<16x1x1x8xf32> to vector<1x1x1x8xf32>
    %388 = vector.extract_strided_slice %373 {offsets = [1, 0, 0, 0], sizes = [1, 1, 1, 8], strides = [1, 1, 1, 1]} : vector<16x1x1x8xf32> to vector<1x1x1x8xf32>
    %389 = vector.extract_strided_slice %373 {offsets = [0, 0, 0, 0], sizes = [1, 1, 1, 8], strides = [1, 1, 1, 1]} : vector<16x1x1x8xf32> to vector<1x1x1x8xf32>
    %390 = tpu.concatenate %374, %375, %376, %377, %378, %379, %380, %381, %382, %383, %384, %385, %386, %387, %388, %389 in 0 : vector<1x1x1x8xf32>, vector<1x1x1x8xf32>, vector<1x1x1x8xf32>, vector<1x1x1x8xf32>, vector<1x1x1x8xf32>, vector<1x1x1x8xf32>, vector<1x1x1x8xf32>, vector<1x1x1x8xf32>, vector<1x1x1x8xf32>, vector<1x1x1x8xf32>, vector<1x1x1x8xf32>, vector<1x1x1x8xf32>, vector<1x1x1x8xf32>, vector<1x1x1x8xf32>, vector<1x1x1x8xf32>, vector<1x1x1x8xf32> -> vector<16x1x1x8xf32>
    %c1_282 = arith.constant 1 : index
    %c15_283 = arith.constant 15 : index
    %c0_284 = arith.constant 0 : index
    %c0_285 = arith.constant 0 : index
    %c0_286 = arith.constant 0 : index
    %391 = vector.load %arg1[%c1_282, %c15_283, %c0_284, %c0_285, %c0_286] : memref<6x16x16x1x8xf32, #tpu.memory_space<vmem>>, vector<1x1x16x1x8xf32>
    %392 = vector.shape_cast %391 : vector<1x1x16x1x8xf32> to vector<1x16x1x8xf32>
    %393 = vector.extract_strided_slice %392 {offsets = [0, 0, 0, 0], sizes = [1, 1, 1, 8], strides = [1, 1, 1, 1]} : vector<1x16x1x8xf32> to vector<1x1x1x8xf32>
    %394 = vector.extract_strided_slice %392 {offsets = [0, 1, 0, 0], sizes = [1, 1, 1, 8], strides = [1, 1, 1, 1]} : vector<1x16x1x8xf32> to vector<1x1x1x8xf32>
    %395 = vector.extract_strided_slice %392 {offsets = [0, 2, 0, 0], sizes = [1, 1, 1, 8], strides = [1, 1, 1, 1]} : vector<1x16x1x8xf32> to vector<1x1x1x8xf32>
    %396 = vector.extract_strided_slice %392 {offsets = [0, 3, 0, 0], sizes = [1, 1, 1, 8], strides = [1, 1, 1, 1]} : vector<1x16x1x8xf32> to vector<1x1x1x8xf32>
    %397 = vector.extract_strided_slice %392 {offsets = [0, 4, 0, 0], sizes = [1, 1, 1, 8], strides = [1, 1, 1, 1]} : vector<1x16x1x8xf32> to vector<1x1x1x8xf32>
    %398 = vector.extract_strided_slice %392 {offsets = [0, 5, 0, 0], sizes = [1, 1, 1, 8], strides = [1, 1, 1, 1]} : vector<1x16x1x8xf32> to vector<1x1x1x8xf32>
    %399 = vector.extract_strided_slice %392 {offsets = [0, 6, 0, 0], sizes = [1, 1, 1, 8], strides = [1, 1, 1, 1]} : vector<1x16x1x8xf32> to vector<1x1x1x8xf32>
    %400 = vector.extract_strided_slice %392 {offsets = [0, 7, 0, 0], sizes = [1, 1, 1, 8], strides = [1, 1, 1, 1]} : vector<1x16x1x8xf32> to vector<1x1x1x8xf32>
    %401 = vector.extract_strided_slice %392 {offsets = [0, 8, 0, 0], sizes = [1, 1, 1, 8], strides = [1, 1, 1, 1]} : vector<1x16x1x8xf32> to vector<1x1x1x8xf32>
    %402 = vector.extract_strided_slice %392 {offsets = [0, 9, 0, 0], sizes = [1, 1, 1, 8], strides = [1, 1, 1, 1]} : vector<1x16x1x8xf32> to vector<1x1x1x8xf32>
    %403 = vector.extract_strided_slice %392 {offsets = [0, 10, 0, 0], sizes = [1, 1, 1, 8], strides = [1, 1, 1, 1]} : vector<1x16x1x8xf32> to vector<1x1x1x8xf32>
    %404 = vector.extract_strided_slice %392 {offsets = [0, 11, 0, 0], sizes = [1, 1, 1, 8], strides = [1, 1, 1, 1]} : vector<1x16x1x8xf32> to vector<1x1x1x8xf32>
    %405 = vector.extract_strided_slice %392 {offsets = [0, 12, 0, 0], sizes = [1, 1, 1, 8], strides = [1, 1, 1, 1]} : vector<1x16x1x8xf32> to vector<1x1x1x8xf32>
    %406 = vector.extract_strided_slice %392 {offsets = [0, 13, 0, 0], sizes = [1, 1, 1, 8], strides = [1, 1, 1, 1]} : vector<1x16x1x8xf32> to vector<1x1x1x8xf32>
    %407 = vector.extract_strided_slice %392 {offsets = [0, 14, 0, 0], sizes = [1, 1, 1, 8], strides = [1, 1, 1, 1]} : vector<1x16x1x8xf32> to vector<1x1x1x8xf32>
    %408 = vector.extract_strided_slice %392 {offsets = [0, 15, 0, 0], sizes = [1, 1, 1, 8], strides = [1, 1, 1, 1]} : vector<1x16x1x8xf32> to vector<1x1x1x8xf32>
    %409 = tpu.concatenate %393, %394, %395, %396, %397, %398, %399, %400, %401, %402, %403, %404, %405, %406, %407, %408 in 0 : vector<1x1x1x8xf32>, vector<1x1x1x8xf32>, vector<1x1x1x8xf32>, vector<1x1x1x8xf32>, vector<1x1x1x8xf32>, vector<1x1x1x8xf32>, vector<1x1x1x8xf32>, vector<1x1x1x8xf32>, vector<1x1x1x8xf32>, vector<1x1x1x8xf32>, vector<1x1x1x8xf32>, vector<1x1x1x8xf32>, vector<1x1x1x8xf32>, vector<1x1x1x8xf32>, vector<1x1x1x8xf32>, vector<1x1x1x8xf32> -> vector<16x1x1x8xf32>
    %c3_287 = arith.constant 3 : index
    %c15_288 = arith.constant 15 : index
    %c0_289 = arith.constant 0 : index
    %c0_290 = arith.constant 0 : index
    %c0_291 = arith.constant 0 : index
    %410 = vector.load %arg1[%c3_287, %c15_288, %c0_289, %c0_290, %c0_291] : memref<6x16x16x1x8xf32, #tpu.memory_space<vmem>>, vector<1x1x1x1x8xf32>
    %411 = vector.shape_cast %410 : vector<1x1x1x1x8xf32> to vector<1x1x1x8xf32>
    %c2_292 = arith.constant 2 : index
    %c15_293 = arith.constant 15 : index
    %c0_294 = arith.constant 0 : index
    %c0_295 = arith.constant 0 : index
    %c0_296 = arith.constant 0 : index
    %412 = vector.load %arg1[%c2_292, %c15_293, %c0_294, %c0_295, %c0_296] : memref<6x16x16x1x8xf32, #tpu.memory_space<vmem>>, vector<1x1x16x1x8xf32>
    %413 = vector.shape_cast %412 : vector<1x1x16x1x8xf32> to vector<1x16x1x8xf32>
    %414 = vector.extract_strided_slice %413 {offsets = [0, 15, 0, 0], sizes = [1, 1, 1, 8], strides = [1, 1, 1, 1]} : vector<1x16x1x8xf32> to vector<1x1x1x8xf32>
    %415 = vector.extract_strided_slice %413 {offsets = [0, 14, 0, 0], sizes = [1, 1, 1, 8], strides = [1, 1, 1, 1]} : vector<1x16x1x8xf32> to vector<1x1x1x8xf32>
    %416 = vector.extract_strided_slice %413 {offsets = [0, 13, 0, 0], sizes = [1, 1, 1, 8], strides = [1, 1, 1, 1]} : vector<1x16x1x8xf32> to vector<1x1x1x8xf32>
    %417 = vector.extract_strided_slice %413 {offsets = [0, 12, 0, 0], sizes = [1, 1, 1, 8], strides = [1, 1, 1, 1]} : vector<1x16x1x8xf32> to vector<1x1x1x8xf32>
    %418 = vector.extract_strided_slice %413 {offsets = [0, 11, 0, 0], sizes = [1, 1, 1, 8], strides = [1, 1, 1, 1]} : vector<1x16x1x8xf32> to vector<1x1x1x8xf32>
    %419 = vector.extract_strided_slice %413 {offsets = [0, 10, 0, 0], sizes = [1, 1, 1, 8], strides = [1, 1, 1, 1]} : vector<1x16x1x8xf32> to vector<1x1x1x8xf32>
    %420 = vector.extract_strided_slice %413 {offsets = [0, 9, 0, 0], sizes = [1, 1, 1, 8], strides = [1, 1, 1, 1]} : vector<1x16x1x8xf32> to vector<1x1x1x8xf32>
    %421 = vector.extract_strided_slice %413 {offsets = [0, 8, 0, 0], sizes = [1, 1, 1, 8], strides = [1, 1, 1, 1]} : vector<1x16x1x8xf32> to vector<1x1x1x8xf32>
    %422 = vector.extract_strided_slice %413 {offsets = [0, 7, 0, 0], sizes = [1, 1, 1, 8], strides = [1, 1, 1, 1]} : vector<1x16x1x8xf32> to vector<1x1x1x8xf32>
    %423 = vector.extract_strided_slice %413 {offsets = [0, 6, 0, 0], sizes = [1, 1, 1, 8], strides = [1, 1, 1, 1]} : vector<1x16x1x8xf32> to vector<1x1x1x8xf32>
    %424 = vector.extract_strided_slice %413 {offsets = [0, 5, 0, 0], sizes = [1, 1, 1, 8], strides = [1, 1, 1, 1]} : vector<1x16x1x8xf32> to vector<1x1x1x8xf32>
    %425 = vector.extract_strided_slice %413 {offsets = [0, 4, 0, 0], sizes = [1, 1, 1, 8], strides = [1, 1, 1, 1]} : vector<1x16x1x8xf32> to vector<1x1x1x8xf32>
    %426 = vector.extract_strided_slice %413 {offsets = [0, 3, 0, 0], sizes = [1, 1, 1, 8], strides = [1, 1, 1, 1]} : vector<1x16x1x8xf32> to vector<1x1x1x8xf32>
    %427 = vector.extract_strided_slice %413 {offsets = [0, 2, 0, 0], sizes = [1, 1, 1, 8], strides = [1, 1, 1, 1]} : vector<1x16x1x8xf32> to vector<1x1x1x8xf32>
    %428 = vector.extract_strided_slice %413 {offsets = [0, 1, 0, 0], sizes = [1, 1, 1, 8], strides = [1, 1, 1, 1]} : vector<1x16x1x8xf32> to vector<1x1x1x8xf32>
    %429 = vector.extract_strided_slice %413 {offsets = [0, 0, 0, 0], sizes = [1, 1, 1, 8], strides = [1, 1, 1, 1]} : vector<1x16x1x8xf32> to vector<1x1x1x8xf32>
    %430 = tpu.concatenate %414, %415, %416, %417, %418, %419, %420, %421, %422, %423, %424, %425, %426, %427, %428, %429 in 1 : vector<1x1x1x8xf32>, vector<1x1x1x8xf32>, vector<1x1x1x8xf32>, vector<1x1x1x8xf32>, vector<1x1x1x8xf32>, vector<1x1x1x8xf32>, vector<1x1x1x8xf32>, vector<1x1x1x8xf32>, vector<1x1x1x8xf32>, vector<1x1x1x8xf32>, vector<1x1x1x8xf32>, vector<1x1x1x8xf32>, vector<1x1x1x8xf32>, vector<1x1x1x8xf32>, vector<1x1x1x8xf32>, vector<1x1x1x8xf32> -> vector<1x16x1x8xf32>
    %c1_297 = arith.constant 1 : index
    %c15_298 = arith.constant 15 : index
    %c15_299 = arith.constant 15 : index
    %c0_300 = arith.constant 0 : index
    %c0_301 = arith.constant 0 : index
    %431 = vector.load %arg1[%c1_297, %c15_298, %c15_299, %c0_300, %c0_301] : memref<6x16x16x1x8xf32, #tpu.memory_space<vmem>>, vector<1x1x1x1x8xf32>
    %432 = vector.shape_cast %431 : vector<1x1x1x1x8xf32> to vector<1x1x1x8xf32>
    %433 = tpu.concatenate %411, %430, %432 in 1 : vector<1x1x1x8xf32>, vector<1x16x1x8xf32>, vector<1x1x1x8xf32> -> vector<1x18x1x8xf32>
    %c5_302 = arith.constant 5 : index
    %c0_303 = arith.constant 0 : index
    %c0_304 = arith.constant 0 : index
    %c0_305 = arith.constant 0 : index
    %c0_306 = arith.constant 0 : index
    %434 = vector.load %arg2[%c5_302, %c0_303, %c0_304, %c0_305, %c0_306] : memref<6x18x18x1x8xf32, #tpu.memory_space<vmem>>, vector<1x1x18x1x8xf32>
    %435 = vector.shape_cast %434 : vector<1x1x18x1x8xf32> to vector<1x18x1x8xf32>
    %436 = vector.shape_cast %354 : vector<1x18x1x8xf32> to vector<1x1x18x1x8xf32>
    tpu.vector_store %arg2[%c5_302, %c0_303, %c0_304, %c0_305, %c0_306], %436 {strides = array<i32>} : memref<6x18x18x1x8xf32, #tpu.memory_space<vmem>>, vector<1x1x18x1x8xf32>,
    %c5_307 = arith.constant 5 : index
    %c1_308 = arith.constant 1 : index
    %c0_309 = arith.constant 0 : index
    %c0_310 = arith.constant 0 : index
    %c0_311 = arith.constant 0 : index
    %437 = vector.load %arg2[%c5_307, %c1_308, %c0_309, %c0_310, %c0_311] : memref<6x18x18x1x8xf32, #tpu.memory_space<vmem>>, vector<1x16x1x1x8xf32>
    %438 = vector.shape_cast %437 : vector<1x16x1x1x8xf32> to vector<16x1x1x8xf32>
    %439 = vector.shape_cast %390 : vector<16x1x1x8xf32> to vector<1x16x1x1x8xf32>
    tpu.vector_store %arg2[%c5_307, %c1_308, %c0_309, %c0_310, %c0_311], %439 {strides = array<i32>} : memref<6x18x18x1x8xf32, #tpu.memory_space<vmem>>, vector<1x16x1x1x8xf32>,
    %c5_312 = arith.constant 5 : index
    %c0_313 = arith.constant 0 : index
    %c0_314 = arith.constant 0 : index
    %c0_315 = arith.constant 0 : index
    %c0_316 = arith.constant 0 : index
    %440 = vector.load %arg1[%c5_312, %c0_313, %c0_314, %c0_315, %c0_316] : memref<6x16x16x1x8xf32, #tpu.memory_space<vmem>>, vector<1x16x16x1x8xf32>
    %441 = vector.shape_cast %440 : vector<1x16x16x1x8xf32> to vector<16x16x1x8xf32>
    %c5_317 = arith.constant 5 : index
    %c1_318 = arith.constant 1 : index
    %c1_319 = arith.constant 1 : index
    %c0_320 = arith.constant 0 : index
    %c0_321 = arith.constant 0 : index
    %442 = vector.load %arg2[%c5_317, %c1_318, %c1_319, %c0_320, %c0_321] : memref<6x18x18x1x8xf32, #tpu.memory_space<vmem>>, vector<1x16x16x1x8xf32>
    %443 = vector.shape_cast %442 : vector<1x16x16x1x8xf32> to vector<16x16x1x8xf32>
    %444 = vector.shape_cast %441 : vector<16x16x1x8xf32> to vector<1x16x16x1x8xf32>
    tpu.vector_store %arg2[%c5_317, %c1_318, %c1_319, %c0_320, %c0_321], %444 {strides = array<i32>} : memref<6x18x18x1x8xf32, #tpu.memory_space<vmem>>, vector<1x16x16x1x8xf32>,
    %c5_322 = arith.constant 5 : index
    %c1_323 = arith.constant 1 : index
    %c17_324 = arith.constant 17 : index
    %c0_325 = arith.constant 0 : index
    %c0_326 = arith.constant 0 : index
    %445 = vector.load %arg2[%c5_322, %c1_323, %c17_324, %c0_325, %c0_326] : memref<6x18x18x1x8xf32, #tpu.memory_space<vmem>>, vector<1x16x1x1x8xf32>
    %446 = vector.shape_cast %445 : vector<1x16x1x1x8xf32> to vector<16x1x1x8xf32>
    %447 = vector.shape_cast %409 : vector<16x1x1x8xf32> to vector<1x16x1x1x8xf32>
    tpu.vector_store %arg2[%c5_322, %c1_323, %c17_324, %c0_325, %c0_326], %447 {strides = array<i32>} : memref<6x18x18x1x8xf32, #tpu.memory_space<vmem>>, vector<1x16x1x1x8xf32>,
    %c5_327 = arith.constant 5 : index
    %c17_328 = arith.constant 17 : index
    %c0_329 = arith.constant 0 : index
    %c0_330 = arith.constant 0 : index
    %c0_331 = arith.constant 0 : index
    %448 = vector.load %arg2[%c5_327, %c17_328, %c0_329, %c0_330, %c0_331] : memref<6x18x18x1x8xf32, #tpu.memory_space<vmem>>, vector<1x1x18x1x8xf32>
    %449 = vector.shape_cast %448 : vector<1x1x18x1x8xf32> to vector<1x18x1x8xf32>
    %450 = vector.shape_cast %433 : vector<1x18x1x8xf32> to vector<1x1x18x1x8xf32>
    tpu.vector_store %arg2[%c5_327, %c17_328, %c0_329, %c0_330, %c0_331], %450 {strides = array<i32>} : memref<6x18x18x1x8xf32, #tpu.memory_space<vmem>>, vector<1x1x18x1x8xf32>,
    return
  }
  func.func @transform_0(%arg0: i32) -> (i32, i32, i32, i32, i32) {
    %c0_i32 = arith.constant 0 : i32
    %c0_i32_0 = arith.constant 0 : i32
    %c0_i32_1 = arith.constant 0 : i32
    %c0_i32_2 = arith.constant 0 : i32
    %c0_i32_3 = arith.constant 0 : i32
    return %c0_i32, %c0_i32_0, %c0_i32_1, %arg0, %c0_i32_2 : i32, i32, i32, i32, i32
  }
  func.func @transform_1(%arg0: i32) -> (i32, i32, i32, i32, i32) {
    %c0_i32 = arith.constant 0 : i32
    %c0_i32_0 = arith.constant 0 : i32
    %c0_i32_1 = arith.constant 0 : i32
    %c0_i32_2 = arith.constant 0 : i32
    %c0_i32_3 = arith.constant 0 : i32
    return %c0_i32, %c0_i32_0, %c0_i32_1, %arg0, %c0_i32_2 : i32, i32, i32, i32, i32
  }
}

</mosaic_0001>

<llo_original>
// kernel: cube_sphere_padding_2d.1
$region0: #{cube_sphere_padding_2d.1}
  #allocation0 [shape = 'u32[]', space=smem, size = 0x4, offset = 0x4, fixed_abs, tag = 'smem constant byte address 0x4 - core index']
  #allocation1 [shape = 'u32[144,128]{1,0:T(1,128)}', space=vmem, size = 0x12000, scoped, tag = 'internal scratch']
  %s0 = inlined_call_operand.vmem [shape: f32[6,16,16,1,8], index: 0, kind: input, shape index: {}]
  %s1 = inlined_call_operand.vmem [shape: f32[6,18,18,1,8], index: 1, kind: output, shape index: {}]
  %s2 = sld [smem:[#allocation0]]
  $region14: #{cube_sphere_padding_2d.1} parent=0
    _
  %s4 = ssub.s32 1, %s2
  %s5 = scalar_select 0, %s4, %s2
  // Predicated region
  $region2: #{cube_sphere_padding_2d.1} parent=0 // pred_check
    _
  $region3: #{cube_sphere_padding_2d.1} parent=0 // pred_check_branch
    %7 = sbr.rel (0) target = $region5
  $region4: #{cube_sphere_padding_2d.1} parent=0 // pred_region
    _
  $region5: #{cube_sphere_padding_2d.1} parent=0 // pred_fallthru
    _
  %s8 = scalar_lea.vmem %s0, 1264
  %v9 = vld [vmem:[%s8] sm:$0x1]
  %v10 = vld [vmem:[%s8 + $0x1] sm:$0x1]
  %v11 = vld [vmem:[%s8 + $0x2] sm:$0x1]
  %v12 = vld [vmem:[%s8 + $0x3] sm:$0x1]
  %v13 = vld [vmem:[%s8 + $0x4] sm:$0x1]
  %v14 = vld [vmem:[%s8 + $0x5] sm:$0x1]
  %v15 = vld [vmem:[%s8 + $0x6] sm:$0x1]
  %v16 = vld [vmem:[%s8 + $0x7] sm:$0x1]
  %v17 = vld [vmem:[%s8 + $0x8] sm:$0x1]
  %v18 = vld [vmem:[%s8 + $0x9] sm:$0x1]
  %v19 = vld [vmem:[%s8 + $0xa] sm:$0x1]
  %v20 = vld [vmem:[%s8 + $0xb] sm:$0x1]
  %v21 = vld [vmem:[%s8 + $0xc] sm:$0x1]
  %v22 = vld [vmem:[%s8 + $0xd] sm:$0x1]
  %v23 = vld [vmem:[%s8 + $0xe] sm:$0x1]
  %v24 = vld [vmem:[%s8 + $0xf] sm:$0x1]
  %s25 = scalar_lea.vmem %s0, 783
  %v26 = vld [vmem:[%s25] sm:$0x1]
  %v27 = vld [vmem:[%s25 + $0x10] sm:$0x1]
  %v28 = vld [vmem:[%s25 + $0x20] sm:$0x1]
  %v29 = vld [vmem:[%s25 + $0x30] sm:$0x1]
  %v30 = vld [vmem:[%s25 + $0x40] sm:$0x1]
  %v31 = vld [vmem:[%s25 + $0x50] sm:$0x1]
  %v32 = vld [vmem:[%s25 + $0x60] sm:$0x1]
  %v33 = vld [vmem:[%s25 + $0x70] sm:$0x1]
  %v34 = vld [vmem:[%s25 + $0x80] sm:$0x1]
  %v35 = vld [vmem:[%s25 + $0x90] sm:$0x1]
  %v36 = vld [vmem:[%s25 + $0xa0] sm:$0x1]
  %v37 = vld [vmem:[%s25 + $0xb0] sm:$0x1]
  %v38 = vld [vmem:[%s25 + $0xc0] sm:$0x1]
  %v39 = vld [vmem:[%s25 + $0xd0] sm:$0x1]
  %v40 = vld [vmem:[%s25 + $0xe0] sm:$0x1]
  %v41 = vld [vmem:[%s25 + $0xf0] sm:$0x1]
  %s42 = scalar_lea.vmem %s0, 256
  %v43 = vld [vmem:[%s42] sm:$0x1]
  %v44 = vld [vmem:[%s42 + $0x10] sm:$0x1]
  %v45 = vld [vmem:[%s42 + $0x20] sm:$0x1]
  %v46 = vld [vmem:[%s42 + $0x30] sm:$0x1]
  %v47 = vld [vmem:[%s42 + $0x40] sm:$0x1]
  %v48 = vld [vmem:[%s42 + $0x50] sm:$0x1]
  %v49 = vld [vmem:[%s42 + $0x60] sm:$0x1]
  %v50 = vld [vmem:[%s42 + $0x70] sm:$0x1]
  %v51 = vld [vmem:[%s42 + $0x80] sm:$0x1]
  %v52 = vld [vmem:[%s42 + $0x90] sm:$0x1]
  %v53 = vld [vmem:[%s42 + $0xa0] sm:$0x1]
  %v54 = vld [vmem:[%s42 + $0xb0] sm:$0x1]
  %v55 = vld [vmem:[%s42 + $0xc0] sm:$0x1]
  %v56 = vld [vmem:[%s42 + $0xd0] sm:$0x1]
  %v57 = vld [vmem:[%s42 + $0xe0] sm:$0x1]
  %v58 = vld [vmem:[%s42 + $0xf0] sm:$0x1]
  %s59 = scalar_lea.vmem %s0, 1280
  %v60 = vld [vmem:[%s59] sm:$0x1]
  %v61 = vld [vmem:[%s59 + $0x1] sm:$0x1]
  %v62 = vld [vmem:[%s59 + $0x2] sm:$0x1]
  %v63 = vld [vmem:[%s59 + $0x3] sm:$0x1]
  %v64 = vld [vmem:[%s59 + $0x4] sm:$0x1]
  %v65 = vld [vmem:[%s59 + $0x5] sm:$0x1]
  %v66 = vld [vmem:[%s59 + $0x6] sm:$0x1]
  %v67 = vld [vmem:[%s59 + $0x7] sm:$0x1]
  %v68 = vld [vmem:[%s59 + $0x8] sm:$0x1]
  %v69 = vld [vmem:[%s59 + $0x9] sm:$0x1]
  %v70 = vld [vmem:[%s59 + $0xa] sm:$0x1]
  %v71 = vld [vmem:[%s59 + $0xb] sm:$0x1]
  %v72 = vld [vmem:[%s59 + $0xc] sm:$0x1]
  %v73 = vld [vmem:[%s59 + $0xd] sm:$0x1]
  %v74 = vld [vmem:[%s59 + $0xe] sm:$0x1]
  %v75 = vld [vmem:[%s59 + $0xf] sm:$0x1]
  %vm76 = vcmask 57344
  %77 = vst.msk [vmem:[%s1] sm:$0x1] %vm76, 0.0
  %78 = vst.msk [vmem:[%s1 + $0x1] sm:$0x1] %vm76, %v9
  %79 = vst.msk [vmem:[%s1 + $0x2] sm:$0x1] %vm76, %v10
  %80 = vst.msk [vmem:[%s1 + $0x3] sm:$0x1] %vm76, %v11
  %81 = vst.msk [vmem:[%s1 + $0x4] sm:$0x1] %vm76, %v12
  %82 = vst.msk [vmem:[%s1 + $0x5] sm:$0x1] %vm76, %v13
  %83 = vst.msk [vmem:[%s1 + $0x6] sm:$0x1] %vm76, %v14
  %84 = vst.msk [vmem:[%s1 + $0x7] sm:$0x1] %vm76, %v15
  %85 = vst.msk [vmem:[%s1 + $0x8] sm:$0x1] %vm76, %v16
  %86 = vst.msk [vmem:[%s1 + $0x9] sm:$0x1] %vm76, %v17
  %87 = vst.msk [vmem:[%s1 + $0xa] sm:$0x1] %vm76, %v18
  %88 = vst.msk [vmem:[%s1 + $0xb] sm:$0x1] %vm76, %v19
  %89 = vst.msk [vmem:[%s1 + $0xc] sm:$0x1] %vm76, %v20
  %90 = vst.msk [vmem:[%s1 + $0xd] sm:$0x1] %vm76, %v21
  %91 = vst.msk [vmem:[%s1 + $0xe] sm:$0x1] %vm76, %v22
  %92 = vst.msk [vmem:[%s1 + $0xf] sm:$0x1] %vm76, %v23
  %93 = vst.msk [vmem:[%s1 + $0x10] sm:$0x1] %vm76, %v24
  %94 = vst.msk [vmem:[%s1 + $0x11] sm:$0x1] %vm76, 0.0
  %s95 = scalar_lea.vmem %s1, 18
  %96 = vst.msk [vmem:[%s95] sm:$0x1] %vm76, %v26
  %97 = vst.msk [vmem:[%s95 + $0x12] sm:$0x1] %vm76, %v27
  %98 = vst.msk [vmem:[%s95 + $0x24] sm:$0x1] %vm76, %v28
  %99 = vst.msk [vmem:[%s95 + $0x36] sm:$0x1] %vm76, %v29
  %100 = vst.msk [vmem:[%s95 + $0x48] sm:$0x1] %vm76, %v30
  %101 = vst.msk [vmem:[%s95 + $0x5a] sm:$0x1] %vm76, %v31
  %102 = vst.msk [vmem:[%s95 + $0x6c] sm:$0x1] %vm76, %v32
  %103 = vst.msk [vmem:[%s95 + $0x7e] sm:$0x1] %vm76, %v33
  %104 = vst.msk [vmem:[%s95 + $0x90] sm:$0x1] %vm76, %v34
  %105 = vst.msk [vmem:[%s95 + $0xa2] sm:$0x1] %vm76, %v35
  %106 = vst.msk [vmem:[%s95 + $0xb4] sm:$0x1] %vm76, %v36
  %107 = vst.msk [vmem:[%s95 + $0xc6] sm:$0x1] %vm76, %v37
  %108 = vst.msk [vmem:[%s95 + $0xd8] sm:$0x1] %vm76, %v38
  %109 = vst.msk [vmem:[%s95 + $0xea] sm:$0x1] %vm76, %v39
  %110 = vst.msk [vmem:[%s95 + $0xfc] sm:$0x1] %vm76, %v40
  %111 = vst.msk [vmem:[%s95 + $0x10e] sm:$0x1] %vm76, %v41
  %v112 = vld [vmem:[%s0] sm:$0x1]
  %v113 = vld [vmem:[%s0 + $0x1] sm:$0x1]
  %v114 = vld [vmem:[%s0 + $0x2] sm:$0x1]
  %v115 = vld [vmem:[%s0 + $0x3] sm:$0x1]
  %v116 = vld [vmem:[%s0 + $0x4] sm:$0x1]
  %v117 = vld [vmem:[%s0 + $0x5] sm:$0x1]
  %v118 = vld [vmem:[%s0 + $0x6] sm:$0x1]
  %v119 = vld [vmem:[%s0 + $0x7] sm:$0x1]
  %v120 = vld [vmem:[%s0 + $0x8] sm:$0x1]
  %v121 = vld [vmem:[%s0 + $0x9] sm:$0x1]
  %v122 = vld [vmem:[%s0 + $0xa] sm:$0x1]
  %v123 = vld [vmem:[%s0 + $0xb] sm:$0x1]
  %v124 = vld [vmem:[%s0 + $0xc] sm:$0x1]
  %v125 = vld [vmem:[%s0 + $0xd] sm:$0x1]
  %v126 = vld [vmem:[%s0 + $0xe] sm:$0x1]
  %v127 = vld [vmem:[%s0 + $0xf] sm:$0x1]
  %v128 = vld [vmem:[%s0 + $0x10] sm:$0x1]
  %v129 = vld [vmem:[%s0 + $0x11] sm:$0x1]
  %v130 = vld [vmem:[%s0 + $0x12] sm:$0x1]
  %v131 = vld [vmem:[%s0 + $0x13] sm:$0x1]
  %v132 = vld [vmem:[%s0 + $0x14] sm:$0x1]
  %v133 = vld [vmem:[%s0 + $0x15] sm:$0x1]
  %v134 = vld [vmem:[%s0 + $0x16] sm:$0x1]
  %v135 = vld [vmem:[%s0 + $0x17] sm:$0x1]
  %v136 = vld [vmem:[%s0 + $0x18] sm:$0x1]
  %v137 = vld [vmem:[%s0 + $0x19] sm:$0x1]
  %v138 = vld [vmem:[%s0 + $0x1a] sm:$0x1]
  %v139 = vld [vmem:[%s0 + $0x1b] sm:$0x1]
  %v140 = vld [vmem:[%s0 + $0x1c] sm:$0x1]
  %v141 = vld [vmem:[%s0 + $0x1d] sm:$0x1]
  %v142 = vld [vmem:[%s0 + $0x1e] sm:$0x1]
  %v143 = vld [vmem:[%s0 + $0x1f] sm:$0x1]
  %v144 = vld [vmem:[%s0 + $0x20] sm:$0x1]
  %v145 = vld [vmem:[%s0 + $0x21] sm:$0x1]
  %v146 = vld [vmem:[%s0 + $0x22] sm:$0x1]
  %v147 = vld [vmem:[%s0 + $0x23] sm:$0x1]
  %v148 = vld [vmem:[%s0 + $0x24] sm:$0x1]
  %v149 = vld [vmem:[%s0 + $0x25] sm:$0x1]
  %v150 = vld [vmem:[%s0 + $0x26] sm:$0x1]
  %v151 = vld [vmem:[%s0 + $0x27] sm:$0x1]
  %v152 = vld [vmem:[%s0 + $0x28] sm:$0x1]
  %v153 = vld [vmem:[%s0 + $0x29] sm:$0x1]
  %v154 = vld [vmem:[%s0 + $0x2a] sm:$0x1]
  %v155 = vld [vmem:[%s0 + $0x2b] sm:$0x1]
  %v156 = vld [vmem:[%s0 + $0x2c] sm:$0x1]
  %v157 = vld [vmem:[%s0 + $0x2d] sm:$0x1]
  %v158 = vld [vmem:[%s0 + $0x2e] sm:$0x1]
  %v159 = vld [vmem:[%s0 + $0x2f] sm:$0x1]
  %v160 = vld [vmem:[%s0 + $0x30] sm:$0x1]
  %v161 = vld [vmem:[%s0 + $0x31] sm:$0x1]
  %v162 = vld [vmem:[%s0 + $0x32] sm:$0x1]
  %v163 = vld [vmem:[%s0 + $0x33] sm:$0x1]
  %v164 = vld [vmem:[%s0 + $0x34] sm:$0x1]
  %v165 = vld [vmem:[%s0 + $0x35] sm:$0x1]
  %v166 = vld [vmem:[%s0 + $0x36] sm:$0x1]
  %v167 = vld [vmem:[%s0 + $0x37] sm:$0x1]
  %v168 = vld [vmem:[%s0 + $0x38] sm:$0x1]
  %v169 = vld [vmem:[%s0 + $0x39] sm:$0x1]
  %v170 = vld [vmem:[%s0 + $0x3a] sm:$0x1]
  %v171 = vld [vmem:[%s0 + $0x3b] sm:$0x1]
  %v172 = vld [vmem:[%s0 + $0x3c] sm:$0x1]
  %v173 = vld [vmem:[%s0 + $0x3d] sm:$0x1]
  %v174 = vld [vmem:[%s0 + $0x3e] sm:$0x1]
  %v175 = vld [vmem:[%s0 + $0x3f] sm:$0x1]
  %v176 = vld [vmem:[%s0 + $0x40] sm:$0x1]
  %v177 = vld [vmem:[%s0 + $0x41] sm:$0x1]
  %v178 = vld [vmem:[%s0 + $0x42] sm:$0x1]
  %v179 = vld [vmem:[%s0 + $0x43] sm:$0x1]
  %v180 = vld [vmem:[%s0 + $0x44] sm:$0x1]
  %v181 = vld [vmem:[%s0 + $0x45] sm:$0x1]
  %v182 = vld [vmem:[%s0 + $0x46] sm:$0x1]
  %v183 = vld [vmem:[%s0 + $0x47] sm:$0x1]
  %v184 = vld [vmem:[%s0 + $0x48] sm:$0x1]
  %v185 = vld [vmem:[%s0 + $0x49] sm:$0x1]
  %v186 = vld [vmem:[%s0 + $0x4a] sm:$0x1]
  %v187 = vld [vmem:[%s0 + $0x4b] sm:$0x1]
  %v188 = vld [vmem:[%s0 + $0x4c] sm:$0x1]
  %v189 = vld [vmem:[%s0 + $0x4d] sm:$0x1]
  %v190 = vld [vmem:[%s0 + $0x4e] sm:$0x1]
  %v191 = vld [vmem:[%s0 + $0x4f] sm:$0x1]
  %v192 = vld [vmem:[%s0 + $0x50] sm:$0x1]
  %v193 = vld [vmem:[%s0 + $0x51] sm:$0x1]
  %v194 = vld [vmem:[%s0 + $0x52] sm:$0x1]
  %v195 = vld [vmem:[%s0 + $0x53] sm:$0x1]
  %v196 = vld [vmem:[%s0 + $0x54] sm:$0x1]
  %v197 = vld [vmem:[%s0 + $0x55] sm:$0x1]
  %v198 = vld [vmem:[%s0 + $0x56] sm:$0x1]
  %v199 = vld [vmem:[%s0 + $0x57] sm:$0x1]
  %v200 = vld [vmem:[%s0 + $0x58] sm:$0x1]
  %v201 = vld [vmem:[%s0 + $0x59] sm:$0x1]
  %v202 = vld [vmem:[%s0 + $0x5a] sm:$0x1]
  %v203 = vld [vmem:[%s0 + $0x5b] sm:$0x1]
  %v204 = vld [vmem:[%s0 + $0x5c] sm:$0x1]
  %v205 = vld [vmem:[%s0 + $0x5d] sm:$0x1]
  %v206 = vld [vmem:[%s0 + $0x5e] sm:$0x1]
  %v207 = vld [vmem:[%s0 + $0x5f] sm:$0x1]
  %v208 = vld [vmem:[%s0 + $0x60] sm:$0x1]
  %v209 = vld [vmem:[%s0 + $0x61] sm:$0x1]
  %v210 = vld [vmem:[%s0 + $0x62] sm:$0x1]
  %v211 = vld [vmem:[%s0 + $0x63] sm:$0x1]
  %v212 = vld [vmem:[%s0 + $0x64] sm:$0x1]
  %v213 = vld [vmem:[%s0 + $0x65] sm:$0x1]
  %v214 = vld [vmem:[%s0 + $0x66] sm:$0x1]
  %v215 = vld [vmem:[%s0 + $0x67] sm:$0x1]
  %v216 = vld [vmem:[%s0 + $0x68] sm:$0x1]
  %v217 = vld [vmem:[%s0 + $0x69] sm:$0x1]
  %v218 = vld [vmem:[%s0 + $0x6a] sm:$0x1]
  %v219 = vld [vmem:[%s0 + $0x6b] sm:$0x1]
  %v220 = vld [vmem:[%s0 + $0x6c] sm:$0x1]
  %v221 = vld [vmem:[%s0 + $0x6d] sm:$0x1]
  %v222 = vld [vmem:[%s0 + $0x6e] sm:$0x1]
  %v223 = vld [vmem:[%s0 + $0x6f] sm:$0x1]
  %v224 = vld [vmem:[%s0 + $0x70] sm:$0x1]
  %v225 = vld [vmem:[%s0 + $0x71] sm:$0x1]
  %v226 = vld [vmem:[%s0 + $0x72] sm:$0x1]
  %v227 = vld [vmem:[%s0 + $0x73] sm:$0x1]
  %v228 = vld [vmem:[%s0 + $0x74] sm:$0x1]
  %v229 = vld [vmem:[%s0 + $0x75] sm:$0x1]
  %v230 = vld [vmem:[%s0 + $0x76] sm:$0x1]
  %v231 = vld [vmem:[%s0 + $0x77] sm:$0x1]
  %v232 = vld [vmem:[%s0 + $0x78] sm:$0x1]
  %v233 = vld [vmem:[%s0 + $0x79] sm:$0x1]
  %v234 = vld [vmem:[%s0 + $0x7a] sm:$0x1]
  %v235 = vld [vmem:[%s0 + $0x7b] sm:$0x1]
  %v236 = vld [vmem:[%s0 + $0x7c] sm:$0x1]
  %v237 = vld [vmem:[%s0 + $0x7d] sm:$0x1]
  %v238 = vld [vmem:[%s0 + $0x7e] sm:$0x1]
  %v239 = vld [vmem:[%s0 + $0x7f] sm:$0x1]
  %v240 = vld [vmem:[%s0 + $0x80] sm:$0x1]
  %v241 = vld [vmem:[%s0 + $0x81] sm:$0x1]
  %v242 = vld [vmem:[%s0 + $0x82] sm:$0x1]
  %v243 = vld [vmem:[%s0 + $0x83] sm:$0x1]
  %v244 = vld [vmem:[%s0 + $0x84] sm:$0x1]
  %v245 = vld [vmem:[%s0 + $0x85] sm:$0x1]
  %v246 = vld [vmem:[%s0 + $0x86] sm:$0x1]
  %v247 = vld [vmem:[%s0 + $0x87] sm:$0x1]
  %v248 = vld [vmem:[%s0 + $0x88] sm:$0x1]
  %v249 = vld [vmem:[%s0 + $0x89] sm:$0x1]
  %v250 = vld [vmem:[%s0 + $0x8a] sm:$0x1]
  %v251 = vld [vmem:[%s0 + $0x8b] sm:$0x1]
  %v252 = vld [vmem:[%s0 + $0x8c] sm:$0x1]
  %v253 = vld [vmem:[%s0 + $0x8d] sm:$0x1]
  %v254 = vld [vmem:[%s0 + $0x8e] sm:$0x1]
  %v255 = vld [vmem:[%s0 + $0x8f] sm:$0x1]
  %v256 = vld [vmem:[%s0 + $0x90] sm:$0x1]
  %v257 = vld [vmem:[%s0 + $0x91] sm:$0x1]
  %v258 = vld [vmem:[%s0 + $0x92] sm:$0x1]
  %v259 = vld [vmem:[%s0 + $0x93] sm:$0x1]
  %v260 = vld [vmem:[%s0 + $0x94] sm:$0x1]
  %v261 = vld [vmem:[%s0 + $0x95] sm:$0x1]
  %v262 = vld [vmem:[%s0 + $0x96] sm:$0x1]
  %v263 = vld [vmem:[%s0 + $0x97] sm:$0x1]
  %v264 = vld [vmem:[%s0 + $0x98] sm:$0x1]
  %v265 = vld [vmem:[%s0 + $0x99] sm:$0x1]
  %v266 = vld [vmem:[%s0 + $0x9a] sm:$0x1]
  %v267 = vld [vmem:[%s0 + $0x9b] sm:$0x1]
  %v268 = vld [vmem:[%s0 + $0x9c] sm:$0x1]
  %v269 = vld [vmem:[%s0 + $0x9d] sm:$0x1]
  %v270 = vld [vmem:[%s0 + $0x9e] sm:$0x1]
  %v271 = vld [vmem:[%s0 + $0x9f] sm:$0x1]
  %v272 = vld [vmem:[%s0 + $0xa0] sm:$0x1]
  %v273 = vld [vmem:[%s0 + $0xa1] sm:$0x1]
  %v274 = vld [vmem:[%s0 + $0xa2] sm:$0x1]
  %v275 = vld [vmem:[%s0 + $0xa3] sm:$0x1]
  %v276 = vld [vmem:[%s0 + $0xa4] sm:$0x1]
  %v277 = vld [vmem:[%s0 + $0xa5] sm:$0x1]
  %v278 = vld [vmem:[%s0 + $0xa6] sm:$0x1]
  %v279 = vld [vmem:[%s0 + $0xa7] sm:$0x1]
  %v280 = vld [vmem:[%s0 + $0xa8] sm:$0x1]
  %v281 = vld [vmem:[%s0 + $0xa9] sm:$0x1]
  %v282 = vld [vmem:[%s0 + $0xaa] sm:$0x1]
  %v283 = vld [vmem:[%s0 + $0xab] sm:$0x1]
  %v284 = vld [vmem:[%s0 + $0xac] sm:$0x1]
  %v285 = vld [vmem:[%s0 + $0xad] sm:$0x1]
  %v286 = vld [vmem:[%s0 + $0xae] sm:$0x1]
  %v287 = vld [vmem:[%s0 + $0xaf] sm:$0x1]
  %v288 = vld [vmem:[%s0 + $0xb0] sm:$0x1]
  %v289 = vld [vmem:[%s0 + $0xb1] sm:$0x1]
  %v290 = vld [vmem:[%s0 + $0xb2] sm:$0x1]
  %v291 = vld [vmem:[%s0 + $0xb3] sm:$0x1]
  %v292 = vld [vmem:[%s0 + $0xb4] sm:$0x1]
  %v293 = vld [vmem:[%s0 + $0xb5] sm:$0x1]
  %v294 = vld [vmem:[%s0 + $0xb6] sm:$0x1]
  %v295 = vld [vmem:[%s0 + $0xb7] sm:$0x1]
  %v296 = vld [vmem:[%s0 + $0xb8] sm:$0x1]
  %v297 = vld [vmem:[%s0 + $0xb9] sm:$0x1]
  %v298 = vld [vmem:[%s0 + $0xba] sm:$0x1]
  %v299 = vld [vmem:[%s0 + $0xbb] sm:$0x1]
  %v300 = vld [vmem:[%s0 + $0xbc] sm:$0x1]
  %v301 = vld [vmem:[%s0 + $0xbd] sm:$0x1]
  %v302 = vld [vmem:[%s0 + $0xbe] sm:$0x1]
  %v303 = vld [vmem:[%s0 + $0xbf] sm:$0x1]
  %v304 = vld [vmem:[%s0 + $0xc0] sm:$0x1]
  %v305 = vld [vmem:[%s0 + $0xc1] sm:$0x1]
  %v306 = vld [vmem:[%s0 + $0xc2] sm:$0x1]
  %v307 = vld [vmem:[%s0 + $0xc3] sm:$0x1]
  %v308 = vld [vmem:[%s0 + $0xc4] sm:$0x1]
  %v309 = vld [vmem:[%s0 + $0xc5] sm:$0x1]
  %v310 = vld [vmem:[%s0 + $0xc6] sm:$0x1]
  %v311 = vld [vmem:[%s0 + $0xc7] sm:$0x1]
  %v312 = vld [vmem:[%s0 + $0xc8] sm:$0x1]
  %v313 = vld [vmem:[%s0 + $0xc9] sm:$0x1]
  %v314 = vld [vmem:[%s0 + $0xca] sm:$0x1]
  %v315 = vld [vmem:[%s0 + $0xcb] sm:$0x1]
  %v316 = vld [vmem:[%s0 + $0xcc] sm:$0x1]
  %v317 = vld [vmem:[%s0 + $0xcd] sm:$0x1]
  %v318 = vld [vmem:[%s0 + $0xce] sm:$0x1]
  %v319 = vld [vmem:[%s0 + $0xcf] sm:$0x1]
  %v320 = vld [vmem:[%s0 + $0xd0] sm:$0x1]
  %v321 = vld [vmem:[%s0 + $0xd1] sm:$0x1]
  %v322 = vld [vmem:[%s0 + $0xd2] sm:$0x1]
  %v323 = vld [vmem:[%s0 + $0xd3] sm:$0x1]
  %v324 = vld [vmem:[%s0 + $0xd4] sm:$0x1]
  %v325 = vld [vmem:[%s0 + $0xd5] sm:$0x1]
  %v326 = vld [vmem:[%s0 + $0xd6] sm:$0x1]
  %v327 = vld [vmem:[%s0 + $0xd7] sm:$0x1]
  %v328 = vld [vmem:[%s0 + $0xd8] sm:$0x1]
  %v329 = vld [vmem:[%s0 + $0xd9] sm:$0x1]
  %v330 = vld [vmem:[%s0 + $0xda] sm:$0x1]
  %v331 = vld [vmem:[%s0 + $0xdb] sm:$0x1]
  %v332 = vld [vmem:[%s0 + $0xdc] sm:$0x1]
  %v333 = vld [vmem:[%s0 + $0xdd] sm:$0x1]
  %v334 = vld [vmem:[%s0 + $0xde] sm:$0x1]
  %v335 = vld [vmem:[%s0 + $0xdf] sm:$0x1]
  %v336 = vld [vmem:[%s0 + $0xe0] sm:$0x1]
  %v337 = vld [vmem:[%s0 + $0xe1] sm:$0x1]
  %v338 = vld [vmem:[%s0 + $0xe2] sm:$0x1]
  %v339 = vld [vmem:[%s0 + $0xe3] sm:$0x1]
  %v340 = vld [vmem:[%s0 + $0xe4] sm:$0x1]
  %v341 = vld [vmem:[%s0 + $0xe5] sm:$0x1]
  %v342 = vld [vmem:[%s0 + $0xe6] sm:$0x1]
  %v343 = vld [vmem:[%s0 + $0xe7] sm:$0x1]
  %v344 = vld [vmem:[%s0 + $0xe8] sm:$0x1]
  %v345 = vld [vmem:[%s0 + $0xe9] sm:$0x1]
  %v346 = vld [vmem:[%s0 + $0xea] sm:$0x1]
  %v347 = vld [vmem:[%s0 + $0xeb] sm:$0x1]
  %v348 = vld [vmem:[%s0 + $0xec] sm:$0x1]
  %v349 = vld [vmem:[%s0 + $0xed] sm:$0x1]
  %v350 = vld [vmem:[%s0 + $0xee] sm:$0x1]
  %v351 = vld [vmem:[%s0 + $0xef] sm:$0x1]
  %v352 = vld [vmem:[%s0 + $0xf0] sm:$0x1]
  %v353 = vld [vmem:[%s0 + $0xf1] sm:$0x1]
  %v354 = vld [vmem:[%s0 + $0xf2] sm:$0x1]
  %v355 = vld [vmem:[%s0 + $0xf3] sm:$0x1]
  %v356 = vld [vmem:[%s0 + $0xf4] sm:$0x1]
  %v357 = vld [vmem:[%s0 + $0xf5] sm:$0x1]
  %v358 = vld [vmem:[%s0 + $0xf6] sm:$0x1]
  %v359 = vld [vmem:[%s0 + $0xf7] sm:$0x1]
  %v360 = vld [vmem:[%s0 + $0xf8] sm:$0x1]
  %v361 = vld [vmem:[%s0 + $0xf9] sm:$0x1]
  %v362 = vld [vmem:[%s0 + $0xfa] sm:$0x1]
  %v363 = vld [vmem:[%s0 + $0xfb] sm:$0x1]
  %v364 = vld [vmem:[%s0 + $0xfc] sm:$0x1]
  %v365 = vld [vmem:[%s0 + $0xfd] sm:$0x1]
  %v366 = vld [vmem:[%s0 + $0xfe] sm:$0x1]
  %v367 = vld [vmem:[%s0 + $0xff] sm:$0x1]
  %s368 = scalar_lea.vmem %s1, 19
  %369 = vst.msk [vmem:[%s368] sm:$0x1] %vm76, %v112
  %370 = vst.msk [vmem:[%s368 + $0x1] sm:$0x1] %vm76, %v113
  %371 = vst.msk [vmem:[%s368 + $0x2] sm:$0x1] %vm76, %v114
  %372 = vst.msk [vmem:[%s368 + $0x3] sm:$0x1] %vm76, %v115
  %373 = vst.msk [vmem:[%s368 + $0x4] sm:$0x1] %vm76, %v116
  %374 = vst.msk [vmem:[%s368 + $0x5] sm:$0x1] %vm76, %v117
  %375 = vst.msk [vmem:[%s368 + $0x6] sm:$0x1] %vm76, %v118
  %376 = vst.msk [vmem:[%s368 + $0x7] sm:$0x1] %vm76, %v119
  %377 = vst.msk [vmem:[%s368 + $0x8] sm:$0x1] %vm76, %v120
  %378 = vst.msk [vmem:[%s368 + $0x9] sm:$0x1] %vm76, %v121
  %379 = vst.msk [vmem:[%s368 + $0xa] sm:$0x1] %vm76, %v122
  %380 = vst.msk [vmem:[%s368 + $0xb] sm:$0x1] %vm76, %v123
  %381 = vst.msk [vmem:[%s368 + $0xc] sm:$0x1] %vm76, %v124
  %382 = vst.msk [vmem:[%s368 + $0xd] sm:$0x1] %vm76, %v125
  %383 = vst.msk [vmem:[%s368 + $0xe] sm:$0x1] %vm76, %v126
  %384 = vst.msk [vmem:[%s368 + $0xf] sm:$0x1] %vm76, %v127
  %385 = vst.msk [vmem:[%s368 + $0x12] sm:$0x1] %vm76, %v128
  %386 = vst.msk [vmem:[%s368 + $0x13] sm:$0x1] %vm76, %v129
  %387 = vst.msk [vmem:[%s368 + $0x14] sm:$0x1] %vm76, %v130
  %388 = vst.msk [vmem:[%s368 + $0x15] sm:$0x1] %vm76, %v131
  %389 = vst.msk [vmem:[%s368 + $0x16] sm:$0x1] %vm76, %v132
  %390 = vst.msk [vmem:[%s368 + $0x17] sm:$0x1] %vm76, %v133
  %391 = vst.msk [vmem:[%s368 + $0x18] sm:$0x1] %vm76, %v134
  %392 = vst.msk [vmem:[%s368 + $0x19] sm:$0x1] %vm76, %v135
  %393 = vst.msk [vmem:[%s368 + $0x1a] sm:$0x1] %vm76, %v136
  %394 = vst.msk [vmem:[%s368 + $0x1b] sm:$0x1] %vm76, %v137
  %395 = vst.msk [vmem:[%s368 + $0x1c] sm:$0x1] %vm76, %v138
  %396 = vst.msk [vmem:[%s368 + $0x1d] sm:$0x1] %vm76, %v139
  %397 = vst.msk [vmem:[%s368 + $0x1e] sm:$0x1] %vm76, %v140
  %398 = vst.msk [vmem:[%s368 + $0x1f] sm:$0x1] %vm76, %v141
  %399 = vst.msk [vmem:[%s368 + $0x20] sm:$0x1] %vm76, %v142
  %400 = vst.msk [vmem:[%s368 + $0x21] sm:$0x1] %vm76, %v143
  %401 = vst.msk [vmem:[%s368 + $0x24] sm:$0x1] %vm76, %v144
  %402 = vst.msk [vmem:[%s368 + $0x25] sm:$0x1] %vm76, %v145
  %403 = vst.msk [vmem:[%s368 + $0x26] sm:$0x1] %vm76, %v146
  %404 = vst.msk [vmem:[%s368 + $0x27] sm:$0x1] %vm76, %v147
  %405 = vst.msk [vmem:[%s368 + $0x28] sm:$0x1] %vm76, %v148
  %406 = vst.msk [vmem:[%s368 + $0x29] sm:$0x1] %vm76, %v149
  %407 = vst.msk [vmem:[%s368 + $0x2a] sm:$0x1] %vm76, %v150
  %408 = vst.msk [vmem:[%s368 + $0x2b] sm:$0x1] %vm76, %v151
  %409 = vst.msk [vmem:[%s368 + $0x2c] sm:$0x1] %vm76, %v152
  %410 = vst.msk [vmem:[%s368 + $0x2d] sm:$0x1] %vm76, %v153
  %411 = vst.msk [vmem:[%s368 + $0x2e] sm:$0x1] %vm76, %v154
  %412 = vst.msk [vmem:[%s368 + $0x2f] sm:$0x1] %vm76, %v155
  %413 = vst.msk [vmem:[%s368 + $0x30] sm:$0x1] %vm76, %v156
  %414 = vst.msk [vmem:[%s368 + $0x31] sm:$0x1] %vm76, %v157
  %415 = vst.msk [vmem:[%s368 + $0x32] sm:$0x1] %vm76, %v158
  %416 = vst.msk [vmem:[%s368 + $0x33] sm:$0x1] %vm76, %v159
  %417 = vst.msk [vmem:[%s368 + $0x36] sm:$0x1] %vm76, %v160
  %418 = vst.msk [vmem:[%s368 + $0x37] sm:$0x1] %vm76, %v161
  %419 = vst.msk [vmem:[%s368 + $0x38] sm:$0x1] %vm76, %v162
  %420 = vst.msk [vmem:[%s368 + $0x39] sm:$0x1] %vm76, %v163
  %421 = vst.msk [vmem:[%s368 + $0x3a] sm:$0x1] %vm76, %v164
  %422 = vst.msk [vmem:[%s368 + $0x3b] sm:$0x1] %vm76, %v165
  %423 = vst.msk [vmem:[%s368 + $0x3c] sm:$0x1] %vm76, %v166
  %424 = vst.msk [vmem:[%s368 + $0x3d] sm:$0x1] %vm76, %v167
  %425 = vst.msk [vmem:[%s368 + $0x3e] sm:$0x1] %vm76, %v168
  %426 = vst.msk [vmem:[%s368 + $0x3f] sm:$0x1] %vm76, %v169
  %427 = vst.msk [vmem:[%s368 + $0x40] sm:$0x1] %vm76, %v170
  %428 = vst.msk [vmem:[%s368 + $0x41] sm:$0x1] %vm76, %v171
  %429 = vst.msk [vmem:[%s368 + $0x42] sm:$0x1] %vm76, %v172
  %430 = vst.msk [vmem:[%s368 + $0x43] sm:$0x1] %vm76, %v173
  %431 = vst.msk [vmem:[%s368 + $0x44] sm:$0x1] %vm76, %v174
  %432 = vst.msk [vmem:[%s368 + $0x45] sm:$0x1] %vm76, %v175
  %433 = vst.msk [vmem:[%s368 + $0x48] sm:$0x1] %vm76, %v176
  %434 = vst.msk [vmem:[%s368 + $0x49] sm:$0x1] %vm76, %v177
  %435 = vst.msk [vmem:[%s368 + $0x4a] sm:$0x1] %vm76, %v178
  %436 = vst.msk [vmem:[%s368 + $0x4b] sm:$0x1] %vm76, %v179
  %437 = vst.msk [vmem:[%s368 + $0x4c] sm:$0x1] %vm76, %v180
  %438 = vst.msk [vmem:[%s368 + $0x4d] sm:$0x1] %vm76, %v181
  %439 = vst.msk [vmem:[%s368 + $0x4e] sm:$0x1] %vm76, %v182
  %440 = vst.msk [vmem:[%s368 + $0x4f] sm:$0x1] %vm76, %v183
  %441 = vst.msk [vmem:[%s368 + $0x50] sm:$0x1] %vm76, %v184
  %442 = vst.msk [vmem:[%s368 + $0x51] sm:$0x1] %vm76, %v185
  %443 = vst.msk [vmem:[%s368 + $0x52] sm:$0x1] %vm76, %v186
  %444 = vst.msk [vmem:[%s368 + $0x53] sm:$0x1] %vm76, %v187
  %445 = vst.msk [vmem:[%s368 + $0x54] sm:$0x1] %vm76, %v188
  %446 = vst.msk [vmem:[%s368 + $0x55] sm:$0x1] %vm76, %v189
  %447 = vst.msk [vmem:[%s368 + $0x56] sm:$0x1] %vm76, %v190
  %448 = vst.msk [vmem:[%s368 + $0x57] sm:$0x1] %vm76, %v191
  %449 = vst.msk [vmem:[%s368 + $0x5a] sm:$0x1] %vm76, %v192
  %450 = vst.msk [vmem:[%s368 + $0x5b] sm:$0x1] %vm76, %v193
  %451 = vst.msk [vmem:[%s368 + $0x5c] sm:$0x1] %vm76, %v194
  %452 = vst.msk [vmem:[%s368 + $0x5d] sm:$0x1] %vm76, %v195
  %453 = vst.msk [vmem:[%s368 + $0x5e] sm:$0x1] %vm76, %v196
  %454 = vst.msk [vmem:[%s368 + $0x5f] sm:$0x1] %vm76, %v197
  %455 = vst.msk [vmem:[%s368 + $0x60] sm:$0x1] %vm76, %v198
  %456 = vst.msk [vmem:[%s368 + $0x61] sm:$0x1] %vm76, %v199
  %457 = vst.msk [vmem:[%s368 + $0x62] sm:$0x1] %vm76, %v200
  %458 = vst.msk [vmem:[%s368 + $0x63] sm:$0x1] %vm76, %v201
  %459 = vst.msk [vmem:[%s368 + $0x64] sm:$0x1] %vm76, %v202
  %460 = vst.msk [vmem:[%s368 + $0x65] sm:$0x1] %vm76, %v203
  %461 = vst.msk [vmem:[%s368 + $0x66] sm:$0x1] %vm76, %v204
  %462 = vst.msk [vmem:[%s368 + $0x67] sm:$0x1] %vm76, %v205
  %463 = vst.msk [vmem:[%s368 + $0x68] sm:$0x1] %vm76, %v206
  %464 = vst.msk [vmem:[%s368 + $0x69] sm:$0x1] %vm76, %v207
  %465 = vst.msk [vmem:[%s368 + $0x6c] sm:$0x1] %vm76, %v208
  %466 = vst.msk [vmem:[%s368 + $0x6d] sm:$0x1] %vm76, %v209
  %467 = vst.msk [vmem:[%s368 + $0x6e] sm:$0x1] %vm76, %v210
  %468 = vst.msk [vmem:[%s368 + $0x6f] sm:$0x1] %vm76, %v211
  %469 = vst.msk [vmem:[%s368 + $0x70] sm:$0x1] %vm76, %v212
  %470 = vst.msk [vmem:[%s368 + $0x71] sm:$0x1] %vm76, %v213
  %471 = vst.msk [vmem:[%s368 + $0x72] sm:$0x1] %vm76, %v214
  %472 = vst.msk [vmem:[%s368 + $0x73] sm:$0x1] %vm76, %v215
  %473 = vst.msk [vmem:[%s368 + $0x74] sm:$0x1] %vm76, %v216
  %474 = vst.msk [vmem:[%s368 + $0x75] sm:$0x1] %vm76, %v217
  %475 = vst.msk [vmem:[%s368 + $0x76] sm:$0x1] %vm76, %v218
  %476 = vst.msk [vmem:[%s368 + $0x77] sm:$0x1] %vm76, %v219
  %477 = vst.msk [vmem:[%s368 + $0x78] sm:$0x1] %vm76, %v220
  %478 = vst.msk [vmem:[%s368 + $0x79] sm:$0x1] %vm76, %v221
  %479 = vst.msk [vmem:[%s368 + $0x7a] sm:$0x1] %vm76, %v222
  %480 = vst.msk [vmem:[%s368 + $0x7b] sm:$0x1] %vm76, %v223
  %481 = vst.msk [vmem:[%s368 + $0x7e] sm:$0x1] %vm76, %v224
  %482 = vst.msk [vmem:[%s368 + $0x7f] sm:$0x1] %vm76, %v225
  %483 = vst.msk [vmem:[%s368 + $0x80] sm:$0x1] %vm76, %v226
  %484 = vst.msk [vmem:[%s368 + $0x81] sm:$0x1] %vm76, %v227
  %485 = vst.msk [vmem:[%s368 + $0x82] sm:$0x1] %vm76, %v228
  %486 = vst.msk [vmem:[%s368 + $0x83] sm:$0x1] %vm76, %v229
  %487 = vst.msk [vmem:[%s368 + $0x84] sm:$0x1] %vm76, %v230
  %488 = vst.msk [vmem:[%s368 + $0x85] sm:$0x1] %vm76, %v231
  %489 = vst.msk [vmem:[%s368 + $0x86] sm:$0x1] %vm76, %v232
  %490 = vst.msk [vmem:[%s368 + $0x87] sm:$0x1] %vm76, %v233
  %491 = vst.msk [vmem:[%s368 + $0x88] sm:$0x1] %vm76, %v234
  %492 = vst.msk [vmem:[%s368 + $0x89] sm:$0x1] %vm76, %v235
  %493 = vst.msk [vmem:[%s368 + $0x8a] sm:$0x1] %vm76, %v236
  %494 = vst.msk [vmem:[%s368 + $0x8b] sm:$0x1] %vm76, %v237
  %495 = vst.msk [vmem:[%s368 + $0x8c] sm:$0x1] %vm76, %v238
  %496 = vst.msk [vmem:[%s368 + $0x8d] sm:$0x1] %vm76, %v239
  %497 = vst.msk [vmem:[%s368 + $0x90] sm:$0x1] %vm76, %v240
  %498 = vst.msk [vmem:[%s368 + $0x91] sm:$0x1] %vm76, %v241
  %499 = vst.msk [vmem:[%s368 + $0x92] sm:$0x1] %vm76, %v242
  %500 = vst.msk [vmem:[%s368 + $0x93] sm:$0x1] %vm76, %v243
  %501 = vst.msk [vmem:[%s368 + $0x94] sm:$0x1] %vm76, %v244
  %502 = vst.msk [vmem:[%s368 + $0x95] sm:$0x1] %vm76, %v245
  %503 = vst.msk [vmem:[%s368 + $0x96] sm:$0x1] %vm76, %v246
  %504 = vst.msk [vmem:[%s368 + $0x97] sm:$0x1] %vm76, %v247
  %505 = vst.msk [vmem:[%s368 + $0x98] sm:$0x1] %vm76, %v248
  %506 = vst.msk [vmem:[%s368 + $0x99] sm:$0x1] %vm76, %v249
  %507 = vst.msk [vmem:[%s368 + $0x9a] sm:$0x1] %vm76, %v250
  %508 = vst.msk [vmem:[%s368 + $0x9b] sm:$0x1] %vm76, %v251
  %509 = vst.msk [vmem:[%s368 + $0x9c] sm:$0x1] %vm76, %v252
  %510 = vst.msk [vmem:[%s368 + $0x9d] sm:$0x1] %vm76, %v253
  %511 = vst.msk [vmem:[%s368 + $0x9e] sm:$0x1] %vm76, %v254
  %512 = vst.msk [vmem:[%s368 + $0x9f] sm:$0x1] %vm76, %v255
  %513 = vst.msk [vmem:[%s368 + $0xa2] sm:$0x1] %vm76, %v256
  %514 = vst.msk [vmem:[%s368 + $0xa3] sm:$0x1] %vm76, %v257
  %515 = vst.msk [vmem:[%s368 + $0xa4] sm:$0x1] %vm76, %v258
  %516 = vst.msk [vmem:[%s368 + $0xa5] sm:$0x1] %vm76, %v259
  %517 = vst.msk [vmem:[%s368 + $0xa6] sm:$0x1] %vm76, %v260
  %518 = vst.msk [vmem:[%s368 + $0xa7] sm:$0x1] %vm76, %v261
  %519 = vst.msk [vmem:[%s368 + $0xa8] sm:$0x1] %vm76, %v262
  %520 = vst.msk [vmem:[%s368 + $0xa9] sm:$0x1] %vm76, %v263
  %521 = vst.msk [vmem:[%s368 + $0xaa] sm:$0x1] %vm76, %v264
  %522 = vst.msk [vmem:[%s368 + $0xab] sm:$0x1] %vm76, %v265
  %523 = vst.msk [vmem:[%s368 + $0xac] sm:$0x1] %vm76, %v266
  %524 = vst.msk [vmem:[%s368 + $0xad] sm:$0x1] %vm76, %v267
  %525 = vst.msk [vmem:[%s368 + $0xae] sm:$0x1] %vm76, %v268
  %526 = vst.msk [vmem:[%s368 + $0xaf] sm:$0x1] %vm76, %v269
  %527 = vst.msk [vmem:[%s368 + $0xb0] sm:$0x1] %vm76, %v270
  %528 = vst.msk [vmem:[%s368 + $0xb1] sm:$0x1] %vm76, %v271
  %529 = vst.msk [vmem:[%s368 + $0xb4] sm:$0x1] %vm76, %v272
  %530 = vst.msk [vmem:[%s368 + $0xb5] sm:$0x1] %vm76, %v273
  %531 = vst.msk [vmem:[%s368 + $0xb6] sm:$0x1] %vm76, %v274
  %532 = vst.msk [vmem:[%s368 + $0xb7] sm:$0x1] %vm76, %v275
  %533 = vst.msk [vmem:[%s368 + $0xb8] sm:$0x1] %vm76, %v276
  %534 = vst.msk [vmem:[%s368 + $0xb9] sm:$0x1] %vm76, %v277
  %535 = vst.msk [vmem:[%s368 + $0xba] sm:$0x1] %vm76, %v278
  %536 = vst.msk [vmem:[%s368 + $0xbb] sm:$0x1] %vm76, %v279
  %537 = vst.msk [vmem:[%s368 + $0xbc] sm:$0x1] %vm76, %v280
  %538 = vst.msk [vmem:[%s368 + $0xbd] sm:$0x1] %vm76, %v281
  %539 = vst.msk [vmem:[%s368 + $0xbe] sm:$0x1] %vm76, %v282
  %540 = vst.msk [vmem:[%s368 + $0xbf] sm:$0x1] %vm76, %v283
  %541 = vst.msk [vmem:[%s368 + $0xc0] sm:$0x1] %vm76, %v284
  %542 = vst.msk [vmem:[%s368 + $0xc1] sm:$0x1] %vm76, %v285
  %543 = vst.msk [vmem:[%s368 + $0xc2] sm:$0x1] %vm76, %v286
  %544 = vst.msk [vmem:[%s368 + $0xc3] sm:$0x1] %vm76, %v287
  %545 = vst.msk [vmem:[%s368 + $0xc6] sm:$0x1] %vm76, %v288
  %546 = vst.msk [vmem:[%s368 + $0xc7] sm:$0x1] %vm76, %v289
  %547 = vst.msk [vmem:[%s368 + $0xc8] sm:$0x1] %vm76, %v290
  %548 = vst.msk [vmem:[%s368 + $0xc9] sm:$0x1] %vm76, %v291
  %549 = vst.msk [vmem:[%s368 + $0xca] sm:$0x1] %vm76, %v292
  %550 = vst.msk [vmem:[%s368 + $0xcb] sm:$0x1] %vm76, %v293
  %551 = vst.msk [vmem:[%s368 + $0xcc] sm:$0x1] %vm76, %v294
  %552 = vst.msk [vmem:[%s368 + $0xcd] sm:$0x1] %vm76, %v295
  %553 = vst.msk [vmem:[%s368 + $0xce] sm:$0x1] %vm76, %v296
  %554 = vst.msk [vmem:[%s368 + $0xcf] sm:$0x1] %vm76, %v297
  %555 = vst.msk [vmem:[%s368 + $0xd0] sm:$0x1] %vm76, %v298
  %556 = vst.msk [vmem:[%s368 + $0xd1] sm:$0x1] %vm76, %v299
  %557 = vst.msk [vmem:[%s368 + $0xd2] sm:$0x1] %vm76, %v300
  %558 = vst.msk [vmem:[%s368 + $0xd3] sm:$0x1] %vm76, %v301
  %559 = vst.msk [vmem:[%s368 + $0xd4] sm:$0x1] %vm76, %v302
  %560 = vst.msk [vmem:[%s368 + $0xd5] sm:$0x1] %vm76, %v303
  %561 = vst.msk [vmem:[%s368 + $0xd8] sm:$0x1] %vm76, %v304
  %562 = vst.msk [vmem:[%s368 + $0xd9] sm:$0x1] %vm76, %v305
  %563 = vst.msk [vmem:[%s368 + $0xda] sm:$0x1] %vm76, %v306
  %564 = vst.msk [vmem:[%s368 + $0xdb] sm:$0x1] %vm76, %v307
  %565 = vst.msk [vmem:[%s368 + $0xdc] sm:$0x1] %vm76, %v308
  %566 = vst.msk [vmem:[%s368 + $0xdd] sm:$0x1] %vm76, %v309
  %567 = vst.msk [vmem:[%s368 + $0xde] sm:$0x1] %vm76, %v310
  %568 = vst.msk [vmem:[%s368 + $0xdf] sm:$0x1] %vm76, %v311
  %569 = vst.msk [vmem:[%s368 + $0xe0] sm:$0x1] %vm76, %v312
  %570 = vst.msk [vmem:[%s368 + $0xe1] sm:$0x1] %vm76, %v313
  %571 = vst.msk [vmem:[%s368 + $0xe2] sm:$0x1] %vm76, %v314
  %572 = vst.msk [vmem:[%s368 + $0xe3] sm:$0x1] %vm76, %v315
  %573 = vst.msk [vmem:[%s368 + $0xe4] sm:$0x1] %vm76, %v316
  %574 = vst.msk [vmem:[%s368 + $0xe5] sm:$0x1] %vm76, %v317
  %575 = vst.msk [vmem:[%s368 + $0xe6] sm:$0x1] %vm76, %v318
  %576 = vst.msk [vmem:[%s368 + $0xe7] sm:$0x1] %vm76, %v319
  %577 = vst.msk [vmem:[%s368 + $0xea] sm:$0x1] %vm76, %v320
  %578 = vst.msk [vmem:[%s368 + $0xeb] sm:$0x1] %vm76, %v321
  %579 = vst.msk [vmem:[%s368 + $0xec] sm:$0x1] %vm76, %v322
  %580 = vst.msk [vmem:[%s368 + $0xed] sm:$0x1] %vm76, %v323
  %581 = vst.msk [vmem:[%s368 + $0xee] sm:$0x1] %vm76, %v324
  %582 = vst.msk [vmem:[%s368 + $0xef] sm:$0x1] %vm76, %v325
  %583 = vst.msk [vmem:[%s368 + $0xf0] sm:$0x1] %vm76, %v326
  %584 = vst.msk [vmem:[%s368 + $0xf1] sm:$0x1] %vm76, %v327
  %585 = vst.msk [vmem:[%s368 + $0xf2] sm:$0x1] %vm76, %v328
  %586 = vst.msk [vmem:[%s368 + $0xf3] sm:$0x1] %vm76, %v329
  %587 = vst.msk [vmem:[%s368 + $0xf4] sm:$0x1] %vm76, %v330
  %588 = vst.msk [vmem:[%s368 + $0xf5] sm:$0x1] %vm76, %v331
  %589 = vst.msk [vmem:[%s368 + $0xf6] sm:$0x1] %vm76, %v332
  %590 = vst.msk [vmem:[%s368 + $0xf7] sm:$0x1] %vm76, %v333
  %591 = vst.msk [vmem:[%s368 + $0xf8] sm:$0x1] %vm76, %v334
  %592 = vst.msk [vmem:[%s368 + $0xf9] sm:$0x1] %vm76, %v335
  %593 = vst.msk [vmem:[%s368 + $0xfc] sm:$0x1] %vm76, %v336
  %594 = vst.msk [vmem:[%s368 + $0xfd] sm:$0x1] %vm76, %v337
  %595 = vst.msk [vmem:[%s368 + $0xfe] sm:$0x1] %vm76, %v338
  %596 = vst.msk [vmem:[%s368 + $0xff] sm:$0x1] %vm76, %v339
  %597 = vst.msk [vmem:[%s368 + $0x100] sm:$0x1] %vm76, %v340
  %598 = vst.msk [vmem:[%s368 + $0x101] sm:$0x1] %vm76, %v341
  %599 = vst.msk [vmem:[%s368 + $0x102] sm:$0x1] %vm76, %v342
  %600 = vst.msk [vmem:[%s368 + $0x103] sm:$0x1] %vm76, %v343
  %601 = vst.msk [vmem:[%s368 + $0x104] sm:$0x1] %vm76, %v344
  %602 = vst.msk [vmem:[%s368 + $0x105] sm:$0x1] %vm76, %v345
  %603 = vst.msk [vmem:[%s368 + $0x106] sm:$0x1] %vm76, %v346
  %604 = vst.msk [vmem:[%s368 + $0x107] sm:$0x1] %vm76, %v347
  %605 = vst.msk [vmem:[%s368 + $0x108] sm:$0x1] %vm76, %v348
  %606 = vst.msk [vmem:[%s368 + $0x109] sm:$0x1] %vm76, %v349
  %607 = vst.msk [vmem:[%s368 + $0x10a] sm:$0x1] %vm76, %v350
  %608 = vst.msk [vmem:[%s368 + $0x10b] sm:$0x1] %vm76, %v351
  %609 = vst.msk [vmem:[%s368 + $0x10e] sm:$0x1] %vm76, %v352
  %610 = vst.msk [vmem:[%s368 + $0x10f] sm:$0x1] %vm76, %v353
  %611 = vst.msk [vmem:[%s368 + $0x110] sm:$0x1] %vm76, %v354
  %612 = vst.msk [vmem:[%s368 + $0x111] sm:$0x1] %vm76, %v355
  %613 = vst.msk [vmem:[%s368 + $0x112] sm:$0x1] %vm76, %v356
  %614 = vst.msk [vmem:[%s368 + $0x113] sm:$0x1] %vm76, %v357
  %615 = vst.msk [vmem:[%s368 + $0x114] sm:$0x1] %vm76, %v358
  %616 = vst.msk [vmem:[%s368 + $0x115] sm:$0x1] %vm76, %v359
  %617 = vst.msk [vmem:[%s368 + $0x116] sm:$0x1] %vm76, %v360
  %618 = vst.msk [vmem:[%s368 + $0x117] sm:$0x1] %vm76, %v361
  %619 = vst.msk [vmem:[%s368 + $0x118] sm:$0x1] %vm76, %v362
  %620 = vst.msk [vmem:[%s368 + $0x119] sm:$0x1] %vm76, %v363
  %621 = vst.msk [vmem:[%s368 + $0x11a] sm:$0x1] %vm76, %v364
  %622 = vst.msk [vmem:[%s368 + $0x11b] sm:$0x1] %vm76, %v365
  %623 = vst.msk [vmem:[%s368 + $0x11c] sm:$0x1] %vm76, %v366
  %624 = vst.msk [vmem:[%s368 + $0x11d] sm:$0x1] %vm76, %v367
  %s625 = scalar_lea.vmem %s1, 35
  %626 = vst.msk [vmem:[%s625] sm:$0x1] %vm76, %v43
  %627 = vst.msk [vmem:[%s625 + $0x12] sm:$0x1] %vm76, %v44
  %628 = vst.msk [vmem:[%s625 + $0x24] sm:$0x1] %vm76, %v45
  %629 = vst.msk [vmem:[%s625 + $0x36] sm:$0x1] %vm76, %v46
  %630 = vst.msk [vmem:[%s625 + $0x48] sm:$0x1] %vm76, %v47
  %631 = vst.msk [vmem:[%s625 + $0x5a] sm:$0x1] %vm76, %v48
  %632 = vst.msk [vmem:[%s625 + $0x6c] sm:$0x1] %vm76, %v49
  %633 = vst.msk [vmem:[%s625 + $0x7e] sm:$0x1] %vm76, %v50
  %634 = vst.msk [vmem:[%s625 + $0x90] sm:$0x1] %vm76, %v51
  %635 = vst.msk [vmem:[%s625 + $0xa2] sm:$0x1] %vm76, %v52
  %636 = vst.msk [vmem:[%s625 + $0xb4] sm:$0x1] %vm76, %v53
  %637 = vst.msk [vmem:[%s625 + $0xc6] sm:$0x1] %vm76, %v54
  %638 = vst.msk [vmem:[%s625 + $0xd8] sm:$0x1] %vm76, %v55
  %639 = vst.msk [vmem:[%s625 + $0xea] sm:$0x1] %vm76, %v56
  %640 = vst.msk [vmem:[%s625 + $0xfc] sm:$0x1] %vm76, %v57
  %641 = vst.msk [vmem:[%s625 + $0x10e] sm:$0x1] %vm76, %v58
  %s642 = scalar_lea.vmem %s1, 306
  %643 = vst.msk [vmem:[%s642] sm:$0x1] %vm76, 0.0
  %644 = vst.msk [vmem:[%s642 + $0x1] sm:$0x1] %vm76, %v60
  %645 = vst.msk [vmem:[%s642 + $0x2] sm:$0x1] %vm76, %v61
  %646 = vst.msk [vmem:[%s642 + $0x3] sm:$0x1] %vm76, %v62
  %647 = vst.msk [vmem:[%s642 + $0x4] sm:$0x1] %vm76, %v63
  %648 = vst.msk [vmem:[%s642 + $0x5] sm:$0x1] %vm76, %v64
  %649 = vst.msk [vmem:[%s642 + $0x6] sm:$0x1] %vm76, %v65
  %650 = vst.msk [vmem:[%s642 + $0x7] sm:$0x1] %vm76, %v66
  %651 = vst.msk [vmem:[%s642 + $0x8] sm:$0x1] %vm76, %v67
  %652 = vst.msk [vmem:[%s642 + $0x9] sm:$0x1] %vm76, %v68
  %653 = vst.msk [vmem:[%s642 + $0xa] sm:$0x1] %vm76, %v69
  %654 = vst.msk [vmem:[%s642 + $0xb] sm:$0x1] %vm76, %v70
  %655 = vst.msk [vmem:[%s642 + $0xc] sm:$0x1] %vm76, %v71
  %656 = vst.msk [vmem:[%s642 + $0xd] sm:$0x1] %vm76, %v72
  %657 = vst.msk [vmem:[%s642 + $0xe] sm:$0x1] %vm76, %v73
  %658 = vst.msk [vmem:[%s642 + $0xf] sm:$0x1] %vm76, %v74
  %659 = vst.msk [vmem:[%s642 + $0x10] sm:$0x1] %vm76, %v75
  %660 = vst.msk [vmem:[%s642 + $0x11] sm:$0x1] %vm76, 0.0
  %s661 = scalar_lea.vmem %s0, 1039
  %v662 = vld [vmem:[%s661] sm:$0x1]
  %v663 = vld [vmem:[%s661 + $0x10] sm:$0x1]
  %v664 = vld [vmem:[%s661 + $0x20] sm:$0x1]
  %v665 = vld [vmem:[%s661 + $0x30] sm:$0x1]
  %v666 = vld [vmem:[%s661 + $0x40] sm:$0x1]
  %v667 = vld [vmem:[%s661 + $0x50] sm:$0x1]
  %v668 = vld [vmem:[%s661 + $0x60] sm:$0x1]
  %v669 = vld [vmem:[%s661 + $0x70] sm:$0x1]
  %v670 = vld [vmem:[%s661 + $0x80] sm:$0x1]
  %v671 = vld [vmem:[%s661 + $0x90] sm:$0x1]
  %v672 = vld [vmem:[%s661 + $0xa0] sm:$0x1]
  %v673 = vld [vmem:[%s661 + $0xb0] sm:$0x1]
  %v674 = vld [vmem:[%s661 + $0xc0] sm:$0x1]
  %v675 = vld [vmem:[%s661 + $0xd0] sm:$0x1]
  %v676 = vld [vmem:[%s661 + $0xe0] sm:$0x1]
  %v677 = vld [vmem:[%s661 + $0xf0] sm:$0x1]
  %s678 = scalar_lea.vmem %s0, 15
  %v679 = vld [vmem:[%s678] sm:$0x1]
  %v680 = vld [vmem:[%s678 + $0x10] sm:$0x1]
  %v681 = vld [vmem:[%s678 + $0x20] sm:$0x1]
  %v682 = vld [vmem:[%s678 + $0x30] sm:$0x1]
  %v683 = vld [vmem:[%s678 + $0x40] sm:$0x1]
  %v684 = vld [vmem:[%s678 + $0x50] sm:$0x1]
  %v685 = vld [vmem:[%s678 + $0x60] sm:$0x1]
  %v686 = vld [vmem:[%s678 + $0x70] sm:$0x1]
  %v687 = vld [vmem:[%s678 + $0x80] sm:$0x1]
  %v688 = vld [vmem:[%s678 + $0x90] sm:$0x1]
  %v689 = vld [vmem:[%s678 + $0xa0] sm:$0x1]
  %v690 = vld [vmem:[%s678 + $0xb0] sm:$0x1]
  %v691 = vld [vmem:[%s678 + $0xc0] sm:$0x1]
  %v692 = vld [vmem:[%s678 + $0xd0] sm:$0x1]
  %v693 = vld [vmem:[%s678 + $0xe0] sm:$0x1]
  %v694 = vld [vmem:[%s678 + $0xf0] sm:$0x1]
  %s695 = scalar_lea.vmem %s0, 512
  %v696 = vld [vmem:[%s695] sm:$0x1]
  %v697 = vld [vmem:[%s695 + $0x10] sm:$0x1]
  %v698 = vld [vmem:[%s695 + $0x20] sm:$0x1]
  %v699 = vld [vmem:[%s695 + $0x30] sm:$0x1]
  %v700 = vld [vmem:[%s695 + $0x40] sm:$0x1]
  %v701 = vld [vmem:[%s695 + $0x50] sm:$0x1]
  %v702 = vld [vmem:[%s695 + $0x60] sm:$0x1]
  %v703 = vld [vmem:[%s695 + $0x70] sm:$0x1]
  %v704 = vld [vmem:[%s695 + $0x80] sm:$0x1]
  %v705 = vld [vmem:[%s695 + $0x90] sm:$0x1]
  %v706 = vld [vmem:[%s695 + $0xa0] sm:$0x1]
  %v707 = vld [vmem:[%s695 + $0xb0] sm:$0x1]
  %v708 = vld [vmem:[%s695 + $0xc0] sm:$0x1]
  %v709 = vld [vmem:[%s695 + $0xd0] sm:$0x1]
  %v710 = vld [vmem:[%s695 + $0xe0] sm:$0x1]
  %v711 = vld [vmem:[%s695 + $0xf0] sm:$0x1]
  %s712 = scalar_lea.vmem %s0, 1295
  %v713 = vld [vmem:[%s712] sm:$0x1]
  %v714 = vld [vmem:[%s712 + $0x10] sm:$0x1]
  %v715 = vld [vmem:[%s712 + $0x20] sm:$0x1]
  %v716 = vld [vmem:[%s712 + $0x30] sm:$0x1]
  %v717 = vld [vmem:[%s712 + $0x40] sm:$0x1]
  %v718 = vld [vmem:[%s712 + $0x50] sm:$0x1]
  %v719 = vld [vmem:[%s712 + $0x60] sm:$0x1]
  %v720 = vld [vmem:[%s712 + $0x70] sm:$0x1]
  %v721 = vld [vmem:[%s712 + $0x80] sm:$0x1]
  %v722 = vld [vmem:[%s712 + $0x90] sm:$0x1]
  %v723 = vld [vmem:[%s712 + $0xa0] sm:$0x1]
  %v724 = vld [vmem:[%s712 + $0xb0] sm:$0x1]
  %v725 = vld [vmem:[%s712 + $0xc0] sm:$0x1]
  %v726 = vld [vmem:[%s712 + $0xd0] sm:$0x1]
  %v727 = vld [vmem:[%s712 + $0xe0] sm:$0x1]
  %v728 = vld [vmem:[%s712 + $0xf0] sm:$0x1]
  %s729 = scalar_lea.vmem %s1, 324
  %730 = vst.msk [vmem:[%s729] sm:$0x1] %vm76, 0.0
  %731 = vst.msk [vmem:[%s729 + $0x1] sm:$0x1] %vm76, %v677
  %732 = vst.msk [vmem:[%s729 + $0x2] sm:$0x1] %vm76, %v676
  %733 = vst.msk [vmem:[%s729 + $0x3] sm:$0x1] %vm76, %v675
  %734 = vst.msk [vmem:[%s729 + $0x4] sm:$0x1] %vm76, %v674
  %735 = vst.msk [vmem:[%s729 + $0x5] sm:$0x1] %vm76, %v673
  %736 = vst.msk [vmem:[%s729 + $0x6] sm:$0x1] %vm76, %v672
  %737 = vst.msk [vmem:[%s729 + $0x7] sm:$0x1] %vm76, %v671
  %738 = vst.msk [vmem:[%s729 + $0x8] sm:$0x1] %vm76, %v670
  %739 = vst.msk [vmem:[%s729 + $0x9] sm:$0x1] %vm76, %v669
  %740 = vst.msk [vmem:[%s729 + $0xa] sm:$0x1] %vm76, %v668
  %741 = vst.msk [vmem:[%s729 + $0xb] sm:$0x1] %vm76, %v667
  %742 = vst.msk [vmem:[%s729 + $0xc] sm:$0x1] %vm76, %v666
  %743 = vst.msk [vmem:[%s729 + $0xd] sm:$0x1] %vm76, %v665
  %744 = vst.msk [vmem:[%s729 + $0xe] sm:$0x1] %vm76, %v664
  %745 = vst.msk [vmem:[%s729 + $0xf] sm:$0x1] %vm76, %v663
  %746 = vst.msk [vmem:[%s729 + $0x10] sm:$0x1] %vm76, %v662
  %747 = vst.msk [vmem:[%s729 + $0x11] sm:$0x1] %vm76, 0.0
  %s748 = scalar_lea.vmem %s1, 342
  %749 = vst.msk [vmem:[%s748] sm:$0x1] %vm76, %v679
  %750 = vst.msk [vmem:[%s748 + $0x12] sm:$0x1] %vm76, %v680
  %751 = vst.msk [vmem:[%s748 + $0x24] sm:$0x1] %vm76, %v681
  %752 = vst.msk [vmem:[%s748 + $0x36] sm:$0x1] %vm76, %v682
  %753 = vst.msk [vmem:[%s748 + $0x48] sm:$0x1] %vm76, %v683
  %754 = vst.msk [vmem:[%s748 + $0x5a] sm:$0x1] %vm76, %v684
  %755 = vst.msk [vmem:[%s748 + $0x6c] sm:$0x1] %vm76, %v685
  %756 = vst.msk [vmem:[%s748 + $0x7e] sm:$0x1] %vm76, %v686
  %757 = vst.msk [vmem:[%s748 + $0x90] sm:$0x1] %vm76, %v687
  %758 = vst.msk [vmem:[%s748 + $0xa2] sm:$0x1] %vm76, %v688
  %759 = vst.msk [vmem:[%s748 + $0xb4] sm:$0x1] %vm76, %v689
  %760 = vst.msk [vmem:[%s748 + $0xc6] sm:$0x1] %vm76, %v690
  %761 = vst.msk [vmem:[%s748 + $0xd8] sm:$0x1] %vm76, %v691
  %762 = vst.msk [vmem:[%s748 + $0xea] sm:$0x1] %vm76, %v692
  %763 = vst.msk [vmem:[%s748 + $0xfc] sm:$0x1] %vm76, %v693
  %764 = vst.msk [vmem:[%s748 + $0x10e] sm:$0x1] %vm76, %v694
  %v765 = vld [vmem:[%s42] sm:$0x1]
  %v766 = vld [vmem:[%s42 + $0x1] sm:$0x1]
  %v767 = vld [vmem:[%s42 + $0x2] sm:$0x1]
  %v768 = vld [vmem:[%s42 + $0x3] sm:$0x1]
  %v769 = vld [vmem:[%s42 + $0x4] sm:$0x1]
  %v770 = vld [vmem:[%s42 + $0x5] sm:$0x1]
  %v771 = vld [vmem:[%s42 + $0x6] sm:$0x1]
  %v772 = vld [vmem:[%s42 + $0x7] sm:$0x1]
  %v773 = vld [vmem:[%s42 + $0x8] sm:$0x1]
  %v774 = vld [vmem:[%s42 + $0x9] sm:$0x1]
  %v775 = vld [vmem:[%s42 + $0xa] sm:$0x1]
  %v776 = vld [vmem:[%s42 + $0xb] sm:$0x1]
  %v777 = vld [vmem:[%s42 + $0xc] sm:$0x1]
  %v778 = vld [vmem:[%s42 + $0xd] sm:$0x1]
  %v779 = vld [vmem:[%s42 + $0xe] sm:$0x1]
  %v780 = vld [vmem:[%s42 + $0xf] sm:$0x1]
  %v781 = vld [vmem:[%s42 + $0x10] sm:$0x1]
  %v782 = vld [vmem:[%s42 + $0x11] sm:$0x1]
  %v783 = vld [vmem:[%s42 + $0x12] sm:$0x1]
  %v784 = vld [vmem:[%s42 + $0x13] sm:$0x1]
  %v785 = vld [vmem:[%s42 + $0x14] sm:$0x1]
  %v786 = vld [vmem:[%s42 + $0x15] sm:$0x1]
  %v787 = vld [vmem:[%s42 + $0x16] sm:$0x1]
  %v788 = vld [vmem:[%s42 + $0x17] sm:$0x1]
  %v789 = vld [vmem:[%s42 + $0x18] sm:$0x1]
  %v790 = vld [vmem:[%s42 + $0x19] sm:$0x1]
  %v791 = vld [vmem:[%s42 + $0x1a] sm:$0x1]
  %v792 = vld [vmem:[%s42 + $0x1b] sm:$0x1]
  %v793 = vld [vmem:[%s42 + $0x1c] sm:$0x1]
  %v794 = vld [vmem:[%s42 + $0x1d] sm:$0x1]
  %v795 = vld [vmem:[%s42 + $0x1e] sm:$0x1]
  %v796 = vld [vmem:[%s42 + $0x1f] sm:$0x1]
  %v797 = vld [vmem:[%s42 + $0x20] sm:$0x1]
  %v798 = vld [vmem:[%s42 + $0x21] sm:$0x1]
  %v799 = vld [vmem:[%s42 + $0x22] sm:$0x1]
  %v800 = vld [vmem:[%s42 + $0x23] sm:$0x1]
  %v801 = vld [vmem:[%s42 + $0x24] sm:$0x1]
  %v802 = vld [vmem:[%s42 + $0x25] sm:$0x1]
  %v803 = vld [vmem:[%s42 + $0x26] sm:$0x1]
  %v804 = vld [vmem:[%s42 + $0x27] sm:$0x1]
  %v805 = vld [vmem:[%s42 + $0x28] sm:$0x1]
  %v806 = vld [vmem:[%s42 + $0x29] sm:$0x1]
  %v807 = vld [vmem:[%s42 + $0x2a] sm:$0x1]
  %v808 = vld [vmem:[%s42 + $0x2b] sm:$0x1]
  %v809 = vld [vmem:[%s42 + $0x2c] sm:$0x1]
  %v810 = vld [vmem:[%s42 + $0x2d] sm:$0x1]
  %v811 = vld [vmem:[%s42 + $0x2e] sm:$0x1]
  %v812 = vld [vmem:[%s42 + $0x2f] sm:$0x1]
  %v813 = vld [vmem:[%s42 + $0x30] sm:$0x1]
  %v814 = vld [vmem:[%s42 + $0x31] sm:$0x1]
  %v815 = vld [vmem:[%s42 + $0x32] sm:$0x1]
  %v816 = vld [vmem:[%s42 + $0x33] sm:$0x1]
  %v817 = vld [vmem:[%s42 + $0x34] sm:$0x1]
  %v818 = vld [vmem:[%s42 + $0x35] sm:$0x1]
  %v819 = vld [vmem:[%s42 + $0x36] sm:$0x1]
  %v820 = vld [vmem:[%s42 + $0x37] sm:$0x1]
  %v821 = vld [vmem:[%s42 + $0x38] sm:$0x1]
  %v822 = vld [vmem:[%s42 + $0x39] sm:$0x1]
  %v823 = vld [vmem:[%s42 + $0x3a] sm:$0x1]
  %v824 = vld [vmem:[%s42 + $0x3b] sm:$0x1]
  %v825 = vld [vmem:[%s42 + $0x3c] sm:$0x1]
  %v826 = vld [vmem:[%s42 + $0x3d] sm:$0x1]
  %v827 = vld [vmem:[%s42 + $0x3e] sm:$0x1]
  %v828 = vld [vmem:[%s42 + $0x3f] sm:$0x1]
  %v829 = vld [vmem:[%s42 + $0x40] sm:$0x1]
  %v830 = vld [vmem:[%s42 + $0x41] sm:$0x1]
  %v831 = vld [vmem:[%s42 + $0x42] sm:$0x1]
  %v832 = vld [vmem:[%s42 + $0x43] sm:$0x1]
  %v833 = vld [vmem:[%s42 + $0x44] sm:$0x1]
  %v834 = vld [vmem:[%s42 + $0x45] sm:$0x1]
  %v835 = vld [vmem:[%s42 + $0x46] sm:$0x1]
  %v836 = vld [vmem:[%s42 + $0x47] sm:$0x1]
  %v837 = vld [vmem:[%s42 + $0x48] sm:$0x1]
  %v838 = vld [vmem:[%s42 + $0x49] sm:$0x1]
  %v839 = vld [vmem:[%s42 + $0x4a] sm:$0x1]
  %v840 = vld [vmem:[%s42 + $0x4b] sm:$0x1]
  %v841 = vld [vmem:[%s42 + $0x4c] sm:$0x1]
  %v842 = vld [vmem:[%s42 + $0x4d] sm:$0x1]
  %v843 = vld [vmem:[%s42 + $0x4e] sm:$0x1]
  %v844 = vld [vmem:[%s42 + $0x4f] sm:$0x1]
  %v845 = vld [vmem:[%s42 + $0x50] sm:$0x1]
  %v846 = vld [vmem:[%s42 + $0x51] sm:$0x1]
  %v847 = vld [vmem:[%s42 + $0x52] sm:$0x1]
  %v848 = vld [vmem:[%s42 + $0x53] sm:$0x1]
  %v849 = vld [vmem:[%s42 + $0x54] sm:$0x1]
  %v850 = vld [vmem:[%s42 + $0x55] sm:$0x1]
  %v851 = vld [vmem:[%s42 + $0x56] sm:$0x1]
  %v852 = vld [vmem:[%s42 + $0x57] sm:$0x1]
  %v853 = vld [vmem:[%s42 + $0x58] sm:$0x1]
  %v854 = vld [vmem:[%s42 + $0x59] sm:$0x1]
  %v855 = vld [vmem:[%s42 + $0x5a] sm:$0x1]
  %v856 = vld [vmem:[%s42 + $0x5b] sm:$0x1]
  %v857 = vld [vmem:[%s42 + $0x5c] sm:$0x1]
  %v858 = vld [vmem:[%s42 + $0x5d] sm:$0x1]
  %v859 = vld [vmem:[%s42 + $0x5e] sm:$0x1]
  %v860 = vld [vmem:[%s42 + $0x5f] sm:$0x1]
  %v861 = vld [vmem:[%s42 + $0x60] sm:$0x1]
  %v862 = vld [vmem:[%s42 + $0x61] sm:$0x1]
  %v863 = vld [vmem:[%s42 + $0x62] sm:$0x1]
  %v864 = vld [vmem:[%s42 + $0x63] sm:$0x1]
  %v865 = vld [vmem:[%s42 + $0x64] sm:$0x1]
  %v866 = vld [vmem:[%s42 + $0x65] sm:$0x1]
  %v867 = vld [vmem:[%s42 + $0x66] sm:$0x1]
  %v868 = vld [vmem:[%s42 + $0x67] sm:$0x1]
  %v869 = vld [vmem:[%s42 + $0x68] sm:$0x1]
  %v870 = vld [vmem:[%s42 + $0x69] sm:$0x1]
  %v871 = vld [vmem:[%s42 + $0x6a] sm:$0x1]
  %v872 = vld [vmem:[%s42 + $0x6b] sm:$0x1]
  %v873 = vld [vmem:[%s42 + $0x6c] sm:$0x1]
  %v874 = vld [vmem:[%s42 + $0x6d] sm:$0x1]
  %v875 = vld [vmem:[%s42 + $0x6e] sm:$0x1]
  %v876 = vld [vmem:[%s42 + $0x6f] sm:$0x1]
  %v877 = vld [vmem:[%s42 + $0x70] sm:$0x1]
  %v878 = vld [vmem:[%s42 + $0x71] sm:$0x1]
  %v879 = vld [vmem:[%s42 + $0x72] sm:$0x1]
  %v880 = vld [vmem:[%s42 + $0x73] sm:$0x1]
  %v881 = vld [vmem:[%s42 + $0x74] sm:$0x1]
  %v882 = vld [vmem:[%s42 + $0x75] sm:$0x1]
  %v883 = vld [vmem:[%s42 + $0x76] sm:$0x1]
  %v884 = vld [vmem:[%s42 + $0x77] sm:$0x1]
  %v885 = vld [vmem:[%s42 + $0x78] sm:$0x1]
  %v886 = vld [vmem:[%s42 + $0x79] sm:$0x1]
  %v887 = vld [vmem:[%s42 + $0x7a] sm:$0x1]
  %v888 = vld [vmem:[%s42 + $0x7b] sm:$0x1]
  %v889 = vld [vmem:[%s42 + $0x7c] sm:$0x1]
  %v890 = vld [vmem:[%s42 + $0x7d] sm:$0x1]
  %v891 = vld [vmem:[%s42 + $0x7e] sm:$0x1]
  %v892 = vld [vmem:[%s42 + $0x7f] sm:$0x1]
  %v893 = vld [vmem:[%s42 + $0x80] sm:$0x1]
  %v894 = vld [vmem:[%s42 + $0x81] sm:$0x1]
  %v895 = vld [vmem:[%s42 + $0x82] sm:$0x1]
  %v896 = vld [vmem:[%s42 + $0x83] sm:$0x1]
  %v897 = vld [vmem:[%s42 + $0x84] sm:$0x1]
  %v898 = vld [vmem:[%s42 + $0x85] sm:$0x1]
  %v899 = vld [vmem:[%s42 + $0x86] sm:$0x1]
  %v900 = vld [vmem:[%s42 + $0x87] sm:$0x1]
  %v901 = vld [vmem:[%s42 + $0x88] sm:$0x1]
  %v902 = vld [vmem:[%s42 + $0x89] sm:$0x1]
  %v903 = vld [vmem:[%s42 + $0x8a] sm:$0x1]
  %v904 = vld [vmem:[%s42 + $0x8b] sm:$0x1]
  %v905 = vld [vmem:[%s42 + $0x8c] sm:$0x1]
  %v906 = vld [vmem:[%s42 + $0x8d] sm:$0x1]
  %v907 = vld [vmem:[%s42 + $0x8e] sm:$0x1]
  %v908 = vld [vmem:[%s42 + $0x8f] sm:$0x1]
  %v909 = vld [vmem:[%s42 + $0x90] sm:$0x1]
  %v910 = vld [vmem:[%s42 + $0x91] sm:$0x1]
  %v911 = vld [vmem:[%s42 + $0x92] sm:$0x1]
  %v912 = vld [vmem:[%s42 + $0x93] sm:$0x1]
  %v913 = vld [vmem:[%s42 + $0x94] sm:$0x1]
  %v914 = vld [vmem:[%s42 + $0x95] sm:$0x1]
  %v915 = vld [vmem:[%s42 + $0x96] sm:$0x1]
  %v916 = vld [vmem:[%s42 + $0x97] sm:$0x1]
  %v917 = vld [vmem:[%s42 + $0x98] sm:$0x1]
  %v918 = vld [vmem:[%s42 + $0x99] sm:$0x1]
  %v919 = vld [vmem:[%s42 + $0x9a] sm:$0x1]
  %v920 = vld [vmem:[%s42 + $0x9b] sm:$0x1]
  %v921 = vld [vmem:[%s42 + $0x9c] sm:$0x1]
  %v922 = vld [vmem:[%s42 + $0x9d] sm:$0x1]
  %v923 = vld [vmem:[%s42 + $0x9e] sm:$0x1]
  %v924 = vld [vmem:[%s42 + $0x9f] sm:$0x1]
  %v925 = vld [vmem:[%s42 + $0xa0] sm:$0x1]
  %v926 = vld [vmem:[%s42 + $0xa1] sm:$0x1]
  %v927 = vld [vmem:[%s42 + $0xa2] sm:$0x1]
  %v928 = vld [vmem:[%s42 + $0xa3] sm:$0x1]
  %v929 = vld [vmem:[%s42 + $0xa4] sm:$0x1]
  %v930 = vld [vmem:[%s42 + $0xa5] sm:$0x1]
  %v931 = vld [vmem:[%s42 + $0xa6] sm:$0x1]
  %v932 = vld [vmem:[%s42 + $0xa7] sm:$0x1]
  %v933 = vld [vmem:[%s42 + $0xa8] sm:$0x1]
  %v934 = vld [vmem:[%s42 + $0xa9] sm:$0x1]
  %v935 = vld [vmem:[%s42 + $0xaa] sm:$0x1]
  %v936 = vld [vmem:[%s42 + $0xab] sm:$0x1]
  %v937 = vld [vmem:[%s42 + $0xac] sm:$0x1]
  %v938 = vld [vmem:[%s42 + $0xad] sm:$0x1]
  %v939 = vld [vmem:[%s42 + $0xae] sm:$0x1]
  %v940 = vld [vmem:[%s42 + $0xaf] sm:$0x1]
  %v941 = vld [vmem:[%s42 + $0xb0] sm:$0x1]
  %v942 = vld [vmem:[%s42 + $0xb1] sm:$0x1]
  %v943 = vld [vmem:[%s42 + $0xb2] sm:$0x1]
  %v944 = vld [vmem:[%s42 + $0xb3] sm:$0x1]
  %v945 = vld [vmem:[%s42 + $0xb4] sm:$0x1]
  %v946 = vld [vmem:[%s42 + $0xb5] sm:$0x1]
  %v947 = vld [vmem:[%s42 + $0xb6] sm:$0x1]
  %v948 = vld [vmem:[%s42 + $0xb7] sm:$0x1]
  %v949 = vld [vmem:[%s42 + $0xb8] sm:$0x1]
  %v950 = vld [vmem:[%s42 + $0xb9] sm:$0x1]
  %v951 = vld [vmem:[%s42 + $0xba] sm:$0x1]
  %v952 = vld [vmem:[%s42 + $0xbb] sm:$0x1]
  %v953 = vld [vmem:[%s42 + $0xbc] sm:$0x1]
  %v954 = vld [vmem:[%s42 + $0xbd] sm:$0x1]
  %v955 = vld [vmem:[%s42 + $0xbe] sm:$0x1]
  %v956 = vld [vmem:[%s42 + $0xbf] sm:$0x1]
  %v957 = vld [vmem:[%s42 + $0xc0] sm:$0x1]
  %v958 = vld [vmem:[%s42 + $0xc1] sm:$0x1]
  %v959 = vld [vmem:[%s42 + $0xc2] sm:$0x1]
  %v960 = vld [vmem:[%s42 + $0xc3] sm:$0x1]
  %v961 = vld [vmem:[%s42 + $0xc4] sm:$0x1]
  %v962 = vld [vmem:[%s42 + $0xc5] sm:$0x1]
  %v963 = vld [vmem:[%s42 + $0xc6] sm:$0x1]
  %v964 = vld [vmem:[%s42 + $0xc7] sm:$0x1]
  %v965 = vld [vmem:[%s42 + $0xc8] sm:$0x1]
  %v966 = vld [vmem:[%s42 + $0xc9] sm:$0x1]
  %v967 = vld [vmem:[%s42 + $0xca] sm:$0x1]
  %v968 = vld [vmem:[%s42 + $0xcb] sm:$0x1]
  %v969 = vld [vmem:[%s42 + $0xcc] sm:$0x1]
  %v970 = vld [vmem:[%s42 + $0xcd] sm:$0x1]
  %v971 = vld [vmem:[%s42 + $0xce] sm:$0x1]
  %v972 = vld [vmem:[%s42 + $0xcf] sm:$0x1]
  %v973 = vld [vmem:[%s42 + $0xd0] sm:$0x1]
  %v974 = vld [vmem:[%s42 + $0xd1] sm:$0x1]
  %v975 = vld [vmem:[%s42 + $0xd2] sm:$0x1]
  %v976 = vld [vmem:[%s42 + $0xd3] sm:$0x1]
  %v977 = vld [vmem:[%s42 + $0xd4] sm:$0x1]
  %v978 = vld [vmem:[%s42 + $0xd5] sm:$0x1]
  %v979 = vld [vmem:[%s42 + $0xd6] sm:$0x1]
  %v980 = vld [vmem:[%s42 + $0xd7] sm:$0x1]
  %v981 = vld [vmem:[%s42 + $0xd8] sm:$0x1]
  %v982 = vld [vmem:[%s42 + $0xd9] sm:$0x1]
  %v983 = vld [vmem:[%s42 + $0xda] sm:$0x1]
  %v984 = vld [vmem:[%s42 + $0xdb] sm:$0x1]
  %v985 = vld [vmem:[%s42 + $0xdc] sm:$0x1]
  %v986 = vld [vmem:[%s42 + $0xdd] sm:$0x1]
  %v987 = vld [vmem:[%s42 + $0xde] sm:$0x1]
  %v988 = vld [vmem:[%s42 + $0xdf] sm:$0x1]
  %v989 = vld [vmem:[%s42 + $0xe0] sm:$0x1]
  %v990 = vld [vmem:[%s42 + $0xe1] sm:$0x1]
  %v991 = vld [vmem:[%s42 + $0xe2] sm:$0x1]
  %v992 = vld [vmem:[%s42 + $0xe3] sm:$0x1]
  %v993 = vld [vmem:[%s42 + $0xe4] sm:$0x1]
  %v994 = vld [vmem:[%s42 + $0xe5] sm:$0x1]
  %v995 = vld [vmem:[%s42 + $0xe6] sm:$0x1]
  %v996 = vld [vmem:[%s42 + $0xe7] sm:$0x1]
  %v997 = vld [vmem:[%s42 + $0xe8] sm:$0x1]
  %v998 = vld [vmem:[%s42 + $0xe9] sm:$0x1]
  %v999 = vld [vmem:[%s42 + $0xea] sm:$0x1]
  %v1000 = vld [vmem:[%s42 + $0xeb] sm:$0x1]
  %v1001 = vld [vmem:[%s42 + $0xec] sm:$0x1]
  %v1002 = vld [vmem:[%s42 + $0xed] sm:$0x1]
  %v1003 = vld [vmem:[%s42 + $0xee] sm:$0x1]
  %v1004 = vld [vmem:[%s42 + $0xef] sm:$0x1]
  %v1005 = vld [vmem:[%s42 + $0xf0] sm:$0x1]
  %v1006 = vld [vmem:[%s42 + $0xf1] sm:$0x1]
  %v1007 = vld [vmem:[%s42 + $0xf2] sm:$0x1]
  %v1008 = vld [vmem:[%s42 + $0xf3] sm:$0x1]
  %v1009 = vld [vmem:[%s42 + $0xf4] sm:$0x1]
  %v1010 = vld [vmem:[%s42 + $0xf5] sm:$0x1]
  %v1011 = vld [vmem:[%s42 + $0xf6] sm:$0x1]
  %v1012 = vld [vmem:[%s42 + $0xf7] sm:$0x1]
  %v1013 = vld [vmem:[%s42 + $0xf8] sm:$0x1]
  %v1014 = vld [vmem:[%s42 + $0xf9] sm:$0x1]
  %v1015 = vld [vmem:[%s42 + $0xfa] sm:$0x1]
  %v1016 = vld [vmem:[%s42 + $0xfb] sm:$0x1]
  %v1017 = vld [vmem:[%s42 + $0xfc] sm:$0x1]
  %v1018 = vld [vmem:[%s42 + $0xfd] sm:$0x1]
  %v1019 = vld [vmem:[%s42 + $0xfe] sm:$0x1]
  %v1020 = vld [vmem:[%s42 + $0xff] sm:$0x1]
  %s1021 = scalar_lea.vmem %s1, 343
  %1022 = vst.msk [vmem:[%s1021] sm:$0x1] %vm76, %v765
  %1023 = vst.msk [vmem:[%s1021 + $0x1] sm:$0x1] %vm76, %v766
  %1024 = vst.msk [vmem:[%s1021 + $0x2] sm:$0x1] %vm76, %v767
  %1025 = vst.msk [vmem:[%s1021 + $0x3] sm:$0x1] %vm76, %v768
  %1026 = vst.msk [vmem:[%s1021 + $0x4] sm:$0x1] %vm76, %v769
  %1027 = vst.msk [vmem:[%s1021 + $0x5] sm:$0x1] %vm76, %v770
  %1028 = vst.msk [vmem:[%s1021 + $0x6] sm:$0x1] %vm76, %v771
  %1029 = vst.msk [vmem:[%s1021 + $0x7] sm:$0x1] %vm76, %v772
  %1030 = vst.msk [vmem:[%s1021 + $0x8] sm:$0x1] %vm76, %v773
  %1031 = vst.msk [vmem:[%s1021 + $0x9] sm:$0x1] %vm76, %v774
  %1032 = vst.msk [vmem:[%s1021 + $0xa] sm:$0x1] %vm76, %v775
  %1033 = vst.msk [vmem:[%s1021 + $0xb] sm:$0x1] %vm76, %v776
  %1034 = vst.msk [vmem:[%s1021 + $0xc] sm:$0x1] %vm76, %v777
  %1035 = vst.msk [vmem:[%s1021 + $0xd] sm:$0x1] %vm76, %v778
  %1036 = vst.msk [vmem:[%s1021 + $0xe] sm:$0x1] %vm76, %v779
  %1037 = vst.msk [vmem:[%s1021 + $0xf] sm:$0x1] %vm76, %v780
  %1038 = vst.msk [vmem:[%s1021 + $0x12] sm:$0x1] %vm76, %v781
  %1039 = vst.msk [vmem:[%s1021 + $0x13] sm:$0x1] %vm76, %v782
  %1040 = vst.msk [vmem:[%s1021 + $0x14] sm:$0x1] %vm76, %v783
  %1041 = vst.msk [vmem:[%s1021 + $0x15] sm:$0x1] %vm76, %v784
  %1042 = vst.msk [vmem:[%s1021 + $0x16] sm:$0x1] %vm76, %v785
  %1043 = vst.msk [vmem:[%s1021 + $0x17] sm:$0x1] %vm76, %v786
  %1044 = vst.msk [vmem:[%s1021 + $0x18] sm:$0x1] %vm76, %v787
  %1045 = vst.msk [vmem:[%s1021 + $0x19] sm:$0x1] %vm76, %v788
  %1046 = vst.msk [vmem:[%s1021 + $0x1a] sm:$0x1] %vm76, %v789
  %1047 = vst.msk [vmem:[%s1021 + $0x1b] sm:$0x1] %vm76, %v790
  %1048 = vst.msk [vmem:[%s1021 + $0x1c] sm:$0x1] %vm76, %v791
  %1049 = vst.msk [vmem:[%s1021 + $0x1d] sm:$0x1] %vm76, %v792
  %1050 = vst.msk [vmem:[%s1021 + $0x1e] sm:$0x1] %vm76, %v793
  %1051 = vst.msk [vmem:[%s1021 + $0x1f] sm:$0x1] %vm76, %v794
  %1052 = vst.msk [vmem:[%s1021 + $0x20] sm:$0x1] %vm76, %v795
  %1053 = vst.msk [vmem:[%s1021 + $0x21] sm:$0x1] %vm76, %v796
  %1054 = vst.msk [vmem:[%s1021 + $0x24] sm:$0x1] %vm76, %v797
  %1055 = vst.msk [vmem:[%s1021 + $0x25] sm:$0x1] %vm76, %v798
  %1056 = vst.msk [vmem:[%s1021 + $0x26] sm:$0x1] %vm76, %v799
  %1057 = vst.msk [vmem:[%s1021 + $0x27] sm:$0x1] %vm76, %v800
  %1058 = vst.msk [vmem:[%s1021 + $0x28] sm:$0x1] %vm76, %v801
  %1059 = vst.msk [vmem:[%s1021 + $0x29] sm:$0x1] %vm76, %v802
  %1060 = vst.msk [vmem:[%s1021 + $0x2a] sm:$0x1] %vm76, %v803
  %1061 = vst.msk [vmem:[%s1021 + $0x2b] sm:$0x1] %vm76, %v804
  %1062 = vst.msk [vmem:[%s1021 + $0x2c] sm:$0x1] %vm76, %v805
  %1063 = vst.msk [vmem:[%s1021 + $0x2d] sm:$0x1] %vm76, %v806
  %1064 = vst.msk [vmem:[%s1021 + $0x2e] sm:$0x1] %vm76, %v807
  %1065 = vst.msk [vmem:[%s1021 + $0x2f] sm:$0x1] %vm76, %v808
  %1066 = vst.msk [vmem:[%s1021 + $0x30] sm:$0x1] %vm76, %v809
  %1067 = vst.msk [vmem:[%s1021 + $0x31] sm:$0x1] %vm76, %v810
  %1068 = vst.msk [vmem:[%s1021 + $0x32] sm:$0x1] %vm76, %v811
  %1069 = vst.msk [vmem:[%s1021 + $0x33] sm:$0x1] %vm76, %v812
  %1070 = vst.msk [vmem:[%s1021 + $0x36] sm:$0x1] %vm76, %v813
  %1071 = vst.msk [vmem:[%s1021 + $0x37] sm:$0x1] %vm76, %v814
  %1072 = vst.msk [vmem:[%s1021 + $0x38] sm:$0x1] %vm76, %v815
  %1073 = vst.msk [vmem:[%s1021 + $0x39] sm:$0x1] %vm76, %v816
  %1074 = vst.msk [vmem:[%s1021 + $0x3a] sm:$0x1] %vm76, %v817
  %1075 = vst.msk [vmem:[%s1021 + $0x3b] sm:$0x1] %vm76, %v818
  %1076 = vst.msk [vmem:[%s1021 + $0x3c] sm:$0x1] %vm76, %v819
  %1077 = vst.msk [vmem:[%s1021 + $0x3d] sm:$0x1] %vm76, %v820
  %1078 = vst.msk [vmem:[%s1021 + $0x3e] sm:$0x1] %vm76, %v821
  %1079 = vst.msk [vmem:[%s1021 + $0x3f] sm:$0x1] %vm76, %v822
  %1080 = vst.msk [vmem:[%s1021 + $0x40] sm:$0x1] %vm76, %v823
  %1081 = vst.msk [vmem:[%s1021 + $0x41] sm:$0x1] %vm76, %v824
  %1082 = vst.msk [vmem:[%s1021 + $0x42] sm:$0x1] %vm76, %v825
  %1083 = vst.msk [vmem:[%s1021 + $0x43] sm:$0x1] %vm76, %v826
  %1084 = vst.msk [vmem:[%s1021 + $0x44] sm:$0x1] %vm76, %v827
  %1085 = vst.msk [vmem:[%s1021 + $0x45] sm:$0x1] %vm76, %v828
  %1086 = vst.msk [vmem:[%s1021 + $0x48] sm:$0x1] %vm76, %v829
  %1087 = vst.msk [vmem:[%s1021 + $0x49] sm:$0x1] %vm76, %v830
  %1088 = vst.msk [vmem:[%s1021 + $0x4a] sm:$0x1] %vm76, %v831
  %1089 = vst.msk [vmem:[%s1021 + $0x4b] sm:$0x1] %vm76, %v832
  %1090 = vst.msk [vmem:[%s1021 + $0x4c] sm:$0x1] %vm76, %v833
  %1091 = vst.msk [vmem:[%s1021 + $0x4d] sm:$0x1] %vm76, %v834
  %1092 = vst.msk [vmem:[%s1021 + $0x4e] sm:$0x1] %vm76, %v835
  %1093 = vst.msk [vmem:[%s1021 + $0x4f] sm:$0x1] %vm76, %v836
  %1094 = vst.msk [vmem:[%s1021 + $0x50] sm:$0x1] %vm76, %v837
  %1095 = vst.msk [vmem:[%s1021 + $0x51] sm:$0x1] %vm76, %v838
  %1096 = vst.msk [vmem:[%s1021 + $0x52] sm:$0x1] %vm76, %v839
  %1097 = vst.msk [vmem:[%s1021 + $0x53] sm:$0x1] %vm76, %v840
  %1098 = vst.msk [vmem:[%s1021 + $0x54] sm:$0x1] %vm76, %v841
  %1099 = vst.msk [vmem:[%s1021 + $0x55] sm:$0x1] %vm76, %v842
  %1100 = vst.msk [vmem:[%s1021 + $0x56] sm:$0x1] %vm76, %v843
  %1101 = vst.msk [vmem:[%s1021 + $0x57] sm:$0x1] %vm76, %v844
  %1102 = vst.msk [vmem:[%s1021 + $0x5a] sm:$0x1] %vm76, %v845
  %1103 = vst.msk [vmem:[%s1021 + $0x5b] sm:$0x1] %vm76, %v846
  %1104 = vst.msk [vmem:[%s1021 + $0x5c] sm:$0x1] %vm76, %v847
  %1105 = vst.msk [vmem:[%s1021 + $0x5d] sm:$0x1] %vm76, %v848
  %1106 = vst.msk [vmem:[%s1021 + $0x5e] sm:$0x1] %vm76, %v849
  %1107 = vst.msk [vmem:[%s1021 + $0x5f] sm:$0x1] %vm76, %v850
  %1108 = vst.msk [vmem:[%s1021 + $0x60] sm:$0x1] %vm76, %v851
  %1109 = vst.msk [vmem:[%s1021 + $0x61] sm:$0x1] %vm76, %v852
  %1110 = vst.msk [vmem:[%s1021 + $0x62] sm:$0x1] %vm76, %v853
  %1111 = vst.msk [vmem:[%s1021 + $0x63] sm:$0x1] %vm76, %v854
  %1112 = vst.msk [vmem:[%s1021 + $0x64] sm:$0x1] %vm76, %v855
  %1113 = vst.msk [vmem:[%s1021 + $0x65] sm:$0x1] %vm76, %v856
  %1114 = vst.msk [vmem:[%s1021 + $0x66] sm:$0x1] %vm76, %v857
  %1115 = vst.msk [vmem:[%s1021 + $0x67] sm:$0x1] %vm76, %v858
  %1116 = vst.msk [vmem:[%s1021 + $0x68] sm:$0x1] %vm76, %v859
  %1117 = vst.msk [vmem:[%s1021 + $0x69] sm:$0x1] %vm76, %v860
  %1118 = vst.msk [vmem:[%s1021 + $0x6c] sm:$0x1] %vm76, %v861
  %1119 = vst.msk [vmem:[%s1021 + $0x6d] sm:$0x1] %vm76, %v862
  %1120 = vst.msk [vmem:[%s1021 + $0x6e] sm:$0x1] %vm76, %v863
  %1121 = vst.msk [vmem:[%s1021 + $0x6f] sm:$0x1] %vm76, %v864
  %1122 = vst.msk [vmem:[%s1021 + $0x70] sm:$0x1] %vm76, %v865
  %1123 = vst.msk [vmem:[%s1021 + $0x71] sm:$0x1] %vm76, %v866
  %1124 = vst.msk [vmem:[%s1021 + $0x72] sm:$0x1] %vm76, %v867
  %1125 = vst.msk [vmem:[%s1021 + $0x73] sm:$0x1] %vm76, %v868
  %1126 = vst.msk [vmem:[%s1021 + $0x74] sm:$0x1] %vm76, %v869
  %1127 = vst.msk [vmem:[%s1021 + $0x75] sm:$0x1] %vm76, %v870
  %1128 = vst.msk [vmem:[%s1021 + $0x76] sm:$0x1] %vm76, %v871
  %1129 = vst.msk [vmem:[%s1021 + $0x77] sm:$0x1] %vm76, %v872
  %1130 = vst.msk [vmem:[%s1021 + $0x78] sm:$0x1] %vm76, %v873
  %1131 = vst.msk [vmem:[%s1021 + $0x79] sm:$0x1] %vm76, %v874
  %1132 = vst.msk [vmem:[%s1021 + $0x7a] sm:$0x1] %vm76, %v875
  %1133 = vst.msk [vmem:[%s1021 + $0x7b] sm:$0x1] %vm76, %v876
  %1134 = vst.msk [vmem:[%s1021 + $0x7e] sm:$0x1] %vm76, %v877
  %1135 = vst.msk [vmem:[%s1021 + $0x7f] sm:$0x1] %vm76, %v878
  %1136 = vst.msk [vmem:[%s1021 + $0x80] sm:$0x1] %vm76, %v879
  %1137 = vst.msk [vmem:[%s1021 + $0x81] sm:$0x1] %vm76, %v880
  %1138 = vst.msk [vmem:[%s1021 + $0x82] sm:$0x1] %vm76, %v881
  %1139 = vst.msk [vmem:[%s1021 + $0x83] sm:$0x1] %vm76, %v882
  %1140 = vst.msk [vmem:[%s1021 + $0x84] sm:$0x1] %vm76, %v883
  %1141 = vst.msk [vmem:[%s1021 + $0x85] sm:$0x1] %vm76, %v884
  %1142 = vst.msk [vmem:[%s1021 + $0x86] sm:$0x1] %vm76, %v885
  %1143 = vst.msk [vmem:[%s1021 + $0x87] sm:$0x1] %vm76, %v886
  %1144 = vst.msk [vmem:[%s1021 + $0x88] sm:$0x1] %vm76, %v887
  %1145 = vst.msk [vmem:[%s1021 + $0x89] sm:$0x1] %vm76, %v888
  %1146 = vst.msk [vmem:[%s1021 + $0x8a] sm:$0x1] %vm76, %v889
  %1147 = vst.msk [vmem:[%s1021 + $0x8b] sm:$0x1] %vm76, %v890
  %1148 = vst.msk [vmem:[%s1021 + $0x8c] sm:$0x1] %vm76, %v891
  %1149 = vst.msk [vmem:[%s1021 + $0x8d] sm:$0x1] %vm76, %v892
  %1150 = vst.msk [vmem:[%s1021 + $0x90] sm:$0x1] %vm76, %v893
  %1151 = vst.msk [vmem:[%s1021 + $0x91] sm:$0x1] %vm76, %v894
  %1152 = vst.msk [vmem:[%s1021 + $0x92] sm:$0x1] %vm76, %v895
  %1153 = vst.msk [vmem:[%s1021 + $0x93] sm:$0x1] %vm76, %v896
  %1154 = vst.msk [vmem:[%s1021 + $0x94] sm:$0x1] %vm76, %v897
  %1155 = vst.msk [vmem:[%s1021 + $0x95] sm:$0x1] %vm76, %v898
  %1156 = vst.msk [vmem:[%s1021 + $0x96] sm:$0x1] %vm76, %v899
  %1157 = vst.msk [vmem:[%s1021 + $0x97] sm:$0x1] %vm76, %v900
  %1158 = vst.msk [vmem:[%s1021 + $0x98] sm:$0x1] %vm76, %v901
  %1159 = vst.msk [vmem:[%s1021 + $0x99] sm:$0x1] %vm76, %v902
  %1160 = vst.msk [vmem:[%s1021 + $0x9a] sm:$0x1] %vm76, %v903
  %1161 = vst.msk [vmem:[%s1021 + $0x9b] sm:$0x1] %vm76, %v904
  %1162 = vst.msk [vmem:[%s1021 + $0x9c] sm:$0x1] %vm76, %v905
  %1163 = vst.msk [vmem:[%s1021 + $0x9d] sm:$0x1] %vm76, %v906
  %1164 = vst.msk [vmem:[%s1021 + $0x9e] sm:$0x1] %vm76, %v907
  %1165 = vst.msk [vmem:[%s1021 + $0x9f] sm:$0x1] %vm76, %v908
  %1166 = vst.msk [vmem:[%s1021 + $0xa2] sm:$0x1] %vm76, %v909
  %1167 = vst.msk [vmem:[%s1021 + $0xa3] sm:$0x1] %vm76, %v910
  %1168 = vst.msk [vmem:[%s1021 + $0xa4] sm:$0x1] %vm76, %v911
  %1169 = vst.msk [vmem:[%s1021 + $0xa5] sm:$0x1] %vm76, %v912
  %1170 = vst.msk [vmem:[%s1021 + $0xa6] sm:$0x1] %vm76, %v913
  %1171 = vst.msk [vmem:[%s1021 + $0xa7] sm:$0x1] %vm76, %v914
  %1172 = vst.msk [vmem:[%s1021 + $0xa8] sm:$0x1] %vm76, %v915
  %1173 = vst.msk [vmem:[%s1021 + $0xa9] sm:$0x1] %vm76, %v916
  %1174 = vst.msk [vmem:[%s1021 + $0xaa] sm:$0x1] %vm76, %v917
  %1175 = vst.msk [vmem:[%s1021 + $0xab] sm:$0x1] %vm76, %v918
  %1176 = vst.msk [vmem:[%s1021 + $0xac] sm:$0x1] %vm76, %v919
  %1177 = vst.msk [vmem:[%s1021 + $0xad] sm:$0x1] %vm76, %v920
  %1178 = vst.msk [vmem:[%s1021 + $0xae] sm:$0x1] %vm76, %v921
  %1179 = vst.msk [vmem:[%s1021 + $0xaf] sm:$0x1] %vm76, %v922
  %1180 = vst.msk [vmem:[%s1021 + $0xb0] sm:$0x1] %vm76, %v923
  %1181 = vst.msk [vmem:[%s1021 + $0xb1] sm:$0x1] %vm76, %v924
  %1182 = vst.msk [vmem:[%s1021 + $0xb4] sm:$0x1] %vm76, %v925
  %1183 = vst.msk [vmem:[%s1021 + $0xb5] sm:$0x1] %vm76, %v926
  %1184 = vst.msk [vmem:[%s1021 + $0xb6] sm:$0x1] %vm76, %v927
  %1185 = vst.msk [vmem:[%s1021 + $0xb7] sm:$0x1] %vm76, %v928
  %1186 = vst.msk [vmem:[%s1021 + $0xb8] sm:$0x1] %vm76, %v929
  %1187 = vst.msk [vmem:[%s1021 + $0xb9] sm:$0x1] %vm76, %v930
  %1188 = vst.msk [vmem:[%s1021 + $0xba] sm:$0x1] %vm76, %v931
  %1189 = vst.msk [vmem:[%s1021 + $0xbb] sm:$0x1] %vm76, %v932
  %1190 = vst.msk [vmem:[%s1021 + $0xbc] sm:$0x1] %vm76, %v933
  %1191 = vst.msk [vmem:[%s1021 + $0xbd] sm:$0x1] %vm76, %v934
  %1192 = vst.msk [vmem:[%s1021 + $0xbe] sm:$0x1] %vm76, %v935
  %1193 = vst.msk [vmem:[%s1021 + $0xbf] sm:$0x1] %vm76, %v936
  %1194 = vst.msk [vmem:[%s1021 + $0xc0] sm:$0x1] %vm76, %v937
  %1195 = vst.msk [vmem:[%s1021 + $0xc1] sm:$0x1] %vm76, %v938
  %1196 = vst.msk [vmem:[%s1021 + $0xc2] sm:$0x1] %vm76, %v939
  %1197 = vst.msk [vmem:[%s1021 + $0xc3] sm:$0x1] %vm76, %v940
  %1198 = vst.msk [vmem:[%s1021 + $0xc6] sm:$0x1] %vm76, %v941
  %1199 = vst.msk [vmem:[%s1021 + $0xc7] sm:$0x1] %vm76, %v942
  %1200 = vst.msk [vmem:[%s1021 + $0xc8] sm:$0x1] %vm76, %v943
  %1201 = vst.msk [vmem:[%s1021 + $0xc9] sm:$0x1] %vm76, %v944
  %1202 = vst.msk [vmem:[%s1021 + $0xca] sm:$0x1] %vm76, %v945
  %1203 = vst.msk [vmem:[%s1021 + $0xcb] sm:$0x1] %vm76, %v946
  %1204 = vst.msk [vmem:[%s1021 + $0xcc] sm:$0x1] %vm76, %v947
  %1205 = vst.msk [vmem:[%s1021 + $0xcd] sm:$0x1] %vm76, %v948
  %1206 = vst.msk [vmem:[%s1021 + $0xce] sm:$0x1] %vm76, %v949
  %1207 = vst.msk [vmem:[%s1021 + $0xcf] sm:$0x1] %vm76, %v950
  %1208 = vst.msk [vmem:[%s1021 + $0xd0] sm:$0x1] %vm76, %v951
  %1209 = vst.msk [vmem:[%s1021 + $0xd1] sm:$0x1] %vm76, %v952
  %1210 = vst.msk [vmem:[%s1021 + $0xd2] sm:$0x1] %vm76, %v953
  %1211 = vst.msk [vmem:[%s1021 + $0xd3] sm:$0x1] %vm76, %v954
  %1212 = vst.msk [vmem:[%s1021 + $0xd4] sm:$0x1] %vm76, %v955
  %1213 = vst.msk [vmem:[%s1021 + $0xd5] sm:$0x1] %vm76, %v956
  %1214 = vst.msk [vmem:[%s1021 + $0xd8] sm:$0x1] %vm76, %v957
  %1215 = vst.msk [vmem:[%s1021 + $0xd9] sm:$0x1] %vm76, %v958
  %1216 = vst.msk [vmem:[%s1021 + $0xda] sm:$0x1] %vm76, %v959
  %1217 = vst.msk [vmem:[%s1021 + $0xdb] sm:$0x1] %vm76, %v960
  %1218 = vst.msk [vmem:[%s1021 + $0xdc] sm:$0x1] %vm76, %v961
  %1219 = vst.msk [vmem:[%s1021 + $0xdd] sm:$0x1] %vm76, %v962
  %1220 = vst.msk [vmem:[%s1021 + $0xde] sm:$0x1] %vm76, %v963
  %1221 = vst.msk [vmem:[%s1021 + $0xdf] sm:$0x1] %vm76, %v964
  %1222 = vst.msk [vmem:[%s1021 + $0xe0] sm:$0x1] %vm76, %v965
  %1223 = vst.msk [vmem:[%s1021 + $0xe1] sm:$0x1] %vm76, %v966
  %1224 = vst.msk [vmem:[%s1021 + $0xe2] sm:$0x1] %vm76, %v967
  %1225 = vst.msk [vmem:[%s1021 + $0xe3] sm:$0x1] %vm76, %v968
  %1226 = vst.msk [vmem:[%s1021 + $0xe4] sm:$0x1] %vm76, %v969
  %1227 = vst.msk [vmem:[%s1021 + $0xe5] sm:$0x1] %vm76, %v970
  %1228 = vst.msk [vmem:[%s1021 + $0xe6] sm:$0x1] %vm76, %v971
  %1229 = vst.msk [vmem:[%s1021 + $0xe7] sm:$0x1] %vm76, %v972
  %1230 = vst.msk [vmem:[%s1021 + $0xea] sm:$0x1] %vm76, %v973
  %1231 = vst.msk [vmem:[%s1021 + $0xeb] sm:$0x1] %vm76, %v974
  %1232 = vst.msk [vmem:[%s1021 + $0xec] sm:$0x1] %vm76, %v975
  %1233 = vst.msk [vmem:[%s1021 + $0xed] sm:$0x1] %vm76, %v976
  %1234 = vst.msk [vmem:[%s1021 + $0xee] sm:$0x1] %vm76, %v977
  %1235 = vst.msk [vmem:[%s1021 + $0xef] sm:$0x1] %vm76, %v978
  %1236 = vst.msk [vmem:[%s1021 + $0xf0] sm:$0x1] %vm76, %v979
  %1237 = vst.msk [vmem:[%s1021 + $0xf1] sm:$0x1] %vm76, %v980
  %1238 = vst.msk [vmem:[%s1021 + $0xf2] sm:$0x1] %vm76, %v981
  %1239 = vst.msk [vmem:[%s1021 + $0xf3] sm:$0x1] %vm76, %v982
  %1240 = vst.msk [vmem:[%s1021 + $0xf4] sm:$0x1] %vm76, %v983
  %1241 = vst.msk [vmem:[%s1021 + $0xf5] sm:$0x1] %vm76, %v984
  %1242 = vst.msk [vmem:[%s1021 + $0xf6] sm:$0x1] %vm76, %v985
  %1243 = vst.msk [vmem:[%s1021 + $0xf7] sm:$0x1] %vm76, %v986
  %1244 = vst.msk [vmem:[%s1021 + $0xf8] sm:$0x1] %vm76, %v987
  %1245 = vst.msk [vmem:[%s1021 + $0xf9] sm:$0x1] %vm76, %v988
  %1246 = vst.msk [vmem:[%s1021 + $0xfc] sm:$0x1] %vm76, %v989
  %1247 = vst.msk [vmem:[%s1021 + $0xfd] sm:$0x1] %vm76, %v990
  %1248 = vst.msk [vmem:[%s1021 + $0xfe] sm:$0x1] %vm76, %v991
  %1249 = vst.msk [vmem:[%s1021 + $0xff] sm:$0x1] %vm76, %v992
  %1250 = vst.msk [vmem:[%s1021 + $0x100] sm:$0x1] %vm76, %v993
  %1251 = vst.msk [vmem:[%s1021 + $0x101] sm:$0x1] %vm76, %v994
  %1252 = vst.msk [vmem:[%s1021 + $0x102] sm:$0x1] %vm76, %v995
  %1253 = vst.msk [vmem:[%s1021 + $0x103] sm:$0x1] %vm76, %v996
  %1254 = vst.msk [vmem:[%s1021 + $0x104] sm:$0x1] %vm76, %v997
  %1255 = vst.msk [vmem:[%s1021 + $0x105] sm:$0x1] %vm76, %v998
  %1256 = vst.msk [vmem:[%s1021 + $0x106] sm:$0x1] %vm76, %v999
  %1257 = vst.msk [vmem:[%s1021 + $0x107] sm:$0x1] %vm76, %v1000
  %1258 = vst.msk [vmem:[%s1021 + $0x108] sm:$0x1] %vm76, %v1001
  %1259 = vst.msk [vmem:[%s1021 + $0x109] sm:$0x1] %vm76, %v1002
  %1260 = vst.msk [vmem:[%s1021 + $0x10a] sm:$0x1] %vm76, %v1003
  %1261 = vst.msk [vmem:[%s1021 + $0x10b] sm:$0x1] %vm76, %v1004
  %1262 = vst.msk [vmem:[%s1021 + $0x10e] sm:$0x1] %vm76, %v1005
  %1263 = vst.msk [vmem:[%s1021 + $0x10f] sm:$0x1] %vm76, %v1006
  %1264 = vst.msk [vmem:[%s1021 + $0x110] sm:$0x1] %vm76, %v1007
  %1265 = vst.msk [vmem:[%s1021 + $0x111] sm:$0x1] %vm76, %v1008
  %1266 = vst.msk [vmem:[%s1021 + $0x112] sm:$0x1] %vm76, %v1009
  %1267 = vst.msk [vmem:[%s1021 + $0x113] sm:$0x1] %vm76, %v1010
  %1268 = vst.msk [vmem:[%s1021 + $0x114] sm:$0x1] %vm76, %v1011
  %1269 = vst.msk [vmem:[%s1021 + $0x115] sm:$0x1] %vm76, %v1012
  %1270 = vst.msk [vmem:[%s1021 + $0x116] sm:$0x1] %vm76, %v1013
  %1271 = vst.msk [vmem:[%s1021 + $0x117] sm:$0x1] %vm76, %v1014
  %1272 = vst.msk [vmem:[%s1021 + $0x118] sm:$0x1] %vm76, %v1015
  %1273 = vst.msk [vmem:[%s1021 + $0x119] sm:$0x1] %vm76, %v1016
  %1274 = vst.msk [vmem:[%s1021 + $0x11a] sm:$0x1] %vm76, %v1017
  %1275 = vst.msk [vmem:[%s1021 + $0x11b] sm:$0x1] %vm76, %v1018
  %1276 = vst.msk [vmem:[%s1021 + $0x11c] sm:$0x1] %vm76, %v1019
  %1277 = vst.msk [vmem:[%s1021 + $0x11d] sm:$0x1] %vm76, %v1020
  %s1278 = scalar_lea.vmem %s1, 359
  %1279 = vst.msk [vmem:[%s1278] sm:$0x1] %vm76, %v696
  %1280 = vst.msk [vmem:[%s1278 + $0x12] sm:$0x1] %vm76, %v697
  %1281 = vst.msk [vmem:[%s1278 + $0x24] sm:$0x1] %vm76, %v698
  %1282 = vst.msk [vmem:[%s1278 + $0x36] sm:$0x1] %vm76, %v699
  %1283 = vst.msk [vmem:[%s1278 + $0x48] sm:$0x1] %vm76, %v700
  %1284 = vst.msk [vmem:[%s1278 + $0x5a] sm:$0x1] %vm76, %v701
  %1285 = vst.msk [vmem:[%s1278 + $0x6c] sm:$0x1] %vm76, %v702
  %1286 = vst.msk [vmem:[%s1278 + $0x7e] sm:$0x1] %vm76, %v703
  %1287 = vst.msk [vmem:[%s1278 + $0x90] sm:$0x1] %vm76, %v704
  %1288 = vst.msk [vmem:[%s1278 + $0xa2] sm:$0x1] %vm76, %v705
  %1289 = vst.msk [vmem:[%s1278 + $0xb4] sm:$0x1] %vm76, %v706
  %1290 = vst.msk [vmem:[%s1278 + $0xc6] sm:$0x1] %vm76, %v707
  %1291 = vst.msk [vmem:[%s1278 + $0xd8] sm:$0x1] %vm76, %v708
  %1292 = vst.msk [vmem:[%s1278 + $0xea] sm:$0x1] %vm76, %v709
  %1293 = vst.msk [vmem:[%s1278 + $0xfc] sm:$0x1] %vm76, %v710
  %1294 = vst.msk [vmem:[%s1278 + $0x10e] sm:$0x1] %vm76, %v711
  %s1295 = scalar_lea.vmem %s1, 630
  %1296 = vst.msk [vmem:[%s1295] sm:$0x1] %vm76, 0.0
  %1297 = vst.msk [vmem:[%s1295 + $0x1] sm:$0x1] %vm76, %v713
  %1298 = vst.msk [vmem:[%s1295 + $0x2] sm:$0x1] %vm76, %v714
  %1299 = vst.msk [vmem:[%s1295 + $0x3] sm:$0x1] %vm76, %v715
  %1300 = vst.msk [vmem:[%s1295 + $0x4] sm:$0x1] %vm76, %v716
  %1301 = vst.msk [vmem:[%s1295 + $0x5] sm:$0x1] %vm76, %v717
  %1302 = vst.msk [vmem:[%s1295 + $0x6] sm:$0x1] %vm76, %v718
  %1303 = vst.msk [vmem:[%s1295 + $0x7] sm:$0x1] %vm76, %v719
  %1304 = vst.msk [vmem:[%s1295 + $0x8] sm:$0x1] %vm76, %v720
  %1305 = vst.msk [vmem:[%s1295 + $0x9] sm:$0x1] %vm76, %v721
  %1306 = vst.msk [vmem:[%s1295 + $0xa] sm:$0x1] %vm76, %v722
  %1307 = vst.msk [vmem:[%s1295 + $0xb] sm:$0x1] %vm76, %v723
  %1308 = vst.msk [vmem:[%s1295 + $0xc] sm:$0x1] %vm76, %v724
  %1309 = vst.msk [vmem:[%s1295 + $0xd] sm:$0x1] %vm76, %v725
  %1310 = vst.msk [vmem:[%s1295 + $0xe] sm:$0x1] %vm76, %v726
  %1311 = vst.msk [vmem:[%s1295 + $0xf] sm:$0x1] %vm76, %v727
  %1312 = vst.msk [vmem:[%s1295 + $0x10] sm:$0x1] %vm76, %v728
  %1313 = vst.msk [vmem:[%s1295 + $0x11] sm:$0x1] %vm76, 0.0
  %s1314 = scalar_lea.vmem %s0, 1024
  %v1315 = vld [vmem:[%s1314] sm:$0x1]
  %v1316 = vld [vmem:[%s1314 + $0x1] sm:$0x1]
  %v1317 = vld [vmem:[%s1314 + $0x2] sm:$0x1]
  %v1318 = vld [vmem:[%s1314 + $0x3] sm:$0x1]
  %v1319 = vld [vmem:[%s1314 + $0x4] sm:$0x1]
  %v1320 = vld [vmem:[%s1314 + $0x5] sm:$0x1]
  %v1321 = vld [vmem:[%s1314 + $0x6] sm:$0x1]
  %v1322 = vld [vmem:[%s1314 + $0x7] sm:$0x1]
  %v1323 = vld [vmem:[%s1314 + $0x8] sm:$0x1]
  %v1324 = vld [vmem:[%s1314 + $0x9] sm:$0x1]
  %v1325 = vld [vmem:[%s1314 + $0xa] sm:$0x1]
  %v1326 = vld [vmem:[%s1314 + $0xb] sm:$0x1]
  %v1327 = vld [vmem:[%s1314 + $0xc] sm:$0x1]
  %v1328 = vld [vmem:[%s1314 + $0xd] sm:$0x1]
  %v1329 = vld [vmem:[%s1314 + $0xe] sm:$0x1]
  %v1330 = vld [vmem:[%s1314 + $0xf] sm:$0x1]
  %s1331 = scalar_lea.vmem %s0, 271
  %v1332 = vld [vmem:[%s1331] sm:$0x1]
  %v1333 = vld [vmem:[%s1331 + $0x10] sm:$0x1]
  %v1334 = vld [vmem:[%s1331 + $0x20] sm:$0x1]
  %v1335 = vld [vmem:[%s1331 + $0x30] sm:$0x1]
  %v1336 = vld [vmem:[%s1331 + $0x40] sm:$0x1]
  %v1337 = vld [vmem:[%s1331 + $0x50] sm:$0x1]
  %v1338 = vld [vmem:[%s1331 + $0x60] sm:$0x1]
  %v1339 = vld [vmem:[%s1331 + $0x70] sm:$0x1]
  %v1340 = vld [vmem:[%s1331 + $0x80] sm:$0x1]
  %v1341 = vld [vmem:[%s1331 + $0x90] sm:$0x1]
  %v1342 = vld [vmem:[%s1331 + $0xa0] sm:$0x1]
  %v1343 = vld [vmem:[%s1331 + $0xb0] sm:$0x1]
  %v1344 = vld [vmem:[%s1331 + $0xc0] sm:$0x1]
  %v1345 = vld [vmem:[%s1331 + $0xd0] sm:$0x1]
  %v1346 = vld [vmem:[%s1331 + $0xe0] sm:$0x1]
  %v1347 = vld [vmem:[%s1331 + $0xf0] sm:$0x1]
  %s1348 = scalar_lea.vmem %s0, 768
  %v1349 = vld [vmem:[%s1348] sm:$0x1]
  %v1350 = vld [vmem:[%s1348 + $0x10] sm:$0x1]
  %v1351 = vld [vmem:[%s1348 + $0x20] sm:$0x1]
  %v1352 = vld [vmem:[%s1348 + $0x30] sm:$0x1]
  %v1353 = vld [vmem:[%s1348 + $0x40] sm:$0x1]
  %v1354 = vld [vmem:[%s1348 + $0x50] sm:$0x1]
  %v1355 = vld [vmem:[%s1348 + $0x60] sm:$0x1]
  %v1356 = vld [vmem:[%s1348 + $0x70] sm:$0x1]
  %v1357 = vld [vmem:[%s1348 + $0x80] sm:$0x1]
  %v1358 = vld [vmem:[%s1348 + $0x90] sm:$0x1]
  %v1359 = vld [vmem:[%s1348 + $0xa0] sm:$0x1]
  %v1360 = vld [vmem:[%s1348 + $0xb0] sm:$0x1]
  %v1361 = vld [vmem:[%s1348 + $0xc0] sm:$0x1]
  %v1362 = vld [vmem:[%s1348 + $0xd0] sm:$0x1]
  %v1363 = vld [vmem:[%s1348 + $0xe0] sm:$0x1]
  %v1364 = vld [vmem:[%s1348 + $0xf0] sm:$0x1]
  %s1365 = scalar_lea.vmem %s0, 1520
  %v1366 = vld [vmem:[%s1365] sm:$0x1]
  %v1367 = vld [vmem:[%s1365 + $0x1] sm:$0x1]
  %v1368 = vld [vmem:[%s1365 + $0x2] sm:$0x1]
  %v1369 = vld [vmem:[%s1365 + $0x3] sm:$0x1]
  %v1370 = vld [vmem:[%s1365 + $0x4] sm:$0x1]
  %v1371 = vld [vmem:[%s1365 + $0x5] sm:$0x1]
  %v1372 = vld [vmem:[%s1365 + $0x6] sm:$0x1]
  %v1373 = vld [vmem:[%s1365 + $0x7] sm:$0x1]
  %v1374 = vld [vmem:[%s1365 + $0x8] sm:$0x1]
  %v1375 = vld [vmem:[%s1365 + $0x9] sm:$0x1]
  %v1376 = vld [vmem:[%s1365 + $0xa] sm:$0x1]
  %v1377 = vld [vmem:[%s1365 + $0xb] sm:$0x1]
  %v1378 = vld [vmem:[%s1365 + $0xc] sm:$0x1]
  %v1379 = vld [vmem:[%s1365 + $0xd] sm:$0x1]
  %v1380 = vld [vmem:[%s1365 + $0xe] sm:$0x1]
  %v1381 = vld [vmem:[%s1365 + $0xf] sm:$0x1]
  %s1382 = scalar_lea.vmem %s1, 648
  %1383 = vst.msk [vmem:[%s1382] sm:$0x1] %vm76, 0.0
  %1384 = vst.msk [vmem:[%s1382 + $0x1] sm:$0x1] %vm76, %v1330
  %1385 = vst.msk [vmem:[%s1382 + $0x2] sm:$0x1] %vm76, %v1329
  %1386 = vst.msk [vmem:[%s1382 + $0x3] sm:$0x1] %vm76, %v1328
  %1387 = vst.msk [vmem:[%s1382 + $0x4] sm:$0x1] %vm76, %v1327
  %1388 = vst.msk [vmem:[%s1382 + $0x5] sm:$0x1] %vm76, %v1326
  %1389 = vst.msk [vmem:[%s1382 + $0x6] sm:$0x1] %vm76, %v1325
  %1390 = vst.msk [vmem:[%s1382 + $0x7] sm:$0x1] %vm76, %v1324
  %1391 = vst.msk [vmem:[%s1382 + $0x8] sm:$0x1] %vm76, %v1323
  %1392 = vst.msk [vmem:[%s1382 + $0x9] sm:$0x1] %vm76, %v1322
  %1393 = vst.msk [vmem:[%s1382 + $0xa] sm:$0x1] %vm76, %v1321
  %1394 = vst.msk [vmem:[%s1382 + $0xb] sm:$0x1] %vm76, %v1320
  %1395 = vst.msk [vmem:[%s1382 + $0xc] sm:$0x1] %vm76, %v1319
  %1396 = vst.msk [vmem:[%s1382 + $0xd] sm:$0x1] %vm76, %v1318
  %1397 = vst.msk [vmem:[%s1382 + $0xe] sm:$0x1] %vm76, %v1317
  %1398 = vst.msk [vmem:[%s1382 + $0xf] sm:$0x1] %vm76, %v1316
  %1399 = vst.msk [vmem:[%s1382 + $0x10] sm:$0x1] %vm76, %v1315
  %1400 = vst.msk [vmem:[%s1382 + $0x11] sm:$0x1] %vm76, 0.0
  %s1401 = scalar_lea.vmem %s1, 666
  %1402 = vst.msk [vmem:[%s1401] sm:$0x1] %vm76, %v1332
  %1403 = vst.msk [vmem:[%s1401 + $0x12] sm:$0x1] %vm76, %v1333
  %1404 = vst.msk [vmem:[%s1401 + $0x24] sm:$0x1] %vm76, %v1334
  %1405 = vst.msk [vmem:[%s1401 + $0x36] sm:$0x1] %vm76, %v1335
  %1406 = vst.msk [vmem:[%s1401 + $0x48] sm:$0x1] %vm76, %v1336
  %1407 = vst.msk [vmem:[%s1401 + $0x5a] sm:$0x1] %vm76, %v1337
  %1408 = vst.msk [vmem:[%s1401 + $0x6c] sm:$0x1] %vm76, %v1338
  %1409 = vst.msk [vmem:[%s1401 + $0x7e] sm:$0x1] %vm76, %v1339
  %1410 = vst.msk [vmem:[%s1401 + $0x90] sm:$0x1] %vm76, %v1340
  %1411 = vst.msk [vmem:[%s1401 + $0xa2] sm:$0x1] %vm76, %v1341
  %1412 = vst.msk [vmem:[%s1401 + $0xb4] sm:$0x1] %vm76, %v1342
  %1413 = vst.msk [vmem:[%s1401 + $0xc6] sm:$0x1] %vm76, %v1343
  %1414 = vst.msk [vmem:[%s1401 + $0xd8] sm:$0x1] %vm76, %v1344
  %1415 = vst.msk [vmem:[%s1401 + $0xea] sm:$0x1] %vm76, %v1345
  %1416 = vst.msk [vmem:[%s1401 + $0xfc] sm:$0x1] %vm76, %v1346
  %1417 = vst.msk [vmem:[%s1401 + $0x10e] sm:$0x1] %vm76, %v1347
  %v1418 = vld [vmem:[%s695] sm:$0x1]
  %v1419 = vld [vmem:[%s695 + $0x1] sm:$0x1]
  %v1420 = vld [vmem:[%s695 + $0x2] sm:$0x1]
  %v1421 = vld [vmem:[%s695 + $0x3] sm:$0x1]
  %v1422 = vld [vmem:[%s695 + $0x4] sm:$0x1]
  %v1423 = vld [vmem:[%s695 + $0x5] sm:$0x1]
  %v1424 = vld [vmem:[%s695 + $0x6] sm:$0x1]
  %v1425 = vld [vmem:[%s695 + $0x7] sm:$0x1]
  %v1426 = vld [vmem:[%s695 + $0x8] sm:$0x1]
  %v1427 = vld [vmem:[%s695 + $0x9] sm:$0x1]
  %v1428 = vld [vmem:[%s695 + $0xa] sm:$0x1]
  %v1429 = vld [vmem:[%s695 + $0xb] sm:$0x1]
  %v1430 = vld [vmem:[%s695 + $0xc] sm:$0x1]
  %v1431 = vld [vmem:[%s695 + $0xd] sm:$0x1]
  %v1432 = vld [vmem:[%s695 + $0xe] sm:$0x1]
  %v1433 = vld [vmem:[%s695 + $0xf] sm:$0x1]
  %v1434 = vld [vmem:[%s695 + $0x10] sm:$0x1]
  %v1435 = vld [vmem:[%s695 + $0x11] sm:$0x1]
  %v1436 = vld [vmem:[%s695 + $0x12] sm:$0x1]
  %v1437 = vld [vmem:[%s695 + $0x13] sm:$0x1]
  %v1438 = vld [vmem:[%s695 + $0x14] sm:$0x1]
  %v1439 = vld [vmem:[%s695 + $0x15] sm:$0x1]
  %v1440 = vld [vmem:[%s695 + $0x16] sm:$0x1]
  %v1441 = vld [vmem:[%s695 + $0x17] sm:$0x1]
  %v1442 = vld [vmem:[%s695 + $0x18] sm:$0x1]
  %v1443 = vld [vmem:[%s695 + $0x19] sm:$0x1]
  %v1444 = vld [vmem:[%s695 + $0x1a] sm:$0x1]
  %v1445 = vld [vmem:[%s695 + $0x1b] sm:$0x1]
  %v1446 = vld [vmem:[%s695 + $0x1c] sm:$0x1]
  %v1447 = vld [vmem:[%s695 + $0x1d] sm:$0x1]
  %v1448 = vld [vmem:[%s695 + $0x1e] sm:$0x1]
  %v1449 = vld [vmem:[%s695 + $0x1f] sm:$0x1]
  %v1450 = vld [vmem:[%s695 + $0x20] sm:$0x1]
  %v1451 = vld [vmem:[%s695 + $0x21] sm:$0x1]
  %v1452 = vld [vmem:[%s695 + $0x22] sm:$0x1]
  %v1453 = vld [vmem:[%s695 + $0x23] sm:$0x1]
  %v1454 = vld [vmem:[%s695 + $0x24] sm:$0x1]
  %v1455 = vld [vmem:[%s695 + $0x25] sm:$0x1]
  %v1456 = vld [vmem:[%s695 + $0x26] sm:$0x1]
  %v1457 = vld [vmem:[%s695 + $0x27] sm:$0x1]
  %v1458 = vld [vmem:[%s695 + $0x28] sm:$0x1]
  %v1459 = vld [vmem:[%s695 + $0x29] sm:$0x1]
  %v1460 = vld [vmem:[%s695 + $0x2a] sm:$0x1]
  %v1461 = vld [vmem:[%s695 + $0x2b] sm:$0x1]
  %v1462 = vld [vmem:[%s695 + $0x2c] sm:$0x1]
  %v1463 = vld [vmem:[%s695 + $0x2d] sm:$0x1]
  %v1464 = vld [vmem:[%s695 + $0x2e] sm:$0x1]
  %v1465 = vld [vmem:[%s695 + $0x2f] sm:$0x1]
  %v1466 = vld [vmem:[%s695 + $0x30] sm:$0x1]
  %v1467 = vld [vmem:[%s695 + $0x31] sm:$0x1]
  %v1468 = vld [vmem:[%s695 + $0x32] sm:$0x1]
  %v1469 = vld [vmem:[%s695 + $0x33] sm:$0x1]
  %v1470 = vld [vmem:[%s695 + $0x34] sm:$0x1]
  %v1471 = vld [vmem:[%s695 + $0x35] sm:$0x1]
  %v1472 = vld [vmem:[%s695 + $0x36] sm:$0x1]
  %v1473 = vld [vmem:[%s695 + $0x37] sm:$0x1]
  %v1474 = vld [vmem:[%s695 + $0x38] sm:$0x1]
  %v1475 = vld [vmem:[%s695 + $0x39] sm:$0x1]
  %v1476 = vld [vmem:[%s695 + $0x3a] sm:$0x1]
  %v1477 = vld [vmem:[%s695 + $0x3b] sm:$0x1]
  %v1478 = vld [vmem:[%s695 + $0x3c] sm:$0x1]
  %v1479 = vld [vmem:[%s695 + $0x3d] sm:$0x1]
  %v1480 = vld [vmem:[%s695 + $0x3e] sm:$0x1]
  %v1481 = vld [vmem:[%s695 + $0x3f] sm:$0x1]
  %v1482 = vld [vmem:[%s695 + $0x40] sm:$0x1]
  %v1483 = vld [vmem:[%s695 + $0x41] sm:$0x1]
  %v1484 = vld [vmem:[%s695 + $0x42] sm:$0x1]
  %v1485 = vld [vmem:[%s695 + $0x43] sm:$0x1]
  %v1486 = vld [vmem:[%s695 + $0x44] sm:$0x1]
  %v1487 = vld [vmem:[%s695 + $0x45] sm:$0x1]
  %v1488 = vld [vmem:[%s695 + $0x46] sm:$0x1]
  %v1489 = vld [vmem:[%s695 + $0x47] sm:$0x1]
  %v1490 = vld [vmem:[%s695 + $0x48] sm:$0x1]
  %v1491 = vld [vmem:[%s695 + $0x49] sm:$0x1]
  %v1492 = vld [vmem:[%s695 + $0x4a] sm:$0x1]
  %v1493 = vld [vmem:[%s695 + $0x4b] sm:$0x1]
  %v1494 = vld [vmem:[%s695 + $0x4c] sm:$0x1]
  %v1495 = vld [vmem:[%s695 + $0x4d] sm:$0x1]
  %v1496 = vld [vmem:[%s695 + $0x4e] sm:$0x1]
  %v1497 = vld [vmem:[%s695 + $0x4f] sm:$0x1]
  %v1498 = vld [vmem:[%s695 + $0x50] sm:$0x1]
  %v1499 = vld [vmem:[%s695 + $0x51] sm:$0x1]
  %v1500 = vld [vmem:[%s695 + $0x52] sm:$0x1]
  %v1501 = vld [vmem:[%s695 + $0x53] sm:$0x1]
  %v1502 = vld [vmem:[%s695 + $0x54] sm:$0x1]
  %v1503 = vld [vmem:[%s695 + $0x55] sm:$0x1]
  %v1504 = vld [vmem:[%s695 + $0x56] sm:$0x1]
  %v1505 = vld [vmem:[%s695 + $0x57] sm:$0x1]
  %v1506 = vld [vmem:[%s695 + $0x58] sm:$0x1]
  %v1507 = vld [vmem:[%s695 + $0x59] sm:$0x1]
  %v1508 = vld [vmem:[%s695 + $0x5a] sm:$0x1]
  %v1509 = vld [vmem:[%s695 + $0x5b] sm:$0x1]
  %v1510 = vld [vmem:[%s695 + $0x5c] sm:$0x1]
  %v1511 = vld [vmem:[%s695 + $0x5d] sm:$0x1]
  %v1512 = vld [vmem:[%s695 + $0x5e] sm:$0x1]
  %v1513 = vld [vmem:[%s695 + $0x5f] sm:$0x1]
  %v1514 = vld [vmem:[%s695 + $0x60] sm:$0x1]
  %v1515 = vld [vmem:[%s695 + $0x61] sm:$0x1]
  %v1516 = vld [vmem:[%s695 + $0x62] sm:$0x1]
  %v1517 = vld [vmem:[%s695 + $0x63] sm:$0x1]
  %v1518 = vld [vmem:[%s695 + $0x64] sm:$0x1]
  %v1519 = vld [vmem:[%s695 + $0x65] sm:$0x1]
  %v1520 = vld [vmem:[%s695 + $0x66] sm:$0x1]
  %v1521 = vld [vmem:[%s695 + $0x67] sm:$0x1]
  %v1522 = vld [vmem:[%s695 + $0x68] sm:$0x1]
  %v1523 = vld [vmem:[%s695 + $0x69] sm:$0x1]
  %v1524 = vld [vmem:[%s695 + $0x6a] sm:$0x1]
  %v1525 = vld [vmem:[%s695 + $0x6b] sm:$0x1]
  %v1526 = vld [vmem:[%s695 + $0x6c] sm:$0x1]
  %v1527 = vld [vmem:[%s695 + $0x6d] sm:$0x1]
  %v1528 = vld [vmem:[%s695 + $0x6e] sm:$0x1]
  %v1529 = vld [vmem:[%s695 + $0x6f] sm:$0x1]
  %v1530 = vld [vmem:[%s695 + $0x70] sm:$0x1]
  %v1531 = vld [vmem:[%s695 + $0x71] sm:$0x1]
  %v1532 = vld [vmem:[%s695 + $0x72] sm:$0x1]
  %v1533 = vld [vmem:[%s695 + $0x73] sm:$0x1]
  %v1534 = vld [vmem:[%s695 + $0x74] sm:$0x1]
  %v1535 = vld [vmem:[%s695 + $0x75] sm:$0x1]
  %v1536 = vld [vmem:[%s695 + $0x76] sm:$0x1]
  %v1537 = vld [vmem:[%s695 + $0x77] sm:$0x1]
  %v1538 = vld [vmem:[%s695 + $0x78] sm:$0x1]
  %v1539 = vld [vmem:[%s695 + $0x79] sm:$0x1]
  %v1540 = vld [vmem:[%s695 + $0x7a] sm:$0x1]
  %v1541 = vld [vmem:[%s695 + $0x7b] sm:$0x1]
  %v1542 = vld [vmem:[%s695 + $0x7c] sm:$0x1]
  %v1543 = vld [vmem:[%s695 + $0x7d] sm:$0x1]
  %v1544 = vld [vmem:[%s695 + $0x7e] sm:$0x1]
  %v1545 = vld [vmem:[%s695 + $0x7f] sm:$0x1]
  %v1546 = vld [vmem:[%s695 + $0x80] sm:$0x1]
  %v1547 = vld [vmem:[%s695 + $0x81] sm:$0x1]
  %v1548 = vld [vmem:[%s695 + $0x82] sm:$0x1]
  %v1549 = vld [vmem:[%s695 + $0x83] sm:$0x1]
  %v1550 = vld [vmem:[%s695 + $0x84] sm:$0x1]
  %v1551 = vld [vmem:[%s695 + $0x85] sm:$0x1]
  %v1552 = vld [vmem:[%s695 + $0x86] sm:$0x1]
  %v1553 = vld [vmem:[%s695 + $0x87] sm:$0x1]
  %v1554 = vld [vmem:[%s695 + $0x88] sm:$0x1]
  %v1555 = vld [vmem:[%s695 + $0x89] sm:$0x1]
  %v1556 = vld [vmem:[%s695 + $0x8a] sm:$0x1]
  %v1557 = vld [vmem:[%s695 + $0x8b] sm:$0x1]
  %v1558 = vld [vmem:[%s695 + $0x8c] sm:$0x1]
  %v1559 = vld [vmem:[%s695 + $0x8d] sm:$0x1]
  %v1560 = vld [vmem:[%s695 + $0x8e] sm:$0x1]
  %v1561 = vld [vmem:[%s695 + $0x8f] sm:$0x1]
  %v1562 = vld [vmem:[%s695 + $0x90] sm:$0x1]
  %v1563 = vld [vmem:[%s695 + $0x91] sm:$0x1]
  %v1564 = vld [vmem:[%s695 + $0x92] sm:$0x1]
  %v1565 = vld [vmem:[%s695 + $0x93] sm:$0x1]
  %v1566 = vld [vmem:[%s695 + $0x94] sm:$0x1]
  %v1567 = vld [vmem:[%s695 + $0x95] sm:$0x1]
  %v1568 = vld [vmem:[%s695 + $0x96] sm:$0x1]
  %v1569 = vld [vmem:[%s695 + $0x97] sm:$0x1]
  %v1570 = vld [vmem:[%s695 + $0x98] sm:$0x1]
  %v1571 = vld [vmem:[%s695 + $0x99] sm:$0x1]
  %v1572 = vld [vmem:[%s695 + $0x9a] sm:$0x1]
  %v1573 = vld [vmem:[%s695 + $0x9b] sm:$0x1]
  %v1574 = vld [vmem:[%s695 + $0x9c] sm:$0x1]
  %v1575 = vld [vmem:[%s695 + $0x9d] sm:$0x1]
  %v1576 = vld [vmem:[%s695 + $0x9e] sm:$0x1]
  %v1577 = vld [vmem:[%s695 + $0x9f] sm:$0x1]
  %v1578 = vld [vmem:[%s695 + $0xa0] sm:$0x1]
  %v1579 = vld [vmem:[%s695 + $0xa1] sm:$0x1]
  %v1580 = vld [vmem:[%s695 + $0xa2] sm:$0x1]
  %v1581 = vld [vmem:[%s695 + $0xa3] sm:$0x1]
  %v1582 = vld [vmem:[%s695 + $0xa4] sm:$0x1]
  %v1583 = vld [vmem:[%s695 + $0xa5] sm:$0x1]
  %v1584 = vld [vmem:[%s695 + $0xa6] sm:$0x1]
  %v1585 = vld [vmem:[%s695 + $0xa7] sm:$0x1]
  %v1586 = vld [vmem:[%s695 + $0xa8] sm:$0x1]
  %v1587 = vld [vmem:[%s695 + $0xa9] sm:$0x1]
  %v1588 = vld [vmem:[%s695 + $0xaa] sm:$0x1]
  %v1589 = vld [vmem:[%s695 + $0xab] sm:$0x1]
  %v1590 = vld [vmem:[%s695 + $0xac] sm:$0x1]
  %v1591 = vld [vmem:[%s695 + $0xad] sm:$0x1]
  %v1592 = vld [vmem:[%s695 + $0xae] sm:$0x1]
  %v1593 = vld [vmem:[%s695 + $0xaf] sm:$0x1]
  %v1594 = vld [vmem:[%s695 + $0xb0] sm:$0x1]
  %v1595 = vld [vmem:[%s695 + $0xb1] sm:$0x1]
  %v1596 = vld [vmem:[%s695 + $0xb2] sm:$0x1]
  %v1597 = vld [vmem:[%s695 + $0xb3] sm:$0x1]
  %v1598 = vld [vmem:[%s695 + $0xb4] sm:$0x1]
  %v1599 = vld [vmem:[%s695 + $0xb5] sm:$0x1]
  %v1600 = vld [vmem:[%s695 + $0xb6] sm:$0x1]
  %v1601 = vld [vmem:[%s695 + $0xb7] sm:$0x1]
  %v1602 = vld [vmem:[%s695 + $0xb8] sm:$0x1]
  %v1603 = vld [vmem:[%s695 + $0xb9] sm:$0x1]
  %v1604 = vld [vmem:[%s695 + $0xba] sm:$0x1]
  %v1605 = vld [vmem:[%s695 + $0xbb] sm:$0x1]
  %v1606 = vld [vmem:[%s695 + $0xbc] sm:$0x1]
  %v1607 = vld [vmem:[%s695 + $0xbd] sm:$0x1]
  %v1608 = vld [vmem:[%s695 + $0xbe] sm:$0x1]
  %v1609 = vld [vmem:[%s695 + $0xbf] sm:$0x1]
  %v1610 = vld [vmem:[%s695 + $0xc0] sm:$0x1]
  %v1611 = vld [vmem:[%s695 + $0xc1] sm:$0x1]
  %v1612 = vld [vmem:[%s695 + $0xc2] sm:$0x1]
  %v1613 = vld [vmem:[%s695 + $0xc3] sm:$0x1]
  %v1614 = vld [vmem:[%s695 + $0xc4] sm:$0x1]
  %v1615 = vld [vmem:[%s695 + $0xc5] sm:$0x1]
  %v1616 = vld [vmem:[%s695 + $0xc6] sm:$0x1]
  %v1617 = vld [vmem:[%s695 + $0xc7] sm:$0x1]
  %v1618 = vld [vmem:[%s695 + $0xc8] sm:$0x1]
  %v1619 = vld [vmem:[%s695 + $0xc9] sm:$0x1]
  %v1620 = vld [vmem:[%s695 + $0xca] sm:$0x1]
  %v1621 = vld [vmem:[%s695 + $0xcb] sm:$0x1]
  %v1622 = vld [vmem:[%s695 + $0xcc] sm:$0x1]
  %v1623 = vld [vmem:[%s695 + $0xcd] sm:$0x1]
  %v1624 = vld [vmem:[%s695 + $0xce] sm:$0x1]
  %v1625 = vld [vmem:[%s695 + $0xcf] sm:$0x1]
  %v1626 = vld [vmem:[%s695 + $0xd0] sm:$0x1]
  %v1627 = vld [vmem:[%s695 + $0xd1] sm:$0x1]
  %v1628 = vld [vmem:[%s695 + $0xd2] sm:$0x1]
  %v1629 = vld [vmem:[%s695 + $0xd3] sm:$0x1]
  %v1630 = vld [vmem:[%s695 + $0xd4] sm:$0x1]
  %v1631 = vld [vmem:[%s695 + $0xd5] sm:$0x1]
  %v1632 = vld [vmem:[%s695 + $0xd6] sm:$0x1]
  %v1633 = vld [vmem:[%s695 + $0xd7] sm:$0x1]
  %v1634 = vld [vmem:[%s695 + $0xd8] sm:$0x1]
  %v1635 = vld [vmem:[%s695 + $0xd9] sm:$0x1]
  %v1636 = vld [vmem:[%s695 + $0xda] sm:$0x1]
  %v1637 = vld [vmem:[%s695 + $0xdb] sm:$0x1]
  %v1638 = vld [vmem:[%s695 + $0xdc] sm:$0x1]
  %v1639 = vld [vmem:[%s695 + $0xdd] sm:$0x1]
  %v1640 = vld [vmem:[%s695 + $0xde] sm:$0x1]
  %v1641 = vld [vmem:[%s695 + $0xdf] sm:$0x1]
  %v1642 = vld [vmem:[%s695 + $0xe0] sm:$0x1]
  %v1643 = vld [vmem:[%s695 + $0xe1] sm:$0x1]
  %v1644 = vld [vmem:[%s695 + $0xe2] sm:$0x1]
  %v1645 = vld [vmem:[%s695 + $0xe3] sm:$0x1]
  %v1646 = vld [vmem:[%s695 + $0xe4] sm:$0x1]
  %v1647 = vld [vmem:[%s695 + $0xe5] sm:$0x1]
  %v1648 = vld [vmem:[%s695 + $0xe6] sm:$0x1]
  %v1649 = vld [vmem:[%s695 + $0xe7] sm:$0x1]
  %v1650 = vld [vmem:[%s695 + $0xe8] sm:$0x1]
  %v1651 = vld [vmem:[%s695 + $0xe9] sm:$0x1]
  %v1652 = vld [vmem:[%s695 + $0xea] sm:$0x1]
  %v1653 = vld [vmem:[%s695 + $0xeb] sm:$0x1]
  %v1654 = vld [vmem:[%s695 + $0xec] sm:$0x1]
  %v1655 = vld [vmem:[%s695 + $0xed] sm:$0x1]
  %v1656 = vld [vmem:[%s695 + $0xee] sm:$0x1]
  %v1657 = vld [vmem:[%s695 + $0xef] sm:$0x1]
  %v1658 = vld [vmem:[%s695 + $0xf0] sm:$0x1]
  %v1659 = vld [vmem:[%s695 + $0xf1] sm:$0x1]
  %v1660 = vld [vmem:[%s695 + $0xf2] sm:$0x1]
  %v1661 = vld [vmem:[%s695 + $0xf3] sm:$0x1]
  %v1662 = vld [vmem:[%s695 + $0xf4] sm:$0x1]
  %v1663 = vld [vmem:[%s695 + $0xf5] sm:$0x1]
  %v1664 = vld [vmem:[%s695 + $0xf6] sm:$0x1]
  %v1665 = vld [vmem:[%s695 + $0xf7] sm:$0x1]
  %v1666 = vld [vmem:[%s695 + $0xf8] sm:$0x1]
  %v1667 = vld [vmem:[%s695 + $0xf9] sm:$0x1]
  %v1668 = vld [vmem:[%s695 + $0xfa] sm:$0x1]
  %v1669 = vld [vmem:[%s695 + $0xfb] sm:$0x1]
  %v1670 = vld [vmem:[%s695 + $0xfc] sm:$0x1]
  %v1671 = vld [vmem:[%s695 + $0xfd] sm:$0x1]
  %v1672 = vld [vmem:[%s695 + $0xfe] sm:$0x1]
  %v1673 = vld [vmem:[%s695 + $0xff] sm:$0x1]
  %s1674 = scalar_lea.vmem %s1, 667
  %1675 = vst.msk [vmem:[%s1674] sm:$0x1] %vm76, %v1418
  %1676 = vst.msk [vmem:[%s1674 + $0x1] sm:$0x1] %vm76, %v1419
  %1677 = vst.msk [vmem:[%s1674 + $0x2] sm:$0x1] %vm76, %v1420
  %1678 = vst.msk [vmem:[%s1674 + $0x3] sm:$0x1] %vm76, %v1421
  %1679 = vst.msk [vmem:[%s1674 + $0x4] sm:$0x1] %vm76, %v1422
  %1680 = vst.msk [vmem:[%s1674 + $0x5] sm:$0x1] %vm76, %v1423
  %1681 = vst.msk [vmem:[%s1674 + $0x6] sm:$0x1] %vm76, %v1424
  %1682 = vst.msk [vmem:[%s1674 + $0x7] sm:$0x1] %vm76, %v1425
  %1683 = vst.msk [vmem:[%s1674 + $0x8] sm:$0x1] %vm76, %v1426
  %1684 = vst.msk [vmem:[%s1674 + $0x9] sm:$0x1] %vm76, %v1427
  %1685 = vst.msk [vmem:[%s1674 + $0xa] sm:$0x1] %vm76, %v1428
  %1686 = vst.msk [vmem:[%s1674 + $0xb] sm:$0x1] %vm76, %v1429
  %1687 = vst.msk [vmem:[%s1674 + $0xc] sm:$0x1] %vm76, %v1430
  %1688 = vst.msk [vmem:[%s1674 + $0xd] sm:$0x1] %vm76, %v1431
  %1689 = vst.msk [vmem:[%s1674 + $0xe] sm:$0x1] %vm76, %v1432
  %1690 = vst.msk [vmem:[%s1674 + $0xf] sm:$0x1] %vm76, %v1433
  %1691 = vst.msk [vmem:[%s1674 + $0x12] sm:$0x1] %vm76, %v1434
  %1692 = vst.msk [vmem:[%s1674 + $0x13] sm:$0x1] %vm76, %v1435
  %1693 = vst.msk [vmem:[%s1674 + $0x14] sm:$0x1] %vm76, %v1436
  %1694 = vst.msk [vmem:[%s1674 + $0x15] sm:$0x1] %vm76, %v1437
  %1695 = vst.msk [vmem:[%s1674 + $0x16] sm:$0x1] %vm76, %v1438
  %1696 = vst.msk [vmem:[%s1674 + $0x17] sm:$0x1] %vm76, %v1439
  %1697 = vst.msk [vmem:[%s1674 + $0x18] sm:$0x1] %vm76, %v1440
  %1698 = vst.msk [vmem:[%s1674 + $0x19] sm:$0x1] %vm76, %v1441
  %1699 = vst.msk [vmem:[%s1674 + $0x1a] sm:$0x1] %vm76, %v1442
  %1700 = vst.msk [vmem:[%s1674 + $0x1b] sm:$0x1] %vm76, %v1443
  %1701 = vst.msk [vmem:[%s1674 + $0x1c] sm:$0x1] %vm76, %v1444
  %1702 = vst.msk [vmem:[%s1674 + $0x1d] sm:$0x1] %vm76, %v1445
  %1703 = vst.msk [vmem:[%s1674 + $0x1e] sm:$0x1] %vm76, %v1446
  %1704 = vst.msk [vmem:[%s1674 + $0x1f] sm:$0x1] %vm76, %v1447
  %1705 = vst.msk [vmem:[%s1674 + $0x20] sm:$0x1] %vm76, %v1448
  %1706 = vst.msk [vmem:[%s1674 + $0x21] sm:$0x1] %vm76, %v1449
  %1707 = vst.msk [vmem:[%s1674 + $0x24] sm:$0x1] %vm76, %v1450
  %1708 = vst.msk [vmem:[%s1674 + $0x25] sm:$0x1] %vm76, %v1451
  %1709 = vst.msk [vmem:[%s1674 + $0x26] sm:$0x1] %vm76, %v1452
  %1710 = vst.msk [vmem:[%s1674 + $0x27] sm:$0x1] %vm76, %v1453
  %1711 = vst.msk [vmem:[%s1674 + $0x28] sm:$0x1] %vm76, %v1454
  %1712 = vst.msk [vmem:[%s1674 + $0x29] sm:$0x1] %vm76, %v1455
  %1713 = vst.msk [vmem:[%s1674 + $0x2a] sm:$0x1] %vm76, %v1456
  %1714 = vst.msk [vmem:[%s1674 + $0x2b] sm:$0x1] %vm76, %v1457
  %1715 = vst.msk [vmem:[%s1674 + $0x2c] sm:$0x1] %vm76, %v1458
  %1716 = vst.msk [vmem:[%s1674 + $0x2d] sm:$0x1] %vm76, %v1459
  %1717 = vst.msk [vmem:[%s1674 + $0x2e] sm:$0x1] %vm76, %v1460
  %1718 = vst.msk [vmem:[%s1674 + $0x2f] sm:$0x1] %vm76, %v1461
  %1719 = vst.msk [vmem:[%s1674 + $0x30] sm:$0x1] %vm76, %v1462
  %1720 = vst.msk [vmem:[%s1674 + $0x31] sm:$0x1] %vm76, %v1463
  %1721 = vst.msk [vmem:[%s1674 + $0x32] sm:$0x1] %vm76, %v1464
  %1722 = vst.msk [vmem:[%s1674 + $0x33] sm:$0x1] %vm76, %v1465
  %1723 = vst.msk [vmem:[%s1674 + $0x36] sm:$0x1] %vm76, %v1466
  %1724 = vst.msk [vmem:[%s1674 + $0x37] sm:$0x1] %vm76, %v1467
  %1725 = vst.msk [vmem:[%s1674 + $0x38] sm:$0x1] %vm76, %v1468
  %1726 = vst.msk [vmem:[%s1674 + $0x39] sm:$0x1] %vm76, %v1469
  %1727 = vst.msk [vmem:[%s1674 + $0x3a] sm:$0x1] %vm76, %v1470
  %1728 = vst.msk [vmem:[%s1674 + $0x3b] sm:$0x1] %vm76, %v1471
  %1729 = vst.msk [vmem:[%s1674 + $0x3c] sm:$0x1] %vm76, %v1472
  %1730 = vst.msk [vmem:[%s1674 + $0x3d] sm:$0x1] %vm76, %v1473
  %1731 = vst.msk [vmem:[%s1674 + $0x3e] sm:$0x1] %vm76, %v1474
  %1732 = vst.msk [vmem:[%s1674 + $0x3f] sm:$0x1] %vm76, %v1475
  %1733 = vst.msk [vmem:[%s1674 + $0x40] sm:$0x1] %vm76, %v1476
  %1734 = vst.msk [vmem:[%s1674 + $0x41] sm:$0x1] %vm76, %v1477
  %1735 = vst.msk [vmem:[%s1674 + $0x42] sm:$0x1] %vm76, %v1478
  %1736 = vst.msk [vmem:[%s1674 + $0x43] sm:$0x1] %vm76, %v1479
  %1737 = vst.msk [vmem:[%s1674 + $0x44] sm:$0x1] %vm76, %v1480
  %1738 = vst.msk [vmem:[%s1674 + $0x45] sm:$0x1] %vm76, %v1481
  %1739 = vst.msk [vmem:[%s1674 + $0x48] sm:$0x1] %vm76, %v1482
  %1740 = vst.msk [vmem:[%s1674 + $0x49] sm:$0x1] %vm76, %v1483
  %1741 = vst.msk [vmem:[%s1674 + $0x4a] sm:$0x1] %vm76, %v1484
  %1742 = vst.msk [vmem:[%s1674 + $0x4b] sm:$0x1] %vm76, %v1485
  %1743 = vst.msk [vmem:[%s1674 + $0x4c] sm:$0x1] %vm76, %v1486
  %1744 = vst.msk [vmem:[%s1674 + $0x4d] sm:$0x1] %vm76, %v1487
  %1745 = vst.msk [vmem:[%s1674 + $0x4e] sm:$0x1] %vm76, %v1488
  %1746 = vst.msk [vmem:[%s1674 + $0x4f] sm:$0x1] %vm76, %v1489
  %1747 = vst.msk [vmem:[%s1674 + $0x50] sm:$0x1] %vm76, %v1490
  %1748 = vst.msk [vmem:[%s1674 + $0x51] sm:$0x1] %vm76, %v1491
  %1749 = vst.msk [vmem:[%s1674 + $0x52] sm:$0x1] %vm76, %v1492
  %1750 = vst.msk [vmem:[%s1674 + $0x53] sm:$0x1] %vm76, %v1493
  %1751 = vst.msk [vmem:[%s1674 + $0x54] sm:$0x1] %vm76, %v1494
  %1752 = vst.msk [vmem:[%s1674 + $0x55] sm:$0x1] %vm76, %v1495
  %1753 = vst.msk [vmem:[%s1674 + $0x56] sm:$0x1] %vm76, %v1496
  %1754 = vst.msk [vmem:[%s1674 + $0x57] sm:$0x1] %vm76, %v1497
  %1755 = vst.msk [vmem:[%s1674 + $0x5a] sm:$0x1] %vm76, %v1498
  %1756 = vst.msk [vmem:[%s1674 + $0x5b] sm:$0x1] %vm76, %v1499
  %1757 = vst.msk [vmem:[%s1674 + $0x5c] sm:$0x1] %vm76, %v1500
  %1758 = vst.msk [vmem:[%s1674 + $0x5d] sm:$0x1] %vm76, %v1501
  %1759 = vst.msk [vmem:[%s1674 + $0x5e] sm:$0x1] %vm76, %v1502
  %1760 = vst.msk [vmem:[%s1674 + $0x5f] sm:$0x1] %vm76, %v1503
  %1761 = vst.msk [vmem:[%s1674 + $0x60] sm:$0x1] %vm76, %v1504
  %1762 = vst.msk [vmem:[%s1674 + $0x61] sm:$0x1] %vm76, %v1505
  %1763 = vst.msk [vmem:[%s1674 + $0x62] sm:$0x1] %vm76, %v1506
  %1764 = vst.msk [vmem:[%s1674 + $0x63] sm:$0x1] %vm76, %v1507
  %1765 = vst.msk [vmem:[%s1674 + $0x64] sm:$0x1] %vm76, %v1508
  %1766 = vst.msk [vmem:[%s1674 + $0x65] sm:$0x1] %vm76, %v1509
  %1767 = vst.msk [vmem:[%s1674 + $0x66] sm:$0x1] %vm76, %v1510
  %1768 = vst.msk [vmem:[%s1674 + $0x67] sm:$0x1] %vm76, %v1511
  %1769 = vst.msk [vmem:[%s1674 + $0x68] sm:$0x1] %vm76, %v1512
  %1770 = vst.msk [vmem:[%s1674 + $0x69] sm:$0x1] %vm76, %v1513
  %1771 = vst.msk [vmem:[%s1674 + $0x6c] sm:$0x1] %vm76, %v1514
  %1772 = vst.msk [vmem:[%s1674 + $0x6d] sm:$0x1] %vm76, %v1515
  %1773 = vst.msk [vmem:[%s1674 + $0x6e] sm:$0x1] %vm76, %v1516
  %1774 = vst.msk [vmem:[%s1674 + $0x6f] sm:$0x1] %vm76, %v1517
  %1775 = vst.msk [vmem:[%s1674 + $0x70] sm:$0x1] %vm76, %v1518
  %1776 = vst.msk [vmem:[%s1674 + $0x71] sm:$0x1] %vm76, %v1519
  %1777 = vst.msk [vmem:[%s1674 + $0x72] sm:$0x1] %vm76, %v1520
  %1778 = vst.msk [vmem:[%s1674 + $0x73] sm:$0x1] %vm76, %v1521
  %1779 = vst.msk [vmem:[%s1674 + $0x74] sm:$0x1] %vm76, %v1522
  %1780 = vst.msk [vmem:[%s1674 + $0x75] sm:$0x1] %vm76, %v1523
  %1781 = vst.msk [vmem:[%s1674 + $0x76] sm:$0x1] %vm76, %v1524
  %1782 = vst.msk [vmem:[%s1674 + $0x77] sm:$0x1] %vm76, %v1525
  %1783 = vst.msk [vmem:[%s1674 + $0x78] sm:$0x1] %vm76, %v1526
  %1784 = vst.msk [vmem:[%s1674 + $0x79] sm:$0x1] %vm76, %v1527
  %1785 = vst.msk [vmem:[%s1674 + $0x7a] sm:$0x1] %vm76, %v1528
  %1786 = vst.msk [vmem:[%s1674 + $0x7b] sm:$0x1] %vm76, %v1529
  %1787 = vst.msk [vmem:[%s1674 + $0x7e] sm:$0x1] %vm76, %v1530
  %1788 = vst.msk [vmem:[%s1674 + $0x7f] sm:$0x1] %vm76, %v1531
  %1789 = vst.msk [vmem:[%s1674 + $0x80] sm:$0x1] %vm76, %v1532
  %1790 = vst.msk [vmem:[%s1674 + $0x81] sm:$0x1] %vm76, %v1533
  %1791 = vst.msk [vmem:[%s1674 + $0x82] sm:$0x1] %vm76, %v1534
  %1792 = vst.msk [vmem:[%s1674 + $0x83] sm:$0x1] %vm76, %v1535
  %1793 = vst.msk [vmem:[%s1674 + $0x84] sm:$0x1] %vm76, %v1536
  %1794 = vst.msk [vmem:[%s1674 + $0x85] sm:$0x1] %vm76, %v1537
  %1795 = vst.msk [vmem:[%s1674 + $0x86] sm:$0x1] %vm76, %v1538
  %1796 = vst.msk [vmem:[%s1674 + $0x87] sm:$0x1] %vm76, %v1539
  %1797 = vst.msk [vmem:[%s1674 + $0x88] sm:$0x1] %vm76, %v1540
  %1798 = vst.msk [vmem:[%s1674 + $0x89] sm:$0x1] %vm76, %v1541
  %1799 = vst.msk [vmem:[%s1674 + $0x8a] sm:$0x1] %vm76, %v1542
  %1800 = vst.msk [vmem:[%s1674 + $0x8b] sm:$0x1] %vm76, %v1543
  %1801 = vst.msk [vmem:[%s1674 + $0x8c] sm:$0x1] %vm76, %v1544
  %1802 = vst.msk [vmem:[%s1674 + $0x8d] sm:$0x1] %vm76, %v1545
  %1803 = vst.msk [vmem:[%s1674 + $0x90] sm:$0x1] %vm76, %v1546
  %1804 = vst.msk [vmem:[%s1674 + $0x91] sm:$0x1] %vm76, %v1547
  %1805 = vst.msk [vmem:[%s1674 + $0x92] sm:$0x1] %vm76, %v1548
  %1806 = vst.msk [vmem:[%s1674 + $0x93] sm:$0x1] %vm76, %v1549
  %1807 = vst.msk [vmem:[%s1674 + $0x94] sm:$0x1] %vm76, %v1550
  %1808 = vst.msk [vmem:[%s1674 + $0x95] sm:$0x1] %vm76, %v1551
  %1809 = vst.msk [vmem:[%s1674 + $0x96] sm:$0x1] %vm76, %v1552
  %1810 = vst.msk [vmem:[%s1674 + $0x97] sm:$0x1] %vm76, %v1553
  %1811 = vst.msk [vmem:[%s1674 + $0x98] sm:$0x1] %vm76, %v1554
  %1812 = vst.msk [vmem:[%s1674 + $0x99] sm:$0x1] %vm76, %v1555
  %1813 = vst.msk [vmem:[%s1674 + $0x9a] sm:$0x1] %vm76, %v1556
  %1814 = vst.msk [vmem:[%s1674 + $0x9b] sm:$0x1] %vm76, %v1557
  %1815 = vst.msk [vmem:[%s1674 + $0x9c] sm:$0x1] %vm76, %v1558
  %1816 = vst.msk [vmem:[%s1674 + $0x9d] sm:$0x1] %vm76, %v1559
  %1817 = vst.msk [vmem:[%s1674 + $0x9e] sm:$0x1] %vm76, %v1560
  %1818 = vst.msk [vmem:[%s1674 + $0x9f] sm:$0x1] %vm76, %v1561
  %1819 = vst.msk [vmem:[%s1674 + $0xa2] sm:$0x1] %vm76, %v1562
  %1820 = vst.msk [vmem:[%s1674 + $0xa3] sm:$0x1] %vm76, %v1563
  %1821 = vst.msk [vmem:[%s1674 + $0xa4] sm:$0x1] %vm76, %v1564
  %1822 = vst.msk [vmem:[%s1674 + $0xa5] sm:$0x1] %vm76, %v1565
  %1823 = vst.msk [vmem:[%s1674 + $0xa6] sm:$0x1] %vm76, %v1566
  %1824 = vst.msk [vmem:[%s1674 + $0xa7] sm:$0x1] %vm76, %v1567
  %1825 = vst.msk [vmem:[%s1674 + $0xa8] sm:$0x1] %vm76, %v1568
  %1826 = vst.msk [vmem:[%s1674 + $0xa9] sm:$0x1] %vm76, %v1569
  %1827 = vst.msk [vmem:[%s1674 + $0xaa] sm:$0x1] %vm76, %v1570
  %1828 = vst.msk [vmem:[%s1674 + $0xab] sm:$0x1] %vm76, %v1571
  %1829 = vst.msk [vmem:[%s1674 + $0xac] sm:$0x1] %vm76, %v1572
  %1830 = vst.msk [vmem:[%s1674 + $0xad] sm:$0x1] %vm76, %v1573
  %1831 = vst.msk [vmem:[%s1674 + $0xae] sm:$0x1] %vm76, %v1574
  %1832 = vst.msk [vmem:[%s1674 + $0xaf] sm:$0x1] %vm76, %v1575
  %1833 = vst.msk [vmem:[%s1674 + $0xb0] sm:$0x1] %vm76, %v1576
  %1834 = vst.msk [vmem:[%s1674 + $0xb1] sm:$0x1] %vm76, %v1577
  %1835 = vst.msk [vmem:[%s1674 + $0xb4] sm:$0x1] %vm76, %v1578
  %1836 = vst.msk [vmem:[%s1674 + $0xb5] sm:$0x1] %vm76, %v1579
  %1837 = vst.msk [vmem:[%s1674 + $0xb6] sm:$0x1] %vm76, %v1580
  %1838 = vst.msk [vmem:[%s1674 + $0xb7] sm:$0x1] %vm76, %v1581
  %1839 = vst.msk [vmem:[%s1674 + $0xb8] sm:$0x1] %vm76, %v1582
  %1840 = vst.msk [vmem:[%s1674 + $0xb9] sm:$0x1] %vm76, %v1583
  %1841 = vst.msk [vmem:[%s1674 + $0xba] sm:$0x1] %vm76, %v1584
  %1842 = vst.msk [vmem:[%s1674 + $0xbb] sm:$0x1] %vm76, %v1585
  %1843 = vst.msk [vmem:[%s1674 + $0xbc] sm:$0x1] %vm76, %v1586
  %1844 = vst.msk [vmem:[%s1674 + $0xbd] sm:$0x1] %vm76, %v1587
  %1845 = vst.msk [vmem:[%s1674 + $0xbe] sm:$0x1] %vm76, %v1588
  %1846 = vst.msk [vmem:[%s1674 + $0xbf] sm:$0x1] %vm76, %v1589
  %1847 = vst.msk [vmem:[%s1674 + $0xc0] sm:$0x1] %vm76, %v1590
  %1848 = vst.msk [vmem:[%s1674 + $0xc1] sm:$0x1] %vm76, %v1591
  %1849 = vst.msk [vmem:[%s1674 + $0xc2] sm:$0x1] %vm76, %v1592
  %1850 = vst.msk [vmem:[%s1674 + $0xc3] sm:$0x1] %vm76, %v1593
  %1851 = vst.msk [vmem:[%s1674 + $0xc6] sm:$0x1] %vm76, %v1594
  %1852 = vst.msk [vmem:[%s1674 + $0xc7] sm:$0x1] %vm76, %v1595
  %1853 = vst.msk [vmem:[%s1674 + $0xc8] sm:$0x1] %vm76, %v1596
  %1854 = vst.msk [vmem:[%s1674 + $0xc9] sm:$0x1] %vm76, %v1597
  %1855 = vst.msk [vmem:[%s1674 + $0xca] sm:$0x1] %vm76, %v1598
  %1856 = vst.msk [vmem:[%s1674 + $0xcb] sm:$0x1] %vm76, %v1599
  %1857 = vst.msk [vmem:[%s1674 + $0xcc] sm:$0x1] %vm76, %v1600
  %1858 = vst.msk [vmem:[%s1674 + $0xcd] sm:$0x1] %vm76, %v1601
  %1859 = vst.msk [vmem:[%s1674 + $0xce] sm:$0x1] %vm76, %v1602
  %1860 = vst.msk [vmem:[%s1674 + $0xcf] sm:$0x1] %vm76, %v1603
  %1861 = vst.msk [vmem:[%s1674 + $0xd0] sm:$0x1] %vm76, %v1604
  %1862 = vst.msk [vmem:[%s1674 + $0xd1] sm:$0x1] %vm76, %v1605
  %1863 = vst.msk [vmem:[%s1674 + $0xd2] sm:$0x1] %vm76, %v1606
  %1864 = vst.msk [vmem:[%s1674 + $0xd3] sm:$0x1] %vm76, %v1607
  %1865 = vst.msk [vmem:[%s1674 + $0xd4] sm:$0x1] %vm76, %v1608
  %1866 = vst.msk [vmem:[%s1674 + $0xd5] sm:$0x1] %vm76, %v1609
  %1867 = vst.msk [vmem:[%s1674 + $0xd8] sm:$0x1] %vm76, %v1610
  %1868 = vst.msk [vmem:[%s1674 + $0xd9] sm:$0x1] %vm76, %v1611
  %1869 = vst.msk [vmem:[%s1674 + $0xda] sm:$0x1] %vm76, %v1612
  %1870 = vst.msk [vmem:[%s1674 + $0xdb] sm:$0x1] %vm76, %v1613
  %1871 = vst.msk [vmem:[%s1674 + $0xdc] sm:$0x1] %vm76, %v1614
  %1872 = vst.msk [vmem:[%s1674 + $0xdd] sm:$0x1] %vm76, %v1615
  %1873 = vst.msk [vmem:[%s1674 + $0xde] sm:$0x1] %vm76, %v1616
  %1874 = vst.msk [vmem:[%s1674 + $0xdf] sm:$0x1] %vm76, %v1617
  %1875 = vst.msk [vmem:[%s1674 + $0xe0] sm:$0x1] %vm76, %v1618
  %1876 = vst.msk [vmem:[%s1674 + $0xe1] sm:$0x1] %vm76, %v1619
  %1877 = vst.msk [vmem:[%s1674 + $0xe2] sm:$0x1] %vm76, %v1620
  %1878 = vst.msk [vmem:[%s1674 + $0xe3] sm:$0x1] %vm76, %v1621
  %1879 = vst.msk [vmem:[%s1674 + $0xe4] sm:$0x1] %vm76, %v1622
  %1880 = vst.msk [vmem:[%s1674 + $0xe5] sm:$0x1] %vm76, %v1623
  %1881 = vst.msk [vmem:[%s1674 + $0xe6] sm:$0x1] %vm76, %v1624
  %1882 = vst.msk [vmem:[%s1674 + $0xe7] sm:$0x1] %vm76, %v1625
  %1883 = vst.msk [vmem:[%s1674 + $0xea] sm:$0x1] %vm76, %v1626
  %1884 = vst.msk [vmem:[%s1674 + $0xeb] sm:$0x1] %vm76, %v1627
  %1885 = vst.msk [vmem:[%s1674 + $0xec] sm:$0x1] %vm76, %v1628
  %1886 = vst.msk [vmem:[%s1674 + $0xed] sm:$0x1] %vm76, %v1629
  %1887 = vst.msk [vmem:[%s1674 + $0xee] sm:$0x1] %vm76, %v1630
  %1888 = vst.msk [vmem:[%s1674 + $0xef] sm:$0x1] %vm76, %v1631
  %1889 = vst.msk [vmem:[%s1674 + $0xf0] sm:$0x1] %vm76, %v1632
  %1890 = vst.msk [vmem:[%s1674 + $0xf1] sm:$0x1] %vm76, %v1633
  %1891 = vst.msk [vmem:[%s1674 + $0xf2] sm:$0x1] %vm76, %v1634
  %1892 = vst.msk [vmem:[%s1674 + $0xf3] sm:$0x1] %vm76, %v1635
  %1893 = vst.msk [vmem:[%s1674 + $0xf4] sm:$0x1] %vm76, %v1636
  %1894 = vst.msk [vmem:[%s1674 + $0xf5] sm:$0x1] %vm76, %v1637
  %1895 = vst.msk [vmem:[%s1674 + $0xf6] sm:$0x1] %vm76, %v1638
  %1896 = vst.msk [vmem:[%s1674 + $0xf7] sm:$0x1] %vm76, %v1639
  %1897 = vst.msk [vmem:[%s1674 + $0xf8] sm:$0x1] %vm76, %v1640
  %1898 = vst.msk [vmem:[%s1674 + $0xf9] sm:$0x1] %vm76, %v1641
  %1899 = vst.msk [vmem:[%s1674 + $0xfc] sm:$0x1] %vm76, %v1642
  %1900 = vst.msk [vmem:[%s1674 + $0xfd] sm:$0x1] %vm76, %v1643
  %1901 = vst.msk [vmem:[%s1674 + $0xfe] sm:$0x1] %vm76, %v1644
  %1902 = vst.msk [vmem:[%s1674 + $0xff] sm:$0x1] %vm76, %v1645
  %1903 = vst.msk [vmem:[%s1674 + $0x100] sm:$0x1] %vm76, %v1646
  %1904 = vst.msk [vmem:[%s1674 + $0x101] sm:$0x1] %vm76, %v1647
  %1905 = vst.msk [vmem:[%s1674 + $0x102] sm:$0x1] %vm76, %v1648
  %1906 = vst.msk [vmem:[%s1674 + $0x103] sm:$0x1] %vm76, %v1649
  %1907 = vst.msk [vmem:[%s1674 + $0x104] sm:$0x1] %vm76, %v1650
  %1908 = vst.msk [vmem:[%s1674 + $0x105] sm:$0x1] %vm76, %v1651
  %1909 = vst.msk [vmem:[%s1674 + $0x106] sm:$0x1] %vm76, %v1652
  %1910 = vst.msk [vmem:[%s1674 + $0x107] sm:$0x1] %vm76, %v1653
  %1911 = vst.msk [vmem:[%s1674 + $0x108] sm:$0x1] %vm76, %v1654
  %1912 = vst.msk [vmem:[%s1674 + $0x109] sm:$0x1] %vm76, %v1655
  %1913 = vst.msk [vmem:[%s1674 + $0x10a] sm:$0x1] %vm76, %v1656
  %1914 = vst.msk [vmem:[%s1674 + $0x10b] sm:$0x1] %vm76, %v1657
  %1915 = vst.msk [vmem:[%s1674 + $0x10e] sm:$0x1] %vm76, %v1658
  %1916 = vst.msk [vmem:[%s1674 + $0x10f] sm:$0x1] %vm76, %v1659
  %1917 = vst.msk [vmem:[%s1674 + $0x110] sm:$0x1] %vm76, %v1660
  %1918 = vst.msk [vmem:[%s1674 + $0x111] sm:$0x1] %vm76, %v1661
  %1919 = vst.msk [vmem:[%s1674 + $0x112] sm:$0x1] %vm76, %v1662
  %1920 = vst.msk [vmem:[%s1674 + $0x113] sm:$0x1] %vm76, %v1663
  %1921 = vst.msk [vmem:[%s1674 + $0x114] sm:$0x1] %vm76, %v1664
  %1922 = vst.msk [vmem:[%s1674 + $0x115] sm:$0x1] %vm76, %v1665
  %1923 = vst.msk [vmem:[%s1674 + $0x116] sm:$0x1] %vm76, %v1666
  %1924 = vst.msk [vmem:[%s1674 + $0x117] sm:$0x1] %vm76, %v1667
  %1925 = vst.msk [vmem:[%s1674 + $0x118] sm:$0x1] %vm76, %v1668
  %1926 = vst.msk [vmem:[%s1674 + $0x119] sm:$0x1] %vm76, %v1669
  %1927 = vst.msk [vmem:[%s1674 + $0x11a] sm:$0x1] %vm76, %v1670
  %1928 = vst.msk [vmem:[%s1674 + $0x11b] sm:$0x1] %vm76, %v1671
  %1929 = vst.msk [vmem:[%s1674 + $0x11c] sm:$0x1] %vm76, %v1672
  %1930 = vst.msk [vmem:[%s1674 + $0x11d] sm:$0x1] %vm76, %v1673
  %s1931 = scalar_lea.vmem %s1, 683
  %1932 = vst.msk [vmem:[%s1931] sm:$0x1] %vm76, %v1349
  %1933 = vst.msk [vmem:[%s1931 + $0x12] sm:$0x1] %vm76, %v1350
  %1934 = vst.msk [vmem:[%s1931 + $0x24] sm:$0x1] %vm76, %v1351
  %1935 = vst.msk [vmem:[%s1931 + $0x36] sm:$0x1] %vm76, %v1352
  %1936 = vst.msk [vmem:[%s1931 + $0x48] sm:$0x1] %vm76, %v1353
  %1937 = vst.msk [vmem:[%s1931 + $0x5a] sm:$0x1] %vm76, %v1354
  %1938 = vst.msk [vmem:[%s1931 + $0x6c] sm:$0x1] %vm76, %v1355
  %1939 = vst.msk [vmem:[%s1931 + $0x7e] sm:$0x1] %vm76, %v1356
  %1940 = vst.msk [vmem:[%s1931 + $0x90] sm:$0x1] %vm76, %v1357
  %1941 = vst.msk [vmem:[%s1931 + $0xa2] sm:$0x1] %vm76, %v1358
  %1942 = vst.msk [vmem:[%s1931 + $0xb4] sm:$0x1] %vm76, %v1359
  %1943 = vst.msk [vmem:[%s1931 + $0xc6] sm:$0x1] %vm76, %v1360
  %1944 = vst.msk [vmem:[%s1931 + $0xd8] sm:$0x1] %vm76, %v1361
  %1945 = vst.msk [vmem:[%s1931 + $0xea] sm:$0x1] %vm76, %v1362
  %1946 = vst.msk [vmem:[%s1931 + $0xfc] sm:$0x1] %vm76, %v1363
  %1947 = vst.msk [vmem:[%s1931 + $0x10e] sm:$0x1] %vm76, %v1364
  %s1948 = scalar_lea.vmem %s1, 954
  %1949 = vst.msk [vmem:[%s1948] sm:$0x1] %vm76, 0.0
  %1950 = vst.msk [vmem:[%s1948 + $0x1] sm:$0x1] %vm76, %v1381
  %1951 = vst.msk [vmem:[%s1948 + $0x2] sm:$0x1] %vm76, %v1380
  %1952 = vst.msk [vmem:[%s1948 + $0x3] sm:$0x1] %vm76, %v1379
  %1953 = vst.msk [vmem:[%s1948 + $0x4] sm:$0x1] %vm76, %v1378
  %1954 = vst.msk [vmem:[%s1948 + $0x5] sm:$0x1] %vm76, %v1377
  %1955 = vst.msk [vmem:[%s1948 + $0x6] sm:$0x1] %vm76, %v1376
  %1956 = vst.msk [vmem:[%s1948 + $0x7] sm:$0x1] %vm76, %v1375
  %1957 = vst.msk [vmem:[%s1948 + $0x8] sm:$0x1] %vm76, %v1374
  %1958 = vst.msk [vmem:[%s1948 + $0x9] sm:$0x1] %vm76, %v1373
  %1959 = vst.msk [vmem:[%s1948 + $0xa] sm:$0x1] %vm76, %v1372
  %1960 = vst.msk [vmem:[%s1948 + $0xb] sm:$0x1] %vm76, %v1371
  %1961 = vst.msk [vmem:[%s1948 + $0xc] sm:$0x1] %vm76, %v1370
  %1962 = vst.msk [vmem:[%s1948 + $0xd] sm:$0x1] %vm76, %v1369
  %1963 = vst.msk [vmem:[%s1948 + $0xe] sm:$0x1] %vm76, %v1368
  %1964 = vst.msk [vmem:[%s1948 + $0xf] sm:$0x1] %vm76, %v1367
  %1965 = vst.msk [vmem:[%s1948 + $0x10] sm:$0x1] %vm76, %v1366
  %1966 = vst.msk [vmem:[%s1948 + $0x11] sm:$0x1] %vm76, 0.0
  %v1967 = vld [vmem:[%s1314] sm:$0x1]
  %v1968 = vld [vmem:[%s1314 + $0x10] sm:$0x1]
  %v1969 = vld [vmem:[%s1314 + $0x20] sm:$0x1]
  %v1970 = vld [vmem:[%s1314 + $0x30] sm:$0x1]
  %v1971 = vld [vmem:[%s1314 + $0x40] sm:$0x1]
  %v1972 = vld [vmem:[%s1314 + $0x50] sm:$0x1]
  %v1973 = vld [vmem:[%s1314 + $0x60] sm:$0x1]
  %v1974 = vld [vmem:[%s1314 + $0x70] sm:$0x1]
  %v1975 = vld [vmem:[%s1314 + $0x80] sm:$0x1]
  %v1976 = vld [vmem:[%s1314 + $0x90] sm:$0x1]
  %v1977 = vld [vmem:[%s1314 + $0xa0] sm:$0x1]
  %v1978 = vld [vmem:[%s1314 + $0xb0] sm:$0x1]
  %v1979 = vld [vmem:[%s1314 + $0xc0] sm:$0x1]
  %v1980 = vld [vmem:[%s1314 + $0xd0] sm:$0x1]
  %v1981 = vld [vmem:[%s1314 + $0xe0] sm:$0x1]
  %v1982 = vld [vmem:[%s1314 + $0xf0] sm:$0x1]
  %s1983 = scalar_lea.vmem %s0, 527
  %v1984 = vld [vmem:[%s1983] sm:$0x1]
  %v1985 = vld [vmem:[%s1983 + $0x10] sm:$0x1]
  %v1986 = vld [vmem:[%s1983 + $0x20] sm:$0x1]
  %v1987 = vld [vmem:[%s1983 + $0x30] sm:$0x1]
  %v1988 = vld [vmem:[%s1983 + $0x40] sm:$0x1]
  %v1989 = vld [vmem:[%s1983 + $0x50] sm:$0x1]
  %v1990 = vld [vmem:[%s1983 + $0x60] sm:$0x1]
  %v1991 = vld [vmem:[%s1983 + $0x70] sm:$0x1]
  %v1992 = vld [vmem:[%s1983 + $0x80] sm:$0x1]
  %v1993 = vld [vmem:[%s1983 + $0x90] sm:$0x1]
  %v1994 = vld [vmem:[%s1983 + $0xa0] sm:$0x1]
  %v1995 = vld [vmem:[%s1983 + $0xb0] sm:$0x1]
  %v1996 = vld [vmem:[%s1983 + $0xc0] sm:$0x1]
  %v1997 = vld [vmem:[%s1983 + $0xd0] sm:$0x1]
  %v1998 = vld [vmem:[%s1983 + $0xe0] sm:$0x1]
  %v1999 = vld [vmem:[%s1983 + $0xf0] sm:$0x1]
  %v2000 = vld [vmem:[%s0] sm:$0x1]
  %v2001 = vld [vmem:[%s0 + $0x10] sm:$0x1]
  %v2002 = vld [vmem:[%s0 + $0x20] sm:$0x1]
  %v2003 = vld [vmem:[%s0 + $0x30] sm:$0x1]
  %v2004 = vld [vmem:[%s0 + $0x40] sm:$0x1]
  %v2005 = vld [vmem:[%s0 + $0x50] sm:$0x1]
  %v2006 = vld [vmem:[%s0 + $0x60] sm:$0x1]
  %v2007 = vld [vmem:[%s0 + $0x70] sm:$0x1]
  %v2008 = vld [vmem:[%s0 + $0x80] sm:$0x1]
  %v2009 = vld [vmem:[%s0 + $0x90] sm:$0x1]
  %v2010 = vld [vmem:[%s0 + $0xa0] sm:$0x1]
  %v2011 = vld [vmem:[%s0 + $0xb0] sm:$0x1]
  %v2012 = vld [vmem:[%s0 + $0xc0] sm:$0x1]
  %v2013 = vld [vmem:[%s0 + $0xd0] sm:$0x1]
  %v2014 = vld [vmem:[%s0 + $0xe0] sm:$0x1]
  %v2015 = vld [vmem:[%s0 + $0xf0] sm:$0x1]
  %v2016 = vld [vmem:[%s59] sm:$0x1]
  %v2017 = vld [vmem:[%s59 + $0x10] sm:$0x1]
  %v2018 = vld [vmem:[%s59 + $0x20] sm:$0x1]
  %v2019 = vld [vmem:[%s59 + $0x30] sm:$0x1]
  %v2020 = vld [vmem:[%s59 + $0x40] sm:$0x1]
  %v2021 = vld [vmem:[%s59 + $0x50] sm:$0x1]
  %v2022 = vld [vmem:[%s59 + $0x60] sm:$0x1]
  %v2023 = vld [vmem:[%s59 + $0x70] sm:$0x1]
  %v2024 = vld [vmem:[%s59 + $0x80] sm:$0x1]
  %v2025 = vld [vmem:[%s59 + $0x90] sm:$0x1]
  %v2026 = vld [vmem:[%s59 + $0xa0] sm:$0x1]
  %v2027 = vld [vmem:[%s59 + $0xb0] sm:$0x1]
  %v2028 = vld [vmem:[%s59 + $0xc0] sm:$0x1]
  %v2029 = vld [vmem:[%s59 + $0xd0] sm:$0x1]
  %v2030 = vld [vmem:[%s59 + $0xe0] sm:$0x1]
  %v2031 = vld [vmem:[%s59 + $0xf0] sm:$0x1]
  %s2032 = scalar_lea.vmem %s1, 972
  %2033 = vst.msk [vmem:[%s2032] sm:$0x1] %vm76, 0.0
  %2034 = vst.msk [vmem:[%s2032 + $0x1] sm:$0x1] %vm76, %v1967
  %2035 = vst.msk [vmem:[%s2032 + $0x2] sm:$0x1] %vm76, %v1968
  %2036 = vst.msk [vmem:[%s2032 + $0x3] sm:$0x1] %vm76, %v1969
  %2037 = vst.msk [vmem:[%s2032 + $0x4] sm:$0x1] %vm76, %v1970
  %2038 = vst.msk [vmem:[%s2032 + $0x5] sm:$0x1] %vm76, %v1971
  %2039 = vst.msk [vmem:[%s2032 + $0x6] sm:$0x1] %vm76, %v1972
  %2040 = vst.msk [vmem:[%s2032 + $0x7] sm:$0x1] %vm76, %v1973
  %2041 = vst.msk [vmem:[%s2032 + $0x8] sm:$0x1] %vm76, %v1974
  %2042 = vst.msk [vmem:[%s2032 + $0x9] sm:$0x1] %vm76, %v1975
  %2043 = vst.msk [vmem:[%s2032 + $0xa] sm:$0x1] %vm76, %v1976
  %2044 = vst.msk [vmem:[%s2032 + $0xb] sm:$0x1] %vm76, %v1977
  %2045 = vst.msk [vmem:[%s2032 + $0xc] sm:$0x1] %vm76, %v1978
  %2046 = vst.msk [vmem:[%s2032 + $0xd] sm:$0x1] %vm76, %v1979
  %2047 = vst.msk [vmem:[%s2032 + $0xe] sm:$0x1] %vm76, %v1980
  %2048 = vst.msk [vmem:[%s2032 + $0xf] sm:$0x1] %vm76, %v1981
  %2049 = vst.msk [vmem:[%s2032 + $0x10] sm:$0x1] %vm76, %v1982
  %2050 = vst.msk [vmem:[%s2032 + $0x11] sm:$0x1] %vm76, 0.0
  %s2051 = scalar_lea.vmem %s1, 990
  %2052 = vst.msk [vmem:[%s2051] sm:$0x1] %vm76, %v1984
  %2053 = vst.msk [vmem:[%s2051 + $0x12] sm:$0x1] %vm76, %v1985
  %2054 = vst.msk [vmem:[%s2051 + $0x24] sm:$0x1] %vm76, %v1986
  %2055 = vst.msk [vmem:[%s2051 + $0x36] sm:$0x1] %vm76, %v1987
  %2056 = vst.msk [vmem:[%s2051 + $0x48] sm:$0x1] %vm76, %v1988
  %2057 = vst.msk [vmem:[%s2051 + $0x5a] sm:$0x1] %vm76, %v1989
  %2058 = vst.msk [vmem:[%s2051 + $0x6c] sm:$0x1] %vm76, %v1990
  %2059 = vst.msk [vmem:[%s2051 + $0x7e] sm:$0x1] %vm76, %v1991
  %2060 = vst.msk [vmem:[%s2051 + $0x90] sm:$0x1] %vm76, %v1992
  %2061 = vst.msk [vmem:[%s2051 + $0xa2] sm:$0x1] %vm76, %v1993
  %2062 = vst.msk [vmem:[%s2051 + $0xb4] sm:$0x1] %vm76, %v1994
  %2063 = vst.msk [vmem:[%s2051 + $0xc6] sm:$0x1] %vm76, %v1995
  %2064 = vst.msk [vmem:[%s2051 + $0xd8] sm:$0x1] %vm76, %v1996
  %2065 = vst.msk [vmem:[%s2051 + $0xea] sm:$0x1] %vm76, %v1997
  %2066 = vst.msk [vmem:[%s2051 + $0xfc] sm:$0x1] %vm76, %v1998
  %2067 = vst.msk [vmem:[%s2051 + $0x10e] sm:$0x1] %vm76, %v1999
  %v2068 = vld [vmem:[%s1348] sm:$0x1]
  %v2069 = vld [vmem:[%s1348 + $0x1] sm:$0x1]
  %v2070 = vld [vmem:[%s1348 + $0x2] sm:$0x1]
  %v2071 = vld [vmem:[%s1348 + $0x3] sm:$0x1]
  %v2072 = vld [vmem:[%s1348 + $0x4] sm:$0x1]
  %v2073 = vld [vmem:[%s1348 + $0x5] sm:$0x1]
  %v2074 = vld [vmem:[%s1348 + $0x6] sm:$0x1]
  %v2075 = vld [vmem:[%s1348 + $0x7] sm:$0x1]
  %v2076 = vld [vmem:[%s1348 + $0x8] sm:$0x1]
  %v2077 = vld [vmem:[%s1348 + $0x9] sm:$0x1]
  %v2078 = vld [vmem:[%s1348 + $0xa] sm:$0x1]
  %v2079 = vld [vmem:[%s1348 + $0xb] sm:$0x1]
  %v2080 = vld [vmem:[%s1348 + $0xc] sm:$0x1]
  %v2081 = vld [vmem:[%s1348 + $0xd] sm:$0x1]
  %v2082 = vld [vmem:[%s1348 + $0xe] sm:$0x1]
  %v2083 = vld [vmem:[%s1348 + $0xf] sm:$0x1]
  %v2084 = vld [vmem:[%s1348 + $0x10] sm:$0x1]
  %v2085 = vld [vmem:[%s1348 + $0x11] sm:$0x1]
  %v2086 = vld [vmem:[%s1348 + $0x12] sm:$0x1]
  %v2087 = vld [vmem:[%s1348 + $0x13] sm:$0x1]
  %v2088 = vld [vmem:[%s1348 + $0x14] sm:$0x1]
  %v2089 = vld [vmem:[%s1348 + $0x15] sm:$0x1]
  %v2090 = vld [vmem:[%s1348 + $0x16] sm:$0x1]
  %v2091 = vld [vmem:[%s1348 + $0x17] sm:$0x1]
  %v2092 = vld [vmem:[%s1348 + $0x18] sm:$0x1]
  %v2093 = vld [vmem:[%s1348 + $0x19] sm:$0x1]
  %v2094 = vld [vmem:[%s1348 + $0x1a] sm:$0x1]
  %v2095 = vld [vmem:[%s1348 + $0x1b] sm:$0x1]
  %v2096 = vld [vmem:[%s1348 + $0x1c] sm:$0x1]
  %v2097 = vld [vmem:[%s1348 + $0x1d] sm:$0x1]
  %v2098 = vld [vmem:[%s1348 + $0x1e] sm:$0x1]
  %v2099 = vld [vmem:[%s1348 + $0x1f] sm:$0x1]
  %v2100 = vld [vmem:[%s1348 + $0x20] sm:$0x1]
  %v2101 = vld [vmem:[%s1348 + $0x21] sm:$0x1]
  %v2102 = vld [vmem:[%s1348 + $0x22] sm:$0x1]
  %v2103 = vld [vmem:[%s1348 + $0x23] sm:$0x1]
  %v2104 = vld [vmem:[%s1348 + $0x24] sm:$0x1]
  %v2105 = vld [vmem:[%s1348 + $0x25] sm:$0x1]
  %v2106 = vld [vmem:[%s1348 + $0x26] sm:$0x1]
  %v2107 = vld [vmem:[%s1348 + $0x27] sm:$0x1]
  %v2108 = vld [vmem:[%s1348 + $0x28] sm:$0x1]
  %v2109 = vld [vmem:[%s1348 + $0x29] sm:$0x1]
  %v2110 = vld [vmem:[%s1348 + $0x2a] sm:$0x1]
  %v2111 = vld [vmem:[%s1348 + $0x2b] sm:$0x1]
  %v2112 = vld [vmem:[%s1348 + $0x2c] sm:$0x1]
  %v2113 = vld [vmem:[%s1348 + $0x2d] sm:$0x1]
  %v2114 = vld [vmem:[%s1348 + $0x2e] sm:$0x1]
  %v2115 = vld [vmem:[%s1348 + $0x2f] sm:$0x1]
  %v2116 = vld [vmem:[%s1348 + $0x30] sm:$0x1]
  %v2117 = vld [vmem:[%s1348 + $0x31] sm:$0x1]
  %v2118 = vld [vmem:[%s1348 + $0x32] sm:$0x1]
  %v2119 = vld [vmem:[%s1348 + $0x33] sm:$0x1]
  %v2120 = vld [vmem:[%s1348 + $0x34] sm:$0x1]
  %v2121 = vld [vmem:[%s1348 + $0x35] sm:$0x1]
  %v2122 = vld [vmem:[%s1348 + $0x36] sm:$0x1]
  %v2123 = vld [vmem:[%s1348 + $0x37] sm:$0x1]
  %v2124 = vld [vmem:[%s1348 + $0x38] sm:$0x1]
  %v2125 = vld [vmem:[%s1348 + $0x39] sm:$0x1]
  %v2126 = vld [vmem:[%s1348 + $0x3a] sm:$0x1]
  %v2127 = vld [vmem:[%s1348 + $0x3b] sm:$0x1]
  %v2128 = vld [vmem:[%s1348 + $0x3c] sm:$0x1]
  %v2129 = vld [vmem:[%s1348 + $0x3d] sm:$0x1]
  %v2130 = vld [vmem:[%s1348 + $0x3e] sm:$0x1]
  %v2131 = vld [vmem:[%s1348 + $0x3f] sm:$0x1]
  %v2132 = vld [vmem:[%s1348 + $0x40] sm:$0x1]
  %v2133 = vld [vmem:[%s1348 + $0x41] sm:$0x1]
  %v2134 = vld [vmem:[%s1348 + $0x42] sm:$0x1]
  %v2135 = vld [vmem:[%s1348 + $0x43] sm:$0x1]
  %v2136 = vld [vmem:[%s1348 + $0x44] sm:$0x1]
  %v2137 = vld [vmem:[%s1348 + $0x45] sm:$0x1]
  %v2138 = vld [vmem:[%s1348 + $0x46] sm:$0x1]
  %v2139 = vld [vmem:[%s1348 + $0x47] sm:$0x1]
  %v2140 = vld [vmem:[%s1348 + $0x48] sm:$0x1]
  %v2141 = vld [vmem:[%s1348 + $0x49] sm:$0x1]
  %v2142 = vld [vmem:[%s1348 + $0x4a] sm:$0x1]
  %v2143 = vld [vmem:[%s1348 + $0x4b] sm:$0x1]
  %v2144 = vld [vmem:[%s1348 + $0x4c] sm:$0x1]
  %v2145 = vld [vmem:[%s1348 + $0x4d] sm:$0x1]
  %v2146 = vld [vmem:[%s1348 + $0x4e] sm:$0x1]
  %v2147 = vld [vmem:[%s1348 + $0x4f] sm:$0x1]
  %v2148 = vld [vmem:[%s1348 + $0x50] sm:$0x1]
  %v2149 = vld [vmem:[%s1348 + $0x51] sm:$0x1]
  %v2150 = vld [vmem:[%s1348 + $0x52] sm:$0x1]
  %v2151 = vld [vmem:[%s1348 + $0x53] sm:$0x1]
  %v2152 = vld [vmem:[%s1348 + $0x54] sm:$0x1]
  %v2153 = vld [vmem:[%s1348 + $0x55] sm:$0x1]
  %v2154 = vld [vmem:[%s1348 + $0x56] sm:$0x1]
  %v2155 = vld [vmem:[%s1348 + $0x57] sm:$0x1]
  %v2156 = vld [vmem:[%s1348 + $0x58] sm:$0x1]
  %v2157 = vld [vmem:[%s1348 + $0x59] sm:$0x1]
  %v2158 = vld [vmem:[%s1348 + $0x5a] sm:$0x1]
  %v2159 = vld [vmem:[%s1348 + $0x5b] sm:$0x1]
  %v2160 = vld [vmem:[%s1348 + $0x5c] sm:$0x1]
  %v2161 = vld [vmem:[%s1348 + $0x5d] sm:$0x1]
  %v2162 = vld [vmem:[%s1348 + $0x5e] sm:$0x1]
  %v2163 = vld [vmem:[%s1348 + $0x5f] sm:$0x1]
  %v2164 = vld [vmem:[%s1348 + $0x60] sm:$0x1]
  %v2165 = vld [vmem:[%s1348 + $0x61] sm:$0x1]
  %v2166 = vld [vmem:[%s1348 + $0x62] sm:$0x1]
  %v2167 = vld [vmem:[%s1348 + $0x63] sm:$0x1]
  %v2168 = vld [vmem:[%s1348 + $0x64] sm:$0x1]
  %v2169 = vld [vmem:[%s1348 + $0x65] sm:$0x1]
  %v2170 = vld [vmem:[%s1348 + $0x66] sm:$0x1]
  %v2171 = vld [vmem:[%s1348 + $0x67] sm:$0x1]
  %v2172 = vld [vmem:[%s1348 + $0x68] sm:$0x1]
  %v2173 = vld [vmem:[%s1348 + $0x69] sm:$0x1]
  %v2174 = vld [vmem:[%s1348 + $0x6a] sm:$0x1]
  %v2175 = vld [vmem:[%s1348 + $0x6b] sm:$0x1]
  %v2176 = vld [vmem:[%s1348 + $0x6c] sm:$0x1]
  %v2177 = vld [vmem:[%s1348 + $0x6d] sm:$0x1]
  %v2178 = vld [vmem:[%s1348 + $0x6e] sm:$0x1]
  %v2179 = vld [vmem:[%s1348 + $0x6f] sm:$0x1]
  %v2180 = vld [vmem:[%s1348 + $0x70] sm:$0x1]
  %v2181 = vld [vmem:[%s1348 + $0x71] sm:$0x1]
  %v2182 = vld [vmem:[%s1348 + $0x72] sm:$0x1]
  %v2183 = vld [vmem:[%s1348 + $0x73] sm:$0x1]
  %v2184 = vld [vmem:[%s1348 + $0x74] sm:$0x1]
  %v2185 = vld [vmem:[%s1348 + $0x75] sm:$0x1]
  %v2186 = vld [vmem:[%s1348 + $0x76] sm:$0x1]
  %v2187 = vld [vmem:[%s1348 + $0x77] sm:$0x1]
  %v2188 = vld [vmem:[%s1348 + $0x78] sm:$0x1]
  %v2189 = vld [vmem:[%s1348 + $0x79] sm:$0x1]
  %v2190 = vld [vmem:[%s1348 + $0x7a] sm:$0x1]
  %v2191 = vld [vmem:[%s1348 + $0x7b] sm:$0x1]
  %v2192 = vld [vmem:[%s1348 + $0x7c] sm:$0x1]
  %v2193 = vld [vmem:[%s1348 + $0x7d] sm:$0x1]
  %v2194 = vld [vmem:[%s1348 + $0x7e] sm:$0x1]
  %v2195 = vld [vmem:[%s1348 + $0x7f] sm:$0x1]
  %v2196 = vld [vmem:[%s1348 + $0x80] sm:$0x1]
  %v2197 = vld [vmem:[%s1348 + $0x81] sm:$0x1]
  %v2198 = vld [vmem:[%s1348 + $0x82] sm:$0x1]
  %v2199 = vld [vmem:[%s1348 + $0x83] sm:$0x1]
  %v2200 = vld [vmem:[%s1348 + $0x84] sm:$0x1]
  %v2201 = vld [vmem:[%s1348 + $0x85] sm:$0x1]
  %v2202 = vld [vmem:[%s1348 + $0x86] sm:$0x1]
  %v2203 = vld [vmem:[%s1348 + $0x87] sm:$0x1]
  %v2204 = vld [vmem:[%s1348 + $0x88] sm:$0x1]
  %v2205 = vld [vmem:[%s1348 + $0x89] sm:$0x1]
  %v2206 = vld [vmem:[%s1348 + $0x8a] sm:$0x1]
  %v2207 = vld [vmem:[%s1348 + $0x8b] sm:$0x1]
  %v2208 = vld [vmem:[%s1348 + $0x8c] sm:$0x1]
  %v2209 = vld [vmem:[%s1348 + $0x8d] sm:$0x1]
  %v2210 = vld [vmem:[%s1348 + $0x8e] sm:$0x1]
  %v2211 = vld [vmem:[%s1348 + $0x8f] sm:$0x1]
  %v2212 = vld [vmem:[%s1348 + $0x90] sm:$0x1]
  %v2213 = vld [vmem:[%s1348 + $0x91] sm:$0x1]
  %v2214 = vld [vmem:[%s1348 + $0x92] sm:$0x1]
  %v2215 = vld [vmem:[%s1348 + $0x93] sm:$0x1]
  %v2216 = vld [vmem:[%s1348 + $0x94] sm:$0x1]
  %v2217 = vld [vmem:[%s1348 + $0x95] sm:$0x1]
  %v2218 = vld [vmem:[%s1348 + $0x96] sm:$0x1]
  %v2219 = vld [vmem:[%s1348 + $0x97] sm:$0x1]
  %v2220 = vld [vmem:[%s1348 + $0x98] sm:$0x1]
  %v2221 = vld [vmem:[%s1348 + $0x99] sm:$0x1]
  %v2222 = vld [vmem:[%s1348 + $0x9a] sm:$0x1]
  %v2223 = vld [vmem:[%s1348 + $0x9b] sm:$0x1]
  %v2224 = vld [vmem:[%s1348 + $0x9c] sm:$0x1]
  %v2225 = vld [vmem:[%s1348 + $0x9d] sm:$0x1]
  %v2226 = vld [vmem:[%s1348 + $0x9e] sm:$0x1]
  %v2227 = vld [vmem:[%s1348 + $0x9f] sm:$0x1]
  %v2228 = vld [vmem:[%s1348 + $0xa0] sm:$0x1]
  %v2229 = vld [vmem:[%s1348 + $0xa1] sm:$0x1]
  %v2230 = vld [vmem:[%s1348 + $0xa2] sm:$0x1]
  %v2231 = vld [vmem:[%s1348 + $0xa3] sm:$0x1]
  %v2232 = vld [vmem:[%s1348 + $0xa4] sm:$0x1]
  %v2233 = vld [vmem:[%s1348 + $0xa5] sm:$0x1]
  %v2234 = vld [vmem:[%s1348 + $0xa6] sm:$0x1]
  %v2235 = vld [vmem:[%s1348 + $0xa7] sm:$0x1]
  %v2236 = vld [vmem:[%s1348 + $0xa8] sm:$0x1]
  %v2237 = vld [vmem:[%s1348 + $0xa9] sm:$0x1]
  %v2238 = vld [vmem:[%s1348 + $0xaa] sm:$0x1]
  %v2239 = vld [vmem:[%s1348 + $0xab] sm:$0x1]
  %v2240 = vld [vmem:[%s1348 + $0xac] sm:$0x1]
  %v2241 = vld [vmem:[%s1348 + $0xad] sm:$0x1]
  %v2242 = vld [vmem:[%s1348 + $0xae] sm:$0x1]
  %v2243 = vld [vmem:[%s1348 + $0xaf] sm:$0x1]
  %v2244 = vld [vmem:[%s1348 + $0xb0] sm:$0x1]
  %v2245 = vld [vmem:[%s1348 + $0xb1] sm:$0x1]
  %v2246 = vld [vmem:[%s1348 + $0xb2] sm:$0x1]
  %v2247 = vld [vmem:[%s1348 + $0xb3] sm:$0x1]
  %v2248 = vld [vmem:[%s1348 + $0xb4] sm:$0x1]
  %v2249 = vld [vmem:[%s1348 + $0xb5] sm:$0x1]
  %v2250 = vld [vmem:[%s1348 + $0xb6] sm:$0x1]
  %v2251 = vld [vmem:[%s1348 + $0xb7] sm:$0x1]
  %v2252 = vld [vmem:[%s1348 + $0xb8] sm:$0x1]
  %v2253 = vld [vmem:[%s1348 + $0xb9] sm:$0x1]
  %v2254 = vld [vmem:[%s1348 + $0xba] sm:$0x1]
  %v2255 = vld [vmem:[%s1348 + $0xbb] sm:$0x1]
  %v2256 = vld [vmem:[%s1348 + $0xbc] sm:$0x1]
  %v2257 = vld [vmem:[%s1348 + $0xbd] sm:$0x1]
  %v2258 = vld [vmem:[%s1348 + $0xbe] sm:$0x1]
  %v2259 = vld [vmem:[%s1348 + $0xbf] sm:$0x1]
  %v2260 = vld [vmem:[%s1348 + $0xc0] sm:$0x1]
  %v2261 = vld [vmem:[%s1348 + $0xc1] sm:$0x1]
  %v2262 = vld [vmem:[%s1348 + $0xc2] sm:$0x1]
  %v2263 = vld [vmem:[%s1348 + $0xc3] sm:$0x1]
  %v2264 = vld [vmem:[%s1348 + $0xc4] sm:$0x1]
  %v2265 = vld [vmem:[%s1348 + $0xc5] sm:$0x1]
  %v2266 = vld [vmem:[%s1348 + $0xc6] sm:$0x1]
  %v2267 = vld [vmem:[%s1348 + $0xc7] sm:$0x1]
  %v2268 = vld [vmem:[%s1348 + $0xc8] sm:$0x1]
  %v2269 = vld [vmem:[%s1348 + $0xc9] sm:$0x1]
  %v2270 = vld [vmem:[%s1348 + $0xca] sm:$0x1]
  %v2271 = vld [vmem:[%s1348 + $0xcb] sm:$0x1]
  %v2272 = vld [vmem:[%s1348 + $0xcc] sm:$0x1]
  %v2273 = vld [vmem:[%s1348 + $0xcd] sm:$0x1]
  %v2274 = vld [vmem:[%s1348 + $0xce] sm:$0x1]
  %v2275 = vld [vmem:[%s1348 + $0xcf] sm:$0x1]
  %v2276 = vld [vmem:[%s1348 + $0xd0] sm:$0x1]
  %v2277 = vld [vmem:[%s1348 + $0xd1] sm:$0x1]
  %v2278 = vld [vmem:[%s1348 + $0xd2] sm:$0x1]
  %v2279 = vld [vmem:[%s1348 + $0xd3] sm:$0x1]
  %v2280 = vld [vmem:[%s1348 + $0xd4] sm:$0x1]
  %v2281 = vld [vmem:[%s1348 + $0xd5] sm:$0x1]
  %v2282 = vld [vmem:[%s1348 + $0xd6] sm:$0x1]
  %v2283 = vld [vmem:[%s1348 + $0xd7] sm:$0x1]
  %v2284 = vld [vmem:[%s1348 + $0xd8] sm:$0x1]
  %v2285 = vld [vmem:[%s1348 + $0xd9] sm:$0x1]
  %v2286 = vld [vmem:[%s1348 + $0xda] sm:$0x1]
  %v2287 = vld [vmem:[%s1348 + $0xdb] sm:$0x1]
  %v2288 = vld [vmem:[%s1348 + $0xdc] sm:$0x1]
  %v2289 = vld [vmem:[%s1348 + $0xdd] sm:$0x1]
  %v2290 = vld [vmem:[%s1348 + $0xde] sm:$0x1]
  %v2291 = vld [vmem:[%s1348 + $0xdf] sm:$0x1]
  %v2292 = vld [vmem:[%s1348 + $0xe0] sm:$0x1]
  %v2293 = vld [vmem:[%s1348 + $0xe1] sm:$0x1]
  %v2294 = vld [vmem:[%s1348 + $0xe2] sm:$0x1]
  %v2295 = vld [vmem:[%s1348 + $0xe3] sm:$0x1]
  %v2296 = vld [vmem:[%s1348 + $0xe4] sm:$0x1]
  %v2297 = vld [vmem:[%s1348 + $0xe5] sm:$0x1]
  %v2298 = vld [vmem:[%s1348 + $0xe6] sm:$0x1]
  %v2299 = vld [vmem:[%s1348 + $0xe7] sm:$0x1]
  %v2300 = vld [vmem:[%s1348 + $0xe8] sm:$0x1]
  %v2301 = vld [vmem:[%s1348 + $0xe9] sm:$0x1]
  %v2302 = vld [vmem:[%s1348 + $0xea] sm:$0x1]
  %v2303 = vld [vmem:[%s1348 + $0xeb] sm:$0x1]
  %v2304 = vld [vmem:[%s1348 + $0xec] sm:$0x1]
  %v2305 = vld [vmem:[%s1348 + $0xed] sm:$0x1]
  %v2306 = vld [vmem:[%s1348 + $0xee] sm:$0x1]
  %v2307 = vld [vmem:[%s1348 + $0xef] sm:$0x1]
  %v2308 = vld [vmem:[%s1348 + $0xf0] sm:$0x1]
  %v2309 = vld [vmem:[%s1348 + $0xf1] sm:$0x1]
  %v2310 = vld [vmem:[%s1348 + $0xf2] sm:$0x1]
  %v2311 = vld [vmem:[%s1348 + $0xf3] sm:$0x1]
  %v2312 = vld [vmem:[%s1348 + $0xf4] sm:$0x1]
  %v2313 = vld [vmem:[%s1348 + $0xf5] sm:$0x1]
  %v2314 = vld [vmem:[%s1348 + $0xf6] sm:$0x1]
  %v2315 = vld [vmem:[%s1348 + $0xf7] sm:$0x1]
  %v2316 = vld [vmem:[%s1348 + $0xf8] sm:$0x1]
  %v2317 = vld [vmem:[%s1348 + $0xf9] sm:$0x1]
  %v2318 = vld [vmem:[%s1348 + $0xfa] sm:$0x1]
  %v2319 = vld [vmem:[%s1348 + $0xfb] sm:$0x1]
  %v2320 = vld [vmem:[%s1348 + $0xfc] sm:$0x1]
  %v2321 = vld [vmem:[%s1348 + $0xfd] sm:$0x1]
  %v2322 = vld [vmem:[%s1348 + $0xfe] sm:$0x1]
  %v2323 = vld [vmem:[%s1348 + $0xff] sm:$0x1]
  %s2324 = scalar_lea.vmem %s1, 991
  %2325 = vst.msk [vmem:[%s2324] sm:$0x1] %vm76, %v2068
  %2326 = vst.msk [vmem:[%s2324 + $0x1] sm:$0x1] %vm76, %v2069
  %2327 = vst.msk [vmem:[%s2324 + $0x2] sm:$0x1] %vm76, %v2070
  %2328 = vst.msk [vmem:[%s2324 + $0x3] sm:$0x1] %vm76, %v2071
  %2329 = vst.msk [vmem:[%s2324 + $0x4] sm:$0x1] %vm76, %v2072
  %2330 = vst.msk [vmem:[%s2324 + $0x5] sm:$0x1] %vm76, %v2073
  %2331 = vst.msk [vmem:[%s2324 + $0x6] sm:$0x1] %vm76, %v2074
  %2332 = vst.msk [vmem:[%s2324 + $0x7] sm:$0x1] %vm76, %v2075
  %2333 = vst.msk [vmem:[%s2324 + $0x8] sm:$0x1] %vm76, %v2076
  %2334 = vst.msk [vmem:[%s2324 + $0x9] sm:$0x1] %vm76, %v2077
  %2335 = vst.msk [vmem:[%s2324 + $0xa] sm:$0x1] %vm76, %v2078
  %2336 = vst.msk [vmem:[%s2324 + $0xb] sm:$0x1] %vm76, %v2079
  %2337 = vst.msk [vmem:[%s2324 + $0xc] sm:$0x1] %vm76, %v2080
  %2338 = vst.msk [vmem:[%s2324 + $0xd] sm:$0x1] %vm76, %v2081
  %2339 = vst.msk [vmem:[%s2324 + $0xe] sm:$0x1] %vm76, %v2082
  %2340 = vst.msk [vmem:[%s2324 + $0xf] sm:$0x1] %vm76, %v2083
  %2341 = vst.msk [vmem:[%s2324 + $0x12] sm:$0x1] %vm76, %v2084
  %2342 = vst.msk [vmem:[%s2324 + $0x13] sm:$0x1] %vm76, %v2085
  %2343 = vst.msk [vmem:[%s2324 + $0x14] sm:$0x1] %vm76, %v2086
  %2344 = vst.msk [vmem:[%s2324 + $0x15] sm:$0x1] %vm76, %v2087
  %2345 = vst.msk [vmem:[%s2324 + $0x16] sm:$0x1] %vm76, %v2088
  %2346 = vst.msk [vmem:[%s2324 + $0x17] sm:$0x1] %vm76, %v2089
  %2347 = vst.msk [vmem:[%s2324 + $0x18] sm:$0x1] %vm76, %v2090
  %2348 = vst.msk [vmem:[%s2324 + $0x19] sm:$0x1] %vm76, %v2091
  %2349 = vst.msk [vmem:[%s2324 + $0x1a] sm:$0x1] %vm76, %v2092
  %2350 = vst.msk [vmem:[%s2324 + $0x1b] sm:$0x1] %vm76, %v2093
  %2351 = vst.msk [vmem:[%s2324 + $0x1c] sm:$0x1] %vm76, %v2094
  %2352 = vst.msk [vmem:[%s2324 + $0x1d] sm:$0x1] %vm76, %v2095
  %2353 = vst.msk [vmem:[%s2324 + $0x1e] sm:$0x1] %vm76, %v2096
  %2354 = vst.msk [vmem:[%s2324 + $0x1f] sm:$0x1] %vm76, %v2097
  %2355 = vst.msk [vmem:[%s2324 + $0x20] sm:$0x1] %vm76, %v2098
  %2356 = vst.msk [vmem:[%s2324 + $0x21] sm:$0x1] %vm76, %v2099
  %2357 = vst.msk [vmem:[%s2324 + $0x24] sm:$0x1] %vm76, %v2100
  %2358 = vst.msk [vmem:[%s2324 + $0x25] sm:$0x1] %vm76, %v2101
  %2359 = vst.msk [vmem:[%s2324 + $0x26] sm:$0x1] %vm76, %v2102
  %2360 = vst.msk [vmem:[%s2324 + $0x27] sm:$0x1] %vm76, %v2103
  %2361 = vst.msk [vmem:[%s2324 + $0x28] sm:$0x1] %vm76, %v2104
  %2362 = vst.msk [vmem:[%s2324 + $0x29] sm:$0x1] %vm76, %v2105
  %2363 = vst.msk [vmem:[%s2324 + $0x2a] sm:$0x1] %vm76, %v2106
  %2364 = vst.msk [vmem:[%s2324 + $0x2b] sm:$0x1] %vm76, %v2107
  %2365 = vst.msk [vmem:[%s2324 + $0x2c] sm:$0x1] %vm76, %v2108
  %2366 = vst.msk [vmem:[%s2324 + $0x2d] sm:$0x1] %vm76, %v2109
  %2367 = vst.msk [vmem:[%s2324 + $0x2e] sm:$0x1] %vm76, %v2110
  %2368 = vst.msk [vmem:[%s2324 + $0x2f] sm:$0x1] %vm76, %v2111
  %2369 = vst.msk [vmem:[%s2324 + $0x30] sm:$0x1] %vm76, %v2112
  %2370 = vst.msk [vmem:[%s2324 + $0x31] sm:$0x1] %vm76, %v2113
  %2371 = vst.msk [vmem:[%s2324 + $0x32] sm:$0x1] %vm76, %v2114
  %2372 = vst.msk [vmem:[%s2324 + $0x33] sm:$0x1] %vm76, %v2115
  %2373 = vst.msk [vmem:[%s2324 + $0x36] sm:$0x1] %vm76, %v2116
  %2374 = vst.msk [vmem:[%s2324 + $0x37] sm:$0x1] %vm76, %v2117
  %2375 = vst.msk [vmem:[%s2324 + $0x38] sm:$0x1] %vm76, %v2118
  %2376 = vst.msk [vmem:[%s2324 + $0x39] sm:$0x1] %vm76, %v2119
  %2377 = vst.msk [vmem:[%s2324 + $0x3a] sm:$0x1] %vm76, %v2120
  %2378 = vst.msk [vmem:[%s2324 + $0x3b] sm:$0x1] %vm76, %v2121
  %2379 = vst.msk [vmem:[%s2324 + $0x3c] sm:$0x1] %vm76, %v2122
  %2380 = vst.msk [vmem:[%s2324 + $0x3d] sm:$0x1] %vm76, %v2123
  %2381 = vst.msk [vmem:[%s2324 + $0x3e] sm:$0x1] %vm76, %v2124
  %2382 = vst.msk [vmem:[%s2324 + $0x3f] sm:$0x1] %vm76, %v2125
  %2383 = vst.msk [vmem:[%s2324 + $0x40] sm:$0x1] %vm76, %v2126
  %2384 = vst.msk [vmem:[%s2324 + $0x41] sm:$0x1] %vm76, %v2127
  %2385 = vst.msk [vmem:[%s2324 + $0x42] sm:$0x1] %vm76, %v2128
  %2386 = vst.msk [vmem:[%s2324 + $0x43] sm:$0x1] %vm76, %v2129
  %2387 = vst.msk [vmem:[%s2324 + $0x44] sm:$0x1] %vm76, %v2130
  %2388 = vst.msk [vmem:[%s2324 + $0x45] sm:$0x1] %vm76, %v2131
  %2389 = vst.msk [vmem:[%s2324 + $0x48] sm:$0x1] %vm76, %v2132
  %2390 = vst.msk [vmem:[%s2324 + $0x49] sm:$0x1] %vm76, %v2133
  %2391 = vst.msk [vmem:[%s2324 + $0x4a] sm:$0x1] %vm76, %v2134
  %2392 = vst.msk [vmem:[%s2324 + $0x4b] sm:$0x1] %vm76, %v2135
  %2393 = vst.msk [vmem:[%s2324 + $0x4c] sm:$0x1] %vm76, %v2136
  %2394 = vst.msk [vmem:[%s2324 + $0x4d] sm:$0x1] %vm76, %v2137
  %2395 = vst.msk [vmem:[%s2324 + $0x4e] sm:$0x1] %vm76, %v2138
  %2396 = vst.msk [vmem:[%s2324 + $0x4f] sm:$0x1] %vm76, %v2139
  %2397 = vst.msk [vmem:[%s2324 + $0x50] sm:$0x1] %vm76, %v2140
  %2398 = vst.msk [vmem:[%s2324 + $0x51] sm:$0x1] %vm76, %v2141
  %2399 = vst.msk [vmem:[%s2324 + $0x52] sm:$0x1] %vm76, %v2142
  %2400 = vst.msk [vmem:[%s2324 + $0x53] sm:$0x1] %vm76, %v2143
  %2401 = vst.msk [vmem:[%s2324 + $0x54] sm:$0x1] %vm76, %v2144
  %2402 = vst.msk [vmem:[%s2324 + $0x55] sm:$0x1] %vm76, %v2145
  %2403 = vst.msk [vmem:[%s2324 + $0x56] sm:$0x1] %vm76, %v2146
  %2404 = vst.msk [vmem:[%s2324 + $0x57] sm:$0x1] %vm76, %v2147
  %2405 = vst.msk [vmem:[%s2324 + $0x5a] sm:$0x1] %vm76, %v2148
  %2406 = vst.msk [vmem:[%s2324 + $0x5b] sm:$0x1] %vm76, %v2149
  %2407 = vst.msk [vmem:[%s2324 + $0x5c] sm:$0x1] %vm76, %v2150
  %2408 = vst.msk [vmem:[%s2324 + $0x5d] sm:$0x1] %vm76, %v2151
  %2409 = vst.msk [vmem:[%s2324 + $0x5e] sm:$0x1] %vm76, %v2152
  %2410 = vst.msk [vmem:[%s2324 + $0x5f] sm:$0x1] %vm76, %v2153
  %2411 = vst.msk [vmem:[%s2324 + $0x60] sm:$0x1] %vm76, %v2154
  %2412 = vst.msk [vmem:[%s2324 + $0x61] sm:$0x1] %vm76, %v2155
  %2413 = vst.msk [vmem:[%s2324 + $0x62] sm:$0x1] %vm76, %v2156
  %2414 = vst.msk [vmem:[%s2324 + $0x63] sm:$0x1] %vm76, %v2157
  %2415 = vst.msk [vmem:[%s2324 + $0x64] sm:$0x1] %vm76, %v2158
  %2416 = vst.msk [vmem:[%s2324 + $0x65] sm:$0x1] %vm76, %v2159
  %2417 = vst.msk [vmem:[%s2324 + $0x66] sm:$0x1] %vm76, %v2160
  %2418 = vst.msk [vmem:[%s2324 + $0x67] sm:$0x1] %vm76, %v2161
  %2419 = vst.msk [vmem:[%s2324 + $0x68] sm:$0x1] %vm76, %v2162
  %2420 = vst.msk [vmem:[%s2324 + $0x69] sm:$0x1] %vm76, %v2163
  %2421 = vst.msk [vmem:[%s2324 + $0x6c] sm:$0x1] %vm76, %v2164
  %2422 = vst.msk [vmem:[%s2324 + $0x6d] sm:$0x1] %vm76, %v2165
  %2423 = vst.msk [vmem:[%s2324 + $0x6e] sm:$0x1] %vm76, %v2166
  %2424 = vst.msk [vmem:[%s2324 + $0x6f] sm:$0x1] %vm76, %v2167
  %2425 = vst.msk [vmem:[%s2324 + $0x70] sm:$0x1] %vm76, %v2168
  %2426 = vst.msk [vmem:[%s2324 + $0x71] sm:$0x1] %vm76, %v2169
  %2427 = vst.msk [vmem:[%s2324 + $0x72] sm:$0x1] %vm76, %v2170
  %2428 = vst.msk [vmem:[%s2324 + $0x73] sm:$0x1] %vm76, %v2171
  %2429 = vst.msk [vmem:[%s2324 + $0x74] sm:$0x1] %vm76, %v2172
  %2430 = vst.msk [vmem:[%s2324 + $0x75] sm:$0x1] %vm76, %v2173
  %2431 = vst.msk [vmem:[%s2324 + $0x76] sm:$0x1] %vm76, %v2174
  %2432 = vst.msk [vmem:[%s2324 + $0x77] sm:$0x1] %vm76, %v2175
  %2433 = vst.msk [vmem:[%s2324 + $0x78] sm:$0x1] %vm76, %v2176
  %2434 = vst.msk [vmem:[%s2324 + $0x79] sm:$0x1] %vm76, %v2177
  %2435 = vst.msk [vmem:[%s2324 + $0x7a] sm:$0x1] %vm76, %v2178
  %2436 = vst.msk [vmem:[%s2324 + $0x7b] sm:$0x1] %vm76, %v2179
  %2437 = vst.msk [vmem:[%s2324 + $0x7e] sm:$0x1] %vm76, %v2180
  %2438 = vst.msk [vmem:[%s2324 + $0x7f] sm:$0x1] %vm76, %v2181
  %2439 = vst.msk [vmem:[%s2324 + $0x80] sm:$0x1] %vm76, %v2182
  %2440 = vst.msk [vmem:[%s2324 + $0x81] sm:$0x1] %vm76, %v2183
  %2441 = vst.msk [vmem:[%s2324 + $0x82] sm:$0x1] %vm76, %v2184
  %2442 = vst.msk [vmem:[%s2324 + $0x83] sm:$0x1] %vm76, %v2185
  %2443 = vst.msk [vmem:[%s2324 + $0x84] sm:$0x1] %vm76, %v2186
  %2444 = vst.msk [vmem:[%s2324 + $0x85] sm:$0x1] %vm76, %v2187
  %2445 = vst.msk [vmem:[%s2324 + $0x86] sm:$0x1] %vm76, %v2188
  %2446 = vst.msk [vmem:[%s2324 + $0x87] sm:$0x1] %vm76, %v2189
  %2447 = vst.msk [vmem:[%s2324 + $0x88] sm:$0x1] %vm76, %v2190
  %2448 = vst.msk [vmem:[%s2324 + $0x89] sm:$0x1] %vm76, %v2191
  %2449 = vst.msk [vmem:[%s2324 + $0x8a] sm:$0x1] %vm76, %v2192
  %2450 = vst.msk [vmem:[%s2324 + $0x8b] sm:$0x1] %vm76, %v2193
  %2451 = vst.msk [vmem:[%s2324 + $0x8c] sm:$0x1] %vm76, %v2194
  %2452 = vst.msk [vmem:[%s2324 + $0x8d] sm:$0x1] %vm76, %v2195
  %2453 = vst.msk [vmem:[%s2324 + $0x90] sm:$0x1] %vm76, %v2196
  %2454 = vst.msk [vmem:[%s2324 + $0x91] sm:$0x1] %vm76, %v2197
  %2455 = vst.msk [vmem:[%s2324 + $0x92] sm:$0x1] %vm76, %v2198
  %2456 = vst.msk [vmem:[%s2324 + $0x93] sm:$0x1] %vm76, %v2199
  %2457 = vst.msk [vmem:[%s2324 + $0x94] sm:$0x1] %vm76, %v2200
  %2458 = vst.msk [vmem:[%s2324 + $0x95] sm:$0x1] %vm76, %v2201
  %2459 = vst.msk [vmem:[%s2324 + $0x96] sm:$0x1] %vm76, %v2202
  %2460 = vst.msk [vmem:[%s2324 + $0x97] sm:$0x1] %vm76, %v2203
  %2461 = vst.msk [vmem:[%s2324 + $0x98] sm:$0x1] %vm76, %v2204
  %2462 = vst.msk [vmem:[%s2324 + $0x99] sm:$0x1] %vm76, %v2205
  %2463 = vst.msk [vmem:[%s2324 + $0x9a] sm:$0x1] %vm76, %v2206
  %2464 = vst.msk [vmem:[%s2324 + $0x9b] sm:$0x1] %vm76, %v2207
  %2465 = vst.msk [vmem:[%s2324 + $0x9c] sm:$0x1] %vm76, %v2208
  %2466 = vst.msk [vmem:[%s2324 + $0x9d] sm:$0x1] %vm76, %v2209
  %2467 = vst.msk [vmem:[%s2324 + $0x9e] sm:$0x1] %vm76, %v2210
  %2468 = vst.msk [vmem:[%s2324 + $0x9f] sm:$0x1] %vm76, %v2211
  %2469 = vst.msk [vmem:[%s2324 + $0xa2] sm:$0x1] %vm76, %v2212
  %2470 = vst.msk [vmem:[%s2324 + $0xa3] sm:$0x1] %vm76, %v2213
  %2471 = vst.msk [vmem:[%s2324 + $0xa4] sm:$0x1] %vm76, %v2214
  %2472 = vst.msk [vmem:[%s2324 + $0xa5] sm:$0x1] %vm76, %v2215
  %2473 = vst.msk [vmem:[%s2324 + $0xa6] sm:$0x1] %vm76, %v2216
  %2474 = vst.msk [vmem:[%s2324 + $0xa7] sm:$0x1] %vm76, %v2217
  %2475 = vst.msk [vmem:[%s2324 + $0xa8] sm:$0x1] %vm76, %v2218
  %2476 = vst.msk [vmem:[%s2324 + $0xa9] sm:$0x1] %vm76, %v2219
  %2477 = vst.msk [vmem:[%s2324 + $0xaa] sm:$0x1] %vm76, %v2220
  %2478 = vst.msk [vmem:[%s2324 + $0xab] sm:$0x1] %vm76, %v2221
  %2479 = vst.msk [vmem:[%s2324 + $0xac] sm:$0x1] %vm76, %v2222
  %2480 = vst.msk [vmem:[%s2324 + $0xad] sm:$0x1] %vm76, %v2223
  %2481 = vst.msk [vmem:[%s2324 + $0xae] sm:$0x1] %vm76, %v2224
  %2482 = vst.msk [vmem:[%s2324 + $0xaf] sm:$0x1] %vm76, %v2225
  %2483 = vst.msk [vmem:[%s2324 + $0xb0] sm:$0x1] %vm76, %v2226
  %2484 = vst.msk [vmem:[%s2324 + $0xb1] sm:$0x1] %vm76, %v2227
  %2485 = vst.msk [vmem:[%s2324 + $0xb4] sm:$0x1] %vm76, %v2228
  %2486 = vst.msk [vmem:[%s2324 + $0xb5] sm:$0x1] %vm76, %v2229
  %2487 = vst.msk [vmem:[%s2324 + $0xb6] sm:$0x1] %vm76, %v2230
  %2488 = vst.msk [vmem:[%s2324 + $0xb7] sm:$0x1] %vm76, %v2231
  %2489 = vst.msk [vmem:[%s2324 + $0xb8] sm:$0x1] %vm76, %v2232
  %2490 = vst.msk [vmem:[%s2324 + $0xb9] sm:$0x1] %vm76, %v2233
  %2491 = vst.msk [vmem:[%s2324 + $0xba] sm:$0x1] %vm76, %v2234
  %2492 = vst.msk [vmem:[%s2324 + $0xbb] sm:$0x1] %vm76, %v2235
  %2493 = vst.msk [vmem:[%s2324 + $0xbc] sm:$0x1] %vm76, %v2236
  %2494 = vst.msk [vmem:[%s2324 + $0xbd] sm:$0x1] %vm76, %v2237
  %2495 = vst.msk [vmem:[%s2324 + $0xbe] sm:$0x1] %vm76, %v2238
  %2496 = vst.msk [vmem:[%s2324 + $0xbf] sm:$0x1] %vm76, %v2239
  %2497 = vst.msk [vmem:[%s2324 + $0xc0] sm:$0x1] %vm76, %v2240
  %2498 = vst.msk [vmem:[%s2324 + $0xc1] sm:$0x1] %vm76, %v2241
  %2499 = vst.msk [vmem:[%s2324 + $0xc2] sm:$0x1] %vm76, %v2242
  %2500 = vst.msk [vmem:[%s2324 + $0xc3] sm:$0x1] %vm76, %v2243
  %2501 = vst.msk [vmem:[%s2324 + $0xc6] sm:$0x1] %vm76, %v2244
  %2502 = vst.msk [vmem:[%s2324 + $0xc7] sm:$0x1] %vm76, %v2245
  %2503 = vst.msk [vmem:[%s2324 + $0xc8] sm:$0x1] %vm76, %v2246
  %2504 = vst.msk [vmem:[%s2324 + $0xc9] sm:$0x1] %vm76, %v2247
  %2505 = vst.msk [vmem:[%s2324 + $0xca] sm:$0x1] %vm76, %v2248
  %2506 = vst.msk [vmem:[%s2324 + $0xcb] sm:$0x1] %vm76, %v2249
  %2507 = vst.msk [vmem:[%s2324 + $0xcc] sm:$0x1] %vm76, %v2250
  %2508 = vst.msk [vmem:[%s2324 + $0xcd] sm:$0x1] %vm76, %v2251
  %2509 = vst.msk [vmem:[%s2324 + $0xce] sm:$0x1] %vm76, %v2252
  %2510 = vst.msk [vmem:[%s2324 + $0xcf] sm:$0x1] %vm76, %v2253
  %2511 = vst.msk [vmem:[%s2324 + $0xd0] sm:$0x1] %vm76, %v2254
  %2512 = vst.msk [vmem:[%s2324 + $0xd1] sm:$0x1] %vm76, %v2255
  %2513 = vst.msk [vmem:[%s2324 + $0xd2] sm:$0x1] %vm76, %v2256
  %2514 = vst.msk [vmem:[%s2324 + $0xd3] sm:$0x1] %vm76, %v2257
  %2515 = vst.msk [vmem:[%s2324 + $0xd4] sm:$0x1] %vm76, %v2258
  %2516 = vst.msk [vmem:[%s2324 + $0xd5] sm:$0x1] %vm76, %v2259
  %2517 = vst.msk [vmem:[%s2324 + $0xd8] sm:$0x1] %vm76, %v2260
  %2518 = vst.msk [vmem:[%s2324 + $0xd9] sm:$0x1] %vm76, %v2261
  %2519 = vst.msk [vmem:[%s2324 + $0xda] sm:$0x1] %vm76, %v2262
  %2520 = vst.msk [vmem:[%s2324 + $0xdb] sm:$0x1] %vm76, %v2263
  %2521 = vst.msk [vmem:[%s2324 + $0xdc] sm:$0x1] %vm76, %v2264
  %2522 = vst.msk [vmem:[%s2324 + $0xdd] sm:$0x1] %vm76, %v2265
  %2523 = vst.msk [vmem:[%s2324 + $0xde] sm:$0x1] %vm76, %v2266
  %2524 = vst.msk [vmem:[%s2324 + $0xdf] sm:$0x1] %vm76, %v2267
  %2525 = vst.msk [vmem:[%s2324 + $0xe0] sm:$0x1] %vm76, %v2268
  %2526 = vst.msk [vmem:[%s2324 + $0xe1] sm:$0x1] %vm76, %v2269
  %2527 = vst.msk [vmem:[%s2324 + $0xe2] sm:$0x1] %vm76, %v2270
  %2528 = vst.msk [vmem:[%s2324 + $0xe3] sm:$0x1] %vm76, %v2271
  %2529 = vst.msk [vmem:[%s2324 + $0xe4] sm:$0x1] %vm76, %v2272
  %2530 = vst.msk [vmem:[%s2324 + $0xe5] sm:$0x1] %vm76, %v2273
  %2531 = vst.msk [vmem:[%s2324 + $0xe6] sm:$0x1] %vm76, %v2274
  %2532 = vst.msk [vmem:[%s2324 + $0xe7] sm:$0x1] %vm76, %v2275
  %2533 = vst.msk [vmem:[%s2324 + $0xea] sm:$0x1] %vm76, %v2276
  %2534 = vst.msk [vmem:[%s2324 + $0xeb] sm:$0x1] %vm76, %v2277
  %2535 = vst.msk [vmem:[%s2324 + $0xec] sm:$0x1] %vm76, %v2278
  %2536 = vst.msk [vmem:[%s2324 + $0xed] sm:$0x1] %vm76, %v2279
  %2537 = vst.msk [vmem:[%s2324 + $0xee] sm:$0x1] %vm76, %v2280
  %2538 = vst.msk [vmem:[%s2324 + $0xef] sm:$0x1] %vm76, %v2281
  %2539 = vst.msk [vmem:[%s2324 + $0xf0] sm:$0x1] %vm76, %v2282
  %2540 = vst.msk [vmem:[%s2324 + $0xf1] sm:$0x1] %vm76, %v2283
  %2541 = vst.msk [vmem:[%s2324 + $0xf2] sm:$0x1] %vm76, %v2284
  %2542 = vst.msk [vmem:[%s2324 + $0xf3] sm:$0x1] %vm76, %v2285
  %2543 = vst.msk [vmem:[%s2324 + $0xf4] sm:$0x1] %vm76, %v2286
  %2544 = vst.msk [vmem:[%s2324 + $0xf5] sm:$0x1] %vm76, %v2287
  %2545 = vst.msk [vmem:[%s2324 + $0xf6] sm:$0x1] %vm76, %v2288
  %2546 = vst.msk [vmem:[%s2324 + $0xf7] sm:$0x1] %vm76, %v2289
  %2547 = vst.msk [vmem:[%s2324 + $0xf8] sm:$0x1] %vm76, %v2290
  %2548 = vst.msk [vmem:[%s2324 + $0xf9] sm:$0x1] %vm76, %v2291
  %2549 = vst.msk [vmem:[%s2324 + $0xfc] sm:$0x1] %vm76, %v2292
  %2550 = vst.msk [vmem:[%s2324 + $0xfd] sm:$0x1] %vm76, %v2293
  %2551 = vst.msk [vmem:[%s2324 + $0xfe] sm:$0x1] %vm76, %v2294
  %2552 = vst.msk [vmem:[%s2324 + $0xff] sm:$0x1] %vm76, %v2295
  %2553 = vst.msk [vmem:[%s2324 + $0x100] sm:$0x1] %vm76, %v2296
  %2554 = vst.msk [vmem:[%s2324 + $0x101] sm:$0x1] %vm76, %v2297
  %2555 = vst.msk [vmem:[%s2324 + $0x102] sm:$0x1] %vm76, %v2298
  %2556 = vst.msk [vmem:[%s2324 + $0x103] sm:$0x1] %vm76, %v2299
  %2557 = vst.msk [vmem:[%s2324 + $0x104] sm:$0x1] %vm76, %v2300
  %2558 = vst.msk [vmem:[%s2324 + $0x105] sm:$0x1] %vm76, %v2301
  %2559 = vst.msk [vmem:[%s2324 + $0x106] sm:$0x1] %vm76, %v2302
  %2560 = vst.msk [vmem:[%s2324 + $0x107] sm:$0x1] %vm76, %v2303
  %2561 = vst.msk [vmem:[%s2324 + $0x108] sm:$0x1] %vm76, %v2304
  %2562 = vst.msk [vmem:[%s2324 + $0x109] sm:$0x1] %vm76, %v2305
  %2563 = vst.msk [vmem:[%s2324 + $0x10a] sm:$0x1] %vm76, %v2306
  %2564 = vst.msk [vmem:[%s2324 + $0x10b] sm:$0x1] %vm76, %v2307
  %2565 = vst.msk [vmem:[%s2324 + $0x10e] sm:$0x1] %vm76, %v2308
  %2566 = vst.msk [vmem:[%s2324 + $0x10f] sm:$0x1] %vm76, %v2309
  %2567 = vst.msk [vmem:[%s2324 + $0x110] sm:$0x1] %vm76, %v2310
  %2568 = vst.msk [vmem:[%s2324 + $0x111] sm:$0x1] %vm76, %v2311
  %2569 = vst.msk [vmem:[%s2324 + $0x112] sm:$0x1] %vm76, %v2312
  %2570 = vst.msk [vmem:[%s2324 + $0x113] sm:$0x1] %vm76, %v2313
  %2571 = vst.msk [vmem:[%s2324 + $0x114] sm:$0x1] %vm76, %v2314
  %2572 = vst.msk [vmem:[%s2324 + $0x115] sm:$0x1] %vm76, %v2315
  %2573 = vst.msk [vmem:[%s2324 + $0x116] sm:$0x1] %vm76, %v2316
  %2574 = vst.msk [vmem:[%s2324 + $0x117] sm:$0x1] %vm76, %v2317
  %2575 = vst.msk [vmem:[%s2324 + $0x118] sm:$0x1] %vm76, %v2318
  %2576 = vst.msk [vmem:[%s2324 + $0x119] sm:$0x1] %vm76, %v2319
  %2577 = vst.msk [vmem:[%s2324 + $0x11a] sm:$0x1] %vm76, %v2320
  %2578 = vst.msk [vmem:[%s2324 + $0x11b] sm:$0x1] %vm76, %v2321
  %2579 = vst.msk [vmem:[%s2324 + $0x11c] sm:$0x1] %vm76, %v2322
  %2580 = vst.msk [vmem:[%s2324 + $0x11d] sm:$0x1] %vm76, %v2323
  %s2581 = scalar_lea.vmem %s1, 1007
  %2582 = vst.msk [vmem:[%s2581] sm:$0x1] %vm76, %v2000
  %2583 = vst.msk [vmem:[%s2581 + $0x12] sm:$0x1] %vm76, %v2001
  %2584 = vst.msk [vmem:[%s2581 + $0x24] sm:$0x1] %vm76, %v2002
  %2585 = vst.msk [vmem:[%s2581 + $0x36] sm:$0x1] %vm76, %v2003
  %2586 = vst.msk [vmem:[%s2581 + $0x48] sm:$0x1] %vm76, %v2004
  %2587 = vst.msk [vmem:[%s2581 + $0x5a] sm:$0x1] %vm76, %v2005
  %2588 = vst.msk [vmem:[%s2581 + $0x6c] sm:$0x1] %vm76, %v2006
  %2589 = vst.msk [vmem:[%s2581 + $0x7e] sm:$0x1] %vm76, %v2007
  %2590 = vst.msk [vmem:[%s2581 + $0x90] sm:$0x1] %vm76, %v2008
  %2591 = vst.msk [vmem:[%s2581 + $0xa2] sm:$0x1] %vm76, %v2009
  %2592 = vst.msk [vmem:[%s2581 + $0xb4] sm:$0x1] %vm76, %v2010
  %2593 = vst.msk [vmem:[%s2581 + $0xc6] sm:$0x1] %vm76, %v2011
  %2594 = vst.msk [vmem:[%s2581 + $0xd8] sm:$0x1] %vm76, %v2012
  %2595 = vst.msk [vmem:[%s2581 + $0xea] sm:$0x1] %vm76, %v2013
  %2596 = vst.msk [vmem:[%s2581 + $0xfc] sm:$0x1] %vm76, %v2014
  %2597 = vst.msk [vmem:[%s2581 + $0x10e] sm:$0x1] %vm76, %v2015
  %s2598 = scalar_lea.vmem %s1, 1278
  %2599 = vst.msk [vmem:[%s2598] sm:$0x1] %vm76, 0.0
  %2600 = vst.msk [vmem:[%s2598 + $0x1] sm:$0x1] %vm76, %v2031
  %2601 = vst.msk [vmem:[%s2598 + $0x2] sm:$0x1] %vm76, %v2030
  %2602 = vst.msk [vmem:[%s2598 + $0x3] sm:$0x1] %vm76, %v2029
  %2603 = vst.msk [vmem:[%s2598 + $0x4] sm:$0x1] %vm76, %v2028
  %2604 = vst.msk [vmem:[%s2598 + $0x5] sm:$0x1] %vm76, %v2027
  %2605 = vst.msk [vmem:[%s2598 + $0x6] sm:$0x1] %vm76, %v2026
  %2606 = vst.msk [vmem:[%s2598 + $0x7] sm:$0x1] %vm76, %v2025
  %2607 = vst.msk [vmem:[%s2598 + $0x8] sm:$0x1] %vm76, %v2024
  %2608 = vst.msk [vmem:[%s2598 + $0x9] sm:$0x1] %vm76, %v2023
  %2609 = vst.msk [vmem:[%s2598 + $0xa] sm:$0x1] %vm76, %v2022
  %2610 = vst.msk [vmem:[%s2598 + $0xb] sm:$0x1] %vm76, %v2021
  %2611 = vst.msk [vmem:[%s2598 + $0xc] sm:$0x1] %vm76, %v2020
  %2612 = vst.msk [vmem:[%s2598 + $0xd] sm:$0x1] %vm76, %v2019
  %2613 = vst.msk [vmem:[%s2598 + $0xe] sm:$0x1] %vm76, %v2018
  %2614 = vst.msk [vmem:[%s2598 + $0xf] sm:$0x1] %vm76, %v2017
  %2615 = vst.msk [vmem:[%s2598 + $0x10] sm:$0x1] %vm76, %v2016
  %2616 = vst.msk [vmem:[%s2598 + $0x11] sm:$0x1] %vm76, 0.0
  %v2617 = vld [vmem:[%s1348] sm:$0x1]
  %v2618 = vld [vmem:[%s695] sm:$0x1]
  %v2619 = vld [vmem:[%s695 + $0x1] sm:$0x1]
  %v2620 = vld [vmem:[%s695 + $0x2] sm:$0x1]
  %v2621 = vld [vmem:[%s695 + $0x3] sm:$0x1]
  %v2622 = vld [vmem:[%s695 + $0x4] sm:$0x1]
  %v2623 = vld [vmem:[%s695 + $0x5] sm:$0x1]
  %v2624 = vld [vmem:[%s695 + $0x6] sm:$0x1]
  %v2625 = vld [vmem:[%s695 + $0x7] sm:$0x1]
  %v2626 = vld [vmem:[%s695 + $0x8] sm:$0x1]
  %v2627 = vld [vmem:[%s695 + $0x9] sm:$0x1]
  %v2628 = vld [vmem:[%s695 + $0xa] sm:$0x1]
  %v2629 = vld [vmem:[%s695 + $0xb] sm:$0x1]
  %v2630 = vld [vmem:[%s695 + $0xc] sm:$0x1]
  %v2631 = vld [vmem:[%s695 + $0xd] sm:$0x1]
  %v2632 = vld [vmem:[%s695 + $0xe] sm:$0x1]
  %v2633 = vld [vmem:[%s695 + $0xf] sm:$0x1]
  %v2634 = vld [vmem:[%s1331] sm:$0x1]
  %v2635 = vld [vmem:[%s1348 + $0x1] sm:$0x1]
  %v2636 = vld [vmem:[%s1348 + $0x2] sm:$0x1]
  %v2637 = vld [vmem:[%s1348 + $0x3] sm:$0x1]
  %v2638 = vld [vmem:[%s1348 + $0x4] sm:$0x1]
  %v2639 = vld [vmem:[%s1348 + $0x5] sm:$0x1]
  %v2640 = vld [vmem:[%s1348 + $0x6] sm:$0x1]
  %v2641 = vld [vmem:[%s1348 + $0x7] sm:$0x1]
  %v2642 = vld [vmem:[%s1348 + $0x8] sm:$0x1]
  %v2643 = vld [vmem:[%s1348 + $0x9] sm:$0x1]
  %v2644 = vld [vmem:[%s1348 + $0xa] sm:$0x1]
  %v2645 = vld [vmem:[%s1348 + $0xb] sm:$0x1]
  %v2646 = vld [vmem:[%s1348 + $0xc] sm:$0x1]
  %v2647 = vld [vmem:[%s1348 + $0xd] sm:$0x1]
  %v2648 = vld [vmem:[%s1348 + $0xe] sm:$0x1]
  %v2649 = vld [vmem:[%s1348 + $0xf] sm:$0x1]
  %v2650 = vld [vmem:[%s42] sm:$0x1]
  %v2651 = vld [vmem:[%s42 + $0x1] sm:$0x1]
  %v2652 = vld [vmem:[%s42 + $0x2] sm:$0x1]
  %v2653 = vld [vmem:[%s42 + $0x3] sm:$0x1]
  %v2654 = vld [vmem:[%s42 + $0x4] sm:$0x1]
  %v2655 = vld [vmem:[%s42 + $0x5] sm:$0x1]
  %v2656 = vld [vmem:[%s42 + $0x6] sm:$0x1]
  %v2657 = vld [vmem:[%s42 + $0x7] sm:$0x1]
  %v2658 = vld [vmem:[%s42 + $0x8] sm:$0x1]
  %v2659 = vld [vmem:[%s42 + $0x9] sm:$0x1]
  %v2660 = vld [vmem:[%s42 + $0xa] sm:$0x1]
  %v2661 = vld [vmem:[%s42 + $0xb] sm:$0x1]
  %v2662 = vld [vmem:[%s42 + $0xc] sm:$0x1]
  %v2663 = vld [vmem:[%s42 + $0xd] sm:$0x1]
  %v2664 = vld [vmem:[%s42 + $0xe] sm:$0x1]
  %v2665 = vld [vmem:[%s42 + $0xf] sm:$0x1]
  %v2666 = vld [vmem:[%s25] sm:$0x1]
  %v2667 = vld [vmem:[%s0] sm:$0x1]
  %v2668 = vld [vmem:[%s0 + $0x1] sm:$0x1]
  %v2669 = vld [vmem:[%s0 + $0x2] sm:$0x1]
  %v2670 = vld [vmem:[%s0 + $0x3] sm:$0x1]
  %v2671 = vld [vmem:[%s0 + $0x4] sm:$0x1]
  %v2672 = vld [vmem:[%s0 + $0x5] sm:$0x1]
  %v2673 = vld [vmem:[%s0 + $0x6] sm:$0x1]
  %v2674 = vld [vmem:[%s0 + $0x7] sm:$0x1]
  %v2675 = vld [vmem:[%s0 + $0x8] sm:$0x1]
  %v2676 = vld [vmem:[%s0 + $0x9] sm:$0x1]
  %v2677 = vld [vmem:[%s0 + $0xa] sm:$0x1]
  %v2678 = vld [vmem:[%s0 + $0xb] sm:$0x1]
  %v2679 = vld [vmem:[%s0 + $0xc] sm:$0x1]
  %v2680 = vld [vmem:[%s0 + $0xd] sm:$0x1]
  %v2681 = vld [vmem:[%s0 + $0xe] sm:$0x1]
  %v2682 = vld [vmem:[%s0 + $0xf] sm:$0x1]
  %s2683 = scalar_lea.vmem %s1, 1296
  %2684 = vst.msk [vmem:[%s2683] sm:$0x1] %vm76, %v2617
  %2685 = vst.msk [vmem:[%s2683 + $0x1] sm:$0x1] %vm76, %v2633
  %2686 = vst.msk [vmem:[%s2683 + $0x2] sm:$0x1] %vm76, %v2632
  %2687 = vst.msk [vmem:[%s2683 + $0x3] sm:$0x1] %vm76, %v2631
  %2688 = vst.msk [vmem:[%s2683 + $0x4] sm:$0x1] %vm76, %v2630
  %2689 = vst.msk [vmem:[%s2683 + $0x5] sm:$0x1] %vm76, %v2629
  %2690 = vst.msk [vmem:[%s2683 + $0x6] sm:$0x1] %vm76, %v2628
  %2691 = vst.msk [vmem:[%s2683 + $0x7] sm:$0x1] %vm76, %v2627
  %2692 = vst.msk [vmem:[%s2683 + $0x8] sm:$0x1] %vm76, %v2626
  %2693 = vst.msk [vmem:[%s2683 + $0x9] sm:$0x1] %vm76, %v2625
  %2694 = vst.msk [vmem:[%s2683 + $0xa] sm:$0x1] %vm76, %v2624
  %2695 = vst.msk [vmem:[%s2683 + $0xb] sm:$0x1] %vm76, %v2623
  %2696 = vst.msk [vmem:[%s2683 + $0xc] sm:$0x1] %vm76, %v2622
  %2697 = vst.msk [vmem:[%s2683 + $0xd] sm:$0x1] %vm76, %v2621
  %2698 = vst.msk [vmem:[%s2683 + $0xe] sm:$0x1] %vm76, %v2620
  %2699 = vst.msk [vmem:[%s2683 + $0xf] sm:$0x1] %vm76, %v2619
  %2700 = vst.msk [vmem:[%s2683 + $0x10] sm:$0x1] %vm76, %v2618
  %2701 = vst.msk [vmem:[%s2683 + $0x11] sm:$0x1] %vm76, %v2634
  %s2702 = scalar_lea.vmem %s1, 1314
  %2703 = vst.msk [vmem:[%s2702] sm:$0x1] %vm76, %v2617
  %2704 = vst.msk [vmem:[%s2702 + $0x12] sm:$0x1] %vm76, %v2635
  %2705 = vst.msk [vmem:[%s2702 + $0x24] sm:$0x1] %vm76, %v2636
  %2706 = vst.msk [vmem:[%s2702 + $0x36] sm:$0x1] %vm76, %v2637
  %2707 = vst.msk [vmem:[%s2702 + $0x48] sm:$0x1] %vm76, %v2638
  %2708 = vst.msk [vmem:[%s2702 + $0x5a] sm:$0x1] %vm76, %v2639
  %2709 = vst.msk [vmem:[%s2702 + $0x6c] sm:$0x1] %vm76, %v2640
  %2710 = vst.msk [vmem:[%s2702 + $0x7e] sm:$0x1] %vm76, %v2641
  %2711 = vst.msk [vmem:[%s2702 + $0x90] sm:$0x1] %vm76, %v2642
  %2712 = vst.msk [vmem:[%s2702 + $0xa2] sm:$0x1] %vm76, %v2643
  %2713 = vst.msk [vmem:[%s2702 + $0xb4] sm:$0x1] %vm76, %v2644
  %2714 = vst.msk [vmem:[%s2702 + $0xc6] sm:$0x1] %vm76, %v2645
  %2715 = vst.msk [vmem:[%s2702 + $0xd8] sm:$0x1] %vm76, %v2646
  %2716 = vst.msk [vmem:[%s2702 + $0xea] sm:$0x1] %vm76, %v2647
  %2717 = vst.msk [vmem:[%s2702 + $0xfc] sm:$0x1] %vm76, %v2648
  %2718 = vst.msk [vmem:[%s2702 + $0x10e] sm:$0x1] %vm76, %v2649
  %v2719 = vld [vmem:[%s1314] sm:$0x1]
  %v2720 = vld [vmem:[%s1314 + $0x1] sm:$0x1]
  %v2721 = vld [vmem:[%s1314 + $0x2] sm:$0x1]
  %v2722 = vld [vmem:[%s1314 + $0x3] sm:$0x1]
  %v2723 = vld [vmem:[%s1314 + $0x4] sm:$0x1]
  %v2724 = vld [vmem:[%s1314 + $0x5] sm:$0x1]
  %v2725 = vld [vmem:[%s1314 + $0x6] sm:$0x1]
  %v2726 = vld [vmem:[%s1314 + $0x7] sm:$0x1]
  %v2727 = vld [vmem:[%s1314 + $0x8] sm:$0x1]
  %v2728 = vld [vmem:[%s1314 + $0x9] sm:$0x1]
  %v2729 = vld [vmem:[%s1314 + $0xa] sm:$0x1]
  %v2730 = vld [vmem:[%s1314 + $0xb] sm:$0x1]
  %v2731 = vld [vmem:[%s1314 + $0xc] sm:$0x1]
  %v2732 = vld [vmem:[%s1314 + $0xd] sm:$0x1]
  %v2733 = vld [vmem:[%s1314 + $0xe] sm:$0x1]
  %v2734 = vld [vmem:[%s1314 + $0xf] sm:$0x1]
  %v2735 = vld [vmem:[%s1314 + $0x10] sm:$0x1]
  %v2736 = vld [vmem:[%s1314 + $0x11] sm:$0x1]
  %v2737 = vld [vmem:[%s1314 + $0x12] sm:$0x1]
  %v2738 = vld [vmem:[%s1314 + $0x13] sm:$0x1]
  %v2739 = vld [vmem:[%s1314 + $0x14] sm:$0x1]
  %v2740 = vld [vmem:[%s1314 + $0x15] sm:$0x1]
  %v2741 = vld [vmem:[%s1314 + $0x16] sm:$0x1]
  %v2742 = vld [vmem:[%s1314 + $0x17] sm:$0x1]
  %v2743 = vld [vmem:[%s1314 + $0x18] sm:$0x1]
  %v2744 = vld [vmem:[%s1314 + $0x19] sm:$0x1]
  %v2745 = vld [vmem:[%s1314 + $0x1a] sm:$0x1]
  %v2746 = vld [vmem:[%s1314 + $0x1b] sm:$0x1]
  %v2747 = vld [vmem:[%s1314 + $0x1c] sm:$0x1]
  %v2748 = vld [vmem:[%s1314 + $0x1d] sm:$0x1]
  %v2749 = vld [vmem:[%s1314 + $0x1e] sm:$0x1]
  %v2750 = vld [vmem:[%s1314 + $0x1f] sm:$0x1]
  %v2751 = vld [vmem:[%s1314 + $0x20] sm:$0x1]
  %v2752 = vld [vmem:[%s1314 + $0x21] sm:$0x1]
  %v2753 = vld [vmem:[%s1314 + $0x22] sm:$0x1]
  %v2754 = vld [vmem:[%s1314 + $0x23] sm:$0x1]
  %v2755 = vld [vmem:[%s1314 + $0x24] sm:$0x1]
  %v2756 = vld [vmem:[%s1314 + $0x25] sm:$0x1]
  %v2757 = vld [vmem:[%s1314 + $0x26] sm:$0x1]
  %v2758 = vld [vmem:[%s1314 + $0x27] sm:$0x1]
  %v2759 = vld [vmem:[%s1314 + $0x28] sm:$0x1]
  %v2760 = vld [vmem:[%s1314 + $0x29] sm:$0x1]
  %v2761 = vld [vmem:[%s1314 + $0x2a] sm:$0x1]
  %v2762 = vld [vmem:[%s1314 + $0x2b] sm:$0x1]
  %v2763 = vld [vmem:[%s1314 + $0x2c] sm:$0x1]
  %v2764 = vld [vmem:[%s1314 + $0x2d] sm:$0x1]
  %v2765 = vld [vmem:[%s1314 + $0x2e] sm:$0x1]
  %v2766 = vld [vmem:[%s1314 + $0x2f] sm:$0x1]
  %v2767 = vld [vmem:[%s1314 + $0x30] sm:$0x1]
  %v2768 = vld [vmem:[%s1314 + $0x31] sm:$0x1]
  %v2769 = vld [vmem:[%s1314 + $0x32] sm:$0x1]
  %v2770 = vld [vmem:[%s1314 + $0x33] sm:$0x1]
  %v2771 = vld [vmem:[%s1314 + $0x34] sm:$0x1]
  %v2772 = vld [vmem:[%s1314 + $0x35] sm:$0x1]
  %v2773 = vld [vmem:[%s1314 + $0x36] sm:$0x1]
  %v2774 = vld [vmem:[%s1314 + $0x37] sm:$0x1]
  %v2775 = vld [vmem:[%s1314 + $0x38] sm:$0x1]
  %v2776 = vld [vmem:[%s1314 + $0x39] sm:$0x1]
  %v2777 = vld [vmem:[%s1314 + $0x3a] sm:$0x1]
  %v2778 = vld [vmem:[%s1314 + $0x3b] sm:$0x1]
  %v2779 = vld [vmem:[%s1314 + $0x3c] sm:$0x1]
  %v2780 = vld [vmem:[%s1314 + $0x3d] sm:$0x1]
  %v2781 = vld [vmem:[%s1314 + $0x3e] sm:$0x1]
  %v2782 = vld [vmem:[%s1314 + $0x3f] sm:$0x1]
  %v2783 = vld [vmem:[%s1314 + $0x40] sm:$0x1]
  %v2784 = vld [vmem:[%s1314 + $0x41] sm:$0x1]
  %v2785 = vld [vmem:[%s1314 + $0x42] sm:$0x1]
  %v2786 = vld [vmem:[%s1314 + $0x43] sm:$0x1]
  %v2787 = vld [vmem:[%s1314 + $0x44] sm:$0x1]
  %v2788 = vld [vmem:[%s1314 + $0x45] sm:$0x1]
  %v2789 = vld [vmem:[%s1314 + $0x46] sm:$0x1]
  %v2790 = vld [vmem:[%s1314 + $0x47] sm:$0x1]
  %v2791 = vld [vmem:[%s1314 + $0x48] sm:$0x1]
  %v2792 = vld [vmem:[%s1314 + $0x49] sm:$0x1]
  %v2793 = vld [vmem:[%s1314 + $0x4a] sm:$0x1]
  %v2794 = vld [vmem:[%s1314 + $0x4b] sm:$0x1]
  %v2795 = vld [vmem:[%s1314 + $0x4c] sm:$0x1]
  %v2796 = vld [vmem:[%s1314 + $0x4d] sm:$0x1]
  %v2797 = vld [vmem:[%s1314 + $0x4e] sm:$0x1]
  %v2798 = vld [vmem:[%s1314 + $0x4f] sm:$0x1]
  %v2799 = vld [vmem:[%s1314 + $0x50] sm:$0x1]
  %v2800 = vld [vmem:[%s1314 + $0x51] sm:$0x1]
  %v2801 = vld [vmem:[%s1314 + $0x52] sm:$0x1]
  %v2802 = vld [vmem:[%s1314 + $0x53] sm:$0x1]
  %v2803 = vld [vmem:[%s1314 + $0x54] sm:$0x1]
  %v2804 = vld [vmem:[%s1314 + $0x55] sm:$0x1]
  %v2805 = vld [vmem:[%s1314 + $0x56] sm:$0x1]
  %v2806 = vld [vmem:[%s1314 + $0x57] sm:$0x1]
  %v2807 = vld [vmem:[%s1314 + $0x58] sm:$0x1]
  %v2808 = vld [vmem:[%s1314 + $0x59] sm:$0x1]
  %v2809 = vld [vmem:[%s1314 + $0x5a] sm:$0x1]
  %v2810 = vld [vmem:[%s1314 + $0x5b] sm:$0x1]
  %v2811 = vld [vmem:[%s1314 + $0x5c] sm:$0x1]
  %v2812 = vld [vmem:[%s1314 + $0x5d] sm:$0x1]
  %v2813 = vld [vmem:[%s1314 + $0x5e] sm:$0x1]
  %v2814 = vld [vmem:[%s1314 + $0x5f] sm:$0x1]
  %v2815 = vld [vmem:[%s1314 + $0x60] sm:$0x1]
  %v2816 = vld [vmem:[%s1314 + $0x61] sm:$0x1]
  %v2817 = vld [vmem:[%s1314 + $0x62] sm:$0x1]
  %v2818 = vld [vmem:[%s1314 + $0x63] sm:$0x1]
  %v2819 = vld [vmem:[%s1314 + $0x64] sm:$0x1]
  %v2820 = vld [vmem:[%s1314 + $0x65] sm:$0x1]
  %v2821 = vld [vmem:[%s1314 + $0x66] sm:$0x1]
  %v2822 = vld [vmem:[%s1314 + $0x67] sm:$0x1]
  %v2823 = vld [vmem:[%s1314 + $0x68] sm:$0x1]
  %v2824 = vld [vmem:[%s1314 + $0x69] sm:$0x1]
  %v2825 = vld [vmem:[%s1314 + $0x6a] sm:$0x1]
  %v2826 = vld [vmem:[%s1314 + $0x6b] sm:$0x1]
  %v2827 = vld [vmem:[%s1314 + $0x6c] sm:$0x1]
  %v2828 = vld [vmem:[%s1314 + $0x6d] sm:$0x1]
  %v2829 = vld [vmem:[%s1314 + $0x6e] sm:$0x1]
  %v2830 = vld [vmem:[%s1314 + $0x6f] sm:$0x1]
  %v2831 = vld [vmem:[%s1314 + $0x70] sm:$0x1]
  %v2832 = vld [vmem:[%s1314 + $0x71] sm:$0x1]
  %v2833 = vld [vmem:[%s1314 + $0x72] sm:$0x1]
  %v2834 = vld [vmem:[%s1314 + $0x73] sm:$0x1]
  %v2835 = vld [vmem:[%s1314 + $0x74] sm:$0x1]
  %v2836 = vld [vmem:[%s1314 + $0x75] sm:$0x1]
  %v2837 = vld [vmem:[%s1314 + $0x76] sm:$0x1]
  %v2838 = vld [vmem:[%s1314 + $0x77] sm:$0x1]
  %v2839 = vld [vmem:[%s1314 + $0x78] sm:$0x1]
  %v2840 = vld [vmem:[%s1314 + $0x79] sm:$0x1]
  %v2841 = vld [vmem:[%s1314 + $0x7a] sm:$0x1]
  %v2842 = vld [vmem:[%s1314 + $0x7b] sm:$0x1]
  %v2843 = vld [vmem:[%s1314 + $0x7c] sm:$0x1]
  %v2844 = vld [vmem:[%s1314 + $0x7d] sm:$0x1]
  %v2845 = vld [vmem:[%s1314 + $0x7e] sm:$0x1]
  %v2846 = vld [vmem:[%s1314 + $0x7f] sm:$0x1]
  %v2847 = vld [vmem:[%s1314 + $0x80] sm:$0x1]
  %v2848 = vld [vmem:[%s1314 + $0x81] sm:$0x1]
  %v2849 = vld [vmem:[%s1314 + $0x82] sm:$0x1]
  %v2850 = vld [vmem:[%s1314 + $0x83] sm:$0x1]
  %v2851 = vld [vmem:[%s1314 + $0x84] sm:$0x1]
  %v2852 = vld [vmem:[%s1314 + $0x85] sm:$0x1]
  %v2853 = vld [vmem:[%s1314 + $0x86] sm:$0x1]
  %v2854 = vld [vmem:[%s1314 + $0x87] sm:$0x1]
  %v2855 = vld [vmem:[%s1314 + $0x88] sm:$0x1]
  %v2856 = vld [vmem:[%s1314 + $0x89] sm:$0x1]
  %v2857 = vld [vmem:[%s1314 + $0x8a] sm:$0x1]
  %v2858 = vld [vmem:[%s1314 + $0x8b] sm:$0x1]
  %v2859 = vld [vmem:[%s1314 + $0x8c] sm:$0x1]
  %v2860 = vld [vmem:[%s1314 + $0x8d] sm:$0x1]
  %v2861 = vld [vmem:[%s1314 + $0x8e] sm:$0x1]
  %v2862 = vld [vmem:[%s1314 + $0x8f] sm:$0x1]
  %v2863 = vld [vmem:[%s1314 + $0x90] sm:$0x1]
  %v2864 = vld [vmem:[%s1314 + $0x91] sm:$0x1]
  %v2865 = vld [vmem:[%s1314 + $0x92] sm:$0x1]
  %v2866 = vld [vmem:[%s1314 + $0x93] sm:$0x1]
  %v2867 = vld [vmem:[%s1314 + $0x94] sm:$0x1]
  %v2868 = vld [vmem:[%s1314 + $0x95] sm:$0x1]
  %v2869 = vld [vmem:[%s1314 + $0x96] sm:$0x1]
  %v2870 = vld [vmem:[%s1314 + $0x97] sm:$0x1]
  %v2871 = vld [vmem:[%s1314 + $0x98] sm:$0x1]
  %v2872 = vld [vmem:[%s1314 + $0x99] sm:$0x1]
  %v2873 = vld [vmem:[%s1314 + $0x9a] sm:$0x1]
  %v2874 = vld [vmem:[%s1314 + $0x9b] sm:$0x1]
  %v2875 = vld [vmem:[%s1314 + $0x9c] sm:$0x1]
  %v2876 = vld [vmem:[%s1314 + $0x9d] sm:$0x1]
  %v2877 = vld [vmem:[%s1314 + $0x9e] sm:$0x1]
  %v2878 = vld [vmem:[%s1314 + $0x9f] sm:$0x1]
  %v2879 = vld [vmem:[%s1314 + $0xa0] sm:$0x1]
  %v2880 = vld [vmem:[%s1314 + $0xa1] sm:$0x1]
  %v2881 = vld [vmem:[%s1314 + $0xa2] sm:$0x1]
  %v2882 = vld [vmem:[%s1314 + $0xa3] sm:$0x1]
  %v2883 = vld [vmem:[%s1314 + $0xa4] sm:$0x1]
  %v2884 = vld [vmem:[%s1314 + $0xa5] sm:$0x1]
  %v2885 = vld [vmem:[%s1314 + $0xa6] sm:$0x1]
  %v2886 = vld [vmem:[%s1314 + $0xa7] sm:$0x1]
  %v2887 = vld [vmem:[%s1314 + $0xa8] sm:$0x1]
  %v2888 = vld [vmem:[%s1314 + $0xa9] sm:$0x1]
  %v2889 = vld [vmem:[%s1314 + $0xaa] sm:$0x1]
  %v2890 = vld [vmem:[%s1314 + $0xab] sm:$0x1]
  %v2891 = vld [vmem:[%s1314 + $0xac] sm:$0x1]
  %v2892 = vld [vmem:[%s1314 + $0xad] sm:$0x1]
  %v2893 = vld [vmem:[%s1314 + $0xae] sm:$0x1]
  %v2894 = vld [vmem:[%s1314 + $0xaf] sm:$0x1]
  %v2895 = vld [vmem:[%s1314 + $0xb0] sm:$0x1]
  %v2896 = vld [vmem:[%s1314 + $0xb1] sm:$0x1]
  %v2897 = vld [vmem:[%s1314 + $0xb2] sm:$0x1]
  %v2898 = vld [vmem:[%s1314 + $0xb3] sm:$0x1]
  %v2899 = vld [vmem:[%s1314 + $0xb4] sm:$0x1]
  %v2900 = vld [vmem:[%s1314 + $0xb5] sm:$0x1]
  %v2901 = vld [vmem:[%s1314 + $0xb6] sm:$0x1]
  %v2902 = vld [vmem:[%s1314 + $0xb7] sm:$0x1]
  %v2903 = vld [vmem:[%s1314 + $0xb8] sm:$0x1]
  %v2904 = vld [vmem:[%s1314 + $0xb9] sm:$0x1]
  %v2905 = vld [vmem:[%s1314 + $0xba] sm:$0x1]
  %v2906 = vld [vmem:[%s1314 + $0xbb] sm:$0x1]
  %v2907 = vld [vmem:[%s1314 + $0xbc] sm:$0x1]
  %v2908 = vld [vmem:[%s1314 + $0xbd] sm:$0x1]
  %v2909 = vld [vmem:[%s1314 + $0xbe] sm:$0x1]
  %v2910 = vld [vmem:[%s1314 + $0xbf] sm:$0x1]
  %v2911 = vld [vmem:[%s1314 + $0xc0] sm:$0x1]
  %v2912 = vld [vmem:[%s1314 + $0xc1] sm:$0x1]
  %v2913 = vld [vmem:[%s1314 + $0xc2] sm:$0x1]
  %v2914 = vld [vmem:[%s1314 + $0xc3] sm:$0x1]
  %v2915 = vld [vmem:[%s1314 + $0xc4] sm:$0x1]
  %v2916 = vld [vmem:[%s1314 + $0xc5] sm:$0x1]
  %v2917 = vld [vmem:[%s1314 + $0xc6] sm:$0x1]
  %v2918 = vld [vmem:[%s1314 + $0xc7] sm:$0x1]
  %v2919 = vld [vmem:[%s1314 + $0xc8] sm:$0x1]
  %v2920 = vld [vmem:[%s1314 + $0xc9] sm:$0x1]
  %v2921 = vld [vmem:[%s1314 + $0xca] sm:$0x1]
  %v2922 = vld [vmem:[%s1314 + $0xcb] sm:$0x1]
  %v2923 = vld [vmem:[%s1314 + $0xcc] sm:$0x1]
  %v2924 = vld [vmem:[%s1314 + $0xcd] sm:$0x1]
  %v2925 = vld [vmem:[%s1314 + $0xce] sm:$0x1]
  %v2926 = vld [vmem:[%s1314 + $0xcf] sm:$0x1]
  %v2927 = vld [vmem:[%s1314 + $0xd0] sm:$0x1]
  %v2928 = vld [vmem:[%s1314 + $0xd1] sm:$0x1]
  %v2929 = vld [vmem:[%s1314 + $0xd2] sm:$0x1]
  %v2930 = vld [vmem:[%s1314 + $0xd3] sm:$0x1]
  %v2931 = vld [vmem:[%s1314 + $0xd4] sm:$0x1]
  %v2932 = vld [vmem:[%s1314 + $0xd5] sm:$0x1]
  %v2933 = vld [vmem:[%s1314 + $0xd6] sm:$0x1]
  %v2934 = vld [vmem:[%s1314 + $0xd7] sm:$0x1]
  %v2935 = vld [vmem:[%s1314 + $0xd8] sm:$0x1]
  %v2936 = vld [vmem:[%s1314 + $0xd9] sm:$0x1]
  %v2937 = vld [vmem:[%s1314 + $0xda] sm:$0x1]
  %v2938 = vld [vmem:[%s1314 + $0xdb] sm:$0x1]
  %v2939 = vld [vmem:[%s1314 + $0xdc] sm:$0x1]
  %v2940 = vld [vmem:[%s1314 + $0xdd] sm:$0x1]
  %v2941 = vld [vmem:[%s1314 + $0xde] sm:$0x1]
  %v2942 = vld [vmem:[%s1314 + $0xdf] sm:$0x1]
  %v2943 = vld [vmem:[%s1314 + $0xe0] sm:$0x1]
  %v2944 = vld [vmem:[%s1314 + $0xe1] sm:$0x1]
  %v2945 = vld [vmem:[%s1314 + $0xe2] sm:$0x1]
  %v2946 = vld [vmem:[%s1314 + $0xe3] sm:$0x1]
  %v2947 = vld [vmem:[%s1314 + $0xe4] sm:$0x1]
  %v2948 = vld [vmem:[%s1314 + $0xe5] sm:$0x1]
  %v2949 = vld [vmem:[%s1314 + $0xe6] sm:$0x1]
  %v2950 = vld [vmem:[%s1314 + $0xe7] sm:$0x1]
  %v2951 = vld [vmem:[%s1314 + $0xe8] sm:$0x1]
  %v2952 = vld [vmem:[%s1314 + $0xe9] sm:$0x1]
  %v2953 = vld [vmem:[%s1314 + $0xea] sm:$0x1]
  %v2954 = vld [vmem:[%s1314 + $0xeb] sm:$0x1]
  %v2955 = vld [vmem:[%s1314 + $0xec] sm:$0x1]
  %v2956 = vld [vmem:[%s1314 + $0xed] sm:$0x1]
  %v2957 = vld [vmem:[%s1314 + $0xee] sm:$0x1]
  %v2958 = vld [vmem:[%s1314 + $0xef] sm:$0x1]
  %v2959 = vld [vmem:[%s1314 + $0xf0] sm:$0x1]
  %v2960 = vld [vmem:[%s1314 + $0xf1] sm:$0x1]
  %v2961 = vld [vmem:[%s1314 + $0xf2] sm:$0x1]
  %v2962 = vld [vmem:[%s1314 + $0xf3] sm:$0x1]
  %v2963 = vld [vmem:[%s1314 + $0xf4] sm:$0x1]
  %v2964 = vld [vmem:[%s1314 + $0xf5] sm:$0x1]
  %v2965 = vld [vmem:[%s1314 + $0xf6] sm:$0x1]
  %v2966 = vld [vmem:[%s1314 + $0xf7] sm:$0x1]
  %v2967 = vld [vmem:[%s1314 + $0xf8] sm:$0x1]
  %v2968 = vld [vmem:[%s1314 + $0xf9] sm:$0x1]
  %v2969 = vld [vmem:[%s1314 + $0xfa] sm:$0x1]
  %v2970 = vld [vmem:[%s1314 + $0xfb] sm:$0x1]
  %v2971 = vld [vmem:[%s1314 + $0xfc] sm:$0x1]
  %v2972 = vld [vmem:[%s1314 + $0xfd] sm:$0x1]
  %v2973 = vld [vmem:[%s1314 + $0xfe] sm:$0x1]
  %v2974 = vld [vmem:[%s1314 + $0xff] sm:$0x1]
  %s2975 = scalar_lea.vmem %s1, 1315
  %2976 = vst.msk [vmem:[%s2975] sm:$0x1] %vm76, %v2719
  %2977 = vst.msk [vmem:[%s2975 + $0x1] sm:$0x1] %vm76, %v2720
  %2978 = vst.msk [vmem:[%s2975 + $0x2] sm:$0x1] %vm76, %v2721
  %2979 = vst.msk [vmem:[%s2975 + $0x3] sm:$0x1] %vm76, %v2722
  %2980 = vst.msk [vmem:[%s2975 + $0x4] sm:$0x1] %vm76, %v2723
  %2981 = vst.msk [vmem:[%s2975 + $0x5] sm:$0x1] %vm76, %v2724
  %2982 = vst.msk [vmem:[%s2975 + $0x6] sm:$0x1] %vm76, %v2725
  %2983 = vst.msk [vmem:[%s2975 + $0x7] sm:$0x1] %vm76, %v2726
  %2984 = vst.msk [vmem:[%s2975 + $0x8] sm:$0x1] %vm76, %v2727
  %2985 = vst.msk [vmem:[%s2975 + $0x9] sm:$0x1] %vm76, %v2728
  %2986 = vst.msk [vmem:[%s2975 + $0xa] sm:$0x1] %vm76, %v2729
  %2987 = vst.msk [vmem:[%s2975 + $0xb] sm:$0x1] %vm76, %v2730
  %2988 = vst.msk [vmem:[%s2975 + $0xc] sm:$0x1] %vm76, %v2731
  %2989 = vst.msk [vmem:[%s2975 + $0xd] sm:$0x1] %vm76, %v2732
  %2990 = vst.msk [vmem:[%s2975 + $0xe] sm:$0x1] %vm76, %v2733
  %2991 = vst.msk [vmem:[%s2975 + $0xf] sm:$0x1] %vm76, %v2734
  %2992 = vst.msk [vmem:[%s2975 + $0x12] sm:$0x1] %vm76, %v2735
  %2993 = vst.msk [vmem:[%s2975 + $0x13] sm:$0x1] %vm76, %v2736
  %2994 = vst.msk [vmem:[%s2975 + $0x14] sm:$0x1] %vm76, %v2737
  %2995 = vst.msk [vmem:[%s2975 + $0x15] sm:$0x1] %vm76, %v2738
  %2996 = vst.msk [vmem:[%s2975 + $0x16] sm:$0x1] %vm76, %v2739
  %2997 = vst.msk [vmem:[%s2975 + $0x17] sm:$0x1] %vm76, %v2740
  %2998 = vst.msk [vmem:[%s2975 + $0x18] sm:$0x1] %vm76, %v2741
  %2999 = vst.msk [vmem:[%s2975 + $0x19] sm:$0x1] %vm76, %v2742
  %3000 = vst.msk [vmem:[%s2975 + $0x1a] sm:$0x1] %vm76, %v2743
  %3001 = vst.msk [vmem:[%s2975 + $0x1b] sm:$0x1] %vm76, %v2744
  %3002 = vst.msk [vmem:[%s2975 + $0x1c] sm:$0x1] %vm76, %v2745
  %3003 = vst.msk [vmem:[%s2975 + $0x1d] sm:$0x1] %vm76, %v2746
  %3004 = vst.msk [vmem:[%s2975 + $0x1e] sm:$0x1] %vm76, %v2747
  %3005 = vst.msk [vmem:[%s2975 + $0x1f] sm:$0x1] %vm76, %v2748
  %3006 = vst.msk [vmem:[%s2975 + $0x20] sm:$0x1] %vm76, %v2749
  %3007 = vst.msk [vmem:[%s2975 + $0x21] sm:$0x1] %vm76, %v2750
  %3008 = vst.msk [vmem:[%s2975 + $0x24] sm:$0x1] %vm76, %v2751
  %3009 = vst.msk [vmem:[%s2975 + $0x25] sm:$0x1] %vm76, %v2752
  %3010 = vst.msk [vmem:[%s2975 + $0x26] sm:$0x1] %vm76, %v2753
  %3011 = vst.msk [vmem:[%s2975 + $0x27] sm:$0x1] %vm76, %v2754
  %3012 = vst.msk [vmem:[%s2975 + $0x28] sm:$0x1] %vm76, %v2755
  %3013 = vst.msk [vmem:[%s2975 + $0x29] sm:$0x1] %vm76, %v2756
  %3014 = vst.msk [vmem:[%s2975 + $0x2a] sm:$0x1] %vm76, %v2757
  %3015 = vst.msk [vmem:[%s2975 + $0x2b] sm:$0x1] %vm76, %v2758
  %3016 = vst.msk [vmem:[%s2975 + $0x2c] sm:$0x1] %vm76, %v2759
  %3017 = vst.msk [vmem:[%s2975 + $0x2d] sm:$0x1] %vm76, %v2760
  %3018 = vst.msk [vmem:[%s2975 + $0x2e] sm:$0x1] %vm76, %v2761
  %3019 = vst.msk [vmem:[%s2975 + $0x2f] sm:$0x1] %vm76, %v2762
  %3020 = vst.msk [vmem:[%s2975 + $0x30] sm:$0x1] %vm76, %v2763
  %3021 = vst.msk [vmem:[%s2975 + $0x31] sm:$0x1] %vm76, %v2764
  %3022 = vst.msk [vmem:[%s2975 + $0x32] sm:$0x1] %vm76, %v2765
  %3023 = vst.msk [vmem:[%s2975 + $0x33] sm:$0x1] %vm76, %v2766
  %3024 = vst.msk [vmem:[%s2975 + $0x36] sm:$0x1] %vm76, %v2767
  %3025 = vst.msk [vmem:[%s2975 + $0x37] sm:$0x1] %vm76, %v2768
  %3026 = vst.msk [vmem:[%s2975 + $0x38] sm:$0x1] %vm76, %v2769
  %3027 = vst.msk [vmem:[%s2975 + $0x39] sm:$0x1] %vm76, %v2770
  %3028 = vst.msk [vmem:[%s2975 + $0x3a] sm:$0x1] %vm76, %v2771
  %3029 = vst.msk [vmem:[%s2975 + $0x3b] sm:$0x1] %vm76, %v2772
  %3030 = vst.msk [vmem:[%s2975 + $0x3c] sm:$0x1] %vm76, %v2773
  %3031 = vst.msk [vmem:[%s2975 + $0x3d] sm:$0x1] %vm76, %v2774
  %3032 = vst.msk [vmem:[%s2975 + $0x3e] sm:$0x1] %vm76, %v2775
  %3033 = vst.msk [vmem:[%s2975 + $0x3f] sm:$0x1] %vm76, %v2776
  %3034 = vst.msk [vmem:[%s2975 + $0x40] sm:$0x1] %vm76, %v2777
  %3035 = vst.msk [vmem:[%s2975 + $0x41] sm:$0x1] %vm76, %v2778
  %3036 = vst.msk [vmem:[%s2975 + $0x42] sm:$0x1] %vm76, %v2779
  %3037 = vst.msk [vmem:[%s2975 + $0x43] sm:$0x1] %vm76, %v2780
  %3038 = vst.msk [vmem:[%s2975 + $0x44] sm:$0x1] %vm76, %v2781
  %3039 = vst.msk [vmem:[%s2975 + $0x45] sm:$0x1] %vm76, %v2782
  %3040 = vst.msk [vmem:[%s2975 + $0x48] sm:$0x1] %vm76, %v2783
  %3041 = vst.msk [vmem:[%s2975 + $0x49] sm:$0x1] %vm76, %v2784
  %3042 = vst.msk [vmem:[%s2975 + $0x4a] sm:$0x1] %vm76, %v2785
  %3043 = vst.msk [vmem:[%s2975 + $0x4b] sm:$0x1] %vm76, %v2786
  %3044 = vst.msk [vmem:[%s2975 + $0x4c] sm:$0x1] %vm76, %v2787
  %3045 = vst.msk [vmem:[%s2975 + $0x4d] sm:$0x1] %vm76, %v2788
  %3046 = vst.msk [vmem:[%s2975 + $0x4e] sm:$0x1] %vm76, %v2789
  %3047 = vst.msk [vmem:[%s2975 + $0x4f] sm:$0x1] %vm76, %v2790
  %3048 = vst.msk [vmem:[%s2975 + $0x50] sm:$0x1] %vm76, %v2791
  %3049 = vst.msk [vmem:[%s2975 + $0x51] sm:$0x1] %vm76, %v2792
  %3050 = vst.msk [vmem:[%s2975 + $0x52] sm:$0x1] %vm76, %v2793
  %3051 = vst.msk [vmem:[%s2975 + $0x53] sm:$0x1] %vm76, %v2794
  %3052 = vst.msk [vmem:[%s2975 + $0x54] sm:$0x1] %vm76, %v2795
  %3053 = vst.msk [vmem:[%s2975 + $0x55] sm:$0x1] %vm76, %v2796
  %3054 = vst.msk [vmem:[%s2975 + $0x56] sm:$0x1] %vm76, %v2797
  %3055 = vst.msk [vmem:[%s2975 + $0x57] sm:$0x1] %vm76, %v2798
  %3056 = vst.msk [vmem:[%s2975 + $0x5a] sm:$0x1] %vm76, %v2799
  %3057 = vst.msk [vmem:[%s2975 + $0x5b] sm:$0x1] %vm76, %v2800
  %3058 = vst.msk [vmem:[%s2975 + $0x5c] sm:$0x1] %vm76, %v2801
  %3059 = vst.msk [vmem:[%s2975 + $0x5d] sm:$0x1] %vm76, %v2802
  %3060 = vst.msk [vmem:[%s2975 + $0x5e] sm:$0x1] %vm76, %v2803
  %3061 = vst.msk [vmem:[%s2975 + $0x5f] sm:$0x1] %vm76, %v2804
  %3062 = vst.msk [vmem:[%s2975 + $0x60] sm:$0x1] %vm76, %v2805
  %3063 = vst.msk [vmem:[%s2975 + $0x61] sm:$0x1] %vm76, %v2806
  %3064 = vst.msk [vmem:[%s2975 + $0x62] sm:$0x1] %vm76, %v2807
  %3065 = vst.msk [vmem:[%s2975 + $0x63] sm:$0x1] %vm76, %v2808
  %3066 = vst.msk [vmem:[%s2975 + $0x64] sm:$0x1] %vm76, %v2809
  %3067 = vst.msk [vmem:[%s2975 + $0x65] sm:$0x1] %vm76, %v2810
  %3068 = vst.msk [vmem:[%s2975 + $0x66] sm:$0x1] %vm76, %v2811
  %3069 = vst.msk [vmem:[%s2975 + $0x67] sm:$0x1] %vm76, %v2812
  %3070 = vst.msk [vmem:[%s2975 + $0x68] sm:$0x1] %vm76, %v2813
  %3071 = vst.msk [vmem:[%s2975 + $0x69] sm:$0x1] %vm76, %v2814
  %3072 = vst.msk [vmem:[%s2975 + $0x6c] sm:$0x1] %vm76, %v2815
  %3073 = vst.msk [vmem:[%s2975 + $0x6d] sm:$0x1] %vm76, %v2816
  %3074 = vst.msk [vmem:[%s2975 + $0x6e] sm:$0x1] %vm76, %v2817
  %3075 = vst.msk [vmem:[%s2975 + $0x6f] sm:$0x1] %vm76, %v2818
  %3076 = vst.msk [vmem:[%s2975 + $0x70] sm:$0x1] %vm76, %v2819
  %3077 = vst.msk [vmem:[%s2975 + $0x71] sm:$0x1] %vm76, %v2820
  %3078 = vst.msk [vmem:[%s2975 + $0x72] sm:$0x1] %vm76, %v2821
  %3079 = vst.msk [vmem:[%s2975 + $0x73] sm:$0x1] %vm76, %v2822
  %3080 = vst.msk [vmem:[%s2975 + $0x74] sm:$0x1] %vm76, %v2823
  %3081 = vst.msk [vmem:[%s2975 + $0x75] sm:$0x1] %vm76, %v2824
  %3082 = vst.msk [vmem:[%s2975 + $0x76] sm:$0x1] %vm76, %v2825
  %3083 = vst.msk [vmem:[%s2975 + $0x77] sm:$0x1] %vm76, %v2826
  %3084 = vst.msk [vmem:[%s2975 + $0x78] sm:$0x1] %vm76, %v2827
  %3085 = vst.msk [vmem:[%s2975 + $0x79] sm:$0x1] %vm76, %v2828
  %3086 = vst.msk [vmem:[%s2975 + $0x7a] sm:$0x1] %vm76, %v2829
  %3087 = vst.msk [vmem:[%s2975 + $0x7b] sm:$0x1] %vm76, %v2830
  %3088 = vst.msk [vmem:[%s2975 + $0x7e] sm:$0x1] %vm76, %v2831
  %3089 = vst.msk [vmem:[%s2975 + $0x7f] sm:$0x1] %vm76, %v2832
  %3090 = vst.msk [vmem:[%s2975 + $0x80] sm:$0x1] %vm76, %v2833
  %3091 = vst.msk [vmem:[%s2975 + $0x81] sm:$0x1] %vm76, %v2834
  %3092 = vst.msk [vmem:[%s2975 + $0x82] sm:$0x1] %vm76, %v2835
  %3093 = vst.msk [vmem:[%s2975 + $0x83] sm:$0x1] %vm76, %v2836
  %3094 = vst.msk [vmem:[%s2975 + $0x84] sm:$0x1] %vm76, %v2837
  %3095 = vst.msk [vmem:[%s2975 + $0x85] sm:$0x1] %vm76, %v2838
  %3096 = vst.msk [vmem:[%s2975 + $0x86] sm:$0x1] %vm76, %v2839
  %3097 = vst.msk [vmem:[%s2975 + $0x87] sm:$0x1] %vm76, %v2840
  %3098 = vst.msk [vmem:[%s2975 + $0x88] sm:$0x1] %vm76, %v2841
  %3099 = vst.msk [vmem:[%s2975 + $0x89] sm:$0x1] %vm76, %v2842
  %3100 = vst.msk [vmem:[%s2975 + $0x8a] sm:$0x1] %vm76, %v2843
  %3101 = vst.msk [vmem:[%s2975 + $0x8b] sm:$0x1] %vm76, %v2844
  %3102 = vst.msk [vmem:[%s2975 + $0x8c] sm:$0x1] %vm76, %v2845
  %3103 = vst.msk [vmem:[%s2975 + $0x8d] sm:$0x1] %vm76, %v2846
  %3104 = vst.msk [vmem:[%s2975 + $0x90] sm:$0x1] %vm76, %v2847
  %3105 = vst.msk [vmem:[%s2975 + $0x91] sm:$0x1] %vm76, %v2848
  %3106 = vst.msk [vmem:[%s2975 + $0x92] sm:$0x1] %vm76, %v2849
  %3107 = vst.msk [vmem:[%s2975 + $0x93] sm:$0x1] %vm76, %v2850
  %3108 = vst.msk [vmem:[%s2975 + $0x94] sm:$0x1] %vm76, %v2851
  %3109 = vst.msk [vmem:[%s2975 + $0x95] sm:$0x1] %vm76, %v2852
  %3110 = vst.msk [vmem:[%s2975 + $0x96] sm:$0x1] %vm76, %v2853
  %3111 = vst.msk [vmem:[%s2975 + $0x97] sm:$0x1] %vm76, %v2854
  %3112 = vst.msk [vmem:[%s2975 + $0x98] sm:$0x1] %vm76, %v2855
  %3113 = vst.msk [vmem:[%s2975 + $0x99] sm:$0x1] %vm76, %v2856
  %3114 = vst.msk [vmem:[%s2975 + $0x9a] sm:$0x1] %vm76, %v2857
  %3115 = vst.msk [vmem:[%s2975 + $0x9b] sm:$0x1] %vm76, %v2858
  %3116 = vst.msk [vmem:[%s2975 + $0x9c] sm:$0x1] %vm76, %v2859
  %3117 = vst.msk [vmem:[%s2975 + $0x9d] sm:$0x1] %vm76, %v2860
  %3118 = vst.msk [vmem:[%s2975 + $0x9e] sm:$0x1] %vm76, %v2861
  %3119 = vst.msk [vmem:[%s2975 + $0x9f] sm:$0x1] %vm76, %v2862
  %3120 = vst.msk [vmem:[%s2975 + $0xa2] sm:$0x1] %vm76, %v2863
  %3121 = vst.msk [vmem:[%s2975 + $0xa3] sm:$0x1] %vm76, %v2864
  %3122 = vst.msk [vmem:[%s2975 + $0xa4] sm:$0x1] %vm76, %v2865
  %3123 = vst.msk [vmem:[%s2975 + $0xa5] sm:$0x1] %vm76, %v2866
  %3124 = vst.msk [vmem:[%s2975 + $0xa6] sm:$0x1] %vm76, %v2867
  %3125 = vst.msk [vmem:[%s2975 + $0xa7] sm:$0x1] %vm76, %v2868
  %3126 = vst.msk [vmem:[%s2975 + $0xa8] sm:$0x1] %vm76, %v2869
  %3127 = vst.msk [vmem:[%s2975 + $0xa9] sm:$0x1] %vm76, %v2870
  %3128 = vst.msk [vmem:[%s2975 + $0xaa] sm:$0x1] %vm76, %v2871
  %3129 = vst.msk [vmem:[%s2975 + $0xab] sm:$0x1] %vm76, %v2872
  %3130 = vst.msk [vmem:[%s2975 + $0xac] sm:$0x1] %vm76, %v2873
  %3131 = vst.msk [vmem:[%s2975 + $0xad] sm:$0x1] %vm76, %v2874
  %3132 = vst.msk [vmem:[%s2975 + $0xae] sm:$0x1] %vm76, %v2875
  %3133 = vst.msk [vmem:[%s2975 + $0xaf] sm:$0x1] %vm76, %v2876
  %3134 = vst.msk [vmem:[%s2975 + $0xb0] sm:$0x1] %vm76, %v2877
  %3135 = vst.msk [vmem:[%s2975 + $0xb1] sm:$0x1] %vm76, %v2878
  %3136 = vst.msk [vmem:[%s2975 + $0xb4] sm:$0x1] %vm76, %v2879
  %3137 = vst.msk [vmem:[%s2975 + $0xb5] sm:$0x1] %vm76, %v2880
  %3138 = vst.msk [vmem:[%s2975 + $0xb6] sm:$0x1] %vm76, %v2881
  %3139 = vst.msk [vmem:[%s2975 + $0xb7] sm:$0x1] %vm76, %v2882
  %3140 = vst.msk [vmem:[%s2975 + $0xb8] sm:$0x1] %vm76, %v2883
  %3141 = vst.msk [vmem:[%s2975 + $0xb9] sm:$0x1] %vm76, %v2884
  %3142 = vst.msk [vmem:[%s2975 + $0xba] sm:$0x1] %vm76, %v2885
  %3143 = vst.msk [vmem:[%s2975 + $0xbb] sm:$0x1] %vm76, %v2886
  %3144 = vst.msk [vmem:[%s2975 + $0xbc] sm:$0x1] %vm76, %v2887
  %3145 = vst.msk [vmem:[%s2975 + $0xbd] sm:$0x1] %vm76, %v2888
  %3146 = vst.msk [vmem:[%s2975 + $0xbe] sm:$0x1] %vm76, %v2889
  %3147 = vst.msk [vmem:[%s2975 + $0xbf] sm:$0x1] %vm76, %v2890
  %3148 = vst.msk [vmem:[%s2975 + $0xc0] sm:$0x1] %vm76, %v2891
  %3149 = vst.msk [vmem:[%s2975 + $0xc1] sm:$0x1] %vm76, %v2892
  %3150 = vst.msk [vmem:[%s2975 + $0xc2] sm:$0x1] %vm76, %v2893
  %3151 = vst.msk [vmem:[%s2975 + $0xc3] sm:$0x1] %vm76, %v2894
  %3152 = vst.msk [vmem:[%s2975 + $0xc6] sm:$0x1] %vm76, %v2895
  %3153 = vst.msk [vmem:[%s2975 + $0xc7] sm:$0x1] %vm76, %v2896
  %3154 = vst.msk [vmem:[%s2975 + $0xc8] sm:$0x1] %vm76, %v2897
  %3155 = vst.msk [vmem:[%s2975 + $0xc9] sm:$0x1] %vm76, %v2898
  %3156 = vst.msk [vmem:[%s2975 + $0xca] sm:$0x1] %vm76, %v2899
  %3157 = vst.msk [vmem:[%s2975 + $0xcb] sm:$0x1] %vm76, %v2900
  %3158 = vst.msk [vmem:[%s2975 + $0xcc] sm:$0x1] %vm76, %v2901
  %3159 = vst.msk [vmem:[%s2975 + $0xcd] sm:$0x1] %vm76, %v2902
  %3160 = vst.msk [vmem:[%s2975 + $0xce] sm:$0x1] %vm76, %v2903
  %3161 = vst.msk [vmem:[%s2975 + $0xcf] sm:$0x1] %vm76, %v2904
  %3162 = vst.msk [vmem:[%s2975 + $0xd0] sm:$0x1] %vm76, %v2905
  %3163 = vst.msk [vmem:[%s2975 + $0xd1] sm:$0x1] %vm76, %v2906
  %3164 = vst.msk [vmem:[%s2975 + $0xd2] sm:$0x1] %vm76, %v2907
  %3165 = vst.msk [vmem:[%s2975 + $0xd3] sm:$0x1] %vm76, %v2908
  %3166 = vst.msk [vmem:[%s2975 + $0xd4] sm:$0x1] %vm76, %v2909
  %3167 = vst.msk [vmem:[%s2975 + $0xd5] sm:$0x1] %vm76, %v2910
  %3168 = vst.msk [vmem:[%s2975 + $0xd8] sm:$0x1] %vm76, %v2911
  %3169 = vst.msk [vmem:[%s2975 + $0xd9] sm:$0x1] %vm76, %v2912
  %3170 = vst.msk [vmem:[%s2975 + $0xda] sm:$0x1] %vm76, %v2913
  %3171 = vst.msk [vmem:[%s2975 + $0xdb] sm:$0x1] %vm76, %v2914
  %3172 = vst.msk [vmem:[%s2975 + $0xdc] sm:$0x1] %vm76, %v2915
  %3173 = vst.msk [vmem:[%s2975 + $0xdd] sm:$0x1] %vm76, %v2916
  %3174 = vst.msk [vmem:[%s2975 + $0xde] sm:$0x1] %vm76, %v2917
  %3175 = vst.msk [vmem:[%s2975 + $0xdf] sm:$0x1] %vm76, %v2918
  %3176 = vst.msk [vmem:[%s2975 + $0xe0] sm:$0x1] %vm76, %v2919
  %3177 = vst.msk [vmem:[%s2975 + $0xe1] sm:$0x1] %vm76, %v2920
  %3178 = vst.msk [vmem:[%s2975 + $0xe2] sm:$0x1] %vm76, %v2921
  %3179 = vst.msk [vmem:[%s2975 + $0xe3] sm:$0x1] %vm76, %v2922
  %3180 = vst.msk [vmem:[%s2975 + $0xe4] sm:$0x1] %vm76, %v2923
  %3181 = vst.msk [vmem:[%s2975 + $0xe5] sm:$0x1] %vm76, %v2924
  %3182 = vst.msk [vmem:[%s2975 + $0xe6] sm:$0x1] %vm76, %v2925
  %3183 = vst.msk [vmem:[%s2975 + $0xe7] sm:$0x1] %vm76, %v2926
  %3184 = vst.msk [vmem:[%s2975 + $0xea] sm:$0x1] %vm76, %v2927
  %3185 = vst.msk [vmem:[%s2975 + $0xeb] sm:$0x1] %vm76, %v2928
  %3186 = vst.msk [vmem:[%s2975 + $0xec] sm:$0x1] %vm76, %v2929
  %3187 = vst.msk [vmem:[%s2975 + $0xed] sm:$0x1] %vm76, %v2930
  %3188 = vst.msk [vmem:[%s2975 + $0xee] sm:$0x1] %vm76, %v2931
  %3189 = vst.msk [vmem:[%s2975 + $0xef] sm:$0x1] %vm76, %v2932
  %3190 = vst.msk [vmem:[%s2975 + $0xf0] sm:$0x1] %vm76, %v2933
  %3191 = vst.msk [vmem:[%s2975 + $0xf1] sm:$0x1] %vm76, %v2934
  %3192 = vst.msk [vmem:[%s2975 + $0xf2] sm:$0x1] %vm76, %v2935
  %3193 = vst.msk [vmem:[%s2975 + $0xf3] sm:$0x1] %vm76, %v2936
  %3194 = vst.msk [vmem:[%s2975 + $0xf4] sm:$0x1] %vm76, %v2937
  %3195 = vst.msk [vmem:[%s2975 + $0xf5] sm:$0x1] %vm76, %v2938
  %3196 = vst.msk [vmem:[%s2975 + $0xf6] sm:$0x1] %vm76, %v2939
  %3197 = vst.msk [vmem:[%s2975 + $0xf7] sm:$0x1] %vm76, %v2940
  %3198 = vst.msk [vmem:[%s2975 + $0xf8] sm:$0x1] %vm76, %v2941
  %3199 = vst.msk [vmem:[%s2975 + $0xf9] sm:$0x1] %vm76, %v2942
  %3200 = vst.msk [vmem:[%s2975 + $0xfc] sm:$0x1] %vm76, %v2943
  %3201 = vst.msk [vmem:[%s2975 + $0xfd] sm:$0x1] %vm76, %v2944
  %3202 = vst.msk [vmem:[%s2975 + $0xfe] sm:$0x1] %vm76, %v2945
  %3203 = vst.msk [vmem:[%s2975 + $0xff] sm:$0x1] %vm76, %v2946
  %3204 = vst.msk [vmem:[%s2975 + $0x100] sm:$0x1] %vm76, %v2947
  %3205 = vst.msk [vmem:[%s2975 + $0x101] sm:$0x1] %vm76, %v2948
  %3206 = vst.msk [vmem:[%s2975 + $0x102] sm:$0x1] %vm76, %v2949
  %3207 = vst.msk [vmem:[%s2975 + $0x103] sm:$0x1] %vm76, %v2950
  %3208 = vst.msk [vmem:[%s2975 + $0x104] sm:$0x1] %vm76, %v2951
  %3209 = vst.msk [vmem:[%s2975 + $0x105] sm:$0x1] %vm76, %v2952
  %3210 = vst.msk [vmem:[%s2975 + $0x106] sm:$0x1] %vm76, %v2953
  %3211 = vst.msk [vmem:[%s2975 + $0x107] sm:$0x1] %vm76, %v2954
  %3212 = vst.msk [vmem:[%s2975 + $0x108] sm:$0x1] %vm76, %v2955
  %3213 = vst.msk [vmem:[%s2975 + $0x109] sm:$0x1] %vm76, %v2956
  %3214 = vst.msk [vmem:[%s2975 + $0x10a] sm:$0x1] %vm76, %v2957
  %3215 = vst.msk [vmem:[%s2975 + $0x10b] sm:$0x1] %vm76, %v2958
  %3216 = vst.msk [vmem:[%s2975 + $0x10e] sm:$0x1] %vm76, %v2959
  %3217 = vst.msk [vmem:[%s2975 + $0x10f] sm:$0x1] %vm76, %v2960
  %3218 = vst.msk [vmem:[%s2975 + $0x110] sm:$0x1] %vm76, %v2961
  %3219 = vst.msk [vmem:[%s2975 + $0x111] sm:$0x1] %vm76, %v2962
  %3220 = vst.msk [vmem:[%s2975 + $0x112] sm:$0x1] %vm76, %v2963
  %3221 = vst.msk [vmem:[%s2975 + $0x113] sm:$0x1] %vm76, %v2964
  %3222 = vst.msk [vmem:[%s2975 + $0x114] sm:$0x1] %vm76, %v2965
  %3223 = vst.msk [vmem:[%s2975 + $0x115] sm:$0x1] %vm76, %v2966
  %3224 = vst.msk [vmem:[%s2975 + $0x116] sm:$0x1] %vm76, %v2967
  %3225 = vst.msk [vmem:[%s2975 + $0x117] sm:$0x1] %vm76, %v2968
  %3226 = vst.msk [vmem:[%s2975 + $0x118] sm:$0x1] %vm76, %v2969
  %3227 = vst.msk [vmem:[%s2975 + $0x119] sm:$0x1] %vm76, %v2970
  %3228 = vst.msk [vmem:[%s2975 + $0x11a] sm:$0x1] %vm76, %v2971
  %3229 = vst.msk [vmem:[%s2975 + $0x11b] sm:$0x1] %vm76, %v2972
  %3230 = vst.msk [vmem:[%s2975 + $0x11c] sm:$0x1] %vm76, %v2973
  %3231 = vst.msk [vmem:[%s2975 + $0x11d] sm:$0x1] %vm76, %v2974
  %s3232 = scalar_lea.vmem %s1, 1331
  %3233 = vst.msk [vmem:[%s3232] sm:$0x1] %vm76, %v2665
  %3234 = vst.msk [vmem:[%s3232 + $0x12] sm:$0x1] %vm76, %v2664
  %3235 = vst.msk [vmem:[%s3232 + $0x24] sm:$0x1] %vm76, %v2663
  %3236 = vst.msk [vmem:[%s3232 + $0x36] sm:$0x1] %vm76, %v2662
  %3237 = vst.msk [vmem:[%s3232 + $0x48] sm:$0x1] %vm76, %v2661
  %3238 = vst.msk [vmem:[%s3232 + $0x5a] sm:$0x1] %vm76, %v2660
  %3239 = vst.msk [vmem:[%s3232 + $0x6c] sm:$0x1] %vm76, %v2659
  %3240 = vst.msk [vmem:[%s3232 + $0x7e] sm:$0x1] %vm76, %v2658
  %3241 = vst.msk [vmem:[%s3232 + $0x90] sm:$0x1] %vm76, %v2657
  %3242 = vst.msk [vmem:[%s3232 + $0xa2] sm:$0x1] %vm76, %v2656
  %3243 = vst.msk [vmem:[%s3232 + $0xb4] sm:$0x1] %vm76, %v2655
  %3244 = vst.msk [vmem:[%s3232 + $0xc6] sm:$0x1] %vm76, %v2654
  %3245 = vst.msk [vmem:[%s3232 + $0xd8] sm:$0x1] %vm76, %v2653
  %3246 = vst.msk [vmem:[%s3232 + $0xea] sm:$0x1] %vm76, %v2652
  %3247 = vst.msk [vmem:[%s3232 + $0xfc] sm:$0x1] %vm76, %v2651
  %3248 = vst.msk [vmem:[%s3232 + $0x10e] sm:$0x1] %vm76, %v2650
  %s3249 = scalar_lea.vmem %s1, 1602
  %3250 = vst.msk [vmem:[%s3249] sm:$0x1] %vm76, %v2666
  %3251 = vst.msk [vmem:[%s3249 + $0x1] sm:$0x1] %vm76, %v2667
  %3252 = vst.msk [vmem:[%s3249 + $0x2] sm:$0x1] %vm76, %v2668
  %3253 = vst.msk [vmem:[%s3249 + $0x3] sm:$0x1] %vm76, %v2669
  %3254 = vst.msk [vmem:[%s3249 + $0x4] sm:$0x1] %vm76, %v2670
  %3255 = vst.msk [vmem:[%s3249 + $0x5] sm:$0x1] %vm76, %v2671
  %3256 = vst.msk [vmem:[%s3249 + $0x6] sm:$0x1] %vm76, %v2672
  %3257 = vst.msk [vmem:[%s3249 + $0x7] sm:$0x1] %vm76, %v2673
  %3258 = vst.msk [vmem:[%s3249 + $0x8] sm:$0x1] %vm76, %v2674
  %3259 = vst.msk [vmem:[%s3249 + $0x9] sm:$0x1] %vm76, %v2675
  %3260 = vst.msk [vmem:[%s3249 + $0xa] sm:$0x1] %vm76, %v2676
  %3261 = vst.msk [vmem:[%s3249 + $0xb] sm:$0x1] %vm76, %v2677
  %3262 = vst.msk [vmem:[%s3249 + $0xc] sm:$0x1] %vm76, %v2678
  %3263 = vst.msk [vmem:[%s3249 + $0xd] sm:$0x1] %vm76, %v2679
  %3264 = vst.msk [vmem:[%s3249 + $0xe] sm:$0x1] %vm76, %v2680
  %3265 = vst.msk [vmem:[%s3249 + $0xf] sm:$0x1] %vm76, %v2681
  %3266 = vst.msk [vmem:[%s3249 + $0x10] sm:$0x1] %vm76, %v2682
  %3267 = vst.msk [vmem:[%s3249 + $0x11] sm:$0x1] %vm76, %v2650
  %s3268 = scalar_lea.vmem %s0, 1023
  %v3269 = vld [vmem:[%s3268] sm:$0x1]
  %s3270 = scalar_lea.vmem %s0, 240
  %v3271 = vld [vmem:[%s3270] sm:$0x1]
  %v3272 = vld [vmem:[%s3270 + $0x1] sm:$0x1]
  %v3273 = vld [vmem:[%s3270 + $0x2] sm:$0x1]
  %v3274 = vld [vmem:[%s3270 + $0x3] sm:$0x1]
  %v3275 = vld [vmem:[%s3270 + $0x4] sm:$0x1]
  %v3276 = vld [vmem:[%s3270 + $0x5] sm:$0x1]
  %v3277 = vld [vmem:[%s3270 + $0x6] sm:$0x1]
  %v3278 = vld [vmem:[%s3270 + $0x7] sm:$0x1]
  %v3279 = vld [vmem:[%s3270 + $0x8] sm:$0x1]
  %v3280 = vld [vmem:[%s3270 + $0x9] sm:$0x1]
  %v3281 = vld [vmem:[%s3270 + $0xa] sm:$0x1]
  %v3282 = vld [vmem:[%s3270 + $0xb] sm:$0x1]
  %v3283 = vld [vmem:[%s3270 + $0xc] sm:$0x1]
  %v3284 = vld [vmem:[%s3270 + $0xd] sm:$0x1]
  %v3285 = vld [vmem:[%s3270 + $0xe] sm:$0x1]
  %v3286 = vld [vmem:[%s3270 + $0xf] sm:$0x1]
  %s3287 = scalar_lea.vmem %s0, 496
  %v3288 = vld [vmem:[%s3287] sm:$0x1]
  %s3289 = scalar_lea.vmem %s0, 1008
  %v3290 = vld [vmem:[%s3289] sm:$0x1]
  %v3291 = vld [vmem:[%s3289 + $0x1] sm:$0x1]
  %v3292 = vld [vmem:[%s3289 + $0x2] sm:$0x1]
  %v3293 = vld [vmem:[%s3289 + $0x3] sm:$0x1]
  %v3294 = vld [vmem:[%s3289 + $0x4] sm:$0x1]
  %v3295 = vld [vmem:[%s3289 + $0x5] sm:$0x1]
  %v3296 = vld [vmem:[%s3289 + $0x6] sm:$0x1]
  %v3297 = vld [vmem:[%s3289 + $0x7] sm:$0x1]
  %v3298 = vld [vmem:[%s3289 + $0x8] sm:$0x1]
  %v3299 = vld [vmem:[%s3289 + $0x9] sm:$0x1]
  %v3300 = vld [vmem:[%s3289 + $0xa] sm:$0x1]
  %v3301 = vld [vmem:[%s3289 + $0xb] sm:$0x1]
  %v3302 = vld [vmem:[%s3289 + $0xc] sm:$0x1]
  %v3303 = vld [vmem:[%s3289 + $0xd] sm:$0x1]
  %v3304 = vld [vmem:[%s3289 + $0xe] sm:$0x1]
  %v3305 = vld [vmem:[%s3289 + $0xf] sm:$0x1]
  %v3306 = vld [vmem:[%s3287 + $0x1] sm:$0x1]
  %v3307 = vld [vmem:[%s3287 + $0x2] sm:$0x1]
  %v3308 = vld [vmem:[%s3287 + $0x3] sm:$0x1]
  %v3309 = vld [vmem:[%s3287 + $0x4] sm:$0x1]
  %v3310 = vld [vmem:[%s3287 + $0x5] sm:$0x1]
  %v3311 = vld [vmem:[%s3287 + $0x6] sm:$0x1]
  %v3312 = vld [vmem:[%s3287 + $0x7] sm:$0x1]
  %v3313 = vld [vmem:[%s3287 + $0x8] sm:$0x1]
  %v3314 = vld [vmem:[%s3287 + $0x9] sm:$0x1]
  %v3315 = vld [vmem:[%s3287 + $0xa] sm:$0x1]
  %v3316 = vld [vmem:[%s3287 + $0xb] sm:$0x1]
  %v3317 = vld [vmem:[%s3287 + $0xc] sm:$0x1]
  %v3318 = vld [vmem:[%s3287 + $0xd] sm:$0x1]
  %v3319 = vld [vmem:[%s3287 + $0xe] sm:$0x1]
  %v3320 = vld [vmem:[%s3287 + $0xf] sm:$0x1]
  %s3321 = scalar_lea.vmem %s0, 752
  %v3322 = vld [vmem:[%s3321] sm:$0x1]
  %v3323 = vld [vmem:[%s3321 + $0x1] sm:$0x1]
  %v3324 = vld [vmem:[%s3321 + $0x2] sm:$0x1]
  %v3325 = vld [vmem:[%s3321 + $0x3] sm:$0x1]
  %v3326 = vld [vmem:[%s3321 + $0x4] sm:$0x1]
  %v3327 = vld [vmem:[%s3321 + $0x5] sm:$0x1]
  %v3328 = vld [vmem:[%s3321 + $0x6] sm:$0x1]
  %v3329 = vld [vmem:[%s3321 + $0x7] sm:$0x1]
  %v3330 = vld [vmem:[%s3321 + $0x8] sm:$0x1]
  %v3331 = vld [vmem:[%s3321 + $0x9] sm:$0x1]
  %v3332 = vld [vmem:[%s3321 + $0xa] sm:$0x1]
  %v3333 = vld [vmem:[%s3321 + $0xb] sm:$0x1]
  %v3334 = vld [vmem:[%s3321 + $0xc] sm:$0x1]
  %v3335 = vld [vmem:[%s3321 + $0xd] sm:$0x1]
  %v3336 = vld [vmem:[%s3321 + $0xe] sm:$0x1]
  %v3337 = vld [vmem:[%s3321 + $0xf] sm:$0x1]
  %s3338 = scalar_lea.vmem %s0, 511
  %v3339 = vld [vmem:[%s3338] sm:$0x1]
  %s3340 = scalar_lea.vmem %s1, 1620
  %3341 = vst.msk [vmem:[%s3340] sm:$0x1] %vm76, %v3269
  %3342 = vst.msk [vmem:[%s3340 + $0x1] sm:$0x1] %vm76, %v3271
  %3343 = vst.msk [vmem:[%s3340 + $0x2] sm:$0x1] %vm76, %v3272
  %3344 = vst.msk [vmem:[%s3340 + $0x3] sm:$0x1] %vm76, %v3273
  %3345 = vst.msk [vmem:[%s3340 + $0x4] sm:$0x1] %vm76, %v3274
  %3346 = vst.msk [vmem:[%s3340 + $0x5] sm:$0x1] %vm76, %v3275
  %3347 = vst.msk [vmem:[%s3340 + $0x6] sm:$0x1] %vm76, %v3276
  %3348 = vst.msk [vmem:[%s3340 + $0x7] sm:$0x1] %vm76, %v3277
  %3349 = vst.msk [vmem:[%s3340 + $0x8] sm:$0x1] %vm76, %v3278
  %3350 = vst.msk [vmem:[%s3340 + $0x9] sm:$0x1] %vm76, %v3279
  %3351 = vst.msk [vmem:[%s3340 + $0xa] sm:$0x1] %vm76, %v3280
  %3352 = vst.msk [vmem:[%s3340 + $0xb] sm:$0x1] %vm76, %v3281
  %3353 = vst.msk [vmem:[%s3340 + $0xc] sm:$0x1] %vm76, %v3282
  %3354 = vst.msk [vmem:[%s3340 + $0xd] sm:$0x1] %vm76, %v3283
  %3355 = vst.msk [vmem:[%s3340 + $0xe] sm:$0x1] %vm76, %v3284
  %3356 = vst.msk [vmem:[%s3340 + $0xf] sm:$0x1] %vm76, %v3285
  %3357 = vst.msk [vmem:[%s3340 + $0x10] sm:$0x1] %vm76, %v3286
  %3358 = vst.msk [vmem:[%s3340 + $0x11] sm:$0x1] %vm76, %v3288
  %s3359 = scalar_lea.vmem %s1, 1638
  %3360 = vst.msk [vmem:[%s3359] sm:$0x1] %vm76, %v3305
  %3361 = vst.msk [vmem:[%s3359 + $0x12] sm:$0x1] %vm76, %v3304
  %3362 = vst.msk [vmem:[%s3359 + $0x24] sm:$0x1] %vm76, %v3303
  %3363 = vst.msk [vmem:[%s3359 + $0x36] sm:$0x1] %vm76, %v3302
  %3364 = vst.msk [vmem:[%s3359 + $0x48] sm:$0x1] %vm76, %v3301
  %3365 = vst.msk [vmem:[%s3359 + $0x5a] sm:$0x1] %vm76, %v3300
  %3366 = vst.msk [vmem:[%s3359 + $0x6c] sm:$0x1] %vm76, %v3299
  %3367 = vst.msk [vmem:[%s3359 + $0x7e] sm:$0x1] %vm76, %v3298
  %3368 = vst.msk [vmem:[%s3359 + $0x90] sm:$0x1] %vm76, %v3297
  %3369 = vst.msk [vmem:[%s3359 + $0xa2] sm:$0x1] %vm76, %v3296
  %3370 = vst.msk [vmem:[%s3359 + $0xb4] sm:$0x1] %vm76, %v3295
  %3371 = vst.msk [vmem:[%s3359 + $0xc6] sm:$0x1] %vm76, %v3294
  %3372 = vst.msk [vmem:[%s3359 + $0xd8] sm:$0x1] %vm76, %v3293
  %3373 = vst.msk [vmem:[%s3359 + $0xea] sm:$0x1] %vm76, %v3292
  %3374 = vst.msk [vmem:[%s3359 + $0xfc] sm:$0x1] %vm76, %v3291
  %3375 = vst.msk [vmem:[%s3359 + $0x10e] sm:$0x1] %vm76, %v3290
  %v3376 = vld [vmem:[%s59] sm:$0x1]
  %v3377 = vld [vmem:[%s59 + $0x1] sm:$0x1]
  %v3378 = vld [vmem:[%s59 + $0x2] sm:$0x1]
  %v3379 = vld [vmem:[%s59 + $0x3] sm:$0x1]
  %v3380 = vld [vmem:[%s59 + $0x4] sm:$0x1]
  %v3381 = vld [vmem:[%s59 + $0x5] sm:$0x1]
  %v3382 = vld [vmem:[%s59 + $0x6] sm:$0x1]
  %v3383 = vld [vmem:[%s59 + $0x7] sm:$0x1]
  %v3384 = vld [vmem:[%s59 + $0x8] sm:$0x1]
  %v3385 = vld [vmem:[%s59 + $0x9] sm:$0x1]
  %v3386 = vld [vmem:[%s59 + $0xa] sm:$0x1]
  %v3387 = vld [vmem:[%s59 + $0xb] sm:$0x1]
  %v3388 = vld [vmem:[%s59 + $0xc] sm:$0x1]
  %v3389 = vld [vmem:[%s59 + $0xd] sm:$0x1]
  %v3390 = vld [vmem:[%s59 + $0xe] sm:$0x1]
  %v3391 = vld [vmem:[%s59 + $0xf] sm:$0x1]
  %v3392 = vld [vmem:[%s59 + $0x10] sm:$0x1]
  %v3393 = vld [vmem:[%s59 + $0x11] sm:$0x1]
  %v3394 = vld [vmem:[%s59 + $0x12] sm:$0x1]
  %v3395 = vld [vmem:[%s59 + $0x13] sm:$0x1]
  %v3396 = vld [vmem:[%s59 + $0x14] sm:$0x1]
  %v3397 = vld [vmem:[%s59 + $0x15] sm:$0x1]
  %v3398 = vld [vmem:[%s59 + $0x16] sm:$0x1]
  %v3399 = vld [vmem:[%s59 + $0x17] sm:$0x1]
  %v3400 = vld [vmem:[%s59 + $0x18] sm:$0x1]
  %v3401 = vld [vmem:[%s59 + $0x19] sm:$0x1]
  %v3402 = vld [vmem:[%s59 + $0x1a] sm:$0x1]
  %v3403 = vld [vmem:[%s59 + $0x1b] sm:$0x1]
  %v3404 = vld [vmem:[%s59 + $0x1c] sm:$0x1]
  %v3405 = vld [vmem:[%s59 + $0x1d] sm:$0x1]
  %v3406 = vld [vmem:[%s59 + $0x1e] sm:$0x1]
  %v3407 = vld [vmem:[%s59 + $0x1f] sm:$0x1]
  %v3408 = vld [vmem:[%s59 + $0x20] sm:$0x1]
  %v3409 = vld [vmem:[%s59 + $0x21] sm:$0x1]
  %v3410 = vld [vmem:[%s59 + $0x22] sm:$0x1]
  %v3411 = vld [vmem:[%s59 + $0x23] sm:$0x1]
  %v3412 = vld [vmem:[%s59 + $0x24] sm:$0x1]
  %v3413 = vld [vmem:[%s59 + $0x25] sm:$0x1]
  %v3414 = vld [vmem:[%s59 + $0x26] sm:$0x1]
  %v3415 = vld [vmem:[%s59 + $0x27] sm:$0x1]
  %v3416 = vld [vmem:[%s59 + $0x28] sm:$0x1]
  %v3417 = vld [vmem:[%s59 + $0x29] sm:$0x1]
  %v3418 = vld [vmem:[%s59 + $0x2a] sm:$0x1]
  %v3419 = vld [vmem:[%s59 + $0x2b] sm:$0x1]
  %v3420 = vld [vmem:[%s59 + $0x2c] sm:$0x1]
  %v3421 = vld [vmem:[%s59 + $0x2d] sm:$0x1]
  %v3422 = vld [vmem:[%s59 + $0x2e] sm:$0x1]
  %v3423 = vld [vmem:[%s59 + $0x2f] sm:$0x1]
  %v3424 = vld [vmem:[%s59 + $0x30] sm:$0x1]
  %v3425 = vld [vmem:[%s59 + $0x31] sm:$0x1]
  %v3426 = vld [vmem:[%s59 + $0x32] sm:$0x1]
  %v3427 = vld [vmem:[%s59 + $0x33] sm:$0x1]
  %v3428 = vld [vmem:[%s59 + $0x34] sm:$0x1]
  %v3429 = vld [vmem:[%s59 + $0x35] sm:$0x1]
  %v3430 = vld [vmem:[%s59 + $0x36] sm:$0x1]
  %v3431 = vld [vmem:[%s59 + $0x37] sm:$0x1]
  %v3432 = vld [vmem:[%s59 + $0x38] sm:$0x1]
  %v3433 = vld [vmem:[%s59 + $0x39] sm:$0x1]
  %v3434 = vld [vmem:[%s59 + $0x3a] sm:$0x1]
  %v3435 = vld [vmem:[%s59 + $0x3b] sm:$0x1]
  %v3436 = vld [vmem:[%s59 + $0x3c] sm:$0x1]
  %v3437 = vld [vmem:[%s59 + $0x3d] sm:$0x1]
  %v3438 = vld [vmem:[%s59 + $0x3e] sm:$0x1]
  %v3439 = vld [vmem:[%s59 + $0x3f] sm:$0x1]
  %v3440 = vld [vmem:[%s59 + $0x40] sm:$0x1]
  %v3441 = vld [vmem:[%s59 + $0x41] sm:$0x1]
  %v3442 = vld [vmem:[%s59 + $0x42] sm:$0x1]
  %v3443 = vld [vmem:[%s59 + $0x43] sm:$0x1]
  %v3444 = vld [vmem:[%s59 + $0x44] sm:$0x1]
  %v3445 = vld [vmem:[%s59 + $0x45] sm:$0x1]
  %v3446 = vld [vmem:[%s59 + $0x46] sm:$0x1]
  %v3447 = vld [vmem:[%s59 + $0x47] sm:$0x1]
  %v3448 = vld [vmem:[%s59 + $0x48] sm:$0x1]
  %v3449 = vld [vmem:[%s59 + $0x49] sm:$0x1]
  %v3450 = vld [vmem:[%s59 + $0x4a] sm:$0x1]
  %v3451 = vld [vmem:[%s59 + $0x4b] sm:$0x1]
  %v3452 = vld [vmem:[%s59 + $0x4c] sm:$0x1]
  %v3453 = vld [vmem:[%s59 + $0x4d] sm:$0x1]
  %v3454 = vld [vmem:[%s59 + $0x4e] sm:$0x1]
  %v3455 = vld [vmem:[%s59 + $0x4f] sm:$0x1]
  %v3456 = vld [vmem:[%s59 + $0x50] sm:$0x1]
  %v3457 = vld [vmem:[%s59 + $0x51] sm:$0x1]
  %v3458 = vld [vmem:[%s59 + $0x52] sm:$0x1]
  %v3459 = vld [vmem:[%s59 + $0x53] sm:$0x1]
  %v3460 = vld [vmem:[%s59 + $0x54] sm:$0x1]
  %v3461 = vld [vmem:[%s59 + $0x55] sm:$0x1]
  %v3462 = vld [vmem:[%s59 + $0x56] sm:$0x1]
  %v3463 = vld [vmem:[%s59 + $0x57] sm:$0x1]
  %v3464 = vld [vmem:[%s59 + $0x58] sm:$0x1]
  %v3465 = vld [vmem:[%s59 + $0x59] sm:$0x1]
  %v3466 = vld [vmem:[%s59 + $0x5a] sm:$0x1]
  %v3467 = vld [vmem:[%s59 + $0x5b] sm:$0x1]
  %v3468 = vld [vmem:[%s59 + $0x5c] sm:$0x1]
  %v3469 = vld [vmem:[%s59 + $0x5d] sm:$0x1]
  %v3470 = vld [vmem:[%s59 + $0x5e] sm:$0x1]
  %v3471 = vld [vmem:[%s59 + $0x5f] sm:$0x1]
  %v3472 = vld [vmem:[%s59 + $0x60] sm:$0x1]
  %v3473 = vld [vmem:[%s59 + $0x61] sm:$0x1]
  %v3474 = vld [vmem:[%s59 + $0x62] sm:$0x1]
  %v3475 = vld [vmem:[%s59 + $0x63] sm:$0x1]
  %v3476 = vld [vmem:[%s59 + $0x64] sm:$0x1]
  %v3477 = vld [vmem:[%s59 + $0x65] sm:$0x1]
  %v3478 = vld [vmem:[%s59 + $0x66] sm:$0x1]
  %v3479 = vld [vmem:[%s59 + $0x67] sm:$0x1]
  %v3480 = vld [vmem:[%s59 + $0x68] sm:$0x1]
  %v3481 = vld [vmem:[%s59 + $0x69] sm:$0x1]
  %v3482 = vld [vmem:[%s59 + $0x6a] sm:$0x1]
  %v3483 = vld [vmem:[%s59 + $0x6b] sm:$0x1]
  %v3484 = vld [vmem:[%s59 + $0x6c] sm:$0x1]
  %v3485 = vld [vmem:[%s59 + $0x6d] sm:$0x1]
  %v3486 = vld [vmem:[%s59 + $0x6e] sm:$0x1]
  %v3487 = vld [vmem:[%s59 + $0x6f] sm:$0x1]
  %v3488 = vld [vmem:[%s59 + $0x70] sm:$0x1]
  %v3489 = vld [vmem:[%s59 + $0x71] sm:$0x1]
  %v3490 = vld [vmem:[%s59 + $0x72] sm:$0x1]
  %v3491 = vld [vmem:[%s59 + $0x73] sm:$0x1]
  %v3492 = vld [vmem:[%s59 + $0x74] sm:$0x1]
  %v3493 = vld [vmem:[%s59 + $0x75] sm:$0x1]
  %v3494 = vld [vmem:[%s59 + $0x76] sm:$0x1]
  %v3495 = vld [vmem:[%s59 + $0x77] sm:$0x1]
  %v3496 = vld [vmem:[%s59 + $0x78] sm:$0x1]
  %v3497 = vld [vmem:[%s59 + $0x79] sm:$0x1]
  %v3498 = vld [vmem:[%s59 + $0x7a] sm:$0x1]
  %v3499 = vld [vmem:[%s59 + $0x7b] sm:$0x1]
  %v3500 = vld [vmem:[%s59 + $0x7c] sm:$0x1]
  %v3501 = vld [vmem:[%s59 + $0x7d] sm:$0x1]
  %v3502 = vld [vmem:[%s59 + $0x7e] sm:$0x1]
  %v3503 = vld [vmem:[%s59 + $0x7f] sm:$0x1]
  %v3504 = vld [vmem:[%s59 + $0x80] sm:$0x1]
  %v3505 = vld [vmem:[%s59 + $0x81] sm:$0x1]
  %v3506 = vld [vmem:[%s59 + $0x82] sm:$0x1]
  %v3507 = vld [vmem:[%s59 + $0x83] sm:$0x1]
  %v3508 = vld [vmem:[%s59 + $0x84] sm:$0x1]
  %v3509 = vld [vmem:[%s59 + $0x85] sm:$0x1]
  %v3510 = vld [vmem:[%s59 + $0x86] sm:$0x1]
  %v3511 = vld [vmem:[%s59 + $0x87] sm:$0x1]
  %v3512 = vld [vmem:[%s59 + $0x88] sm:$0x1]
  %v3513 = vld [vmem:[%s59 + $0x89] sm:$0x1]
  %v3514 = vld [vmem:[%s59 + $0x8a] sm:$0x1]
  %v3515 = vld [vmem:[%s59 + $0x8b] sm:$0x1]
  %v3516 = vld [vmem:[%s59 + $0x8c] sm:$0x1]
  %v3517 = vld [vmem:[%s59 + $0x8d] sm:$0x1]
  %v3518 = vld [vmem:[%s59 + $0x8e] sm:$0x1]
  %v3519 = vld [vmem:[%s59 + $0x8f] sm:$0x1]
  %v3520 = vld [vmem:[%s59 + $0x90] sm:$0x1]
  %v3521 = vld [vmem:[%s59 + $0x91] sm:$0x1]
  %v3522 = vld [vmem:[%s59 + $0x92] sm:$0x1]
  %v3523 = vld [vmem:[%s59 + $0x93] sm:$0x1]
  %v3524 = vld [vmem:[%s59 + $0x94] sm:$0x1]
  %v3525 = vld [vmem:[%s59 + $0x95] sm:$0x1]
  %v3526 = vld [vmem:[%s59 + $0x96] sm:$0x1]
  %v3527 = vld [vmem:[%s59 + $0x97] sm:$0x1]
  %v3528 = vld [vmem:[%s59 + $0x98] sm:$0x1]
  %v3529 = vld [vmem:[%s59 + $0x99] sm:$0x1]
  %v3530 = vld [vmem:[%s59 + $0x9a] sm:$0x1]
  %v3531 = vld [vmem:[%s59 + $0x9b] sm:$0x1]
  %v3532 = vld [vmem:[%s59 + $0x9c] sm:$0x1]
  %v3533 = vld [vmem:[%s59 + $0x9d] sm:$0x1]
  %v3534 = vld [vmem:[%s59 + $0x9e] sm:$0x1]
  %v3535 = vld [vmem:[%s59 + $0x9f] sm:$0x1]
  %v3536 = vld [vmem:[%s59 + $0xa0] sm:$0x1]
  %v3537 = vld [vmem:[%s59 + $0xa1] sm:$0x1]
  %v3538 = vld [vmem:[%s59 + $0xa2] sm:$0x1]
  %v3539 = vld [vmem:[%s59 + $0xa3] sm:$0x1]
  %v3540 = vld [vmem:[%s59 + $0xa4] sm:$0x1]
  %v3541 = vld [vmem:[%s59 + $0xa5] sm:$0x1]
  %v3542 = vld [vmem:[%s59 + $0xa6] sm:$0x1]
  %v3543 = vld [vmem:[%s59 + $0xa7] sm:$0x1]
  %v3544 = vld [vmem:[%s59 + $0xa8] sm:$0x1]
  %v3545 = vld [vmem:[%s59 + $0xa9] sm:$0x1]
  %v3546 = vld [vmem:[%s59 + $0xaa] sm:$0x1]
  %v3547 = vld [vmem:[%s59 + $0xab] sm:$0x1]
  %v3548 = vld [vmem:[%s59 + $0xac] sm:$0x1]
  %v3549 = vld [vmem:[%s59 + $0xad] sm:$0x1]
  %v3550 = vld [vmem:[%s59 + $0xae] sm:$0x1]
  %v3551 = vld [vmem:[%s59 + $0xaf] sm:$0x1]
  %v3552 = vld [vmem:[%s59 + $0xb0] sm:$0x1]
  %v3553 = vld [vmem:[%s59 + $0xb1] sm:$0x1]
  %v3554 = vld [vmem:[%s59 + $0xb2] sm:$0x1]
  %v3555 = vld [vmem:[%s59 + $0xb3] sm:$0x1]
  %v3556 = vld [vmem:[%s59 + $0xb4] sm:$0x1]
  %v3557 = vld [vmem:[%s59 + $0xb5] sm:$0x1]
  %v3558 = vld [vmem:[%s59 + $0xb6] sm:$0x1]
  %v3559 = vld [vmem:[%s59 + $0xb7] sm:$0x1]
  %v3560 = vld [vmem:[%s59 + $0xb8] sm:$0x1]
  %v3561 = vld [vmem:[%s59 + $0xb9] sm:$0x1]
  %v3562 = vld [vmem:[%s59 + $0xba] sm:$0x1]
  %v3563 = vld [vmem:[%s59 + $0xbb] sm:$0x1]
  %v3564 = vld [vmem:[%s59 + $0xbc] sm:$0x1]
  %v3565 = vld [vmem:[%s59 + $0xbd] sm:$0x1]
  %v3566 = vld [vmem:[%s59 + $0xbe] sm:$0x1]
  %v3567 = vld [vmem:[%s59 + $0xbf] sm:$0x1]
  %v3568 = vld [vmem:[%s59 + $0xc0] sm:$0x1]
  %v3569 = vld [vmem:[%s59 + $0xc1] sm:$0x1]
  %v3570 = vld [vmem:[%s59 + $0xc2] sm:$0x1]
  %v3571 = vld [vmem:[%s59 + $0xc3] sm:$0x1]
  %v3572 = vld [vmem:[%s59 + $0xc4] sm:$0x1]
  %v3573 = vld [vmem:[%s59 + $0xc5] sm:$0x1]
  %v3574 = vld [vmem:[%s59 + $0xc6] sm:$0x1]
  %v3575 = vld [vmem:[%s59 + $0xc7] sm:$0x1]
  %v3576 = vld [vmem:[%s59 + $0xc8] sm:$0x1]
  %v3577 = vld [vmem:[%s59 + $0xc9] sm:$0x1]
  %v3578 = vld [vmem:[%s59 + $0xca] sm:$0x1]
  %v3579 = vld [vmem:[%s59 + $0xcb] sm:$0x1]
  %v3580 = vld [vmem:[%s59 + $0xcc] sm:$0x1]
  %v3581 = vld [vmem:[%s59 + $0xcd] sm:$0x1]
  %v3582 = vld [vmem:[%s59 + $0xce] sm:$0x1]
  %v3583 = vld [vmem:[%s59 + $0xcf] sm:$0x1]
  %v3584 = vld [vmem:[%s59 + $0xd0] sm:$0x1]
  %v3585 = vld [vmem:[%s59 + $0xd1] sm:$0x1]
  %v3586 = vld [vmem:[%s59 + $0xd2] sm:$0x1]
  %v3587 = vld [vmem:[%s59 + $0xd3] sm:$0x1]
  %v3588 = vld [vmem:[%s59 + $0xd4] sm:$0x1]
  %v3589 = vld [vmem:[%s59 + $0xd5] sm:$0x1]
  %v3590 = vld [vmem:[%s59 + $0xd6] sm:$0x1]
  %v3591 = vld [vmem:[%s59 + $0xd7] sm:$0x1]
  %v3592 = vld [vmem:[%s59 + $0xd8] sm:$0x1]
  %v3593 = vld [vmem:[%s59 + $0xd9] sm:$0x1]
  %v3594 = vld [vmem:[%s59 + $0xda] sm:$0x1]
  %v3595 = vld [vmem:[%s59 + $0xdb] sm:$0x1]
  %v3596 = vld [vmem:[%s59 + $0xdc] sm:$0x1]
  %v3597 = vld [vmem:[%s59 + $0xdd] sm:$0x1]
  %v3598 = vld [vmem:[%s59 + $0xde] sm:$0x1]
  %v3599 = vld [vmem:[%s59 + $0xdf] sm:$0x1]
  %v3600 = vld [vmem:[%s59 + $0xe0] sm:$0x1]
  %v3601 = vld [vmem:[%s59 + $0xe1] sm:$0x1]
  %v3602 = vld [vmem:[%s59 + $0xe2] sm:$0x1]
  %v3603 = vld [vmem:[%s59 + $0xe3] sm:$0x1]
  %v3604 = vld [vmem:[%s59 + $0xe4] sm:$0x1]
  %v3605 = vld [vmem:[%s59 + $0xe5] sm:$0x1]
  %v3606 = vld [vmem:[%s59 + $0xe6] sm:$0x1]
  %v3607 = vld [vmem:[%s59 + $0xe7] sm:$0x1]
  %v3608 = vld [vmem:[%s59 + $0xe8] sm:$0x1]
  %v3609 = vld [vmem:[%s59 + $0xe9] sm:$0x1]
  %v3610 = vld [vmem:[%s59 + $0xea] sm:$0x1]
  %v3611 = vld [vmem:[%s59 + $0xeb] sm:$0x1]
  %v3612 = vld [vmem:[%s59 + $0xec] sm:$0x1]
  %v3613 = vld [vmem:[%s59 + $0xed] sm:$0x1]
  %v3614 = vld [vmem:[%s59 + $0xee] sm:$0x1]
  %v3615 = vld [vmem:[%s59 + $0xef] sm:$0x1]
  %v3616 = vld [vmem:[%s59 + $0xf0] sm:$0x1]
  %v3617 = vld [vmem:[%s59 + $0xf1] sm:$0x1]
  %v3618 = vld [vmem:[%s59 + $0xf2] sm:$0x1]
  %v3619 = vld [vmem:[%s59 + $0xf3] sm:$0x1]
  %v3620 = vld [vmem:[%s59 + $0xf4] sm:$0x1]
  %v3621 = vld [vmem:[%s59 + $0xf5] sm:$0x1]
  %v3622 = vld [vmem:[%s59 + $0xf6] sm:$0x1]
  %v3623 = vld [vmem:[%s59 + $0xf7] sm:$0x1]
  %v3624 = vld [vmem:[%s59 + $0xf8] sm:$0x1]
  %v3625 = vld [vmem:[%s59 + $0xf9] sm:$0x1]
  %v3626 = vld [vmem:[%s59 + $0xfa] sm:$0x1]
  %v3627 = vld [vmem:[%s59 + $0xfb] sm:$0x1]
  %v3628 = vld [vmem:[%s59 + $0xfc] sm:$0x1]
  %v3629 = vld [vmem:[%s59 + $0xfd] sm:$0x1]
  %v3630 = vld [vmem:[%s59 + $0xfe] sm:$0x1]
  %v3631 = vld [vmem:[%s59 + $0xff] sm:$0x1]
  %s3632 = scalar_lea.vmem %s1, 1639
  %3633 = vst.msk [vmem:[%s3632] sm:$0x1] %vm76, %v3376
  %3634 = vst.msk [vmem:[%s3632 + $0x1] sm:$0x1] %vm76, %v3377
  %3635 = vst.msk [vmem:[%s3632 + $0x2] sm:$0x1] %vm76, %v3378
  %3636 = vst.msk [vmem:[%s3632 + $0x3] sm:$0x1] %vm76, %v3379
  %3637 = vst.msk [vmem:[%s3632 + $0x4] sm:$0x1] %vm76, %v3380
  %3638 = vst.msk [vmem:[%s3632 + $0x5] sm:$0x1] %vm76, %v3381
  %3639 = vst.msk [vmem:[%s3632 + $0x6] sm:$0x1] %vm76, %v3382
  %3640 = vst.msk [vmem:[%s3632 + $0x7] sm:$0x1] %vm76, %v3383
  %3641 = vst.msk [vmem:[%s3632 + $0x8] sm:$0x1] %vm76, %v3384
  %3642 = vst.msk [vmem:[%s3632 + $0x9] sm:$0x1] %vm76, %v3385
  %3643 = vst.msk [vmem:[%s3632 + $0xa] sm:$0x1] %vm76, %v3386
  %3644 = vst.msk [vmem:[%s3632 + $0xb] sm:$0x1] %vm76, %v3387
  %3645 = vst.msk [vmem:[%s3632 + $0xc] sm:$0x1] %vm76, %v3388
  %3646 = vst.msk [vmem:[%s3632 + $0xd] sm:$0x1] %vm76, %v3389
  %3647 = vst.msk [vmem:[%s3632 + $0xe] sm:$0x1] %vm76, %v3390
  %3648 = vst.msk [vmem:[%s3632 + $0xf] sm:$0x1] %vm76, %v3391
  %3649 = vst.msk [vmem:[%s3632 + $0x12] sm:$0x1] %vm76, %v3392
  %3650 = vst.msk [vmem:[%s3632 + $0x13] sm:$0x1] %vm76, %v3393
  %3651 = vst.msk [vmem:[%s3632 + $0x14] sm:$0x1] %vm76, %v3394
  %3652 = vst.msk [vmem:[%s3632 + $0x15] sm:$0x1] %vm76, %v3395
  %3653 = vst.msk [vmem:[%s3632 + $0x16] sm:$0x1] %vm76, %v3396
  %3654 = vst.msk [vmem:[%s3632 + $0x17] sm:$0x1] %vm76, %v3397
  %3655 = vst.msk [vmem:[%s3632 + $0x18] sm:$0x1] %vm76, %v3398
  %3656 = vst.msk [vmem:[%s3632 + $0x19] sm:$0x1] %vm76, %v3399
  %3657 = vst.msk [vmem:[%s3632 + $0x1a] sm:$0x1] %vm76, %v3400
  %3658 = vst.msk [vmem:[%s3632 + $0x1b] sm:$0x1] %vm76, %v3401
  %3659 = vst.msk [vmem:[%s3632 + $0x1c] sm:$0x1] %vm76, %v3402
  %3660 = vst.msk [vmem:[%s3632 + $0x1d] sm:$0x1] %vm76, %v3403
  %3661 = vst.msk [vmem:[%s3632 + $0x1e] sm:$0x1] %vm76, %v3404
  %3662 = vst.msk [vmem:[%s3632 + $0x1f] sm:$0x1] %vm76, %v3405
  %3663 = vst.msk [vmem:[%s3632 + $0x20] sm:$0x1] %vm76, %v3406
  %3664 = vst.msk [vmem:[%s3632 + $0x21] sm:$0x1] %vm76, %v3407
  %3665 = vst.msk [vmem:[%s3632 + $0x24] sm:$0x1] %vm76, %v3408
  %3666 = vst.msk [vmem:[%s3632 + $0x25] sm:$0x1] %vm76, %v3409
  %3667 = vst.msk [vmem:[%s3632 + $0x26] sm:$0x1] %vm76, %v3410
  %3668 = vst.msk [vmem:[%s3632 + $0x27] sm:$0x1] %vm76, %v3411
  %3669 = vst.msk [vmem:[%s3632 + $0x28] sm:$0x1] %vm76, %v3412
  %3670 = vst.msk [vmem:[%s3632 + $0x29] sm:$0x1] %vm76, %v3413
  %3671 = vst.msk [vmem:[%s3632 + $0x2a] sm:$0x1] %vm76, %v3414
  %3672 = vst.msk [vmem:[%s3632 + $0x2b] sm:$0x1] %vm76, %v3415
  %3673 = vst.msk [vmem:[%s3632 + $0x2c] sm:$0x1] %vm76, %v3416
  %3674 = vst.msk [vmem:[%s3632 + $0x2d] sm:$0x1] %vm76, %v3417
  %3675 = vst.msk [vmem:[%s3632 + $0x2e] sm:$0x1] %vm76, %v3418
  %3676 = vst.msk [vmem:[%s3632 + $0x2f] sm:$0x1] %vm76, %v3419
  %3677 = vst.msk [vmem:[%s3632 + $0x30] sm:$0x1] %vm76, %v3420
  %3678 = vst.msk [vmem:[%s3632 + $0x31] sm:$0x1] %vm76, %v3421
  %3679 = vst.msk [vmem:[%s3632 + $0x32] sm:$0x1] %vm76, %v3422
  %3680 = vst.msk [vmem:[%s3632 + $0x33] sm:$0x1] %vm76, %v3423
  %3681 = vst.msk [vmem:[%s3632 + $0x36] sm:$0x1] %vm76, %v3424
  %3682 = vst.msk [vmem:[%s3632 + $0x37] sm:$0x1] %vm76, %v3425
  %3683 = vst.msk [vmem:[%s3632 + $0x38] sm:$0x1] %vm76, %v3426
  %3684 = vst.msk [vmem:[%s3632 + $0x39] sm:$0x1] %vm76, %v3427
  %3685 = vst.msk [vmem:[%s3632 + $0x3a] sm:$0x1] %vm76, %v3428
  %3686 = vst.msk [vmem:[%s3632 + $0x3b] sm:$0x1] %vm76, %v3429
  %3687 = vst.msk [vmem:[%s3632 + $0x3c] sm:$0x1] %vm76, %v3430
  %3688 = vst.msk [vmem:[%s3632 + $0x3d] sm:$0x1] %vm76, %v3431
  %3689 = vst.msk [vmem:[%s3632 + $0x3e] sm:$0x1] %vm76, %v3432
  %3690 = vst.msk [vmem:[%s3632 + $0x3f] sm:$0x1] %vm76, %v3433
  %3691 = vst.msk [vmem:[%s3632 + $0x40] sm:$0x1] %vm76, %v3434
  %3692 = vst.msk [vmem:[%s3632 + $0x41] sm:$0x1] %vm76, %v3435
  %3693 = vst.msk [vmem:[%s3632 + $0x42] sm:$0x1] %vm76, %v3436
  %3694 = vst.msk [vmem:[%s3632 + $0x43] sm:$0x1] %vm76, %v3437
  %3695 = vst.msk [vmem:[%s3632 + $0x44] sm:$0x1] %vm76, %v3438
  %3696 = vst.msk [vmem:[%s3632 + $0x45] sm:$0x1] %vm76, %v3439
  %3697 = vst.msk [vmem:[%s3632 + $0x48] sm:$0x1] %vm76, %v3440
  %3698 = vst.msk [vmem:[%s3632 + $0x49] sm:$0x1] %vm76, %v3441
  %3699 = vst.msk [vmem:[%s3632 + $0x4a] sm:$0x1] %vm76, %v3442
  %3700 = vst.msk [vmem:[%s3632 + $0x4b] sm:$0x1] %vm76, %v3443
  %3701 = vst.msk [vmem:[%s3632 + $0x4c] sm:$0x1] %vm76, %v3444
  %3702 = vst.msk [vmem:[%s3632 + $0x4d] sm:$0x1] %vm76, %v3445
  %3703 = vst.msk [vmem:[%s3632 + $0x4e] sm:$0x1] %vm76, %v3446
  %3704 = vst.msk [vmem:[%s3632 + $0x4f] sm:$0x1] %vm76, %v3447
  %3705 = vst.msk [vmem:[%s3632 + $0x50] sm:$0x1] %vm76, %v3448
  %3706 = vst.msk [vmem:[%s3632 + $0x51] sm:$0x1] %vm76, %v3449
  %3707 = vst.msk [vmem:[%s3632 + $0x52] sm:$0x1] %vm76, %v3450
  %3708 = vst.msk [vmem:[%s3632 + $0x53] sm:$0x1] %vm76, %v3451
  %3709 = vst.msk [vmem:[%s3632 + $0x54] sm:$0x1] %vm76, %v3452
  %3710 = vst.msk [vmem:[%s3632 + $0x55] sm:$0x1] %vm76, %v3453
  %3711 = vst.msk [vmem:[%s3632 + $0x56] sm:$0x1] %vm76, %v3454
  %3712 = vst.msk [vmem:[%s3632 + $0x57] sm:$0x1] %vm76, %v3455
  %3713 = vst.msk [vmem:[%s3632 + $0x5a] sm:$0x1] %vm76, %v3456
  %3714 = vst.msk [vmem:[%s3632 + $0x5b] sm:$0x1] %vm76, %v3457
  %3715 = vst.msk [vmem:[%s3632 + $0x5c] sm:$0x1] %vm76, %v3458
  %3716 = vst.msk [vmem:[%s3632 + $0x5d] sm:$0x1] %vm76, %v3459
  %3717 = vst.msk [vmem:[%s3632 + $0x5e] sm:$0x1] %vm76, %v3460
  %3718 = vst.msk [vmem:[%s3632 + $0x5f] sm:$0x1] %vm76, %v3461
  %3719 = vst.msk [vmem:[%s3632 + $0x60] sm:$0x1] %vm76, %v3462
  %3720 = vst.msk [vmem:[%s3632 + $0x61] sm:$0x1] %vm76, %v3463
  %3721 = vst.msk [vmem:[%s3632 + $0x62] sm:$0x1] %vm76, %v3464
  %3722 = vst.msk [vmem:[%s3632 + $0x63] sm:$0x1] %vm76, %v3465
  %3723 = vst.msk [vmem:[%s3632 + $0x64] sm:$0x1] %vm76, %v3466
  %3724 = vst.msk [vmem:[%s3632 + $0x65] sm:$0x1] %vm76, %v3467
  %3725 = vst.msk [vmem:[%s3632 + $0x66] sm:$0x1] %vm76, %v3468
  %3726 = vst.msk [vmem:[%s3632 + $0x67] sm:$0x1] %vm76, %v3469
  %3727 = vst.msk [vmem:[%s3632 + $0x68] sm:$0x1] %vm76, %v3470
  %3728 = vst.msk [vmem:[%s3632 + $0x69] sm:$0x1] %vm76, %v3471
  %3729 = vst.msk [vmem:[%s3632 + $0x6c] sm:$0x1] %vm76, %v3472
  %3730 = vst.msk [vmem:[%s3632 + $0x6d] sm:$0x1] %vm76, %v3473
  %3731 = vst.msk [vmem:[%s3632 + $0x6e] sm:$0x1] %vm76, %v3474
  %3732 = vst.msk [vmem:[%s3632 + $0x6f] sm:$0x1] %vm76, %v3475
  %3733 = vst.msk [vmem:[%s3632 + $0x70] sm:$0x1] %vm76, %v3476
  %3734 = vst.msk [vmem:[%s3632 + $0x71] sm:$0x1] %vm76, %v3477
  %3735 = vst.msk [vmem:[%s3632 + $0x72] sm:$0x1] %vm76, %v3478
  %3736 = vst.msk [vmem:[%s3632 + $0x73] sm:$0x1] %vm76, %v3479
  %3737 = vst.msk [vmem:[%s3632 + $0x74] sm:$0x1] %vm76, %v3480
  %3738 = vst.msk [vmem:[%s3632 + $0x75] sm:$0x1] %vm76, %v3481
  %3739 = vst.msk [vmem:[%s3632 + $0x76] sm:$0x1] %vm76, %v3482
  %3740 = vst.msk [vmem:[%s3632 + $0x77] sm:$0x1] %vm76, %v3483
  %3741 = vst.msk [vmem:[%s3632 + $0x78] sm:$0x1] %vm76, %v3484
  %3742 = vst.msk [vmem:[%s3632 + $0x79] sm:$0x1] %vm76, %v3485
  %3743 = vst.msk [vmem:[%s3632 + $0x7a] sm:$0x1] %vm76, %v3486
  %3744 = vst.msk [vmem:[%s3632 + $0x7b] sm:$0x1] %vm76, %v3487
  %3745 = vst.msk [vmem:[%s3632 + $0x7e] sm:$0x1] %vm76, %v3488
  %3746 = vst.msk [vmem:[%s3632 + $0x7f] sm:$0x1] %vm76, %v3489
  %3747 = vst.msk [vmem:[%s3632 + $0x80] sm:$0x1] %vm76, %v3490
  %3748 = vst.msk [vmem:[%s3632 + $0x81] sm:$0x1] %vm76, %v3491
  %3749 = vst.msk [vmem:[%s3632 + $0x82] sm:$0x1] %vm76, %v3492
  %3750 = vst.msk [vmem:[%s3632 + $0x83] sm:$0x1] %vm76, %v3493
  %3751 = vst.msk [vmem:[%s3632 + $0x84] sm:$0x1] %vm76, %v3494
  %3752 = vst.msk [vmem:[%s3632 + $0x85] sm:$0x1] %vm76, %v3495
  %3753 = vst.msk [vmem:[%s3632 + $0x86] sm:$0x1] %vm76, %v3496
  %3754 = vst.msk [vmem:[%s3632 + $0x87] sm:$0x1] %vm76, %v3497
  %3755 = vst.msk [vmem:[%s3632 + $0x88] sm:$0x1] %vm76, %v3498
  %3756 = vst.msk [vmem:[%s3632 + $0x89] sm:$0x1] %vm76, %v3499
  %3757 = vst.msk [vmem:[%s3632 + $0x8a] sm:$0x1] %vm76, %v3500
  %3758 = vst.msk [vmem:[%s3632 + $0x8b] sm:$0x1] %vm76, %v3501
  %3759 = vst.msk [vmem:[%s3632 + $0x8c] sm:$0x1] %vm76, %v3502
  %3760 = vst.msk [vmem:[%s3632 + $0x8d] sm:$0x1] %vm76, %v3503
  %3761 = vst.msk [vmem:[%s3632 + $0x90] sm:$0x1] %vm76, %v3504
  %3762 = vst.msk [vmem:[%s3632 + $0x91] sm:$0x1] %vm76, %v3505
  %3763 = vst.msk [vmem:[%s3632 + $0x92] sm:$0x1] %vm76, %v3506
  %3764 = vst.msk [vmem:[%s3632 + $0x93] sm:$0x1] %vm76, %v3507
  %3765 = vst.msk [vmem:[%s3632 + $0x94] sm:$0x1] %vm76, %v3508
  %3766 = vst.msk [vmem:[%s3632 + $0x95] sm:$0x1] %vm76, %v3509
  %3767 = vst.msk [vmem:[%s3632 + $0x96] sm:$0x1] %vm76, %v3510
  %3768 = vst.msk [vmem:[%s3632 + $0x97] sm:$0x1] %vm76, %v3511
  %3769 = vst.msk [vmem:[%s3632 + $0x98] sm:$0x1] %vm76, %v3512
  %3770 = vst.msk [vmem:[%s3632 + $0x99] sm:$0x1] %vm76, %v3513
  %3771 = vst.msk [vmem:[%s3632 + $0x9a] sm:$0x1] %vm76, %v3514
  %3772 = vst.msk [vmem:[%s3632 + $0x9b] sm:$0x1] %vm76, %v3515
  %3773 = vst.msk [vmem:[%s3632 + $0x9c] sm:$0x1] %vm76, %v3516
  %3774 = vst.msk [vmem:[%s3632 + $0x9d] sm:$0x1] %vm76, %v3517
  %3775 = vst.msk [vmem:[%s3632 + $0x9e] sm:$0x1] %vm76, %v3518
  %3776 = vst.msk [vmem:[%s3632 + $0x9f] sm:$0x1] %vm76, %v3519
  %3777 = vst.msk [vmem:[%s3632 + $0xa2] sm:$0x1] %vm76, %v3520
  %3778 = vst.msk [vmem:[%s3632 + $0xa3] sm:$0x1] %vm76, %v3521
  %3779 = vst.msk [vmem:[%s3632 + $0xa4] sm:$0x1] %vm76, %v3522
  %3780 = vst.msk [vmem:[%s3632 + $0xa5] sm:$0x1] %vm76, %v3523
  %3781 = vst.msk [vmem:[%s3632 + $0xa6] sm:$0x1] %vm76, %v3524
  %3782 = vst.msk [vmem:[%s3632 + $0xa7] sm:$0x1] %vm76, %v3525
  %3783 = vst.msk [vmem:[%s3632 + $0xa8] sm:$0x1] %vm76, %v3526
  %3784 = vst.msk [vmem:[%s3632 + $0xa9] sm:$0x1] %vm76, %v3527
  %3785 = vst.msk [vmem:[%s3632 + $0xaa] sm:$0x1] %vm76, %v3528
  %3786 = vst.msk [vmem:[%s3632 + $0xab] sm:$0x1] %vm76, %v3529
  %3787 = vst.msk [vmem:[%s3632 + $0xac] sm:$0x1] %vm76, %v3530
  %3788 = vst.msk [vmem:[%s3632 + $0xad] sm:$0x1] %vm76, %v3531
  %3789 = vst.msk [vmem:[%s3632 + $0xae] sm:$0x1] %vm76, %v3532
  %3790 = vst.msk [vmem:[%s3632 + $0xaf] sm:$0x1] %vm76, %v3533
  %3791 = vst.msk [vmem:[%s3632 + $0xb0] sm:$0x1] %vm76, %v3534
  %3792 = vst.msk [vmem:[%s3632 + $0xb1] sm:$0x1] %vm76, %v3535
  %3793 = vst.msk [vmem:[%s3632 + $0xb4] sm:$0x1] %vm76, %v3536
  %3794 = vst.msk [vmem:[%s3632 + $0xb5] sm:$0x1] %vm76, %v3537
  %3795 = vst.msk [vmem:[%s3632 + $0xb6] sm:$0x1] %vm76, %v3538
  %3796 = vst.msk [vmem:[%s3632 + $0xb7] sm:$0x1] %vm76, %v3539
  %3797 = vst.msk [vmem:[%s3632 + $0xb8] sm:$0x1] %vm76, %v3540
  %3798 = vst.msk [vmem:[%s3632 + $0xb9] sm:$0x1] %vm76, %v3541
  %3799 = vst.msk [vmem:[%s3632 + $0xba] sm:$0x1] %vm76, %v3542
  %3800 = vst.msk [vmem:[%s3632 + $0xbb] sm:$0x1] %vm76, %v3543
  %3801 = vst.msk [vmem:[%s3632 + $0xbc] sm:$0x1] %vm76, %v3544
  %3802 = vst.msk [vmem:[%s3632 + $0xbd] sm:$0x1] %vm76, %v3545
  %3803 = vst.msk [vmem:[%s3632 + $0xbe] sm:$0x1] %vm76, %v3546
  %3804 = vst.msk [vmem:[%s3632 + $0xbf] sm:$0x1] %vm76, %v3547
  %3805 = vst.msk [vmem:[%s3632 + $0xc0] sm:$0x1] %vm76, %v3548
  %3806 = vst.msk [vmem:[%s3632 + $0xc1] sm:$0x1] %vm76, %v3549
  %3807 = vst.msk [vmem:[%s3632 + $0xc2] sm:$0x1] %vm76, %v3550
  %3808 = vst.msk [vmem:[%s3632 + $0xc3] sm:$0x1] %vm76, %v3551
  %3809 = vst.msk [vmem:[%s3632 + $0xc6] sm:$0x1] %vm76, %v3552
  %3810 = vst.msk [vmem:[%s3632 + $0xc7] sm:$0x1] %vm76, %v3553
  %3811 = vst.msk [vmem:[%s3632 + $0xc8] sm:$0x1] %vm76, %v3554
  %3812 = vst.msk [vmem:[%s3632 + $0xc9] sm:$0x1] %vm76, %v3555
  %3813 = vst.msk [vmem:[%s3632 + $0xca] sm:$0x1] %vm76, %v3556
  %3814 = vst.msk [vmem:[%s3632 + $0xcb] sm:$0x1] %vm76, %v3557
  %3815 = vst.msk [vmem:[%s3632 + $0xcc] sm:$0x1] %vm76, %v3558
  %3816 = vst.msk [vmem:[%s3632 + $0xcd] sm:$0x1] %vm76, %v3559
  %3817 = vst.msk [vmem:[%s3632 + $0xce] sm:$0x1] %vm76, %v3560
  %3818 = vst.msk [vmem:[%s3632 + $0xcf] sm:$0x1] %vm76, %v3561
  %3819 = vst.msk [vmem:[%s3632 + $0xd0] sm:$0x1] %vm76, %v3562
  %3820 = vst.msk [vmem:[%s3632 + $0xd1] sm:$0x1] %vm76, %v3563
  %3821 = vst.msk [vmem:[%s3632 + $0xd2] sm:$0x1] %vm76, %v3564
  %3822 = vst.msk [vmem:[%s3632 + $0xd3] sm:$0x1] %vm76, %v3565
  %3823 = vst.msk [vmem:[%s3632 + $0xd4] sm:$0x1] %vm76, %v3566
  %3824 = vst.msk [vmem:[%s3632 + $0xd5] sm:$0x1] %vm76, %v3567
  %3825 = vst.msk [vmem:[%s3632 + $0xd8] sm:$0x1] %vm76, %v3568
  %3826 = vst.msk [vmem:[%s3632 + $0xd9] sm:$0x1] %vm76, %v3569
  %3827 = vst.msk [vmem:[%s3632 + $0xda] sm:$0x1] %vm76, %v3570
  %3828 = vst.msk [vmem:[%s3632 + $0xdb] sm:$0x1] %vm76, %v3571
  %3829 = vst.msk [vmem:[%s3632 + $0xdc] sm:$0x1] %vm76, %v3572
  %3830 = vst.msk [vmem:[%s3632 + $0xdd] sm:$0x1] %vm76, %v3573
  %3831 = vst.msk [vmem:[%s3632 + $0xde] sm:$0x1] %vm76, %v3574
  %3832 = vst.msk [vmem:[%s3632 + $0xdf] sm:$0x1] %vm76, %v3575
  %3833 = vst.msk [vmem:[%s3632 + $0xe0] sm:$0x1] %vm76, %v3576
  %3834 = vst.msk [vmem:[%s3632 + $0xe1] sm:$0x1] %vm76, %v3577
  %3835 = vst.msk [vmem:[%s3632 + $0xe2] sm:$0x1] %vm76, %v3578
  %3836 = vst.msk [vmem:[%s3632 + $0xe3] sm:$0x1] %vm76, %v3579
  %3837 = vst.msk [vmem:[%s3632 + $0xe4] sm:$0x1] %vm76, %v3580
  %3838 = vst.msk [vmem:[%s3632 + $0xe5] sm:$0x1] %vm76, %v3581
  %3839 = vst.msk [vmem:[%s3632 + $0xe6] sm:$0x1] %vm76, %v3582
  %3840 = vst.msk [vmem:[%s3632 + $0xe7] sm:$0x1] %vm76, %v3583
  %3841 = vst.msk [vmem:[%s3632 + $0xea] sm:$0x1] %vm76, %v3584
  %3842 = vst.msk [vmem:[%s3632 + $0xeb] sm:$0x1] %vm76, %v3585
  %3843 = vst.msk [vmem:[%s3632 + $0xec] sm:$0x1] %vm76, %v3586
  %3844 = vst.msk [vmem:[%s3632 + $0xed] sm:$0x1] %vm76, %v3587
  %3845 = vst.msk [vmem:[%s3632 + $0xee] sm:$0x1] %vm76, %v3588
  %3846 = vst.msk [vmem:[%s3632 + $0xef] sm:$0x1] %vm76, %v3589
  %3847 = vst.msk [vmem:[%s3632 + $0xf0] sm:$0x1] %vm76, %v3590
  %3848 = vst.msk [vmem:[%s3632 + $0xf1] sm:$0x1] %vm76, %v3591
  %3849 = vst.msk [vmem:[%s3632 + $0xf2] sm:$0x1] %vm76, %v3592
  %3850 = vst.msk [vmem:[%s3632 + $0xf3] sm:$0x1] %vm76, %v3593
  %3851 = vst.msk [vmem:[%s3632 + $0xf4] sm:$0x1] %vm76, %v3594
  %3852 = vst.msk [vmem:[%s3632 + $0xf5] sm:$0x1] %vm76, %v3595
  %3853 = vst.msk [vmem:[%s3632 + $0xf6] sm:$0x1] %vm76, %v3596
  %3854 = vst.msk [vmem:[%s3632 + $0xf7] sm:$0x1] %vm76, %v3597
  %3855 = vst.msk [vmem:[%s3632 + $0xf8] sm:$0x1] %vm76, %v3598
  %3856 = vst.msk [vmem:[%s3632 + $0xf9] sm:$0x1] %vm76, %v3599
  %3857 = vst.msk [vmem:[%s3632 + $0xfc] sm:$0x1] %vm76, %v3600
  %3858 = vst.msk [vmem:[%s3632 + $0xfd] sm:$0x1] %vm76, %v3601
  %3859 = vst.msk [vmem:[%s3632 + $0xfe] sm:$0x1] %vm76, %v3602
  %3860 = vst.msk [vmem:[%s3632 + $0xff] sm:$0x1] %vm76, %v3603
  %3861 = vst.msk [vmem:[%s3632 + $0x100] sm:$0x1] %vm76, %v3604
  %3862 = vst.msk [vmem:[%s3632 + $0x101] sm:$0x1] %vm76, %v3605
  %3863 = vst.msk [vmem:[%s3632 + $0x102] sm:$0x1] %vm76, %v3606
  %3864 = vst.msk [vmem:[%s3632 + $0x103] sm:$0x1] %vm76, %v3607
  %3865 = vst.msk [vmem:[%s3632 + $0x104] sm:$0x1] %vm76, %v3608
  %3866 = vst.msk [vmem:[%s3632 + $0x105] sm:$0x1] %vm76, %v3609
  %3867 = vst.msk [vmem:[%s3632 + $0x106] sm:$0x1] %vm76, %v3610
  %3868 = vst.msk [vmem:[%s3632 + $0x107] sm:$0x1] %vm76, %v3611
  %3869 = vst.msk [vmem:[%s3632 + $0x108] sm:$0x1] %vm76, %v3612
  %3870 = vst.msk [vmem:[%s3632 + $0x109] sm:$0x1] %vm76, %v3613
  %3871 = vst.msk [vmem:[%s3632 + $0x10a] sm:$0x1] %vm76, %v3614
  %3872 = vst.msk [vmem:[%s3632 + $0x10b] sm:$0x1] %vm76, %v3615
  %3873 = vst.msk [vmem:[%s3632 + $0x10e] sm:$0x1] %vm76, %v3616
  %3874 = vst.msk [vmem:[%s3632 + $0x10f] sm:$0x1] %vm76, %v3617
  %3875 = vst.msk [vmem:[%s3632 + $0x110] sm:$0x1] %vm76, %v3618
  %3876 = vst.msk [vmem:[%s3632 + $0x111] sm:$0x1] %vm76, %v3619
  %3877 = vst.msk [vmem:[%s3632 + $0x112] sm:$0x1] %vm76, %v3620
  %3878 = vst.msk [vmem:[%s3632 + $0x113] sm:$0x1] %vm76, %v3621
  %3879 = vst.msk [vmem:[%s3632 + $0x114] sm:$0x1] %vm76, %v3622
  %3880 = vst.msk [vmem:[%s3632 + $0x115] sm:$0x1] %vm76, %v3623
  %3881 = vst.msk [vmem:[%s3632 + $0x116] sm:$0x1] %vm76, %v3624
  %3882 = vst.msk [vmem:[%s3632 + $0x117] sm:$0x1] %vm76, %v3625
  %3883 = vst.msk [vmem:[%s3632 + $0x118] sm:$0x1] %vm76, %v3626
  %3884 = vst.msk [vmem:[%s3632 + $0x119] sm:$0x1] %vm76, %v3627
  %3885 = vst.msk [vmem:[%s3632 + $0x11a] sm:$0x1] %vm76, %v3628
  %3886 = vst.msk [vmem:[%s3632 + $0x11b] sm:$0x1] %vm76, %v3629
  %3887 = vst.msk [vmem:[%s3632 + $0x11c] sm:$0x1] %vm76, %v3630
  %3888 = vst.msk [vmem:[%s3632 + $0x11d] sm:$0x1] %vm76, %v3631
  %s3889 = scalar_lea.vmem %s1, 1655
  %3890 = vst.msk [vmem:[%s3889] sm:$0x1] %vm76, %v3288
  %3891 = vst.msk [vmem:[%s3889 + $0x12] sm:$0x1] %vm76, %v3306
  %3892 = vst.msk [vmem:[%s3889 + $0x24] sm:$0x1] %vm76, %v3307
  %3893 = vst.msk [vmem:[%s3889 + $0x36] sm:$0x1] %vm76, %v3308
  %3894 = vst.msk [vmem:[%s3889 + $0x48] sm:$0x1] %vm76, %v3309
  %3895 = vst.msk [vmem:[%s3889 + $0x5a] sm:$0x1] %vm76, %v3310
  %3896 = vst.msk [vmem:[%s3889 + $0x6c] sm:$0x1] %vm76, %v3311
  %3897 = vst.msk [vmem:[%s3889 + $0x7e] sm:$0x1] %vm76, %v3312
  %3898 = vst.msk [vmem:[%s3889 + $0x90] sm:$0x1] %vm76, %v3313
  %3899 = vst.msk [vmem:[%s3889 + $0xa2] sm:$0x1] %vm76, %v3314
  %3900 = vst.msk [vmem:[%s3889 + $0xb4] sm:$0x1] %vm76, %v3315
  %3901 = vst.msk [vmem:[%s3889 + $0xc6] sm:$0x1] %vm76, %v3316
  %3902 = vst.msk [vmem:[%s3889 + $0xd8] sm:$0x1] %vm76, %v3317
  %3903 = vst.msk [vmem:[%s3889 + $0xea] sm:$0x1] %vm76, %v3318
  %3904 = vst.msk [vmem:[%s3889 + $0xfc] sm:$0x1] %vm76, %v3319
  %3905 = vst.msk [vmem:[%s3889 + $0x10e] sm:$0x1] %vm76, %v3320
  %s3906 = scalar_lea.vmem %s1, 1926
  %3907 = vst.msk [vmem:[%s3906] sm:$0x1] %vm76, %v3290
  %3908 = vst.msk [vmem:[%s3906 + $0x1] sm:$0x1] %vm76, %v3337
  %3909 = vst.msk [vmem:[%s3906 + $0x2] sm:$0x1] %vm76, %v3336
  %3910 = vst.msk [vmem:[%s3906 + $0x3] sm:$0x1] %vm76, %v3335
  %3911 = vst.msk [vmem:[%s3906 + $0x4] sm:$0x1] %vm76, %v3334
  %3912 = vst.msk [vmem:[%s3906 + $0x5] sm:$0x1] %vm76, %v3333
  %3913 = vst.msk [vmem:[%s3906 + $0x6] sm:$0x1] %vm76, %v3332
  %3914 = vst.msk [vmem:[%s3906 + $0x7] sm:$0x1] %vm76, %v3331
  %3915 = vst.msk [vmem:[%s3906 + $0x8] sm:$0x1] %vm76, %v3330
  %3916 = vst.msk [vmem:[%s3906 + $0x9] sm:$0x1] %vm76, %v3329
  %3917 = vst.msk [vmem:[%s3906 + $0xa] sm:$0x1] %vm76, %v3328
  %3918 = vst.msk [vmem:[%s3906 + $0xb] sm:$0x1] %vm76, %v3327
  %3919 = vst.msk [vmem:[%s3906 + $0xc] sm:$0x1] %vm76, %v3326
  %3920 = vst.msk [vmem:[%s3906 + $0xd] sm:$0x1] %vm76, %v3325
  %3921 = vst.msk [vmem:[%s3906 + $0xe] sm:$0x1] %vm76, %v3324
  %3922 = vst.msk [vmem:[%s3906 + $0xf] sm:$0x1] %vm76, %v3323
  %3923 = vst.msk [vmem:[%s3906 + $0x10] sm:$0x1] %vm76, %v3322
  %3924 = vst.msk [vmem:[%s3906 + $0x11] sm:$0x1] %vm76, %v3339
  // Predicated region
  $region6: #{cube_sphere_padding_2d.1} parent=0 // pred_check
    _
  $region7: #{cube_sphere_padding_2d.1} parent=0 // pred_check_branch
    %3926 = sbr.rel (0) target = $region9
  $region8: #{cube_sphere_padding_2d.1} parent=0 // pred_region
    _
  $region9: #{cube_sphere_padding_2d.1} parent=0 // pred_fallthru
    _
  // Predicated region
  $region10: #{cube_sphere_padding_2d.1} parent=0 // pred_check
    _
  $region11: #{cube_sphere_padding_2d.1} parent=0 // pred_check_branch
    %3928 = sbr.rel (0) target = $region13
  $region12: #{cube_sphere_padding_2d.1} parent=0 // pred_region
    _
  $region13: #{cube_sphere_padding_2d.1} parent=0 // pred_fallthru
    _

</llo_original>
